<compile_context>
chip_gen: v7x
topology: tpu7x:2x2x1
jax: 0.10.0
libtpu: 0.0.40
codegen_flags: <defaults>
</compile_context>

<pallas_src>
import functools

import jax
import jax.numpy as jnp
from jax import lax
from jax.experimental import pallas as pl
from jax.experimental.pallas import tpu as pltpu


HP = 128     # padded news-vector / GRU-hidden width (lane tile)
SUB = 8      # f32 sublane tile (batch padding)


# ----------------------------- config ---------------------------------------
class Config:
    num_filters = 32               # F ; real news vector dim = 3*F = 96
    window_size = 3
    word_embedding_dim = 32        # D
    query_vector_dim = 16          # Q
    num_words_title = 8            # T
    num_clicked_news_a_user = 8    # L
    num_categories = 16
    num_users = 8
    num_words = 50                 # vocab size
    K = 2                          # 1 + K candidate news
    long_short_term_method = 'ini'
    masking_probability = 0.5      # dropout2d prob (inactive at eval)
    batch = 4


# --------------------------- fused kernel ------------------------------------
def _fused_lstur_kernel(xcat_ref, catsub_ref, convw_ref, convb_ref,
                        attw_ref, attb_ref, attq_ref,
                        h0_ref, len_ref, mask_ref,
                        wih_ref, whh_ref, bih_ref, bhh_ref, out_ref):
    """Title CNN+attention for all news, GRU user encoder, dot-product predictor."""
    n_all, hp = catsub_ref.shape           # (C+L)*Bp, 128
    nt = xcat_ref.shape[0]                 # n_all * T
    T = nt // n_all
    bp, L = mask_ref.shape                 # padded batch, history length
    cb = n_all - L * bp                    # number of candidate rows = C * bp
    C = cb // bp

    # ---- news title tower: im2col conv (single MXU matmul) + ReLU + additive attention
    h = jnp.dot(xcat_ref[...], convw_ref[...], preferred_element_type=jnp.float32)
    h = jnp.maximum(h + convb_ref[...], 0.0)                       # (NT, 128); title feats in lanes [64,96)
    att = jnp.tanh(jnp.dot(h, attw_ref[...], preferred_element_type=jnp.float32)
                   + attb_ref[...])                                # (NT, Q)
    scores = jnp.dot(att, attq_ref[...], preferred_element_type=jnp.float32)   # (NT, 1)
    scores = scores.reshape(n_all, T)
    scores = scores - jnp.max(scores, axis=-1, keepdims=True)
    e = jnp.exp(scores)
    alpha = e / jnp.sum(e, axis=-1, keepdims=True)                 # (N_all, T)
    hv = h.reshape(n_all, T, hp)
    title_vec = jnp.sum(hv * alpha[:, :, None], axis=1)            # (N_all, 128)

    # news vector = [category | subcategory | title | 0-pad]; lane blocks are disjoint -> plain add
    news_vec = catsub_ref[...] + title_vec                         # (N_all, 128)

    # ---- GRU user encoder ('ini': h0 = user embedding); unrolled, gates in 128-lane slabs
    wih = wih_ref[...]
    whh = whh_ref[...]
    bih = bih_ref[...]
    bhh = bhh_ref[...]
    lengths = len_ref[...]                                         # (Bp, 1) int32
    mask = mask_ref[...]                                           # (Bp, L) float32
    h_t = h0_ref[...]                                              # (Bp, 128)
    for t in range(L):                                             # static unroll (L small, fixed)
        x_t = news_vec[cb + t * bp:cb + (t + 1) * bp, :] * mask[:, t:t + 1]
        gi = jnp.dot(x_t, wih, preferred_element_type=jnp.float32) + bih
        gh = jnp.dot(h_t, whh, preferred_element_type=jnp.float32) + bhh
        r = jax.nn.sigmoid(gi[:, 0 * hp:1 * hp] + gh[:, 0 * hp:1 * hp])
        z = jax.nn.sigmoid(gi[:, 1 * hp:2 * hp] + gh[:, 1 * hp:2 * hp])
        n = jnp.tanh(gi[:, 2 * hp:3 * hp] + r * gh[:, 2 * hp:3 * hp])
        h_new = (1.0 - z) * n + z * h_t
        upd = (t < lengths).astype(jnp.float32)                    # packed-sequence gate
        h_t = upd * h_new + (1.0 - upd) * h_t

    # ---- dot-product click predictor; lane-dense (Bp, 128) output, score c in lane c
    lane = lax.broadcasted_iota(jnp.int32, (bp, hp), 1)
    out = jnp.zeros((bp, hp), jnp.float32)
    for c in range(C):
        s = jnp.sum(news_vec[c * bp:(c + 1) * bp, :] * h_t, axis=-1, keepdims=True)   # (Bp, 1)
        out = out + (lane == c).astype(jnp.float32) * s
    out_ref[...] = out


# ------------------------------ params ---------------------------------------
def init_params(cfg, key):
    """Natural (PyTorch-layout) parameters."""
    F = cfg.num_filters
    D = cfg.word_embedding_dim
    Q = cfg.query_vector_dim
    H = 3 * F
    ks = jax.random.split(key, 12)

    def nrm(k, shape, s=0.1):
        return (s * jax.random.normal(k, shape)).astype(jnp.float32)

    return {
        'word_emb': nrm(ks[0], (cfg.num_words, D)).at[0].set(0.0),        # padding_idx=0
        'cat_emb':  nrm(ks[1], (cfg.num_categories, F)).at[0].set(0.0),   # padding_idx=0
        'user_emb': nrm(ks[2], (cfg.num_users, H)).at[0].set(0.0),        # padding_idx=0
        'conv_w':   nrm(ks[3], (cfg.window_size, D, F)),                  # Conv2d(1,F,(3,D)) reshaped
        'conv_b':   nrm(ks[4], (1, F)),
        'att_w':    nrm(ks[5], (F, Q)),
        'att_b':    nrm(ks[6], (1, Q)),
        'att_q':    nrm(ks[7], (Q, 1)),
        'gru_wih':  nrm(ks[8], (H, 3 * H)),                               # weight_ih_l0.T (gates r,z,n)
        'gru_whh':  nrm(ks[9], (H, 3 * H)),                               # weight_hh_l0.T
        'gru_bih':  nrm(ks[10], (1, 3 * H)),
        'gru_bhh':  nrm(ks[11], (1, 3 * H)),
    }


def pack_params(cfg, p):
    """Pad/relayout parameters for the lane-aligned fused kernel (done once)."""
    F = cfg.num_filters
    D = cfg.word_embedding_dim
    Q = cfg.query_vector_dim
    H = 3 * F
    toff = 2 * F                       # title features live in lanes [2F, 3F) of the 128-wide news vec

    conv_w = jnp.zeros((cfg.window_size * D, HP), jnp.float32)
    conv_w = conv_w.at[:, toff:toff + F].set(p['conv_w'].reshape(cfg.window_size * D, F))
    conv_b = jnp.zeros((1, HP), jnp.float32).at[:, toff:toff + F].set(p['conv_b'])
    att_w = jnp.zeros((HP, Q), jnp.float32).at[toff:toff + F, :].set(p['att_w'])

    def pad_gru_w(w):                  # (H, 3H) -> (HP, 3*HP); gate g -> lanes [g*HP, g*HP+H)
        wp = jnp.zeros((HP, 3 * HP), jnp.float32)
        for g in range(3):
            wp = wp.at[:H, g * HP:g * HP + H].set(w[:, g * H:(g + 1) * H])
        return wp

    def pad_gru_b(b):                  # (1, 3H) -> (1, 3*HP)
        bp_ = jnp.zeros((1, 3 * HP), jnp.float32)
        for g in range(3):
            bp_ = bp_.at[:, g * HP:g * HP + H].set(b[:, g * H:(g + 1) * H])
        return bp_

    user_emb = jnp.zeros((cfg.num_users, HP), jnp.float32).at[:, :H].set(p['user_emb'])

    return {
        'word_emb': p['word_emb'],
        'cat_emb': p['cat_emb'],
        'user_emb': user_emb,
        'conv_w': conv_w, 'conv_b': conv_b,
        'att_w': att_w, 'att_b': p['att_b'], 'att_q': p['att_q'],
        'gru_wih': pad_gru_w(p['gru_wih']), 'gru_whh': pad_gru_w(p['gru_whh']),
        'gru_bih': pad_gru_b(p['gru_bih']), 'gru_bhh': pad_gru_b(p['gru_bhh']),
    }


# ------------------------------ forward ---------------------------------------
def lstur_forward(cfg, kp, user, clicked_news_length, candidate_news, clicked_news,
                  clicked_news_mask):
    F = cfg.num_filters
    D = cfg.word_embedding_dim
    T = cfg.num_words_title
    C, B = candidate_news['category'].shape
    L = clicked_news['category'].shape[0]
    Bp = ((B + SUB - 1) // SUB) * SUB
    padn = Bp - B

    def pad_batch(x, axis):
        if padn == 0:
            return x
        pads = [(0, 0)] * x.ndim
        pads[axis] = (0, padn)
        return jnp.pad(x, pads)

    user_p = pad_batch(user, 0)
    len_p = pad_batch(clicked_news_length, 0).astype(jnp.int32).reshape(Bp, 1)
    mask_p = pad_batch(clicked_news_mask.astype(jnp.float32), 0)              # (Bp, L)

    # flatten candidate + clicked news into one batch of (C+L)*Bp items (candidates first)
    cat_idx = jnp.concatenate([pad_batch(candidate_news['category'], 1).reshape(-1),
                               pad_batch(clicked_news['category'], 1).reshape(-1)])
    sub_idx = jnp.concatenate([pad_batch(candidate_news['subcategory'], 1).reshape(-1),
                               pad_batch(clicked_news['subcategory'], 1).reshape(-1)])
    title_idx = jnp.concatenate([pad_batch(candidate_news['title'], 1).reshape(-1, T),
                                 pad_batch(clicked_news['title'], 1).reshape(-1, T)])
    n_all = (C + L) * Bp

    # XLA prologue: embedding gathers + im2col (cheap, fused under jit); all compute is one kernel.
    cat_vec = kp['cat_emb'][cat_idx]                                          # (N_all, F)
    sub_vec = kp['cat_emb'][sub_idx]                                          # (N_all, F)
    catsub = jnp.concatenate(
        [cat_vec, sub_vec, jnp.zeros((n_all, HP - 2 * F), jnp.float32)], axis=-1)  # (N_all, 128)

    t_emb = kp['word_emb'][title_idx]                        # (N_all, T, D); word dropout = identity (eval)
    xp = jnp.pad(t_emb, ((0, 0), (1, 1), (0, 0)))            # 'same' padding for window=3
    xcat = jnp.concatenate([xp[:, 0:T], xp[:, 1:T + 1], xp[:, 2:T + 2]],
                           axis=-1).reshape(n_all * T, 3 * D)                 # im2col (NT, 3D)

    h0 = kp['user_emb'][user_p]                              # (Bp, 128); dropout2d = identity (eval)

    vmem_spec = pl.BlockSpec(memory_space=pltpu.MemorySpace.VMEM)
    out = pl.pallas_call(
        _fused_lstur_kernel,
        out_shape=jax.ShapeDtypeStruct((Bp, HP), jnp.float32),
        in_specs=[vmem_spec] * 14,
        out_specs=vmem_spec,
    )(xcat, catsub, kp['conv_w'], kp['conv_b'], kp['att_w'], kp['att_b'], kp['att_q'],
      h0, len_p, mask_p, kp['gru_wih'], kp['gru_whh'], kp['gru_bih'], kp['gru_bhh'])

    return out[:B, :C]                                       # (batch, 1+K)


# ------------------------------- main ----------------------------------------
if __name__ == "__main__":
    cfg = Config()
    key = jax.random.PRNGKey(0)
    kparam, kdata = jax.random.split(key)
    params = init_params(cfg, kparam)
    kparams = pack_params(cfg, params)

    B = cfg.batch
    C = 1 + cfg.K
    L = cfg.num_clicked_news_a_user
    T = cfg.num_words_title

    kk = jax.random.split(kdata, 8)
    user = jax.random.randint(kk[0], (B,), 0, cfg.num_users)
    clicked_news_length = jax.random.randint(kk[1], (B,), 1, L + 1)
    candidate_news = {
        'category':    jax.random.randint(kk[2], (C, B), 0, cfg.num_categories),
        'subcategory': jax.random.randint(kk[3], (C, B), 0, cfg.num_categories),
        'title':       jax.random.randint(kk[4], (C, B, T), 0, cfg.num_words),
    }
    clicked_news = {
        'category':    jax.random.randint(kk[5], (L, B), 0, cfg.num_categories),
        'subcategory': jax.random.randint(kk[6], (L, B), 0, cfg.num_categories),
        'title':       jax.random.randint(kk[7], (L, B, T), 0, cfg.num_words),
    }
    # clicked_news_mask (batch, L), consistent with clicked_news_length
    clicked_news_mask = (jnp.arange(L)[None, :] < clicked_news_length[:, None]).astype(jnp.float32)

    fwd = jax.jit(functools.partial(lstur_forward, cfg))
    click_prob = fwd(kparams, user, clicked_news_length, candidate_news, clicked_news,
                     clicked_news_mask)
    click_prob = jax.block_until_ready(click_prob)
    assert click_prob.shape == (B, C) and click_prob.dtype == jnp.float32
    print("KERNEL_OK")
</pallas_src>

<mosaic_0001>
module attributes {stable_mosaic.version = 11 : i64} {
  func.func @_fused_lstur_kernel(%arg0: memref<704x96xf32, #tpu.memory_space<vmem>>, %arg1: memref<88x128xf32, #tpu.memory_space<vmem>>, %arg2: memref<96x128xf32, #tpu.memory_space<vmem>>, %arg3: memref<1x128xf32, #tpu.memory_space<vmem>>, %arg4: memref<128x16xf32, #tpu.memory_space<vmem>>, %arg5: memref<1x16xf32, #tpu.memory_space<vmem>>, %arg6: memref<16x1xf32, #tpu.memory_space<vmem>>, %arg7: memref<8x128xf32, #tpu.memory_space<vmem>>, %arg8: memref<8x1xi32, #tpu.memory_space<vmem>>, %arg9: memref<8x8xf32, #tpu.memory_space<vmem>>, %arg10: memref<128x384xf32, #tpu.memory_space<vmem>>, %arg11: memref<128x384xf32, #tpu.memory_space<vmem>>, %arg12: memref<1x384xf32, #tpu.memory_space<vmem>>, %arg13: memref<1x384xf32, #tpu.memory_space<vmem>>, %arg14: memref<8x128xf32, #tpu.memory_space<vmem>>) attributes {dimension_semantics = [], scalar_prefetch = 0 : i64, scratch_operands = 0 : i64, tpu.core_type = #tpu.core_type<tc>} {
    %c0 = arith.constant 0 : index
    %c0_0 = arith.constant 0 : index
    %0 = vector.load %arg0[%c0, %c0_0] : memref<704x96xf32, #tpu.memory_space<vmem>>, vector<704x96xf32>
    %c0_1 = arith.constant 0 : index
    %c0_2 = arith.constant 0 : index
    %1 = vector.load %arg2[%c0_1, %c0_2] : memref<96x128xf32, #tpu.memory_space<vmem>>, vector<96x128xf32>
    %cst = arith.constant dense<0.000000e+00> : vector<704x128xf32>
    %2 = tpu.matmul %0, %1, %cst {dimension_numbers = #tpu.dot_dimension_numbers<[1], [0], [0], [1], [0, 0, 1, 1], [], []>} : vector<704x96xf32>, vector<96x128xf32>, vector<704x128xf32> -> vector<704x128xf32>
    %c0_3 = arith.constant 0 : index
    %c0_4 = arith.constant 0 : index
    %3 = vector.load %arg3[%c0_3, %c0_4] : memref<1x128xf32, #tpu.memory_space<vmem>>, vector<1x128xf32>
    %4 = vector.broadcast %3 : vector<1x128xf32> to vector<704x128xf32>
    %5 = arith.addf %2, %4 : vector<704x128xf32>
    %cst_5 = arith.constant 0.000000e+00 : f32
    %6 = vector.broadcast %cst_5 : f32 to vector<704x128xf32>
    %7 = arith.maximumf %5, %6 : vector<704x128xf32>
    %c0_6 = arith.constant 0 : index
    %c0_7 = arith.constant 0 : index
    %8 = vector.load %arg4[%c0_6, %c0_7] : memref<128x16xf32, #tpu.memory_space<vmem>>, vector<128x16xf32>
    %cst_8 = arith.constant dense<0.000000e+00> : vector<704x16xf32>
    %9 = tpu.matmul %7, %8, %cst_8 {dimension_numbers = #tpu.dot_dimension_numbers<[1], [0], [0], [1], [0, 0, 1, 1], [], []>} : vector<704x128xf32>, vector<128x16xf32>, vector<704x16xf32> -> vector<704x16xf32>
    %c0_9 = arith.constant 0 : index
    %c0_10 = arith.constant 0 : index
    %10 = vector.load %arg5[%c0_9, %c0_10] : memref<1x16xf32, #tpu.memory_space<vmem>>, vector<1x16xf32>
    %11 = vector.broadcast %10 : vector<1x16xf32> to vector<704x16xf32>
    %12 = arith.addf %9, %11 : vector<704x16xf32>
    %13 = math.tanh %12 : vector<704x16xf32>
    %c0_11 = arith.constant 0 : index
    %c0_12 = arith.constant 0 : index
    %14 = vector.load %arg6[%c0_11, %c0_12] : memref<16x1xf32, #tpu.memory_space<vmem>>, vector<16x1xf32>
    %cst_13 = arith.constant dense<0.000000e+00> : vector<704x1xf32>
    %15 = tpu.matmul %13, %14, %cst_13 {dimension_numbers = #tpu.dot_dimension_numbers<[1], [0], [0], [1], [0, 0, 1, 1], [], []>} : vector<704x16xf32>, vector<16x1xf32>, vector<704x1xf32> -> vector<704x1xf32>
    %16 = vector.shape_cast %15 : vector<704x1xf32> to vector<88x8xf32>
    %cst_14 = arith.constant dense<0xFF800000> : vector<88xf32>
    %17 = vector.multi_reduction <maximumf>, %16, %cst_14 [1] : vector<88x8xf32> to vector<88xf32>
    %18 = vector.shape_cast %17 : vector<88xf32> to vector<88x1xf32>
    %19 = vector.broadcast %18 : vector<88x1xf32> to vector<88x8xf32>
    %20 = arith.subf %16, %19 : vector<88x8xf32>
    %21 = math.exp %20 : vector<88x8xf32>
    %cst_15 = arith.constant dense<0.000000e+00> : vector<88xf32>
    %22 = vector.multi_reduction <add>, %21, %cst_15 [1] : vector<88x8xf32> to vector<88xf32>
    %23 = vector.shape_cast %22 : vector<88xf32> to vector<88x1xf32>
    %24 = vector.broadcast %23 : vector<88x1xf32> to vector<88x8xf32>
    %25 = arith.divf %21, %24 : vector<88x8xf32>
    %26 = vector.shape_cast %7 : vector<704x128xf32> to vector<88x8x128xf32>
    %27 = vector.shape_cast %25 : vector<88x8xf32> to vector<88x8x1xf32>
    %28 = vector.broadcast %27 : vector<88x8x1xf32> to vector<88x8x128xf32>
    %29 = arith.mulf %26, %28 : vector<88x8x128xf32>
    %cst_16 = arith.constant dense<0.000000e+00> : vector<88x128xf32>
    %30 = vector.multi_reduction <add>, %29, %cst_16 [1] : vector<88x8x128xf32> to vector<88x128xf32>
    %c0_17 = arith.constant 0 : index
    %c0_18 = arith.constant 0 : index
    %31 = vector.load %arg1[%c0_17, %c0_18] : memref<88x128xf32, #tpu.memory_space<vmem>>, vector<88x128xf32>
    %32 = arith.addf %31, %30 : vector<88x128xf32>
    %c0_19 = arith.constant 0 : index
    %c0_20 = arith.constant 0 : index
    %33 = vector.load %arg10[%c0_19, %c0_20] : memref<128x384xf32, #tpu.memory_space<vmem>>, vector<128x384xf32>
    %c0_21 = arith.constant 0 : index
    %c0_22 = arith.constant 0 : index
    %34 = vector.load %arg11[%c0_21, %c0_22] : memref<128x384xf32, #tpu.memory_space<vmem>>, vector<128x384xf32>
    %c0_23 = arith.constant 0 : index
    %c0_24 = arith.constant 0 : index
    %35 = vector.load %arg12[%c0_23, %c0_24] : memref<1x384xf32, #tpu.memory_space<vmem>>, vector<1x384xf32>
    %c0_25 = arith.constant 0 : index
    %c0_26 = arith.constant 0 : index
    %36 = vector.load %arg13[%c0_25, %c0_26] : memref<1x384xf32, #tpu.memory_space<vmem>>, vector<1x384xf32>
    %c0_27 = arith.constant 0 : index
    %c0_28 = arith.constant 0 : index
    %37 = vector.load %arg8[%c0_27, %c0_28] : memref<8x1xi32, #tpu.memory_space<vmem>>, vector<8x1xi32>
    %c0_29 = arith.constant 0 : index
    %c0_30 = arith.constant 0 : index
    %38 = vector.load %arg9[%c0_29, %c0_30] : memref<8x8xf32, #tpu.memory_space<vmem>>, vector<8x8xf32>
    %c0_31 = arith.constant 0 : index
    %c0_32 = arith.constant 0 : index
    %39 = vector.load %arg7[%c0_31, %c0_32] : memref<8x128xf32, #tpu.memory_space<vmem>>, vector<8x128xf32>
    %40 = vector.extract_strided_slice %32 {offsets = [24, 0], sizes = [8, 128], strides = [1, 1]} : vector<88x128xf32> to vector<8x128xf32>
    %41 = vector.extract_strided_slice %38 {offsets = [0, 0], sizes = [8, 1], strides = [1, 1]} : vector<8x8xf32> to vector<8x1xf32>
    %42 = vector.broadcast %41 : vector<8x1xf32> to vector<8x128xf32>
    %43 = arith.mulf %40, %42 : vector<8x128xf32>
    %cst_33 = arith.constant dense<0.000000e+00> : vector<8x384xf32>
    %44 = tpu.matmul %43, %33, %cst_33 {dimension_numbers = #tpu.dot_dimension_numbers<[1], [0], [0], [1], [0, 0, 1, 1], [], []>} : vector<8x128xf32>, vector<128x384xf32>, vector<8x384xf32> -> vector<8x384xf32>
    %45 = vector.broadcast %35 : vector<1x384xf32> to vector<8x384xf32>
    %46 = arith.addf %44, %45 : vector<8x384xf32>
    %cst_34 = arith.constant dense<0.000000e+00> : vector<8x384xf32>
    %47 = tpu.matmul %39, %34, %cst_34 {dimension_numbers = #tpu.dot_dimension_numbers<[1], [0], [0], [1], [0, 0, 1, 1], [], []>} : vector<8x128xf32>, vector<128x384xf32>, vector<8x384xf32> -> vector<8x384xf32>
    %48 = vector.broadcast %36 : vector<1x384xf32> to vector<8x384xf32>
    %49 = arith.addf %47, %48 : vector<8x384xf32>
    %50 = vector.extract_strided_slice %46 {offsets = [0, 0], sizes = [8, 128], strides = [1, 1]} : vector<8x384xf32> to vector<8x128xf32>
    %51 = vector.extract_strided_slice %49 {offsets = [0, 0], sizes = [8, 128], strides = [1, 1]} : vector<8x384xf32> to vector<8x128xf32>
    %52 = arith.addf %50, %51 : vector<8x128xf32>
    %53 = arith.negf %52 : vector<8x128xf32>
    %54 = math.exp %53 : vector<8x128xf32>
    %cst_35 = arith.constant 1.000000e+00 : f32
    %55 = vector.broadcast %cst_35 : f32 to vector<8x128xf32>
    %56 = arith.addf %55, %54 : vector<8x128xf32>
    %57 = arith.divf %55, %56 : vector<8x128xf32>
    %58 = vector.extract_strided_slice %46 {offsets = [0, 128], sizes = [8, 128], strides = [1, 1]} : vector<8x384xf32> to vector<8x128xf32>
    %59 = vector.extract_strided_slice %49 {offsets = [0, 128], sizes = [8, 128], strides = [1, 1]} : vector<8x384xf32> to vector<8x128xf32>
    %60 = arith.addf %58, %59 : vector<8x128xf32>
    %61 = arith.negf %60 : vector<8x128xf32>
    %62 = math.exp %61 : vector<8x128xf32>
    %cst_36 = arith.constant 1.000000e+00 : f32
    %63 = vector.broadcast %cst_36 : f32 to vector<8x128xf32>
    %64 = arith.addf %63, %62 : vector<8x128xf32>
    %65 = arith.divf %63, %64 : vector<8x128xf32>
    %66 = vector.extract_strided_slice %46 {offsets = [0, 256], sizes = [8, 128], strides = [1, 1]} : vector<8x384xf32> to vector<8x128xf32>
    %67 = vector.extract_strided_slice %49 {offsets = [0, 256], sizes = [8, 128], strides = [1, 1]} : vector<8x384xf32> to vector<8x128xf32>
    %68 = arith.mulf %57, %67 : vector<8x128xf32>
    %69 = arith.addf %66, %68 : vector<8x128xf32>
    %70 = math.tanh %69 : vector<8x128xf32>
    %cst_37 = arith.constant 1.000000e+00 : f32
    %71 = vector.broadcast %cst_37 : f32 to vector<8x128xf32>
    %72 = arith.subf %71, %65 : vector<8x128xf32>
    %73 = arith.mulf %72, %70 : vector<8x128xf32>
    %74 = arith.mulf %65, %39 : vector<8x128xf32>
    %75 = arith.addf %73, %74 : vector<8x128xf32>
    %c0_i32 = arith.constant 0 : i32
    %76 = vector.broadcast %c0_i32 : i32 to vector<8x1xi32>
    %77 = arith.cmpi sgt, %37, %76 : vector<8x1xi32>
    %78 = arith.extui %77 : vector<8x1xi1> to vector<8x1xi32>
    %79 = arith.sitofp %78 : vector<8x1xi32> to vector<8x1xf32>
    %80 = vector.broadcast %79 : vector<8x1xf32> to vector<8x128xf32>
    %81 = arith.mulf %80, %75 : vector<8x128xf32>
    %cst_38 = arith.constant 1.000000e+00 : f32
    %82 = vector.broadcast %cst_38 : f32 to vector<8x1xf32>
    %83 = arith.subf %82, %79 : vector<8x1xf32>
    %84 = vector.broadcast %83 : vector<8x1xf32> to vector<8x128xf32>
    %85 = arith.mulf %84, %39 : vector<8x128xf32>
    %86 = arith.addf %81, %85 : vector<8x128xf32>
    %87 = vector.extract_strided_slice %32 {offsets = [32, 0], sizes = [8, 128], strides = [1, 1]} : vector<88x128xf32> to vector<8x128xf32>
    %88 = vector.extract_strided_slice %38 {offsets = [0, 1], sizes = [8, 1], strides = [1, 1]} : vector<8x8xf32> to vector<8x1xf32>
    %89 = vector.broadcast %88 : vector<8x1xf32> to vector<8x128xf32>
    %90 = arith.mulf %87, %89 : vector<8x128xf32>
    %cst_39 = arith.constant dense<0.000000e+00> : vector<8x384xf32>
    %91 = tpu.matmul %90, %33, %cst_39 {dimension_numbers = #tpu.dot_dimension_numbers<[1], [0], [0], [1], [0, 0, 1, 1], [], []>} : vector<8x128xf32>, vector<128x384xf32>, vector<8x384xf32> -> vector<8x384xf32>
    %92 = vector.broadcast %35 : vector<1x384xf32> to vector<8x384xf32>
    %93 = arith.addf %91, %92 : vector<8x384xf32>
    %cst_40 = arith.constant dense<0.000000e+00> : vector<8x384xf32>
    %94 = tpu.matmul %86, %34, %cst_40 {dimension_numbers = #tpu.dot_dimension_numbers<[1], [0], [0], [1], [0, 0, 1, 1], [], []>} : vector<8x128xf32>, vector<128x384xf32>, vector<8x384xf32> -> vector<8x384xf32>
    %95 = vector.broadcast %36 : vector<1x384xf32> to vector<8x384xf32>
    %96 = arith.addf %94, %95 : vector<8x384xf32>
    %97 = vector.extract_strided_slice %93 {offsets = [0, 0], sizes = [8, 128], strides = [1, 1]} : vector<8x384xf32> to vector<8x128xf32>
    %98 = vector.extract_strided_slice %96 {offsets = [0, 0], sizes = [8, 128], strides = [1, 1]} : vector<8x384xf32> to vector<8x128xf32>
    %99 = arith.addf %97, %98 : vector<8x128xf32>
    %100 = arith.negf %99 : vector<8x128xf32>
    %101 = math.exp %100 : vector<8x128xf32>
    %cst_41 = arith.constant 1.000000e+00 : f32
    %102 = vector.broadcast %cst_41 : f32 to vector<8x128xf32>
    %103 = arith.addf %102, %101 : vector<8x128xf32>
    %104 = arith.divf %102, %103 : vector<8x128xf32>
    %105 = vector.extract_strided_slice %93 {offsets = [0, 128], sizes = [8, 128], strides = [1, 1]} : vector<8x384xf32> to vector<8x128xf32>
    %106 = vector.extract_strided_slice %96 {offsets = [0, 128], sizes = [8, 128], strides = [1, 1]} : vector<8x384xf32> to vector<8x128xf32>
    %107 = arith.addf %105, %106 : vector<8x128xf32>
    %108 = arith.negf %107 : vector<8x128xf32>
    %109 = math.exp %108 : vector<8x128xf32>
    %cst_42 = arith.constant 1.000000e+00 : f32
    %110 = vector.broadcast %cst_42 : f32 to vector<8x128xf32>
    %111 = arith.addf %110, %109 : vector<8x128xf32>
    %112 = arith.divf %110, %111 : vector<8x128xf32>
    %113 = vector.extract_strided_slice %93 {offsets = [0, 256], sizes = [8, 128], strides = [1, 1]} : vector<8x384xf32> to vector<8x128xf32>
    %114 = vector.extract_strided_slice %96 {offsets = [0, 256], sizes = [8, 128], strides = [1, 1]} : vector<8x384xf32> to vector<8x128xf32>
    %115 = arith.mulf %104, %114 : vector<8x128xf32>
    %116 = arith.addf %113, %115 : vector<8x128xf32>
    %117 = math.tanh %116 : vector<8x128xf32>
    %cst_43 = arith.constant 1.000000e+00 : f32
    %118 = vector.broadcast %cst_43 : f32 to vector<8x128xf32>
    %119 = arith.subf %118, %112 : vector<8x128xf32>
    %120 = arith.mulf %119, %117 : vector<8x128xf32>
    %121 = arith.mulf %112, %86 : vector<8x128xf32>
    %122 = arith.addf %120, %121 : vector<8x128xf32>
    %c1_i32 = arith.constant 1 : i32
    %123 = vector.broadcast %c1_i32 : i32 to vector<8x1xi32>
    %124 = arith.cmpi sgt, %37, %123 : vector<8x1xi32>
    %125 = arith.extui %124 : vector<8x1xi1> to vector<8x1xi32>
    %126 = arith.sitofp %125 : vector<8x1xi32> to vector<8x1xf32>
    %127 = vector.broadcast %126 : vector<8x1xf32> to vector<8x128xf32>
    %128 = arith.mulf %127, %122 : vector<8x128xf32>
    %cst_44 = arith.constant 1.000000e+00 : f32
    %129 = vector.broadcast %cst_44 : f32 to vector<8x1xf32>
    %130 = arith.subf %129, %126 : vector<8x1xf32>
    %131 = vector.broadcast %130 : vector<8x1xf32> to vector<8x128xf32>
    %132 = arith.mulf %131, %86 : vector<8x128xf32>
    %133 = arith.addf %128, %132 : vector<8x128xf32>
    %134 = vector.extract_strided_slice %32 {offsets = [40, 0], sizes = [8, 128], strides = [1, 1]} : vector<88x128xf32> to vector<8x128xf32>
    %135 = vector.extract_strided_slice %38 {offsets = [0, 2], sizes = [8, 1], strides = [1, 1]} : vector<8x8xf32> to vector<8x1xf32>
    %136 = vector.broadcast %135 : vector<8x1xf32> to vector<8x128xf32>
    %137 = arith.mulf %134, %136 : vector<8x128xf32>
    %cst_45 = arith.constant dense<0.000000e+00> : vector<8x384xf32>
    %138 = tpu.matmul %137, %33, %cst_45 {dimension_numbers = #tpu.dot_dimension_numbers<[1], [0], [0], [1], [0, 0, 1, 1], [], []>} : vector<8x128xf32>, vector<128x384xf32>, vector<8x384xf32> -> vector<8x384xf32>
    %139 = vector.broadcast %35 : vector<1x384xf32> to vector<8x384xf32>
    %140 = arith.addf %138, %139 : vector<8x384xf32>
    %cst_46 = arith.constant dense<0.000000e+00> : vector<8x384xf32>
    %141 = tpu.matmul %133, %34, %cst_46 {dimension_numbers = #tpu.dot_dimension_numbers<[1], [0], [0], [1], [0, 0, 1, 1], [], []>} : vector<8x128xf32>, vector<128x384xf32>, vector<8x384xf32> -> vector<8x384xf32>
    %142 = vector.broadcast %36 : vector<1x384xf32> to vector<8x384xf32>
    %143 = arith.addf %141, %142 : vector<8x384xf32>
    %144 = vector.extract_strided_slice %140 {offsets = [0, 0], sizes = [8, 128], strides = [1, 1]} : vector<8x384xf32> to vector<8x128xf32>
    %145 = vector.extract_strided_slice %143 {offsets = [0, 0], sizes = [8, 128], strides = [1, 1]} : vector<8x384xf32> to vector<8x128xf32>
    %146 = arith.addf %144, %145 : vector<8x128xf32>
    %147 = arith.negf %146 : vector<8x128xf32>
    %148 = math.exp %147 : vector<8x128xf32>
    %cst_47 = arith.constant 1.000000e+00 : f32
    %149 = vector.broadcast %cst_47 : f32 to vector<8x128xf32>
    %150 = arith.addf %149, %148 : vector<8x128xf32>
    %151 = arith.divf %149, %150 : vector<8x128xf32>
    %152 = vector.extract_strided_slice %140 {offsets = [0, 128], sizes = [8, 128], strides = [1, 1]} : vector<8x384xf32> to vector<8x128xf32>
    %153 = vector.extract_strided_slice %143 {offsets = [0, 128], sizes = [8, 128], strides = [1, 1]} : vector<8x384xf32> to vector<8x128xf32>
    %154 = arith.addf %152, %153 : vector<8x128xf32>
    %155 = arith.negf %154 : vector<8x128xf32>
    %156 = math.exp %155 : vector<8x128xf32>
    %cst_48 = arith.constant 1.000000e+00 : f32
    %157 = vector.broadcast %cst_48 : f32 to vector<8x128xf32>
    %158 = arith.addf %157, %156 : vector<8x128xf32>
    %159 = arith.divf %157, %158 : vector<8x128xf32>
    %160 = vector.extract_strided_slice %140 {offsets = [0, 256], sizes = [8, 128], strides = [1, 1]} : vector<8x384xf32> to vector<8x128xf32>
    %161 = vector.extract_strided_slice %143 {offsets = [0, 256], sizes = [8, 128], strides = [1, 1]} : vector<8x384xf32> to vector<8x128xf32>
    %162 = arith.mulf %151, %161 : vector<8x128xf32>
    %163 = arith.addf %160, %162 : vector<8x128xf32>
    %164 = math.tanh %163 : vector<8x128xf32>
    %cst_49 = arith.constant 1.000000e+00 : f32
    %165 = vector.broadcast %cst_49 : f32 to vector<8x128xf32>
    %166 = arith.subf %165, %159 : vector<8x128xf32>
    %167 = arith.mulf %166, %164 : vector<8x128xf32>
    %168 = arith.mulf %159, %133 : vector<8x128xf32>
    %169 = arith.addf %167, %168 : vector<8x128xf32>
    %c2_i32 = arith.constant 2 : i32
    %170 = vector.broadcast %c2_i32 : i32 to vector<8x1xi32>
    %171 = arith.cmpi sgt, %37, %170 : vector<8x1xi32>
    %172 = arith.extui %171 : vector<8x1xi1> to vector<8x1xi32>
    %173 = arith.sitofp %172 : vector<8x1xi32> to vector<8x1xf32>
    %174 = vector.broadcast %173 : vector<8x1xf32> to vector<8x128xf32>
    %175 = arith.mulf %174, %169 : vector<8x128xf32>
    %cst_50 = arith.constant 1.000000e+00 : f32
    %176 = vector.broadcast %cst_50 : f32 to vector<8x1xf32>
    %177 = arith.subf %176, %173 : vector<8x1xf32>
    %178 = vector.broadcast %177 : vector<8x1xf32> to vector<8x128xf32>
    %179 = arith.mulf %178, %133 : vector<8x128xf32>
    %180 = arith.addf %175, %179 : vector<8x128xf32>
    %181 = vector.extract_strided_slice %32 {offsets = [48, 0], sizes = [8, 128], strides = [1, 1]} : vector<88x128xf32> to vector<8x128xf32>
    %182 = vector.extract_strided_slice %38 {offsets = [0, 3], sizes = [8, 1], strides = [1, 1]} : vector<8x8xf32> to vector<8x1xf32>
    %183 = vector.broadcast %182 : vector<8x1xf32> to vector<8x128xf32>
    %184 = arith.mulf %181, %183 : vector<8x128xf32>
    %cst_51 = arith.constant dense<0.000000e+00> : vector<8x384xf32>
    %185 = tpu.matmul %184, %33, %cst_51 {dimension_numbers = #tpu.dot_dimension_numbers<[1], [0], [0], [1], [0, 0, 1, 1], [], []>} : vector<8x128xf32>, vector<128x384xf32>, vector<8x384xf32> -> vector<8x384xf32>
    %186 = vector.broadcast %35 : vector<1x384xf32> to vector<8x384xf32>
    %187 = arith.addf %185, %186 : vector<8x384xf32>
    %cst_52 = arith.constant dense<0.000000e+00> : vector<8x384xf32>
    %188 = tpu.matmul %180, %34, %cst_52 {dimension_numbers = #tpu.dot_dimension_numbers<[1], [0], [0], [1], [0, 0, 1, 1], [], []>} : vector<8x128xf32>, vector<128x384xf32>, vector<8x384xf32> -> vector<8x384xf32>
    %189 = vector.broadcast %36 : vector<1x384xf32> to vector<8x384xf32>
    %190 = arith.addf %188, %189 : vector<8x384xf32>
    %191 = vector.extract_strided_slice %187 {offsets = [0, 0], sizes = [8, 128], strides = [1, 1]} : vector<8x384xf32> to vector<8x128xf32>
    %192 = vector.extract_strided_slice %190 {offsets = [0, 0], sizes = [8, 128], strides = [1, 1]} : vector<8x384xf32> to vector<8x128xf32>
    %193 = arith.addf %191, %192 : vector<8x128xf32>
    %194 = arith.negf %193 : vector<8x128xf32>
    %195 = math.exp %194 : vector<8x128xf32>
    %cst_53 = arith.constant 1.000000e+00 : f32
    %196 = vector.broadcast %cst_53 : f32 to vector<8x128xf32>
    %197 = arith.addf %196, %195 : vector<8x128xf32>
    %198 = arith.divf %196, %197 : vector<8x128xf32>
    %199 = vector.extract_strided_slice %187 {offsets = [0, 128], sizes = [8, 128], strides = [1, 1]} : vector<8x384xf32> to vector<8x128xf32>
    %200 = vector.extract_strided_slice %190 {offsets = [0, 128], sizes = [8, 128], strides = [1, 1]} : vector<8x384xf32> to vector<8x128xf32>
    %201 = arith.addf %199, %200 : vector<8x128xf32>
    %202 = arith.negf %201 : vector<8x128xf32>
    %203 = math.exp %202 : vector<8x128xf32>
    %cst_54 = arith.constant 1.000000e+00 : f32
    %204 = vector.broadcast %cst_54 : f32 to vector<8x128xf32>
    %205 = arith.addf %204, %203 : vector<8x128xf32>
    %206 = arith.divf %204, %205 : vector<8x128xf32>
    %207 = vector.extract_strided_slice %187 {offsets = [0, 256], sizes = [8, 128], strides = [1, 1]} : vector<8x384xf32> to vector<8x128xf32>
    %208 = vector.extract_strided_slice %190 {offsets = [0, 256], sizes = [8, 128], strides = [1, 1]} : vector<8x384xf32> to vector<8x128xf32>
    %209 = arith.mulf %198, %208 : vector<8x128xf32>
    %210 = arith.addf %207, %209 : vector<8x128xf32>
    %211 = math.tanh %210 : vector<8x128xf32>
    %cst_55 = arith.constant 1.000000e+00 : f32
    %212 = vector.broadcast %cst_55 : f32 to vector<8x128xf32>
    %213 = arith.subf %212, %206 : vector<8x128xf32>
    %214 = arith.mulf %213, %211 : vector<8x128xf32>
    %215 = arith.mulf %206, %180 : vector<8x128xf32>
    %216 = arith.addf %214, %215 : vector<8x128xf32>
    %c3_i32 = arith.constant 3 : i32
    %217 = vector.broadcast %c3_i32 : i32 to vector<8x1xi32>
    %218 = arith.cmpi sgt, %37, %217 : vector<8x1xi32>
    %219 = arith.extui %218 : vector<8x1xi1> to vector<8x1xi32>
    %220 = arith.sitofp %219 : vector<8x1xi32> to vector<8x1xf32>
    %221 = vector.broadcast %220 : vector<8x1xf32> to vector<8x128xf32>
    %222 = arith.mulf %221, %216 : vector<8x128xf32>
    %cst_56 = arith.constant 1.000000e+00 : f32
    %223 = vector.broadcast %cst_56 : f32 to vector<8x1xf32>
    %224 = arith.subf %223, %220 : vector<8x1xf32>
    %225 = vector.broadcast %224 : vector<8x1xf32> to vector<8x128xf32>
    %226 = arith.mulf %225, %180 : vector<8x128xf32>
    %227 = arith.addf %222, %226 : vector<8x128xf32>
    %228 = vector.extract_strided_slice %32 {offsets = [56, 0], sizes = [8, 128], strides = [1, 1]} : vector<88x128xf32> to vector<8x128xf32>
    %229 = vector.extract_strided_slice %38 {offsets = [0, 4], sizes = [8, 1], strides = [1, 1]} : vector<8x8xf32> to vector<8x1xf32>
    %230 = vector.broadcast %229 : vector<8x1xf32> to vector<8x128xf32>
    %231 = arith.mulf %228, %230 : vector<8x128xf32>
    %cst_57 = arith.constant dense<0.000000e+00> : vector<8x384xf32>
    %232 = tpu.matmul %231, %33, %cst_57 {dimension_numbers = #tpu.dot_dimension_numbers<[1], [0], [0], [1], [0, 0, 1, 1], [], []>} : vector<8x128xf32>, vector<128x384xf32>, vector<8x384xf32> -> vector<8x384xf32>
    %233 = vector.broadcast %35 : vector<1x384xf32> to vector<8x384xf32>
    %234 = arith.addf %232, %233 : vector<8x384xf32>
    %cst_58 = arith.constant dense<0.000000e+00> : vector<8x384xf32>
    %235 = tpu.matmul %227, %34, %cst_58 {dimension_numbers = #tpu.dot_dimension_numbers<[1], [0], [0], [1], [0, 0, 1, 1], [], []>} : vector<8x128xf32>, vector<128x384xf32>, vector<8x384xf32> -> vector<8x384xf32>
    %236 = vector.broadcast %36 : vector<1x384xf32> to vector<8x384xf32>
    %237 = arith.addf %235, %236 : vector<8x384xf32>
    %238 = vector.extract_strided_slice %234 {offsets = [0, 0], sizes = [8, 128], strides = [1, 1]} : vector<8x384xf32> to vector<8x128xf32>
    %239 = vector.extract_strided_slice %237 {offsets = [0, 0], sizes = [8, 128], strides = [1, 1]} : vector<8x384xf32> to vector<8x128xf32>
    %240 = arith.addf %238, %239 : vector<8x128xf32>
    %241 = arith.negf %240 : vector<8x128xf32>
    %242 = math.exp %241 : vector<8x128xf32>
    %cst_59 = arith.constant 1.000000e+00 : f32
    %243 = vector.broadcast %cst_59 : f32 to vector<8x128xf32>
    %244 = arith.addf %243, %242 : vector<8x128xf32>
    %245 = arith.divf %243, %244 : vector<8x128xf32>
    %246 = vector.extract_strided_slice %234 {offsets = [0, 128], sizes = [8, 128], strides = [1, 1]} : vector<8x384xf32> to vector<8x128xf32>
    %247 = vector.extract_strided_slice %237 {offsets = [0, 128], sizes = [8, 128], strides = [1, 1]} : vector<8x384xf32> to vector<8x128xf32>
    %248 = arith.addf %246, %247 : vector<8x128xf32>
    %249 = arith.negf %248 : vector<8x128xf32>
    %250 = math.exp %249 : vector<8x128xf32>
    %cst_60 = arith.constant 1.000000e+00 : f32
    %251 = vector.broadcast %cst_60 : f32 to vector<8x128xf32>
    %252 = arith.addf %251, %250 : vector<8x128xf32>
    %253 = arith.divf %251, %252 : vector<8x128xf32>
    %254 = vector.extract_strided_slice %234 {offsets = [0, 256], sizes = [8, 128], strides = [1, 1]} : vector<8x384xf32> to vector<8x128xf32>
    %255 = vector.extract_strided_slice %237 {offsets = [0, 256], sizes = [8, 128], strides = [1, 1]} : vector<8x384xf32> to vector<8x128xf32>
    %256 = arith.mulf %245, %255 : vector<8x128xf32>
    %257 = arith.addf %254, %256 : vector<8x128xf32>
    %258 = math.tanh %257 : vector<8x128xf32>
    %cst_61 = arith.constant 1.000000e+00 : f32
    %259 = vector.broadcast %cst_61 : f32 to vector<8x128xf32>
    %260 = arith.subf %259, %253 : vector<8x128xf32>
    %261 = arith.mulf %260, %258 : vector<8x128xf32>
    %262 = arith.mulf %253, %227 : vector<8x128xf32>
    %263 = arith.addf %261, %262 : vector<8x128xf32>
    %c4_i32 = arith.constant 4 : i32
    %264 = vector.broadcast %c4_i32 : i32 to vector<8x1xi32>
    %265 = arith.cmpi sgt, %37, %264 : vector<8x1xi32>
    %266 = arith.extui %265 : vector<8x1xi1> to vector<8x1xi32>
    %267 = arith.sitofp %266 : vector<8x1xi32> to vector<8x1xf32>
    %268 = vector.broadcast %267 : vector<8x1xf32> to vector<8x128xf32>
    %269 = arith.mulf %268, %263 : vector<8x128xf32>
    %cst_62 = arith.constant 1.000000e+00 : f32
    %270 = vector.broadcast %cst_62 : f32 to vector<8x1xf32>
    %271 = arith.subf %270, %267 : vector<8x1xf32>
    %272 = vector.broadcast %271 : vector<8x1xf32> to vector<8x128xf32>
    %273 = arith.mulf %272, %227 : vector<8x128xf32>
    %274 = arith.addf %269, %273 : vector<8x128xf32>
    %275 = vector.extract_strided_slice %32 {offsets = [64, 0], sizes = [8, 128], strides = [1, 1]} : vector<88x128xf32> to vector<8x128xf32>
    %276 = vector.extract_strided_slice %38 {offsets = [0, 5], sizes = [8, 1], strides = [1, 1]} : vector<8x8xf32> to vector<8x1xf32>
    %277 = vector.broadcast %276 : vector<8x1xf32> to vector<8x128xf32>
    %278 = arith.mulf %275, %277 : vector<8x128xf32>
    %cst_63 = arith.constant dense<0.000000e+00> : vector<8x384xf32>
    %279 = tpu.matmul %278, %33, %cst_63 {dimension_numbers = #tpu.dot_dimension_numbers<[1], [0], [0], [1], [0, 0, 1, 1], [], []>} : vector<8x128xf32>, vector<128x384xf32>, vector<8x384xf32> -> vector<8x384xf32>
    %280 = vector.broadcast %35 : vector<1x384xf32> to vector<8x384xf32>
    %281 = arith.addf %279, %280 : vector<8x384xf32>
    %cst_64 = arith.constant dense<0.000000e+00> : vector<8x384xf32>
    %282 = tpu.matmul %274, %34, %cst_64 {dimension_numbers = #tpu.dot_dimension_numbers<[1], [0], [0], [1], [0, 0, 1, 1], [], []>} : vector<8x128xf32>, vector<128x384xf32>, vector<8x384xf32> -> vector<8x384xf32>
    %283 = vector.broadcast %36 : vector<1x384xf32> to vector<8x384xf32>
    %284 = arith.addf %282, %283 : vector<8x384xf32>
    %285 = vector.extract_strided_slice %281 {offsets = [0, 0], sizes = [8, 128], strides = [1, 1]} : vector<8x384xf32> to vector<8x128xf32>
    %286 = vector.extract_strided_slice %284 {offsets = [0, 0], sizes = [8, 128], strides = [1, 1]} : vector<8x384xf32> to vector<8x128xf32>
    %287 = arith.addf %285, %286 : vector<8x128xf32>
    %288 = arith.negf %287 : vector<8x128xf32>
    %289 = math.exp %288 : vector<8x128xf32>
    %cst_65 = arith.constant 1.000000e+00 : f32
    %290 = vector.broadcast %cst_65 : f32 to vector<8x128xf32>
    %291 = arith.addf %290, %289 : vector<8x128xf32>
    %292 = arith.divf %290, %291 : vector<8x128xf32>
    %293 = vector.extract_strided_slice %281 {offsets = [0, 128], sizes = [8, 128], strides = [1, 1]} : vector<8x384xf32> to vector<8x128xf32>
    %294 = vector.extract_strided_slice %284 {offsets = [0, 128], sizes = [8, 128], strides = [1, 1]} : vector<8x384xf32> to vector<8x128xf32>
    %295 = arith.addf %293, %294 : vector<8x128xf32>
    %296 = arith.negf %295 : vector<8x128xf32>
    %297 = math.exp %296 : vector<8x128xf32>
    %cst_66 = arith.constant 1.000000e+00 : f32
    %298 = vector.broadcast %cst_66 : f32 to vector<8x128xf32>
    %299 = arith.addf %298, %297 : vector<8x128xf32>
    %300 = arith.divf %298, %299 : vector<8x128xf32>
    %301 = vector.extract_strided_slice %281 {offsets = [0, 256], sizes = [8, 128], strides = [1, 1]} : vector<8x384xf32> to vector<8x128xf32>
    %302 = vector.extract_strided_slice %284 {offsets = [0, 256], sizes = [8, 128], strides = [1, 1]} : vector<8x384xf32> to vector<8x128xf32>
    %303 = arith.mulf %292, %302 : vector<8x128xf32>
    %304 = arith.addf %301, %303 : vector<8x128xf32>
    %305 = math.tanh %304 : vector<8x128xf32>
    %cst_67 = arith.constant 1.000000e+00 : f32
    %306 = vector.broadcast %cst_67 : f32 to vector<8x128xf32>
    %307 = arith.subf %306, %300 : vector<8x128xf32>
    %308 = arith.mulf %307, %305 : vector<8x128xf32>
    %309 = arith.mulf %300, %274 : vector<8x128xf32>
    %310 = arith.addf %308, %309 : vector<8x128xf32>
    %c5_i32 = arith.constant 5 : i32
    %311 = vector.broadcast %c5_i32 : i32 to vector<8x1xi32>
    %312 = arith.cmpi sgt, %37, %311 : vector<8x1xi32>
    %313 = arith.extui %312 : vector<8x1xi1> to vector<8x1xi32>
    %314 = arith.sitofp %313 : vector<8x1xi32> to vector<8x1xf32>
    %315 = vector.broadcast %314 : vector<8x1xf32> to vector<8x128xf32>
    %316 = arith.mulf %315, %310 : vector<8x128xf32>
    %cst_68 = arith.constant 1.000000e+00 : f32
    %317 = vector.broadcast %cst_68 : f32 to vector<8x1xf32>
    %318 = arith.subf %317, %314 : vector<8x1xf32>
    %319 = vector.broadcast %318 : vector<8x1xf32> to vector<8x128xf32>
    %320 = arith.mulf %319, %274 : vector<8x128xf32>
    %321 = arith.addf %316, %320 : vector<8x128xf32>
    %322 = vector.extract_strided_slice %32 {offsets = [72, 0], sizes = [8, 128], strides = [1, 1]} : vector<88x128xf32> to vector<8x128xf32>
    %323 = vector.extract_strided_slice %38 {offsets = [0, 6], sizes = [8, 1], strides = [1, 1]} : vector<8x8xf32> to vector<8x1xf32>
    %324 = vector.broadcast %323 : vector<8x1xf32> to vector<8x128xf32>
    %325 = arith.mulf %322, %324 : vector<8x128xf32>
    %cst_69 = arith.constant dense<0.000000e+00> : vector<8x384xf32>
    %326 = tpu.matmul %325, %33, %cst_69 {dimension_numbers = #tpu.dot_dimension_numbers<[1], [0], [0], [1], [0, 0, 1, 1], [], []>} : vector<8x128xf32>, vector<128x384xf32>, vector<8x384xf32> -> vector<8x384xf32>
    %327 = vector.broadcast %35 : vector<1x384xf32> to vector<8x384xf32>
    %328 = arith.addf %326, %327 : vector<8x384xf32>
    %cst_70 = arith.constant dense<0.000000e+00> : vector<8x384xf32>
    %329 = tpu.matmul %321, %34, %cst_70 {dimension_numbers = #tpu.dot_dimension_numbers<[1], [0], [0], [1], [0, 0, 1, 1], [], []>} : vector<8x128xf32>, vector<128x384xf32>, vector<8x384xf32> -> vector<8x384xf32>
    %330 = vector.broadcast %36 : vector<1x384xf32> to vector<8x384xf32>
    %331 = arith.addf %329, %330 : vector<8x384xf32>
    %332 = vector.extract_strided_slice %328 {offsets = [0, 0], sizes = [8, 128], strides = [1, 1]} : vector<8x384xf32> to vector<8x128xf32>
    %333 = vector.extract_strided_slice %331 {offsets = [0, 0], sizes = [8, 128], strides = [1, 1]} : vector<8x384xf32> to vector<8x128xf32>
    %334 = arith.addf %332, %333 : vector<8x128xf32>
    %335 = arith.negf %334 : vector<8x128xf32>
    %336 = math.exp %335 : vector<8x128xf32>
    %cst_71 = arith.constant 1.000000e+00 : f32
    %337 = vector.broadcast %cst_71 : f32 to vector<8x128xf32>
    %338 = arith.addf %337, %336 : vector<8x128xf32>
    %339 = arith.divf %337, %338 : vector<8x128xf32>
    %340 = vector.extract_strided_slice %328 {offsets = [0, 128], sizes = [8, 128], strides = [1, 1]} : vector<8x384xf32> to vector<8x128xf32>
    %341 = vector.extract_strided_slice %331 {offsets = [0, 128], sizes = [8, 128], strides = [1, 1]} : vector<8x384xf32> to vector<8x128xf32>
    %342 = arith.addf %340, %341 : vector<8x128xf32>
    %343 = arith.negf %342 : vector<8x128xf32>
    %344 = math.exp %343 : vector<8x128xf32>
    %cst_72 = arith.constant 1.000000e+00 : f32
    %345 = vector.broadcast %cst_72 : f32 to vector<8x128xf32>
    %346 = arith.addf %345, %344 : vector<8x128xf32>
    %347 = arith.divf %345, %346 : vector<8x128xf32>
    %348 = vector.extract_strided_slice %328 {offsets = [0, 256], sizes = [8, 128], strides = [1, 1]} : vector<8x384xf32> to vector<8x128xf32>
    %349 = vector.extract_strided_slice %331 {offsets = [0, 256], sizes = [8, 128], strides = [1, 1]} : vector<8x384xf32> to vector<8x128xf32>
    %350 = arith.mulf %339, %349 : vector<8x128xf32>
    %351 = arith.addf %348, %350 : vector<8x128xf32>
    %352 = math.tanh %351 : vector<8x128xf32>
    %cst_73 = arith.constant 1.000000e+00 : f32
    %353 = vector.broadcast %cst_73 : f32 to vector<8x128xf32>
    %354 = arith.subf %353, %347 : vector<8x128xf32>
    %355 = arith.mulf %354, %352 : vector<8x128xf32>
    %356 = arith.mulf %347, %321 : vector<8x128xf32>
    %357 = arith.addf %355, %356 : vector<8x128xf32>
    %c6_i32 = arith.constant 6 : i32
    %358 = vector.broadcast %c6_i32 : i32 to vector<8x1xi32>
    %359 = arith.cmpi sgt, %37, %358 : vector<8x1xi32>
    %360 = arith.extui %359 : vector<8x1xi1> to vector<8x1xi32>
    %361 = arith.sitofp %360 : vector<8x1xi32> to vector<8x1xf32>
    %362 = vector.broadcast %361 : vector<8x1xf32> to vector<8x128xf32>
    %363 = arith.mulf %362, %357 : vector<8x128xf32>
    %cst_74 = arith.constant 1.000000e+00 : f32
    %364 = vector.broadcast %cst_74 : f32 to vector<8x1xf32>
    %365 = arith.subf %364, %361 : vector<8x1xf32>
    %366 = vector.broadcast %365 : vector<8x1xf32> to vector<8x128xf32>
    %367 = arith.mulf %366, %321 : vector<8x128xf32>
    %368 = arith.addf %363, %367 : vector<8x128xf32>
    %369 = vector.extract_strided_slice %32 {offsets = [80, 0], sizes = [8, 128], strides = [1, 1]} : vector<88x128xf32> to vector<8x128xf32>
    %370 = vector.extract_strided_slice %38 {offsets = [0, 7], sizes = [8, 1], strides = [1, 1]} : vector<8x8xf32> to vector<8x1xf32>
    %371 = vector.broadcast %370 : vector<8x1xf32> to vector<8x128xf32>
    %372 = arith.mulf %369, %371 : vector<8x128xf32>
    %cst_75 = arith.constant dense<0.000000e+00> : vector<8x384xf32>
    %373 = tpu.matmul %372, %33, %cst_75 {dimension_numbers = #tpu.dot_dimension_numbers<[1], [0], [0], [1], [0, 0, 1, 1], [], []>} : vector<8x128xf32>, vector<128x384xf32>, vector<8x384xf32> -> vector<8x384xf32>
    %374 = vector.broadcast %35 : vector<1x384xf32> to vector<8x384xf32>
    %375 = arith.addf %373, %374 : vector<8x384xf32>
    %cst_76 = arith.constant dense<0.000000e+00> : vector<8x384xf32>
    %376 = tpu.matmul %368, %34, %cst_76 {dimension_numbers = #tpu.dot_dimension_numbers<[1], [0], [0], [1], [0, 0, 1, 1], [], []>} : vector<8x128xf32>, vector<128x384xf32>, vector<8x384xf32> -> vector<8x384xf32>
    %377 = vector.broadcast %36 : vector<1x384xf32> to vector<8x384xf32>
    %378 = arith.addf %376, %377 : vector<8x384xf32>
    %379 = vector.extract_strided_slice %375 {offsets = [0, 0], sizes = [8, 128], strides = [1, 1]} : vector<8x384xf32> to vector<8x128xf32>
    %380 = vector.extract_strided_slice %378 {offsets = [0, 0], sizes = [8, 128], strides = [1, 1]} : vector<8x384xf32> to vector<8x128xf32>
    %381 = arith.addf %379, %380 : vector<8x128xf32>
    %382 = arith.negf %381 : vector<8x128xf32>
    %383 = math.exp %382 : vector<8x128xf32>
    %cst_77 = arith.constant 1.000000e+00 : f32
    %384 = vector.broadcast %cst_77 : f32 to vector<8x128xf32>
    %385 = arith.addf %384, %383 : vector<8x128xf32>
    %386 = arith.divf %384, %385 : vector<8x128xf32>
    %387 = vector.extract_strided_slice %375 {offsets = [0, 128], sizes = [8, 128], strides = [1, 1]} : vector<8x384xf32> to vector<8x128xf32>
    %388 = vector.extract_strided_slice %378 {offsets = [0, 128], sizes = [8, 128], strides = [1, 1]} : vector<8x384xf32> to vector<8x128xf32>
    %389 = arith.addf %387, %388 : vector<8x128xf32>
    %390 = arith.negf %389 : vector<8x128xf32>
    %391 = math.exp %390 : vector<8x128xf32>
    %cst_78 = arith.constant 1.000000e+00 : f32
    %392 = vector.broadcast %cst_78 : f32 to vector<8x128xf32>
    %393 = arith.addf %392, %391 : vector<8x128xf32>
    %394 = arith.divf %392, %393 : vector<8x128xf32>
    %395 = vector.extract_strided_slice %375 {offsets = [0, 256], sizes = [8, 128], strides = [1, 1]} : vector<8x384xf32> to vector<8x128xf32>
    %396 = vector.extract_strided_slice %378 {offsets = [0, 256], sizes = [8, 128], strides = [1, 1]} : vector<8x384xf32> to vector<8x128xf32>
    %397 = arith.mulf %386, %396 : vector<8x128xf32>
    %398 = arith.addf %395, %397 : vector<8x128xf32>
    %399 = math.tanh %398 : vector<8x128xf32>
    %cst_79 = arith.constant 1.000000e+00 : f32
    %400 = vector.broadcast %cst_79 : f32 to vector<8x128xf32>
    %401 = arith.subf %400, %394 : vector<8x128xf32>
    %402 = arith.mulf %401, %399 : vector<8x128xf32>
    %403 = arith.mulf %394, %368 : vector<8x128xf32>
    %404 = arith.addf %402, %403 : vector<8x128xf32>
    %c7_i32 = arith.constant 7 : i32
    %405 = vector.broadcast %c7_i32 : i32 to vector<8x1xi32>
    %406 = arith.cmpi sgt, %37, %405 : vector<8x1xi32>
    %407 = arith.extui %406 : vector<8x1xi1> to vector<8x1xi32>
    %408 = arith.sitofp %407 : vector<8x1xi32> to vector<8x1xf32>
    %409 = vector.broadcast %408 : vector<8x1xf32> to vector<8x128xf32>
    %410 = arith.mulf %409, %404 : vector<8x128xf32>
    %cst_80 = arith.constant 1.000000e+00 : f32
    %411 = vector.broadcast %cst_80 : f32 to vector<8x1xf32>
    %412 = arith.subf %411, %408 : vector<8x1xf32>
    %413 = vector.broadcast %412 : vector<8x1xf32> to vector<8x128xf32>
    %414 = arith.mulf %413, %368 : vector<8x128xf32>
    %415 = arith.addf %410, %414 : vector<8x128xf32>
    %416 = tpu.iota {dimensions = array<i32: 1>} : vector<8x128xi32>
    %cst_81 = arith.constant 0.000000e+00 : f32
    %417 = vector.broadcast %cst_81 : f32 to vector<8x128xf32>
    %418 = vector.extract_strided_slice %32 {offsets = [0, 0], sizes = [8, 128], strides = [1, 1]} : vector<88x128xf32> to vector<8x128xf32>
    %419 = arith.mulf %418, %415 : vector<8x128xf32>
    %cst_82 = arith.constant dense<0.000000e+00> : vector<8xf32>
    %420 = vector.multi_reduction <add>, %419, %cst_82 [1] : vector<8x128xf32> to vector<8xf32>
    %421 = vector.shape_cast %420 : vector<8xf32> to vector<8x1xf32>
    %c0_i32_83 = arith.constant 0 : i32
    %422 = vector.broadcast %c0_i32_83 : i32 to vector<8x128xi32>
    %423 = arith.cmpi eq, %416, %422 : vector<8x128xi32>
    %424 = arith.extui %423 : vector<8x128xi1> to vector<8x128xi32>
    %425 = arith.sitofp %424 : vector<8x128xi32> to vector<8x128xf32>
    %426 = vector.broadcast %421 : vector<8x1xf32> to vector<8x128xf32>
    %427 = arith.mulf %425, %426 : vector<8x128xf32>
    %428 = arith.addf %417, %427 : vector<8x128xf32>
    %429 = vector.extract_strided_slice %32 {offsets = [8, 0], sizes = [8, 128], strides = [1, 1]} : vector<88x128xf32> to vector<8x128xf32>
    %430 = arith.mulf %429, %415 : vector<8x128xf32>
    %cst_84 = arith.constant dense<0.000000e+00> : vector<8xf32>
    %431 = vector.multi_reduction <add>, %430, %cst_84 [1] : vector<8x128xf32> to vector<8xf32>
    %432 = vector.shape_cast %431 : vector<8xf32> to vector<8x1xf32>
    %c1_i32_85 = arith.constant 1 : i32
    %433 = vector.broadcast %c1_i32_85 : i32 to vector<8x128xi32>
    %434 = arith.cmpi eq, %416, %433 : vector<8x128xi32>
    %435 = arith.extui %434 : vector<8x128xi1> to vector<8x128xi32>
    %436 = arith.sitofp %435 : vector<8x128xi32> to vector<8x128xf32>
    %437 = vector.broadcast %432 : vector<8x1xf32> to vector<8x128xf32>
    %438 = arith.mulf %436, %437 : vector<8x128xf32>
    %439 = arith.addf %428, %438 : vector<8x128xf32>
    %440 = vector.extract_strided_slice %32 {offsets = [16, 0], sizes = [8, 128], strides = [1, 1]} : vector<88x128xf32> to vector<8x128xf32>
    %441 = arith.mulf %440, %415 : vector<8x128xf32>
    %cst_86 = arith.constant dense<0.000000e+00> : vector<8xf32>
    %442 = vector.multi_reduction <add>, %441, %cst_86 [1] : vector<8x128xf32> to vector<8xf32>
    %443 = vector.shape_cast %442 : vector<8xf32> to vector<8x1xf32>
    %c2_i32_87 = arith.constant 2 : i32
    %444 = vector.broadcast %c2_i32_87 : i32 to vector<8x128xi32>
    %445 = arith.cmpi eq, %416, %444 : vector<8x128xi32>
    %446 = arith.extui %445 : vector<8x128xi1> to vector<8x128xi32>
    %447 = arith.sitofp %446 : vector<8x128xi32> to vector<8x128xf32>
    %448 = vector.broadcast %443 : vector<8x1xf32> to vector<8x128xf32>
    %449 = arith.mulf %447, %448 : vector<8x128xf32>
    %450 = arith.addf %439, %449 : vector<8x128xf32>
    %c0_88 = arith.constant 0 : index
    %c0_89 = arith.constant 0 : index
    %451 = vector.load %arg14[%c0_88, %c0_89] : memref<8x128xf32, #tpu.memory_space<vmem>>, vector<8x128xf32>
    tpu.vector_store %arg14[%c0_88, %c0_89], %450 {strides = array<i32>} : memref<8x128xf32, #tpu.memory_space<vmem>>, vector<8x128xf32>,
    return
  }
}

</mosaic_0001>

<llo_original>
// kernel: lstur_forward.1
$region0: #{lstur_forward.1}
  #allocation0 [shape = 'u32[]', space=smem, size = 0x4, offset = 0x4, fixed_abs, tag = 'smem constant byte address 0x4 - core index']
  #allocation1 [shape = 'u32[144,128]{1,0:T(1,128)}', space=vmem, size = 0x12000, scoped, tag = 'internal scratch']
  %s0 = inlined_call_operand.vmem [shape: f32[704,96], index: 0, kind: input, shape index: {}]
  %s1 = inlined_call_operand.vmem [shape: f32[88,128], index: 1, kind: input, shape index: {}]
  %s2 = inlined_call_operand.vmem [shape: f32[96,128], index: 2, kind: input, shape index: {}]
  %s3 = inlined_call_operand.vmem [shape: f32[1,128], index: 3, kind: input, shape index: {}]
  %s4 = inlined_call_operand.vmem [shape: f32[128,16], index: 4, kind: input, shape index: {}]
  %s5 = inlined_call_operand.vmem [shape: f32[1,16], index: 5, kind: input, shape index: {}]
  %s6 = inlined_call_operand.vmem [shape: f32[16,1], index: 6, kind: input, shape index: {}]
  %s7 = inlined_call_operand.vmem [shape: f32[8,128], index: 7, kind: input, shape index: {}]
  %s8 = inlined_call_operand.vmem [shape: s32[8,1], index: 8, kind: input, shape index: {}]
  %s9 = inlined_call_operand.vmem [shape: f32[8,8], index: 9, kind: input, shape index: {}]
  %s10 = inlined_call_operand.vmem [shape: f32[128,384], index: 10, kind: input, shape index: {}]
  %s11 = inlined_call_operand.vmem [shape: f32[128,384], index: 11, kind: input, shape index: {}]
  %s12 = inlined_call_operand.vmem [shape: f32[1,384], index: 12, kind: input, shape index: {}]
  %s13 = inlined_call_operand.vmem [shape: f32[1,384], index: 13, kind: input, shape index: {}]
  %s14 = inlined_call_operand.vmem [shape: f32[8,128], index: 14, kind: output, shape index: {}]
  %s15 = sld [smem:[#allocation0]]
  $region66: #{lstur_forward.1} parent=0
    _
  %s17 = ssub.s32 1, %s15
  %s18 = scalar_select 0, %s17, %s15
  // Predicated region
  $region2: #{lstur_forward.1} parent=0 // pred_check
    _
  $region3: #{lstur_forward.1} parent=0 // pred_check_branch
    %20 = sbr.rel (0) target = $region5
  $region4: #{lstur_forward.1} parent=0 // pred_region
    _
  $region5: #{lstur_forward.1} parent=0 // pred_fallthru
    _
  // Predicated region
  $region6: #{lstur_forward.1} parent=0 // pred_check
    _
  $region7: #{lstur_forward.1} parent=0 // pred_check_branch
    %22 = sbr.rel (0) target = $region9
  $region8: #{lstur_forward.1} parent=0 // pred_region
    _
  $region9: #{lstur_forward.1} parent=0 // pred_fallthru
    _
  // Predicated region
  $region10: #{lstur_forward.1} parent=0 // pred_check
    _
  $region11: #{lstur_forward.1} parent=0 // pred_check_branch
    %24 = sbr.rel (0) target = $region13
  $region12: #{lstur_forward.1} parent=0 // pred_region
    _
  $region13: #{lstur_forward.1} parent=0 // pred_fallthru
    _
  // Predicated region
  $region14: #{lstur_forward.1} parent=0 // pred_check
    _
  $region15: #{lstur_forward.1} parent=0 // pred_check_branch
    %26 = sbr.rel (0) target = $region17
  $region16: #{lstur_forward.1} parent=0 // pred_region
    _
  $region17: #{lstur_forward.1} parent=0 // pred_fallthru
    _
  // Predicated region
  $region18: #{lstur_forward.1} parent=0 // pred_check
    _
  $region19: #{lstur_forward.1} parent=0 // pred_check_branch
    %28 = sbr.rel (0) target = $region21
  $region20: #{lstur_forward.1} parent=0 // pred_region
    _
  $region21: #{lstur_forward.1} parent=0 // pred_fallthru
    _
  // Predicated region
  $region22: #{lstur_forward.1} parent=0 // pred_check
    _
  $region23: #{lstur_forward.1} parent=0 // pred_check_branch
    %30 = sbr.rel (0) target = $region25
  $region24: #{lstur_forward.1} parent=0 // pred_region
    _
  $region25: #{lstur_forward.1} parent=0 // pred_fallthru
    _
  // Predicated region
  $region26: #{lstur_forward.1} parent=0 // pred_check
    _
  $region27: #{lstur_forward.1} parent=0 // pred_check_branch
    %32 = sbr.rel (0) target = $region29
  $region28: #{lstur_forward.1} parent=0 // pred_region
    _
  $region29: #{lstur_forward.1} parent=0 // pred_fallthru
    _
  // Predicated region
  $region30: #{lstur_forward.1} parent=0 // pred_check
    _
  $region31: #{lstur_forward.1} parent=0 // pred_check_branch
    %34 = sbr.rel (0) target = $region33
  $region32: #{lstur_forward.1} parent=0 // pred_region
    _
  $region33: #{lstur_forward.1} parent=0 // pred_fallthru
    _
  // Predicated region
  $region34: #{lstur_forward.1} parent=0 // pred_check
    _
  $region35: #{lstur_forward.1} parent=0 // pred_check_branch
    %36 = sbr.rel (0) target = $region37
  $region36: #{lstur_forward.1} parent=0 // pred_region
    _
  $region37: #{lstur_forward.1} parent=0 // pred_fallthru
    _
  // Predicated region
  $region38: #{lstur_forward.1} parent=0 // pred_check
    _
  $region39: #{lstur_forward.1} parent=0 // pred_check_branch
    %38 = sbr.rel (0) target = $region41
  $region40: #{lstur_forward.1} parent=0 // pred_region
    _
  $region41: #{lstur_forward.1} parent=0 // pred_fallthru
    _
  // Predicated region
  $region42: #{lstur_forward.1} parent=0 // pred_check
    _
  $region43: #{lstur_forward.1} parent=0 // pred_check_branch
    %40 = sbr.rel (0) target = $region45
  $region44: #{lstur_forward.1} parent=0 // pred_region
    _
  $region45: #{lstur_forward.1} parent=0 // pred_fallthru
    _
  // Predicated region
  $region46: #{lstur_forward.1} parent=0 // pred_check
    _
  $region47: #{lstur_forward.1} parent=0 // pred_check_branch
    %42 = sbr.rel (0) target = $region49
  $region48: #{lstur_forward.1} parent=0 // pred_region
    _
  $region49: #{lstur_forward.1} parent=0 // pred_fallthru
    _
  // Predicated region
  $region50: #{lstur_forward.1} parent=0 // pred_check
    _
  $region51: #{lstur_forward.1} parent=0 // pred_check_branch
    %44 = sbr.rel (0) target = $region53
  $region52: #{lstur_forward.1} parent=0 // pred_region
    _
  $region53: #{lstur_forward.1} parent=0 // pred_fallthru
    _
  // Predicated region
  $region54: #{lstur_forward.1} parent=0 // pred_check
    _
  $region55: #{lstur_forward.1} parent=0 // pred_check_branch
    %46 = sbr.rel (0) target = $region57
  $region56: #{lstur_forward.1} parent=0 // pred_region
    _
  $region57: #{lstur_forward.1} parent=0 // pred_fallthru
    _
  %v47 = vld [vmem:[%s0] sm:$0xff]
  %v48 = vld [vmem:[%s0 + $0x8] sm:$0xff]
  %v49 = vld [vmem:[%s0 + $0x10] sm:$0xff]
  %v50 = vld [vmem:[%s0 + $0x18] sm:$0xff]
  %v51 = vld [vmem:[%s0 + $0x20] sm:$0xff]
  %v52 = vld [vmem:[%s0 + $0x28] sm:$0xff]
  %v53 = vld [vmem:[%s0 + $0x30] sm:$0xff]
  %v54 = vld [vmem:[%s0 + $0x38] sm:$0xff]
  %v55 = vld [vmem:[%s0 + $0x40] sm:$0xff]
  %v56 = vld [vmem:[%s0 + $0x48] sm:$0xff]
  %v57 = vld [vmem:[%s0 + $0x50] sm:$0xff]
  %v58 = vld [vmem:[%s0 + $0x58] sm:$0xff]
  %v59 = vld [vmem:[%s0 + $0x60] sm:$0xff]
  %v60 = vld [vmem:[%s0 + $0x68] sm:$0xff]
  %v61 = vld [vmem:[%s0 + $0x70] sm:$0xff]
  %v62 = vld [vmem:[%s0 + $0x78] sm:$0xff]
  %v63 = vld [vmem:[%s0 + $0x80] sm:$0xff]
  %v64 = vld [vmem:[%s0 + $0x88] sm:$0xff]
  %v65 = vld [vmem:[%s0 + $0x90] sm:$0xff]
  %v66 = vld [vmem:[%s0 + $0x98] sm:$0xff]
  %v67 = vld [vmem:[%s0 + $0xa0] sm:$0xff]
  %v68 = vld [vmem:[%s0 + $0xa8] sm:$0xff]
  %v69 = vld [vmem:[%s0 + $0xb0] sm:$0xff]
  %v70 = vld [vmem:[%s0 + $0xb8] sm:$0xff]
  %v71 = vld [vmem:[%s0 + $0xc0] sm:$0xff]
  %v72 = vld [vmem:[%s0 + $0xc8] sm:$0xff]
  %v73 = vld [vmem:[%s0 + $0xd0] sm:$0xff]
  %v74 = vld [vmem:[%s0 + $0xd8] sm:$0xff]
  %v75 = vld [vmem:[%s0 + $0xe0] sm:$0xff]
  %v76 = vld [vmem:[%s0 + $0xe8] sm:$0xff]
  %v77 = vld [vmem:[%s0 + $0xf0] sm:$0xff]
  %v78 = vld [vmem:[%s0 + $0xf8] sm:$0xff]
  %v79 = vld [vmem:[%s0 + $0x100] sm:$0xff]
  %v80 = vld [vmem:[%s0 + $0x108] sm:$0xff]
  %v81 = vld [vmem:[%s0 + $0x110] sm:$0xff]
  %v82 = vld [vmem:[%s0 + $0x118] sm:$0xff]
  %v83 = vld [vmem:[%s0 + $0x120] sm:$0xff]
  %v84 = vld [vmem:[%s0 + $0x128] sm:$0xff]
  %v85 = vld [vmem:[%s0 + $0x130] sm:$0xff]
  %v86 = vld [vmem:[%s0 + $0x138] sm:$0xff]
  %v87 = vld [vmem:[%s0 + $0x140] sm:$0xff]
  %v88 = vld [vmem:[%s0 + $0x148] sm:$0xff]
  %v89 = vld [vmem:[%s0 + $0x150] sm:$0xff]
  %v90 = vld [vmem:[%s0 + $0x158] sm:$0xff]
  %v91 = vld [vmem:[%s0 + $0x160] sm:$0xff]
  %v92 = vld [vmem:[%s0 + $0x168] sm:$0xff]
  %v93 = vld [vmem:[%s0 + $0x170] sm:$0xff]
  %v94 = vld [vmem:[%s0 + $0x178] sm:$0xff]
  %v95 = vld [vmem:[%s0 + $0x180] sm:$0xff]
  %v96 = vld [vmem:[%s0 + $0x188] sm:$0xff]
  %v97 = vld [vmem:[%s0 + $0x190] sm:$0xff]
  %v98 = vld [vmem:[%s0 + $0x198] sm:$0xff]
  %v99 = vld [vmem:[%s0 + $0x1a0] sm:$0xff]
  %v100 = vld [vmem:[%s0 + $0x1a8] sm:$0xff]
  %v101 = vld [vmem:[%s0 + $0x1b0] sm:$0xff]
  %v102 = vld [vmem:[%s0 + $0x1b8] sm:$0xff]
  %v103 = vld [vmem:[%s0 + $0x1c0] sm:$0xff]
  %v104 = vld [vmem:[%s0 + $0x1c8] sm:$0xff]
  %v105 = vld [vmem:[%s0 + $0x1d0] sm:$0xff]
  %v106 = vld [vmem:[%s0 + $0x1d8] sm:$0xff]
  %v107 = vld [vmem:[%s0 + $0x1e0] sm:$0xff]
  %v108 = vld [vmem:[%s0 + $0x1e8] sm:$0xff]
  %v109 = vld [vmem:[%s0 + $0x1f0] sm:$0xff]
  %v110 = vld [vmem:[%s0 + $0x1f8] sm:$0xff]
  %v111 = vld [vmem:[%s0 + $0x200] sm:$0xff]
  %v112 = vld [vmem:[%s0 + $0x208] sm:$0xff]
  %v113 = vld [vmem:[%s0 + $0x210] sm:$0xff]
  %v114 = vld [vmem:[%s0 + $0x218] sm:$0xff]
  %v115 = vld [vmem:[%s0 + $0x220] sm:$0xff]
  %v116 = vld [vmem:[%s0 + $0x228] sm:$0xff]
  %v117 = vld [vmem:[%s0 + $0x230] sm:$0xff]
  %v118 = vld [vmem:[%s0 + $0x238] sm:$0xff]
  %v119 = vld [vmem:[%s0 + $0x240] sm:$0xff]
  %v120 = vld [vmem:[%s0 + $0x248] sm:$0xff]
  %v121 = vld [vmem:[%s0 + $0x250] sm:$0xff]
  %v122 = vld [vmem:[%s0 + $0x258] sm:$0xff]
  %v123 = vld [vmem:[%s0 + $0x260] sm:$0xff]
  %v124 = vld [vmem:[%s0 + $0x268] sm:$0xff]
  %v125 = vld [vmem:[%s0 + $0x270] sm:$0xff]
  %v126 = vld [vmem:[%s0 + $0x278] sm:$0xff]
  %v127 = vld [vmem:[%s0 + $0x280] sm:$0xff]
  %v128 = vld [vmem:[%s0 + $0x288] sm:$0xff]
  %v129 = vld [vmem:[%s0 + $0x290] sm:$0xff]
  %v130 = vld [vmem:[%s0 + $0x298] sm:$0xff]
  %v131 = vld [vmem:[%s0 + $0x2a0] sm:$0xff]
  %v132 = vld [vmem:[%s0 + $0x2a8] sm:$0xff]
  %v133 = vld [vmem:[%s0 + $0x2b0] sm:$0xff]
  %v134 = vld [vmem:[%s0 + $0x2b8] sm:$0xff]
  %v135 = vld [vmem:[%s2] sm:$0xff]
  %v136 = vld [vmem:[%s2 + $0x8] sm:$0xff]
  %v137 = vld [vmem:[%s2 + $0x10] sm:$0xff]
  %v138 = vld [vmem:[%s2 + $0x18] sm:$0xff]
  %v139 = vld [vmem:[%s2 + $0x20] sm:$0xff]
  %v140 = vld [vmem:[%s2 + $0x28] sm:$0xff]
  %v141 = vld [vmem:[%s2 + $0x30] sm:$0xff]
  %v142 = vld [vmem:[%s2 + $0x38] sm:$0xff]
  %v143 = vld [vmem:[%s2 + $0x40] sm:$0xff]
  %v144 = vld [vmem:[%s2 + $0x48] sm:$0xff]
  %v145 = vld [vmem:[%s2 + $0x50] sm:$0xff]
  %v146 = vld [vmem:[%s2 + $0x58] sm:$0xff]
  %v147 = vld [vmem:[%s3] sm:$0x1]
  %v149 = vlaneseq
  %v150 = vshrl.u32 %v149, 7
  %v151 = vsub.s32 0, %v150
  %v152 = vrot.slane %v147, %v151
  %vm154 = vcmask 785408
  %v156 = vsel %vm154, %v47, 0
  %v159 = vsel %vm154, %v48, 0
  %v162 = vsel %vm154, %v49, 0
  %v165 = vsel %vm154, %v50, 0
  %v168 = vsel %vm154, %v51, 0
  %v171 = vsel %vm154, %v52, 0
  %v174 = vsel %vm154, %v53, 0
  %v177 = vsel %vm154, %v54, 0
  %v180 = vsel %vm154, %v55, 0
  %v183 = vsel %vm154, %v56, 0
  %v186 = vsel %vm154, %v57, 0
  %v189 = vsel %vm154, %v58, 0
  %v192 = vsel %vm154, %v59, 0
  %v195 = vsel %vm154, %v60, 0
  %v198 = vsel %vm154, %v61, 0
  %v201 = vsel %vm154, %v62, 0
  %v204 = vsel %vm154, %v63, 0
  %v207 = vsel %vm154, %v64, 0
  %v210 = vsel %vm154, %v65, 0
  %v213 = vsel %vm154, %v66, 0
  %v216 = vsel %vm154, %v67, 0
  %v219 = vsel %vm154, %v68, 0
  %v222 = vsel %vm154, %v69, 0
  %v225 = vsel %vm154, %v70, 0
  %v228 = vsel %vm154, %v71, 0
  %v231 = vsel %vm154, %v72, 0
  %v234 = vsel %vm154, %v73, 0
  %v237 = vsel %vm154, %v74, 0
  %v240 = vsel %vm154, %v75, 0
  %v243 = vsel %vm154, %v76, 0
  %v246 = vsel %vm154, %v77, 0
  %v249 = vsel %vm154, %v78, 0
  %v252 = vsel %vm154, %v79, 0
  %v255 = vsel %vm154, %v80, 0
  %v258 = vsel %vm154, %v81, 0
  %v261 = vsel %vm154, %v82, 0
  %v264 = vsel %vm154, %v83, 0
  %v267 = vsel %vm154, %v84, 0
  %v270 = vsel %vm154, %v85, 0
  %v273 = vsel %vm154, %v86, 0
  %v276 = vsel %vm154, %v87, 0
  %v279 = vsel %vm154, %v88, 0
  %v282 = vsel %vm154, %v89, 0
  %v285 = vsel %vm154, %v90, 0
  %v288 = vsel %vm154, %v91, 0
  %v291 = vsel %vm154, %v92, 0
  %v294 = vsel %vm154, %v93, 0
  %v297 = vsel %vm154, %v94, 0
  %v300 = vsel %vm154, %v95, 0
  %v303 = vsel %vm154, %v96, 0
  %v306 = vsel %vm154, %v97, 0
  %v309 = vsel %vm154, %v98, 0
  %v312 = vsel %vm154, %v99, 0
  %v315 = vsel %vm154, %v100, 0
  %v318 = vsel %vm154, %v101, 0
  %v321 = vsel %vm154, %v102, 0
  %v324 = vsel %vm154, %v103, 0
  %v327 = vsel %vm154, %v104, 0
  %v330 = vsel %vm154, %v105, 0
  %v333 = vsel %vm154, %v106, 0
  %v336 = vsel %vm154, %v107, 0
  %v339 = vsel %vm154, %v108, 0
  %v342 = vsel %vm154, %v109, 0
  %v345 = vsel %vm154, %v110, 0
  %v348 = vsel %vm154, %v111, 0
  %v351 = vsel %vm154, %v112, 0
  %v354 = vsel %vm154, %v113, 0
  %v357 = vsel %vm154, %v114, 0
  %v360 = vsel %vm154, %v115, 0
  %v363 = vsel %vm154, %v116, 0
  %v366 = vsel %vm154, %v117, 0
  %v369 = vsel %vm154, %v118, 0
  %v372 = vsel %vm154, %v119, 0
  %v375 = vsel %vm154, %v120, 0
  %v378 = vsel %vm154, %v121, 0
  %v381 = vsel %vm154, %v122, 0
  %v384 = vsel %vm154, %v123, 0
  %v387 = vsel %vm154, %v124, 0
  %v390 = vsel %vm154, %v125, 0
  %v393 = vsel %vm154, %v126, 0
  %v396 = vsel %vm154, %v127, 0
  %v399 = vsel %vm154, %v128, 0
  %v402 = vsel %vm154, %v129, 0
  %v405 = vsel %vm154, %v130, 0
  %v408 = vsel %vm154, %v131, 0
  %v411 = vsel %vm154, %v132, 0
  %v414 = vsel %vm154, %v133, 0
  %v417 = vsel %vm154, %v134, 0
  %419 = vmatprep.subr.mxu0 0.0
  %420 = vmatpush1.msra.mxu0 %v135
  %421 = vmatprep.subr.mxu0 0.0
  %422 = vmatpush1.msra.mxu0 %v136
  %423 = vmatprep.subr.mxu0 0.0
  %424 = vmatpush1.msra.mxu0 %v137
  %425 = vmatprep.subr.mxu0 0.0
  %426 = vmatpush1.msra.mxu0 %v138
  %427 = vmatprep.subr.mxu0 0.0
  %428 = vmatpush1.msra.mxu0 %v139
  %429 = vmatprep.subr.mxu0 0.0
  %430 = vmatpush1.msra.mxu0 %v140
  %431 = vmatprep.subr.mxu0 0.0
  %432 = vmatpush1.msra.mxu0 %v141
  %433 = vmatprep.subr.mxu0 0.0
  %434 = vmatpush1.msra.mxu0 %v142
  %435 = vmatprep.subr.mxu0 0.0
  %436 = vmatpush1.msra.mxu0 %v143
  %437 = vmatprep.subr.mxu0 0.0
  %438 = vmatpush1.msra.mxu0 %v144
  %439 = vmatprep.subr.mxu0 0.0
  %440 = vmatpush1.msra.mxu0 %v145
  %441 = vmatprep.subr.mxu0 0.0
  %442 = vmatpush1.msra.mxu0 %v146
  %443 = vmatprep.subr.mxu0 0.0
  %444 = vmatpush1.msra.mxu0 0.0
  %445 = vmatprep.subr.mxu0 0.0
  %446 = vmatpush1.msra.mxu0 0.0
  %447 = vmatprep.subr.mxu0 0.0
  %448 = vmatpush1.msra.mxu0 0.0
  %449 = vmatprep.subr.mxu0 0.0
  %450 = vmatpush1.msra.mxu0 0.0
  %451 = vmatprep.subr.mxu0 0.0
  %452 = vmatpush1.msra.mxu0 0.0
  %453 = vmatprep.subr.mxu0 0.0
  %454 = vmatpush1.msra.mxu0 0.0
  %455 = vmatprep.subr.mxu0 0.0
  %456 = vmatpush1.msra.mxu0 0.0
  %457 = vmatprep.subr.mxu0 0.0
  %458 = vmatpush1.msra.mxu0 0.0
  %459 = vmatprep.subr.mxu0 0.0
  %460 = vmatpush1.msra.mxu0 0.0
  %461 = vmatprep.subr.mxu0 0.0
  %462 = vmatpush1.msra.mxu0 0.0
  %463 = vmatprep.subr.mxu0 0.0
  %464 = vmatpush1.msra.mxu0 0.0
  %465 = vmatprep.subr.mxu0 0.0
  %466 = vmatpush1.msra.mxu0 0.0
  %467 = vmatprep.subr.mxu0 0.0
  %468 = vmatpush1.msra.mxu0 0.0
  %469 = vmatprep.subr.mxu0 0.0
  %470 = vmatpush1.msra.mxu0 0.0
  %471 = vmatprep.subr.mxu0 0.0
  %472 = vmatpush1.msra.mxu0 0.0
  %473 = vmatprep.subr.mxu0 0.0
  %474 = vmatpush1.msra.mxu0 0.0
  %475 = vmatprep.subr.mxu0 0.0
  %476 = vmatpush1.msra.mxu0 0.0
  %477 = vmatprep.subr.mxu0 0.0
  %478 = vmatpush1.msra.mxu0 0.0
  %479 = vmatprep.subr.mxu0 0.0
  %480 = vmatpush1.msra.mxu0 0.0
  %481 = vmatprep.subr.mxu0 0.0
  %482 = vmatpush1.msra.mxu0 0.0
  %483 = vmatprep.mubr.f32.mxu0 0.0
  %484 = vmatmul.mubr.f32.gmra.mrb[0].mxu0 %v156
  %v485 = vpop.f32.mrb[0].mxu0
  %v486 = vadd.f32 %v152, %v485
  %v487 = vpop.f32.mrb[0].mxu0
  %488 = vmatprep.mubr.f32.mxu0 0.0
  %489 = vmatmul.mubr.f32.gmra.mrb[0].mxu0 %v159
  %v490 = vpop.f32.mrb[0].mxu0
  %v491 = vadd.f32 %v152, %v490
  %v492 = vpop.f32.mrb[0].mxu0
  %493 = vmatprep.mubr.f32.mxu0 0.0
  %494 = vmatmul.mubr.f32.gmra.mrb[0].mxu0 %v162
  %v495 = vpop.f32.mrb[0].mxu0
  %v496 = vadd.f32 %v152, %v495
  %v497 = vpop.f32.mrb[0].mxu0
  %498 = vmatprep.mubr.f32.mxu0 0.0
  %499 = vmatmul.mubr.f32.gmra.mrb[0].mxu0 %v165
  %v500 = vpop.f32.mrb[0].mxu0
  %v501 = vadd.f32 %v152, %v500
  %v502 = vpop.f32.mrb[0].mxu0
  %503 = vmatprep.mubr.f32.mxu0 0.0
  %504 = vmatmul.mubr.f32.gmra.mrb[0].mxu0 %v168
  %v505 = vpop.f32.mrb[0].mxu0
  %v506 = vadd.f32 %v152, %v505
  %v507 = vpop.f32.mrb[0].mxu0
  %508 = vmatprep.mubr.f32.mxu0 0.0
  %509 = vmatmul.mubr.f32.gmra.mrb[0].mxu0 %v171
  %v510 = vpop.f32.mrb[0].mxu0
  %v511 = vadd.f32 %v152, %v510
  %v512 = vpop.f32.mrb[0].mxu0
  %513 = vmatprep.mubr.f32.mxu0 0.0
  %514 = vmatmul.mubr.f32.gmra.mrb[0].mxu0 %v174
  %v515 = vpop.f32.mrb[0].mxu0
  %v516 = vadd.f32 %v152, %v515
  %v517 = vpop.f32.mrb[0].mxu0
  %518 = vmatprep.mubr.f32.mxu0 0.0
  %519 = vmatmul.mubr.f32.gmra.mrb[0].mxu0 %v177
  %v520 = vpop.f32.mrb[0].mxu0
  %v521 = vadd.f32 %v152, %v520
  %v522 = vpop.f32.mrb[0].mxu0
  %523 = vmatprep.mubr.f32.mxu0 0.0
  %524 = vmatmul.mubr.f32.gmra.mrb[0].mxu0 %v180
  %v525 = vpop.f32.mrb[0].mxu0
  %v526 = vadd.f32 %v152, %v525
  %v527 = vpop.f32.mrb[0].mxu0
  %528 = vmatprep.mubr.f32.mxu0 0.0
  %529 = vmatmul.mubr.f32.gmra.mrb[0].mxu0 %v183
  %v530 = vpop.f32.mrb[0].mxu0
  %v531 = vadd.f32 %v152, %v530
  %v532 = vpop.f32.mrb[0].mxu0
  %533 = vmatprep.mubr.f32.mxu0 0.0
  %534 = vmatmul.mubr.f32.gmra.mrb[0].mxu0 %v186
  %v535 = vpop.f32.mrb[0].mxu0
  %v536 = vadd.f32 %v152, %v535
  %v537 = vpop.f32.mrb[0].mxu0
  %538 = vmatprep.mubr.f32.mxu0 0.0
  %539 = vmatmul.mubr.f32.gmra.mrb[0].mxu0 %v189
  %v540 = vpop.f32.mrb[0].mxu0
  %v541 = vadd.f32 %v152, %v540
  %v542 = vpop.f32.mrb[0].mxu0
  %543 = vmatprep.mubr.f32.mxu0 0.0
  %544 = vmatmul.mubr.f32.gmra.mrb[0].mxu0 %v192
  %v545 = vpop.f32.mrb[0].mxu0
  %v546 = vadd.f32 %v152, %v545
  %v547 = vpop.f32.mrb[0].mxu0
  %548 = vmatprep.mubr.f32.mxu0 0.0
  %549 = vmatmul.mubr.f32.gmra.mrb[0].mxu0 %v195
  %v550 = vpop.f32.mrb[0].mxu0
  %v551 = vadd.f32 %v152, %v550
  %v552 = vpop.f32.mrb[0].mxu0
  %553 = vmatprep.mubr.f32.mxu0 0.0
  %554 = vmatmul.mubr.f32.gmra.mrb[0].mxu0 %v198
  %v555 = vpop.f32.mrb[0].mxu0
  %v556 = vadd.f32 %v152, %v555
  %v557 = vpop.f32.mrb[0].mxu0
  %558 = vmatprep.mubr.f32.mxu0 0.0
  %559 = vmatmul.mubr.f32.gmra.mrb[0].mxu0 %v201
  %v560 = vpop.f32.mrb[0].mxu0
  %v561 = vadd.f32 %v152, %v560
  %v562 = vpop.f32.mrb[0].mxu0
  %563 = vmatprep.mubr.f32.mxu0 0.0
  %564 = vmatmul.mubr.f32.gmra.mrb[0].mxu0 %v204
  %v565 = vpop.f32.mrb[0].mxu0
  %v566 = vadd.f32 %v152, %v565
  %v567 = vpop.f32.mrb[0].mxu0
  %568 = vmatprep.mubr.f32.mxu0 0.0
  %569 = vmatmul.mubr.f32.gmra.mrb[0].mxu0 %v207
  %v570 = vpop.f32.mrb[0].mxu0
  %v571 = vadd.f32 %v152, %v570
  %v572 = vpop.f32.mrb[0].mxu0
  %573 = vmatprep.mubr.f32.mxu0 0.0
  %574 = vmatmul.mubr.f32.gmra.mrb[0].mxu0 %v210
  %v575 = vpop.f32.mrb[0].mxu0
  %v576 = vadd.f32 %v152, %v575
  %v577 = vpop.f32.mrb[0].mxu0
  %578 = vmatprep.mubr.f32.mxu0 0.0
  %579 = vmatmul.mubr.f32.gmra.mrb[0].mxu0 %v213
  %v580 = vpop.f32.mrb[0].mxu0
  %v581 = vadd.f32 %v152, %v580
  %v582 = vpop.f32.mrb[0].mxu0
  %583 = vmatprep.mubr.f32.mxu0 0.0
  %584 = vmatmul.mubr.f32.gmra.mrb[0].mxu0 %v216
  %v585 = vpop.f32.mrb[0].mxu0
  %v586 = vadd.f32 %v152, %v585
  %v587 = vpop.f32.mrb[0].mxu0
  %588 = vmatprep.mubr.f32.mxu0 0.0
  %589 = vmatmul.mubr.f32.gmra.mrb[0].mxu0 %v219
  %v590 = vpop.f32.mrb[0].mxu0
  %v591 = vadd.f32 %v152, %v590
  %v592 = vpop.f32.mrb[0].mxu0
  %593 = vmatprep.mubr.f32.mxu0 0.0
  %594 = vmatmul.mubr.f32.gmra.mrb[0].mxu0 %v222
  %v595 = vpop.f32.mrb[0].mxu0
  %v596 = vadd.f32 %v152, %v595
  %v597 = vpop.f32.mrb[0].mxu0
  %598 = vmatprep.mubr.f32.mxu0 0.0
  %599 = vmatmul.mubr.f32.gmra.mrb[0].mxu0 %v225
  %v600 = vpop.f32.mrb[0].mxu0
  %v601 = vadd.f32 %v152, %v600
  %v602 = vpop.f32.mrb[0].mxu0
  %603 = vmatprep.mubr.f32.mxu0 0.0
  %604 = vmatmul.mubr.f32.gmra.mrb[0].mxu0 %v228
  %v605 = vpop.f32.mrb[0].mxu0
  %v606 = vadd.f32 %v152, %v605
  %v607 = vpop.f32.mrb[0].mxu0
  %608 = vmatprep.mubr.f32.mxu0 0.0
  %609 = vmatmul.mubr.f32.gmra.mrb[0].mxu0 %v231
  %v610 = vpop.f32.mrb[0].mxu0
  %v611 = vadd.f32 %v152, %v610
  %v612 = vpop.f32.mrb[0].mxu0
  %613 = vmatprep.mubr.f32.mxu0 0.0
  %614 = vmatmul.mubr.f32.gmra.mrb[0].mxu0 %v234
  %v615 = vpop.f32.mrb[0].mxu0
  %v616 = vadd.f32 %v152, %v615
  %v617 = vpop.f32.mrb[0].mxu0
  %618 = vmatprep.mubr.f32.mxu0 0.0
  %619 = vmatmul.mubr.f32.gmra.mrb[0].mxu0 %v237
  %v620 = vpop.f32.mrb[0].mxu0
  %v621 = vadd.f32 %v152, %v620
  %v622 = vpop.f32.mrb[0].mxu0
  %623 = vmatprep.mubr.f32.mxu0 0.0
  %624 = vmatmul.mubr.f32.gmra.mrb[0].mxu0 %v240
  %v625 = vpop.f32.mrb[0].mxu0
  %v626 = vadd.f32 %v152, %v625
  %v627 = vpop.f32.mrb[0].mxu0
  %628 = vmatprep.mubr.f32.mxu0 0.0
  %629 = vmatmul.mubr.f32.gmra.mrb[0].mxu0 %v243
  %v630 = vpop.f32.mrb[0].mxu0
  %v631 = vadd.f32 %v152, %v630
  %v632 = vpop.f32.mrb[0].mxu0
  %633 = vmatprep.mubr.f32.mxu0 0.0
  %634 = vmatmul.mubr.f32.gmra.mrb[0].mxu0 %v246
  %v635 = vpop.f32.mrb[0].mxu0
  %v636 = vadd.f32 %v152, %v635
  %v637 = vpop.f32.mrb[0].mxu0
  %638 = vmatprep.mubr.f32.mxu0 0.0
  %639 = vmatmul.mubr.f32.gmra.mrb[0].mxu0 %v249
  %v640 = vpop.f32.mrb[0].mxu0
  %v641 = vadd.f32 %v152, %v640
  %v642 = vpop.f32.mrb[0].mxu0
  %643 = vmatprep.mubr.f32.mxu0 0.0
  %644 = vmatmul.mubr.f32.gmra.mrb[0].mxu0 %v252
  %v645 = vpop.f32.mrb[0].mxu0
  %v646 = vadd.f32 %v152, %v645
  %v647 = vpop.f32.mrb[0].mxu0
  %648 = vmatprep.mubr.f32.mxu0 0.0
  %649 = vmatmul.mubr.f32.gmra.mrb[0].mxu0 %v255
  %v650 = vpop.f32.mrb[0].mxu0
  %v651 = vadd.f32 %v152, %v650
  %v652 = vpop.f32.mrb[0].mxu0
  %653 = vmatprep.mubr.f32.mxu0 0.0
  %654 = vmatmul.mubr.f32.gmra.mrb[0].mxu0 %v258
  %v655 = vpop.f32.mrb[0].mxu0
  %v656 = vadd.f32 %v152, %v655
  %v657 = vpop.f32.mrb[0].mxu0
  %658 = vmatprep.mubr.f32.mxu0 0.0
  %659 = vmatmul.mubr.f32.gmra.mrb[0].mxu0 %v261
  %v660 = vpop.f32.mrb[0].mxu0
  %v661 = vadd.f32 %v152, %v660
  %v662 = vpop.f32.mrb[0].mxu0
  %663 = vmatprep.mubr.f32.mxu0 0.0
  %664 = vmatmul.mubr.f32.gmra.mrb[0].mxu0 %v264
  %v665 = vpop.f32.mrb[0].mxu0
  %v666 = vadd.f32 %v152, %v665
  %v667 = vpop.f32.mrb[0].mxu0
  %668 = vmatprep.mubr.f32.mxu0 0.0
  %669 = vmatmul.mubr.f32.gmra.mrb[0].mxu0 %v267
  %v670 = vpop.f32.mrb[0].mxu0
  %v671 = vadd.f32 %v152, %v670
  %v672 = vpop.f32.mrb[0].mxu0
  %673 = vmatprep.mubr.f32.mxu0 0.0
  %674 = vmatmul.mubr.f32.gmra.mrb[0].mxu0 %v270
  %v675 = vpop.f32.mrb[0].mxu0
  %v676 = vadd.f32 %v152, %v675
  %v677 = vpop.f32.mrb[0].mxu0
  %678 = vmatprep.mubr.f32.mxu0 0.0
  %679 = vmatmul.mubr.f32.gmra.mrb[0].mxu0 %v273
  %v680 = vpop.f32.mrb[0].mxu0
  %v681 = vadd.f32 %v152, %v680
  %v682 = vpop.f32.mrb[0].mxu0
  %683 = vmatprep.mubr.f32.mxu0 0.0
  %684 = vmatmul.mubr.f32.gmra.mrb[0].mxu0 %v276
  %v685 = vpop.f32.mrb[0].mxu0
  %v686 = vadd.f32 %v152, %v685
  %v687 = vpop.f32.mrb[0].mxu0
  %688 = vmatprep.mubr.f32.mxu0 0.0
  %689 = vmatmul.mubr.f32.gmra.mrb[0].mxu0 %v279
  %v690 = vpop.f32.mrb[0].mxu0
  %v691 = vadd.f32 %v152, %v690
  %v692 = vpop.f32.mrb[0].mxu0
  %693 = vmatprep.mubr.f32.mxu0 0.0
  %694 = vmatmul.mubr.f32.gmra.mrb[0].mxu0 %v282
  %v695 = vpop.f32.mrb[0].mxu0
  %v696 = vadd.f32 %v152, %v695
  %v697 = vpop.f32.mrb[0].mxu0
  %698 = vmatprep.mubr.f32.mxu0 0.0
  %699 = vmatmul.mubr.f32.gmra.mrb[0].mxu0 %v285
  %v700 = vpop.f32.mrb[0].mxu0
  %v701 = vadd.f32 %v152, %v700
  %v702 = vpop.f32.mrb[0].mxu0
  %703 = vmatprep.mubr.f32.mxu0 0.0
  %704 = vmatmul.mubr.f32.gmra.mrb[0].mxu0 %v288
  %v705 = vpop.f32.mrb[0].mxu0
  %v706 = vadd.f32 %v152, %v705
  %v707 = vpop.f32.mrb[0].mxu0
  %708 = vmatprep.mubr.f32.mxu0 0.0
  %709 = vmatmul.mubr.f32.gmra.mrb[0].mxu0 %v291
  %v710 = vpop.f32.mrb[0].mxu0
  %v711 = vadd.f32 %v152, %v710
  %v712 = vpop.f32.mrb[0].mxu0
  %713 = vmatprep.mubr.f32.mxu0 0.0
  %714 = vmatmul.mubr.f32.gmra.mrb[0].mxu0 %v294
  %v715 = vpop.f32.mrb[0].mxu0
  %v716 = vadd.f32 %v152, %v715
  %v717 = vpop.f32.mrb[0].mxu0
  %718 = vmatprep.mubr.f32.mxu0 0.0
  %719 = vmatmul.mubr.f32.gmra.mrb[0].mxu0 %v297
  %v720 = vpop.f32.mrb[0].mxu0
  %v721 = vadd.f32 %v152, %v720
  %v722 = vpop.f32.mrb[0].mxu0
  %723 = vmatprep.mubr.f32.mxu0 0.0
  %724 = vmatmul.mubr.f32.gmra.mrb[0].mxu0 %v300
  %v725 = vpop.f32.mrb[0].mxu0
  %v726 = vadd.f32 %v152, %v725
  %v727 = vpop.f32.mrb[0].mxu0
  %728 = vmatprep.mubr.f32.mxu0 0.0
  %729 = vmatmul.mubr.f32.gmra.mrb[0].mxu0 %v303
  %v730 = vpop.f32.mrb[0].mxu0
  %v731 = vadd.f32 %v152, %v730
  %v732 = vpop.f32.mrb[0].mxu0
  %733 = vmatprep.mubr.f32.mxu0 0.0
  %734 = vmatmul.mubr.f32.gmra.mrb[0].mxu0 %v306
  %v735 = vpop.f32.mrb[0].mxu0
  %v736 = vadd.f32 %v152, %v735
  %v737 = vpop.f32.mrb[0].mxu0
  %738 = vmatprep.mubr.f32.mxu0 0.0
  %739 = vmatmul.mubr.f32.gmra.mrb[0].mxu0 %v309
  %v740 = vpop.f32.mrb[0].mxu0
  %v741 = vadd.f32 %v152, %v740
  %v742 = vpop.f32.mrb[0].mxu0
  %743 = vmatprep.mubr.f32.mxu0 0.0
  %744 = vmatmul.mubr.f32.gmra.mrb[0].mxu0 %v312
  %v745 = vpop.f32.mrb[0].mxu0
  %v746 = vadd.f32 %v152, %v745
  %v747 = vpop.f32.mrb[0].mxu0
  %748 = vmatprep.mubr.f32.mxu0 0.0
  %749 = vmatmul.mubr.f32.gmra.mrb[0].mxu0 %v315
  %v750 = vpop.f32.mrb[0].mxu0
  %v751 = vadd.f32 %v152, %v750
  %v752 = vpop.f32.mrb[0].mxu0
  %753 = vmatprep.mubr.f32.mxu0 0.0
  %754 = vmatmul.mubr.f32.gmra.mrb[0].mxu0 %v318
  %v755 = vpop.f32.mrb[0].mxu0
  %v756 = vadd.f32 %v152, %v755
  %v757 = vpop.f32.mrb[0].mxu0
  %758 = vmatprep.mubr.f32.mxu0 0.0
  %759 = vmatmul.mubr.f32.gmra.mrb[0].mxu0 %v321
  %v760 = vpop.f32.mrb[0].mxu0
  %v761 = vadd.f32 %v152, %v760
  %v762 = vpop.f32.mrb[0].mxu0
  %763 = vmatprep.mubr.f32.mxu0 0.0
  %764 = vmatmul.mubr.f32.gmra.mrb[0].mxu0 %v324
  %v765 = vpop.f32.mrb[0].mxu0
  %v766 = vadd.f32 %v152, %v765
  %v767 = vpop.f32.mrb[0].mxu0
  %768 = vmatprep.mubr.f32.mxu0 0.0
  %769 = vmatmul.mubr.f32.gmra.mrb[0].mxu0 %v327
  %v770 = vpop.f32.mrb[0].mxu0
  %v771 = vadd.f32 %v152, %v770
  %v772 = vpop.f32.mrb[0].mxu0
  %773 = vmatprep.mubr.f32.mxu0 0.0
  %774 = vmatmul.mubr.f32.gmra.mrb[0].mxu0 %v330
  %v775 = vpop.f32.mrb[0].mxu0
  %v776 = vadd.f32 %v152, %v775
  %v777 = vpop.f32.mrb[0].mxu0
  %778 = vmatprep.mubr.f32.mxu0 0.0
  %779 = vmatmul.mubr.f32.gmra.mrb[0].mxu0 %v333
  %v780 = vpop.f32.mrb[0].mxu0
  %v781 = vadd.f32 %v152, %v780
  %v782 = vpop.f32.mrb[0].mxu0
  %783 = vmatprep.mubr.f32.mxu0 0.0
  %784 = vmatmul.mubr.f32.gmra.mrb[0].mxu0 %v336
  %v785 = vpop.f32.mrb[0].mxu0
  %v786 = vadd.f32 %v152, %v785
  %v787 = vpop.f32.mrb[0].mxu0
  %788 = vmatprep.mubr.f32.mxu0 0.0
  %789 = vmatmul.mubr.f32.gmra.mrb[0].mxu0 %v339
  %v790 = vpop.f32.mrb[0].mxu0
  %v791 = vadd.f32 %v152, %v790
  %v792 = vpop.f32.mrb[0].mxu0
  %793 = vmatprep.mubr.f32.mxu0 0.0
  %794 = vmatmul.mubr.f32.gmra.mrb[0].mxu0 %v342
  %v795 = vpop.f32.mrb[0].mxu0
  %v796 = vadd.f32 %v152, %v795
  %v797 = vpop.f32.mrb[0].mxu0
  %798 = vmatprep.mubr.f32.mxu0 0.0
  %799 = vmatmul.mubr.f32.gmra.mrb[0].mxu0 %v345
  %v800 = vpop.f32.mrb[0].mxu0
  %v801 = vadd.f32 %v152, %v800
  %v802 = vpop.f32.mrb[0].mxu0
  %803 = vmatprep.mubr.f32.mxu0 0.0
  %804 = vmatmul.mubr.f32.gmra.mrb[0].mxu0 %v348
  %v805 = vpop.f32.mrb[0].mxu0
  %v806 = vadd.f32 %v152, %v805
  %v807 = vpop.f32.mrb[0].mxu0
  %808 = vmatprep.mubr.f32.mxu0 0.0
  %809 = vmatmul.mubr.f32.gmra.mrb[0].mxu0 %v351
  %v810 = vpop.f32.mrb[0].mxu0
  %v811 = vadd.f32 %v152, %v810
  %v812 = vpop.f32.mrb[0].mxu0
  %813 = vmatprep.mubr.f32.mxu0 0.0
  %814 = vmatmul.mubr.f32.gmra.mrb[0].mxu0 %v354
  %v815 = vpop.f32.mrb[0].mxu0
  %v816 = vadd.f32 %v152, %v815
  %v817 = vpop.f32.mrb[0].mxu0
  %818 = vmatprep.mubr.f32.mxu0 0.0
  %819 = vmatmul.mubr.f32.gmra.mrb[0].mxu0 %v357
  %v820 = vpop.f32.mrb[0].mxu0
  %v821 = vadd.f32 %v152, %v820
  %v822 = vpop.f32.mrb[0].mxu0
  %823 = vmatprep.mubr.f32.mxu0 0.0
  %824 = vmatmul.mubr.f32.gmra.mrb[0].mxu0 %v360
  %v825 = vpop.f32.mrb[0].mxu0
  %v826 = vadd.f32 %v152, %v825
  %v827 = vpop.f32.mrb[0].mxu0
  %828 = vmatprep.mubr.f32.mxu0 0.0
  %829 = vmatmul.mubr.f32.gmra.mrb[0].mxu0 %v363
  %v830 = vpop.f32.mrb[0].mxu0
  %v831 = vadd.f32 %v152, %v830
  %v832 = vpop.f32.mrb[0].mxu0
  %833 = vmatprep.mubr.f32.mxu0 0.0
  %834 = vmatmul.mubr.f32.gmra.mrb[0].mxu0 %v366
  %v835 = vpop.f32.mrb[0].mxu0
  %v836 = vadd.f32 %v152, %v835
  %v837 = vpop.f32.mrb[0].mxu0
  %838 = vmatprep.mubr.f32.mxu0 0.0
  %839 = vmatmul.mubr.f32.gmra.mrb[0].mxu0 %v369
  %v840 = vpop.f32.mrb[0].mxu0
  %v841 = vadd.f32 %v152, %v840
  %v842 = vpop.f32.mrb[0].mxu0
  %843 = vmatprep.mubr.f32.mxu0 0.0
  %844 = vmatmul.mubr.f32.gmra.mrb[0].mxu0 %v372
  %v845 = vpop.f32.mrb[0].mxu0
  %v846 = vadd.f32 %v152, %v845
  %v847 = vpop.f32.mrb[0].mxu0
  %848 = vmatprep.mubr.f32.mxu0 0.0
  %849 = vmatmul.mubr.f32.gmra.mrb[0].mxu0 %v375
  %v850 = vpop.f32.mrb[0].mxu0
  %v851 = vadd.f32 %v152, %v850
  %v852 = vpop.f32.mrb[0].mxu0
  %853 = vmatprep.mubr.f32.mxu0 0.0
  %854 = vmatmul.mubr.f32.gmra.mrb[0].mxu0 %v378
  %v855 = vpop.f32.mrb[0].mxu0
  %v856 = vadd.f32 %v152, %v855
  %v857 = vpop.f32.mrb[0].mxu0
  %858 = vmatprep.mubr.f32.mxu0 0.0
  %859 = vmatmul.mubr.f32.gmra.mrb[0].mxu0 %v381
  %v860 = vpop.f32.mrb[0].mxu0
  %v861 = vadd.f32 %v152, %v860
  %v862 = vpop.f32.mrb[0].mxu0
  %863 = vmatprep.mubr.f32.mxu0 0.0
  %864 = vmatmul.mubr.f32.gmra.mrb[0].mxu0 %v384
  %v865 = vpop.f32.mrb[0].mxu0
  %v866 = vadd.f32 %v152, %v865
  %v867 = vpop.f32.mrb[0].mxu0
  %868 = vmatprep.mubr.f32.mxu0 0.0
  %869 = vmatmul.mubr.f32.gmra.mrb[0].mxu0 %v387
  %v870 = vpop.f32.mrb[0].mxu0
  %v871 = vadd.f32 %v152, %v870
  %v872 = vpop.f32.mrb[0].mxu0
  %873 = vmatprep.mubr.f32.mxu0 0.0
  %874 = vmatmul.mubr.f32.gmra.mrb[0].mxu0 %v390
  %v875 = vpop.f32.mrb[0].mxu0
  %v876 = vadd.f32 %v152, %v875
  %v877 = vpop.f32.mrb[0].mxu0
  %878 = vmatprep.mubr.f32.mxu0 0.0
  %879 = vmatmul.mubr.f32.gmra.mrb[0].mxu0 %v393
  %v880 = vpop.f32.mrb[0].mxu0
  %v881 = vadd.f32 %v152, %v880
  %v882 = vpop.f32.mrb[0].mxu0
  %883 = vmatprep.mubr.f32.mxu0 0.0
  %884 = vmatmul.mubr.f32.gmra.mrb[0].mxu0 %v396
  %v885 = vpop.f32.mrb[0].mxu0
  %v886 = vadd.f32 %v152, %v885
  %v887 = vpop.f32.mrb[0].mxu0
  %888 = vmatprep.mubr.f32.mxu0 0.0
  %889 = vmatmul.mubr.f32.gmra.mrb[0].mxu0 %v399
  %v890 = vpop.f32.mrb[0].mxu0
  %v891 = vadd.f32 %v152, %v890
  %v892 = vpop.f32.mrb[0].mxu0
  %893 = vmatprep.mubr.f32.mxu0 0.0
  %894 = vmatmul.mubr.f32.gmra.mrb[0].mxu0 %v402
  %v895 = vpop.f32.mrb[0].mxu0
  %v896 = vadd.f32 %v152, %v895
  %v897 = vpop.f32.mrb[0].mxu0
  %898 = vmatprep.mubr.f32.mxu0 0.0
  %899 = vmatmul.mubr.f32.gmra.mrb[0].mxu0 %v405
  %v900 = vpop.f32.mrb[0].mxu0
  %v901 = vadd.f32 %v152, %v900
  %v902 = vpop.f32.mrb[0].mxu0
  %903 = vmatprep.mubr.f32.mxu0 0.0
  %904 = vmatmul.mubr.f32.gmra.mrb[0].mxu0 %v408
  %v905 = vpop.f32.mrb[0].mxu0
  %v906 = vadd.f32 %v152, %v905
  %v907 = vpop.f32.mrb[0].mxu0
  %908 = vmatprep.mubr.f32.mxu0 0.0
  %909 = vmatmul.mubr.f32.gmra.mrb[0].mxu0 %v411
  %v910 = vpop.f32.mrb[0].mxu0
  %v911 = vadd.f32 %v152, %v910
  %v912 = vpop.f32.mrb[0].mxu0
  %913 = vmatprep.mubr.f32.mxu0 0.0
  %914 = vmatmul.mubr.f32.gmra.mrb[0].mxu0 %v414
  %v915 = vpop.f32.mrb[0].mxu0
  %v916 = vadd.f32 %v152, %v915
  %v917 = vpop.f32.mrb[0].mxu0
  %918 = vmatprep.mubr.f32.mxu0 0.0
  %919 = vmatmul.mubr.f32.gmra.mrb[0].mxu0 %v417
  %v920 = vpop.f32.mrb[0].mxu0
  %v921 = vadd.f32 %v152, %v920
  %v922 = vpop.f32.mrb[0].mxu0
  %923 = vdwg.mxu0
  %v924 = vmax.f32 %v486, 0.0
  %v925 = vmax.f32 %v491, 0.0
  %v926 = vmax.f32 %v496, 0.0
  %v927 = vmax.f32 %v501, 0.0
  %v928 = vmax.f32 %v506, 0.0
  %v929 = vmax.f32 %v511, 0.0
  %v930 = vmax.f32 %v516, 0.0
  %v931 = vmax.f32 %v521, 0.0
  %v932 = vmax.f32 %v526, 0.0
  %v933 = vmax.f32 %v531, 0.0
  %v934 = vmax.f32 %v536, 0.0
  %v935 = vmax.f32 %v541, 0.0
  %v936 = vmax.f32 %v546, 0.0
  %v937 = vmax.f32 %v551, 0.0
  %v938 = vmax.f32 %v556, 0.0
  %v939 = vmax.f32 %v561, 0.0
  %v940 = vmax.f32 %v566, 0.0
  %v941 = vmax.f32 %v571, 0.0
  %v942 = vmax.f32 %v576, 0.0
  %v943 = vmax.f32 %v581, 0.0
  %v944 = vmax.f32 %v586, 0.0
  %v945 = vmax.f32 %v591, 0.0
  %v946 = vmax.f32 %v596, 0.0
  %v947 = vmax.f32 %v601, 0.0
  %v948 = vmax.f32 %v606, 0.0
  %v949 = vmax.f32 %v611, 0.0
  %v950 = vmax.f32 %v616, 0.0
  %v951 = vmax.f32 %v621, 0.0
  %v952 = vmax.f32 %v626, 0.0
  %v953 = vmax.f32 %v631, 0.0
  %v954 = vmax.f32 %v636, 0.0
  %v955 = vmax.f32 %v641, 0.0
  %v956 = vmax.f32 %v646, 0.0
  %v957 = vmax.f32 %v651, 0.0
  %v958 = vmax.f32 %v656, 0.0
  %v959 = vmax.f32 %v661, 0.0
  %v960 = vmax.f32 %v666, 0.0
  %v961 = vmax.f32 %v671, 0.0
  %v962 = vmax.f32 %v676, 0.0
  %v963 = vmax.f32 %v681, 0.0
  %v964 = vmax.f32 %v686, 0.0
  %v965 = vmax.f32 %v691, 0.0
  %v966 = vmax.f32 %v696, 0.0
  %v967 = vmax.f32 %v701, 0.0
  %v968 = vmax.f32 %v706, 0.0
  %v969 = vmax.f32 %v711, 0.0
  %v970 = vmax.f32 %v716, 0.0
  %v971 = vmax.f32 %v721, 0.0
  %v972 = vmax.f32 %v726, 0.0
  %v973 = vmax.f32 %v731, 0.0
  %v974 = vmax.f32 %v736, 0.0
  %v975 = vmax.f32 %v741, 0.0
  %v976 = vmax.f32 %v746, 0.0
  %v977 = vmax.f32 %v751, 0.0
  %v978 = vmax.f32 %v756, 0.0
  %v979 = vmax.f32 %v761, 0.0
  %v980 = vmax.f32 %v766, 0.0
  %v981 = vmax.f32 %v771, 0.0
  %v982 = vmax.f32 %v776, 0.0
  %v983 = vmax.f32 %v781, 0.0
  %v984 = vmax.f32 %v786, 0.0
  %v985 = vmax.f32 %v791, 0.0
  %v986 = vmax.f32 %v796, 0.0
  %v987 = vmax.f32 %v801, 0.0
  %v988 = vmax.f32 %v806, 0.0
  %v989 = vmax.f32 %v811, 0.0
  %v990 = vmax.f32 %v816, 0.0
  %v991 = vmax.f32 %v821, 0.0
  %v992 = vmax.f32 %v826, 0.0
  %v993 = vmax.f32 %v831, 0.0
  %v994 = vmax.f32 %v836, 0.0
  %v995 = vmax.f32 %v841, 0.0
  %v996 = vmax.f32 %v846, 0.0
  %v997 = vmax.f32 %v851, 0.0
  %v998 = vmax.f32 %v856, 0.0
  %v999 = vmax.f32 %v861, 0.0
  %v1000 = vmax.f32 %v866, 0.0
  %v1001 = vmax.f32 %v871, 0.0
  %v1002 = vmax.f32 %v876, 0.0
  %v1003 = vmax.f32 %v881, 0.0
  %v1004 = vmax.f32 %v886, 0.0
  %v1005 = vmax.f32 %v891, 0.0
  %v1006 = vmax.f32 %v896, 0.0
  %v1007 = vmax.f32 %v901, 0.0
  %v1008 = vmax.f32 %v906, 0.0
  %v1009 = vmax.f32 %v911, 0.0
  %v1010 = vmax.f32 %v916, 0.0
  %v1011 = vmax.f32 %v921, 0.0
  %v1012 = vld [vmem:[%s4] sm:$0xff]
  %v1013 = vld [vmem:[%s4 + $0x8] sm:$0xff]
  %v1014 = vld [vmem:[%s4 + $0x10] sm:$0xff]
  %v1015 = vld [vmem:[%s4 + $0x18] sm:$0xff]
  %v1016 = vld [vmem:[%s4 + $0x20] sm:$0xff]
  %v1017 = vld [vmem:[%s4 + $0x28] sm:$0xff]
  %v1018 = vld [vmem:[%s4 + $0x30] sm:$0xff]
  %v1019 = vld [vmem:[%s4 + $0x38] sm:$0xff]
  %v1020 = vld [vmem:[%s4 + $0x40] sm:$0xff]
  %v1021 = vld [vmem:[%s4 + $0x48] sm:$0xff]
  %v1022 = vld [vmem:[%s4 + $0x50] sm:$0xff]
  %v1023 = vld [vmem:[%s4 + $0x58] sm:$0xff]
  %v1024 = vld [vmem:[%s4 + $0x60] sm:$0xff]
  %v1025 = vld [vmem:[%s4 + $0x68] sm:$0xff]
  %v1026 = vld [vmem:[%s4 + $0x70] sm:$0xff]
  %v1027 = vld [vmem:[%s4 + $0x78] sm:$0xff]
  %v1028 = vld [vmem:[%s5] sm:$0x1]
  %v1030 = vlaneseq
  %v1031 = vshrl.u32 %v1030, 7
  %v1032 = vsub.s32 0, %v1031
  %v1033 = vrot.slane %v1028, %v1032
  %1035 = vmatprep.subr.mxu0 0.0
  %1036 = vmatpush1.msra.mxu0 %v1012
  %1037 = vmatprep.subr.mxu0 0.0
  %1038 = vmatpush1.msra.mxu0 %v1013
  %1039 = vmatprep.subr.mxu0 0.0
  %1040 = vmatpush1.msra.mxu0 %v1014
  %1041 = vmatprep.subr.mxu0 0.0
  %1042 = vmatpush1.msra.mxu0 %v1015
  %1043 = vmatprep.subr.mxu0 0.0
  %1044 = vmatpush1.msra.mxu0 %v1016
  %1045 = vmatprep.subr.mxu0 0.0
  %1046 = vmatpush1.msra.mxu0 %v1017
  %1047 = vmatprep.subr.mxu0 0.0
  %1048 = vmatpush1.msra.mxu0 %v1018
  %1049 = vmatprep.subr.mxu0 0.0
  %1050 = vmatpush1.msra.mxu0 %v1019
  %1051 = vmatprep.subr.mxu0 0.0
  %1052 = vmatpush1.msra.mxu0 %v1020
  %1053 = vmatprep.subr.mxu0 0.0
  %1054 = vmatpush1.msra.mxu0 %v1021
  %1055 = vmatprep.subr.mxu0 0.0
  %1056 = vmatpush1.msra.mxu0 %v1022
  %1057 = vmatprep.subr.mxu0 0.0
  %1058 = vmatpush1.msra.mxu0 %v1023
  %1059 = vmatprep.subr.mxu0 0.0
  %1060 = vmatpush1.msra.mxu0 %v1024
  %1061 = vmatprep.subr.mxu0 0.0
  %1062 = vmatpush1.msra.mxu0 %v1025
  %1063 = vmatprep.subr.mxu0 0.0
  %1064 = vmatpush1.msra.mxu0 %v1026
  %1065 = vmatprep.subr.mxu0 0.0
  %1066 = vmatpush1.msra.mxu0 %v1027
  %1067 = vmatprep.subr.mxu0 0.0
  %1068 = vmatpush1.msra.mxu0 0.0
  %1069 = vmatprep.subr.mxu0 0.0
  %1070 = vmatpush1.msra.mxu0 0.0
  %1071 = vmatprep.subr.mxu0 0.0
  %1072 = vmatpush1.msra.mxu0 0.0
  %1073 = vmatprep.subr.mxu0 0.0
  %1074 = vmatpush1.msra.mxu0 0.0
  %1075 = vmatprep.subr.mxu0 0.0
  %1076 = vmatpush1.msra.mxu0 0.0
  %1077 = vmatprep.subr.mxu0 0.0
  %1078 = vmatpush1.msra.mxu0 0.0
  %1079 = vmatprep.subr.mxu0 0.0
  %1080 = vmatpush1.msra.mxu0 0.0
  %1081 = vmatprep.subr.mxu0 0.0
  %1082 = vmatpush1.msra.mxu0 0.0
  %1083 = vmatprep.subr.mxu0 0.0
  %1084 = vmatpush1.msra.mxu0 0.0
  %1085 = vmatprep.subr.mxu0 0.0
  %1086 = vmatpush1.msra.mxu0 0.0
  %1087 = vmatprep.subr.mxu0 0.0
  %1088 = vmatpush1.msra.mxu0 0.0
  %1089 = vmatprep.subr.mxu0 0.0
  %1090 = vmatpush1.msra.mxu0 0.0
  %1091 = vmatprep.subr.mxu0 0.0
  %1092 = vmatpush1.msra.mxu0 0.0
  %1093 = vmatprep.subr.mxu0 0.0
  %1094 = vmatpush1.msra.mxu0 0.0
  %1095 = vmatprep.subr.mxu0 0.0
  %1096 = vmatpush1.msra.mxu0 0.0
  %1097 = vmatprep.subr.mxu0 0.0
  %1098 = vmatpush1.msra.mxu0 0.0
  %1099 = vmatprep.mubr.f32.mxu0 0.0
  %1100 = vmatmul.mubr.f32.gmra.mrb[0].mxu0 %v924
  %v1101 = vpop.f32.mrb[0].mxu0
  %v1102 = vadd.f32 %v1033, %v1101
  %v1103 = vpop.f32.mrb[0].mxu0
  %1104 = vmatprep.mubr.f32.mxu0 0.0
  %1105 = vmatmul.mubr.f32.gmra.mrb[0].mxu0 %v925
  %v1106 = vpop.f32.mrb[0].mxu0
  %v1107 = vadd.f32 %v1033, %v1106
  %v1108 = vpop.f32.mrb[0].mxu0
  %1109 = vmatprep.mubr.f32.mxu0 0.0
  %1110 = vmatmul.mubr.f32.gmra.mrb[0].mxu0 %v926
  %v1111 = vpop.f32.mrb[0].mxu0
  %v1112 = vadd.f32 %v1033, %v1111
  %v1113 = vpop.f32.mrb[0].mxu0
  %1114 = vmatprep.mubr.f32.mxu0 0.0
  %1115 = vmatmul.mubr.f32.gmra.mrb[0].mxu0 %v927
  %v1116 = vpop.f32.mrb[0].mxu0
  %v1117 = vadd.f32 %v1033, %v1116
  %v1118 = vpop.f32.mrb[0].mxu0
  %1119 = vmatprep.mubr.f32.mxu0 0.0
  %1120 = vmatmul.mubr.f32.gmra.mrb[0].mxu0 %v928
  %v1121 = vpop.f32.mrb[0].mxu0
  %v1122 = vadd.f32 %v1033, %v1121
  %v1123 = vpop.f32.mrb[0].mxu0
  %1124 = vmatprep.mubr.f32.mxu0 0.0
  %1125 = vmatmul.mubr.f32.gmra.mrb[0].mxu0 %v929
  %v1126 = vpop.f32.mrb[0].mxu0
  %v1127 = vadd.f32 %v1033, %v1126
  %v1128 = vpop.f32.mrb[0].mxu0
  %1129 = vmatprep.mubr.f32.mxu0 0.0
  %1130 = vmatmul.mubr.f32.gmra.mrb[0].mxu0 %v930
  %v1131 = vpop.f32.mrb[0].mxu0
  %v1132 = vadd.f32 %v1033, %v1131
  %v1133 = vpop.f32.mrb[0].mxu0
  %1134 = vmatprep.mubr.f32.mxu0 0.0
  %1135 = vmatmul.mubr.f32.gmra.mrb[0].mxu0 %v931
  %v1136 = vpop.f32.mrb[0].mxu0
  %v1137 = vadd.f32 %v1033, %v1136
  %v1138 = vpop.f32.mrb[0].mxu0
  %1139 = vmatprep.mubr.f32.mxu0 0.0
  %1140 = vmatmul.mubr.f32.gmra.mrb[0].mxu0 %v932
  %v1141 = vpop.f32.mrb[0].mxu0
  %v1142 = vadd.f32 %v1033, %v1141
  %v1143 = vpop.f32.mrb[0].mxu0
  %1144 = vmatprep.mubr.f32.mxu0 0.0
  %1145 = vmatmul.mubr.f32.gmra.mrb[0].mxu0 %v933
  %v1146 = vpop.f32.mrb[0].mxu0
  %v1147 = vadd.f32 %v1033, %v1146
  %v1148 = vpop.f32.mrb[0].mxu0
  %1149 = vmatprep.mubr.f32.mxu0 0.0
  %1150 = vmatmul.mubr.f32.gmra.mrb[0].mxu0 %v934
  %v1151 = vpop.f32.mrb[0].mxu0
  %v1152 = vadd.f32 %v1033, %v1151
  %v1153 = vpop.f32.mrb[0].mxu0
  %1154 = vmatprep.mubr.f32.mxu0 0.0
  %1155 = vmatmul.mubr.f32.gmra.mrb[0].mxu0 %v935
  %v1156 = vpop.f32.mrb[0].mxu0
  %v1157 = vadd.f32 %v1033, %v1156
  %v1158 = vpop.f32.mrb[0].mxu0
  %1159 = vmatprep.mubr.f32.mxu0 0.0
  %1160 = vmatmul.mubr.f32.gmra.mrb[0].mxu0 %v936
  %v1161 = vpop.f32.mrb[0].mxu0
  %v1162 = vadd.f32 %v1033, %v1161
  %v1163 = vpop.f32.mrb[0].mxu0
  %1164 = vmatprep.mubr.f32.mxu0 0.0
  %1165 = vmatmul.mubr.f32.gmra.mrb[0].mxu0 %v937
  %v1166 = vpop.f32.mrb[0].mxu0
  %v1167 = vadd.f32 %v1033, %v1166
  %v1168 = vpop.f32.mrb[0].mxu0
  %1169 = vmatprep.mubr.f32.mxu0 0.0
  %1170 = vmatmul.mubr.f32.gmra.mrb[0].mxu0 %v938
  %v1171 = vpop.f32.mrb[0].mxu0
  %v1172 = vadd.f32 %v1033, %v1171
  %v1173 = vpop.f32.mrb[0].mxu0
  %1174 = vmatprep.mubr.f32.mxu0 0.0
  %1175 = vmatmul.mubr.f32.gmra.mrb[0].mxu0 %v939
  %v1176 = vpop.f32.mrb[0].mxu0
  %v1177 = vadd.f32 %v1033, %v1176
  %v1178 = vpop.f32.mrb[0].mxu0
  %1179 = vmatprep.mubr.f32.mxu0 0.0
  %1180 = vmatmul.mubr.f32.gmra.mrb[0].mxu0 %v940
  %v1181 = vpop.f32.mrb[0].mxu0
  %v1182 = vadd.f32 %v1033, %v1181
  %v1183 = vpop.f32.mrb[0].mxu0
  %1184 = vmatprep.mubr.f32.mxu0 0.0
  %1185 = vmatmul.mubr.f32.gmra.mrb[0].mxu0 %v941
  %v1186 = vpop.f32.mrb[0].mxu0
  %v1187 = vadd.f32 %v1033, %v1186
  %v1188 = vpop.f32.mrb[0].mxu0
  %1189 = vmatprep.mubr.f32.mxu0 0.0
  %1190 = vmatmul.mubr.f32.gmra.mrb[0].mxu0 %v942
  %v1191 = vpop.f32.mrb[0].mxu0
  %v1192 = vadd.f32 %v1033, %v1191
  %v1193 = vpop.f32.mrb[0].mxu0
  %1194 = vmatprep.mubr.f32.mxu0 0.0
  %1195 = vmatmul.mubr.f32.gmra.mrb[0].mxu0 %v943
  %v1196 = vpop.f32.mrb[0].mxu0
  %v1197 = vadd.f32 %v1033, %v1196
  %v1198 = vpop.f32.mrb[0].mxu0
  %1199 = vmatprep.mubr.f32.mxu0 0.0
  %1200 = vmatmul.mubr.f32.gmra.mrb[0].mxu0 %v944
  %v1201 = vpop.f32.mrb[0].mxu0
  %v1202 = vadd.f32 %v1033, %v1201
  %v1203 = vpop.f32.mrb[0].mxu0
  %1204 = vmatprep.mubr.f32.mxu0 0.0
  %1205 = vmatmul.mubr.f32.gmra.mrb[0].mxu0 %v945
  %v1206 = vpop.f32.mrb[0].mxu0
  %v1207 = vadd.f32 %v1033, %v1206
  %v1208 = vpop.f32.mrb[0].mxu0
  %1209 = vmatprep.mubr.f32.mxu0 0.0
  %1210 = vmatmul.mubr.f32.gmra.mrb[0].mxu0 %v946
  %v1211 = vpop.f32.mrb[0].mxu0
  %v1212 = vadd.f32 %v1033, %v1211
  %v1213 = vpop.f32.mrb[0].mxu0
  %1214 = vmatprep.mubr.f32.mxu0 0.0
  %1215 = vmatmul.mubr.f32.gmra.mrb[0].mxu0 %v947
  %v1216 = vpop.f32.mrb[0].mxu0
  %v1217 = vadd.f32 %v1033, %v1216
  %v1218 = vpop.f32.mrb[0].mxu0
  %1219 = vmatprep.mubr.f32.mxu0 0.0
  %1220 = vmatmul.mubr.f32.gmra.mrb[0].mxu0 %v948
  %v1221 = vpop.f32.mrb[0].mxu0
  %v1222 = vadd.f32 %v1033, %v1221
  %v1223 = vpop.f32.mrb[0].mxu0
  %1224 = vmatprep.mubr.f32.mxu0 0.0
  %1225 = vmatmul.mubr.f32.gmra.mrb[0].mxu0 %v949
  %v1226 = vpop.f32.mrb[0].mxu0
  %v1227 = vadd.f32 %v1033, %v1226
  %v1228 = vpop.f32.mrb[0].mxu0
  %1229 = vmatprep.mubr.f32.mxu0 0.0
  %1230 = vmatmul.mubr.f32.gmra.mrb[0].mxu0 %v950
  %v1231 = vpop.f32.mrb[0].mxu0
  %v1232 = vadd.f32 %v1033, %v1231
  %v1233 = vpop.f32.mrb[0].mxu0
  %1234 = vmatprep.mubr.f32.mxu0 0.0
  %1235 = vmatmul.mubr.f32.gmra.mrb[0].mxu0 %v951
  %v1236 = vpop.f32.mrb[0].mxu0
  %v1237 = vadd.f32 %v1033, %v1236
  %v1238 = vpop.f32.mrb[0].mxu0
  %1239 = vmatprep.mubr.f32.mxu0 0.0
  %1240 = vmatmul.mubr.f32.gmra.mrb[0].mxu0 %v952
  %v1241 = vpop.f32.mrb[0].mxu0
  %v1242 = vadd.f32 %v1033, %v1241
  %v1243 = vpop.f32.mrb[0].mxu0
  %1244 = vmatprep.mubr.f32.mxu0 0.0
  %1245 = vmatmul.mubr.f32.gmra.mrb[0].mxu0 %v953
  %v1246 = vpop.f32.mrb[0].mxu0
  %v1247 = vadd.f32 %v1033, %v1246
  %v1248 = vpop.f32.mrb[0].mxu0
  %1249 = vmatprep.mubr.f32.mxu0 0.0
  %1250 = vmatmul.mubr.f32.gmra.mrb[0].mxu0 %v954
  %v1251 = vpop.f32.mrb[0].mxu0
  %v1252 = vadd.f32 %v1033, %v1251
  %v1253 = vpop.f32.mrb[0].mxu0
  %1254 = vmatprep.mubr.f32.mxu0 0.0
  %1255 = vmatmul.mubr.f32.gmra.mrb[0].mxu0 %v955
  %v1256 = vpop.f32.mrb[0].mxu0
  %v1257 = vadd.f32 %v1033, %v1256
  %v1258 = vpop.f32.mrb[0].mxu0
  %1259 = vmatprep.mubr.f32.mxu0 0.0
  %1260 = vmatmul.mubr.f32.gmra.mrb[0].mxu0 %v956
  %v1261 = vpop.f32.mrb[0].mxu0
  %v1262 = vadd.f32 %v1033, %v1261
  %v1263 = vpop.f32.mrb[0].mxu0
  %1264 = vmatprep.mubr.f32.mxu0 0.0
  %1265 = vmatmul.mubr.f32.gmra.mrb[0].mxu0 %v957
  %v1266 = vpop.f32.mrb[0].mxu0
  %v1267 = vadd.f32 %v1033, %v1266
  %v1268 = vpop.f32.mrb[0].mxu0
  %1269 = vmatprep.mubr.f32.mxu0 0.0
  %1270 = vmatmul.mubr.f32.gmra.mrb[0].mxu0 %v958
  %v1271 = vpop.f32.mrb[0].mxu0
  %v1272 = vadd.f32 %v1033, %v1271
  %v1273 = vpop.f32.mrb[0].mxu0
  %1274 = vmatprep.mubr.f32.mxu0 0.0
  %1275 = vmatmul.mubr.f32.gmra.mrb[0].mxu0 %v959
  %v1276 = vpop.f32.mrb[0].mxu0
  %v1277 = vadd.f32 %v1033, %v1276
  %v1278 = vpop.f32.mrb[0].mxu0
  %1279 = vmatprep.mubr.f32.mxu0 0.0
  %1280 = vmatmul.mubr.f32.gmra.mrb[0].mxu0 %v960
  %v1281 = vpop.f32.mrb[0].mxu0
  %v1282 = vadd.f32 %v1033, %v1281
  %v1283 = vpop.f32.mrb[0].mxu0
  %1284 = vmatprep.mubr.f32.mxu0 0.0
  %1285 = vmatmul.mubr.f32.gmra.mrb[0].mxu0 %v961
  %v1286 = vpop.f32.mrb[0].mxu0
  %v1287 = vadd.f32 %v1033, %v1286
  %v1288 = vpop.f32.mrb[0].mxu0
  %1289 = vmatprep.mubr.f32.mxu0 0.0
  %1290 = vmatmul.mubr.f32.gmra.mrb[0].mxu0 %v962
  %v1291 = vpop.f32.mrb[0].mxu0
  %v1292 = vadd.f32 %v1033, %v1291
  %v1293 = vpop.f32.mrb[0].mxu0
  %1294 = vmatprep.mubr.f32.mxu0 0.0
  %1295 = vmatmul.mubr.f32.gmra.mrb[0].mxu0 %v963
  %v1296 = vpop.f32.mrb[0].mxu0
  %v1297 = vadd.f32 %v1033, %v1296
  %v1298 = vpop.f32.mrb[0].mxu0
  %1299 = vmatprep.mubr.f32.mxu0 0.0
  %1300 = vmatmul.mubr.f32.gmra.mrb[0].mxu0 %v964
  %v1301 = vpop.f32.mrb[0].mxu0
  %v1302 = vadd.f32 %v1033, %v1301
  %v1303 = vpop.f32.mrb[0].mxu0
  %1304 = vmatprep.mubr.f32.mxu0 0.0
  %1305 = vmatmul.mubr.f32.gmra.mrb[0].mxu0 %v965
  %v1306 = vpop.f32.mrb[0].mxu0
  %v1307 = vadd.f32 %v1033, %v1306
  %v1308 = vpop.f32.mrb[0].mxu0
  %1309 = vmatprep.mubr.f32.mxu0 0.0
  %1310 = vmatmul.mubr.f32.gmra.mrb[0].mxu0 %v966
  %v1311 = vpop.f32.mrb[0].mxu0
  %v1312 = vadd.f32 %v1033, %v1311
  %v1313 = vpop.f32.mrb[0].mxu0
  %1314 = vmatprep.mubr.f32.mxu0 0.0
  %1315 = vmatmul.mubr.f32.gmra.mrb[0].mxu0 %v967
  %v1316 = vpop.f32.mrb[0].mxu0
  %v1317 = vadd.f32 %v1033, %v1316
  %v1318 = vpop.f32.mrb[0].mxu0
  %1319 = vmatprep.mubr.f32.mxu0 0.0
  %1320 = vmatmul.mubr.f32.gmra.mrb[0].mxu0 %v968
  %v1321 = vpop.f32.mrb[0].mxu0
  %v1322 = vadd.f32 %v1033, %v1321
  %v1323 = vpop.f32.mrb[0].mxu0
  %1324 = vmatprep.mubr.f32.mxu0 0.0
  %1325 = vmatmul.mubr.f32.gmra.mrb[0].mxu0 %v969
  %v1326 = vpop.f32.mrb[0].mxu0
  %v1327 = vadd.f32 %v1033, %v1326
  %v1328 = vpop.f32.mrb[0].mxu0
  %1329 = vmatprep.mubr.f32.mxu0 0.0
  %1330 = vmatmul.mubr.f32.gmra.mrb[0].mxu0 %v970
  %v1331 = vpop.f32.mrb[0].mxu0
  %v1332 = vadd.f32 %v1033, %v1331
  %v1333 = vpop.f32.mrb[0].mxu0
  %1334 = vmatprep.mubr.f32.mxu0 0.0
  %1335 = vmatmul.mubr.f32.gmra.mrb[0].mxu0 %v971
  %v1336 = vpop.f32.mrb[0].mxu0
  %v1337 = vadd.f32 %v1033, %v1336
  %v1338 = vpop.f32.mrb[0].mxu0
  %1339 = vmatprep.mubr.f32.mxu0 0.0
  %1340 = vmatmul.mubr.f32.gmra.mrb[0].mxu0 %v972
  %v1341 = vpop.f32.mrb[0].mxu0
  %v1342 = vadd.f32 %v1033, %v1341
  %v1343 = vpop.f32.mrb[0].mxu0
  %1344 = vmatprep.mubr.f32.mxu0 0.0
  %1345 = vmatmul.mubr.f32.gmra.mrb[0].mxu0 %v973
  %v1346 = vpop.f32.mrb[0].mxu0
  %v1347 = vadd.f32 %v1033, %v1346
  %v1348 = vpop.f32.mrb[0].mxu0
  %1349 = vmatprep.mubr.f32.mxu0 0.0
  %1350 = vmatmul.mubr.f32.gmra.mrb[0].mxu0 %v974
  %v1351 = vpop.f32.mrb[0].mxu0
  %v1352 = vadd.f32 %v1033, %v1351
  %v1353 = vpop.f32.mrb[0].mxu0
  %1354 = vmatprep.mubr.f32.mxu0 0.0
  %1355 = vmatmul.mubr.f32.gmra.mrb[0].mxu0 %v975
  %v1356 = vpop.f32.mrb[0].mxu0
  %v1357 = vadd.f32 %v1033, %v1356
  %v1358 = vpop.f32.mrb[0].mxu0
  %1359 = vmatprep.mubr.f32.mxu0 0.0
  %1360 = vmatmul.mubr.f32.gmra.mrb[0].mxu0 %v976
  %v1361 = vpop.f32.mrb[0].mxu0
  %v1362 = vadd.f32 %v1033, %v1361
  %v1363 = vpop.f32.mrb[0].mxu0
  %1364 = vmatprep.mubr.f32.mxu0 0.0
  %1365 = vmatmul.mubr.f32.gmra.mrb[0].mxu0 %v977
  %v1366 = vpop.f32.mrb[0].mxu0
  %v1367 = vadd.f32 %v1033, %v1366
  %v1368 = vpop.f32.mrb[0].mxu0
  %1369 = vmatprep.mubr.f32.mxu0 0.0
  %1370 = vmatmul.mubr.f32.gmra.mrb[0].mxu0 %v978
  %v1371 = vpop.f32.mrb[0].mxu0
  %v1372 = vadd.f32 %v1033, %v1371
  %v1373 = vpop.f32.mrb[0].mxu0
  %1374 = vmatprep.mubr.f32.mxu0 0.0
  %1375 = vmatmul.mubr.f32.gmra.mrb[0].mxu0 %v979
  %v1376 = vpop.f32.mrb[0].mxu0
  %v1377 = vadd.f32 %v1033, %v1376
  %v1378 = vpop.f32.mrb[0].mxu0
  %1379 = vmatprep.mubr.f32.mxu0 0.0
  %1380 = vmatmul.mubr.f32.gmra.mrb[0].mxu0 %v980
  %v1381 = vpop.f32.mrb[0].mxu0
  %v1382 = vadd.f32 %v1033, %v1381
  %v1383 = vpop.f32.mrb[0].mxu0
  %1384 = vmatprep.mubr.f32.mxu0 0.0
  %1385 = vmatmul.mubr.f32.gmra.mrb[0].mxu0 %v981
  %v1386 = vpop.f32.mrb[0].mxu0
  %v1387 = vadd.f32 %v1033, %v1386
  %v1388 = vpop.f32.mrb[0].mxu0
  %1389 = vmatprep.mubr.f32.mxu0 0.0
  %1390 = vmatmul.mubr.f32.gmra.mrb[0].mxu0 %v982
  %v1391 = vpop.f32.mrb[0].mxu0
  %v1392 = vadd.f32 %v1033, %v1391
  %v1393 = vpop.f32.mrb[0].mxu0
  %1394 = vmatprep.mubr.f32.mxu0 0.0
  %1395 = vmatmul.mubr.f32.gmra.mrb[0].mxu0 %v983
  %v1396 = vpop.f32.mrb[0].mxu0
  %v1397 = vadd.f32 %v1033, %v1396
  %v1398 = vpop.f32.mrb[0].mxu0
  %1399 = vmatprep.mubr.f32.mxu0 0.0
  %1400 = vmatmul.mubr.f32.gmra.mrb[0].mxu0 %v984
  %v1401 = vpop.f32.mrb[0].mxu0
  %v1402 = vadd.f32 %v1033, %v1401
  %v1403 = vpop.f32.mrb[0].mxu0
  %1404 = vmatprep.mubr.f32.mxu0 0.0
  %1405 = vmatmul.mubr.f32.gmra.mrb[0].mxu0 %v985
  %v1406 = vpop.f32.mrb[0].mxu0
  %v1407 = vadd.f32 %v1033, %v1406
  %v1408 = vpop.f32.mrb[0].mxu0
  %1409 = vmatprep.mubr.f32.mxu0 0.0
  %1410 = vmatmul.mubr.f32.gmra.mrb[0].mxu0 %v986
  %v1411 = vpop.f32.mrb[0].mxu0
  %v1412 = vadd.f32 %v1033, %v1411
  %v1413 = vpop.f32.mrb[0].mxu0
  %1414 = vmatprep.mubr.f32.mxu0 0.0
  %1415 = vmatmul.mubr.f32.gmra.mrb[0].mxu0 %v987
  %v1416 = vpop.f32.mrb[0].mxu0
  %v1417 = vadd.f32 %v1033, %v1416
  %v1418 = vpop.f32.mrb[0].mxu0
  %1419 = vmatprep.mubr.f32.mxu0 0.0
  %1420 = vmatmul.mubr.f32.gmra.mrb[0].mxu0 %v988
  %v1421 = vpop.f32.mrb[0].mxu0
  %v1422 = vadd.f32 %v1033, %v1421
  %v1423 = vpop.f32.mrb[0].mxu0
  %1424 = vmatprep.mubr.f32.mxu0 0.0
  %1425 = vmatmul.mubr.f32.gmra.mrb[0].mxu0 %v989
  %v1426 = vpop.f32.mrb[0].mxu0
  %v1427 = vadd.f32 %v1033, %v1426
  %v1428 = vpop.f32.mrb[0].mxu0
  %1429 = vmatprep.mubr.f32.mxu0 0.0
  %1430 = vmatmul.mubr.f32.gmra.mrb[0].mxu0 %v990
  %v1431 = vpop.f32.mrb[0].mxu0
  %v1432 = vadd.f32 %v1033, %v1431
  %v1433 = vpop.f32.mrb[0].mxu0
  %1434 = vmatprep.mubr.f32.mxu0 0.0
  %1435 = vmatmul.mubr.f32.gmra.mrb[0].mxu0 %v991
  %v1436 = vpop.f32.mrb[0].mxu0
  %v1437 = vadd.f32 %v1033, %v1436
  %v1438 = vpop.f32.mrb[0].mxu0
  %1439 = vmatprep.mubr.f32.mxu0 0.0
  %1440 = vmatmul.mubr.f32.gmra.mrb[0].mxu0 %v992
  %v1441 = vpop.f32.mrb[0].mxu0
  %v1442 = vadd.f32 %v1033, %v1441
  %v1443 = vpop.f32.mrb[0].mxu0
  %1444 = vmatprep.mubr.f32.mxu0 0.0
  %1445 = vmatmul.mubr.f32.gmra.mrb[0].mxu0 %v993
  %v1446 = vpop.f32.mrb[0].mxu0
  %v1447 = vadd.f32 %v1033, %v1446
  %v1448 = vpop.f32.mrb[0].mxu0
  %1449 = vmatprep.mubr.f32.mxu0 0.0
  %1450 = vmatmul.mubr.f32.gmra.mrb[0].mxu0 %v994
  %v1451 = vpop.f32.mrb[0].mxu0
  %v1452 = vadd.f32 %v1033, %v1451
  %v1453 = vpop.f32.mrb[0].mxu0
  %1454 = vmatprep.mubr.f32.mxu0 0.0
  %1455 = vmatmul.mubr.f32.gmra.mrb[0].mxu0 %v995
  %v1456 = vpop.f32.mrb[0].mxu0
  %v1457 = vadd.f32 %v1033, %v1456
  %v1458 = vpop.f32.mrb[0].mxu0
  %1459 = vmatprep.mubr.f32.mxu0 0.0
  %1460 = vmatmul.mubr.f32.gmra.mrb[0].mxu0 %v996
  %v1461 = vpop.f32.mrb[0].mxu0
  %v1462 = vadd.f32 %v1033, %v1461
  %v1463 = vpop.f32.mrb[0].mxu0
  %1464 = vmatprep.mubr.f32.mxu0 0.0
  %1465 = vmatmul.mubr.f32.gmra.mrb[0].mxu0 %v997
  %v1466 = vpop.f32.mrb[0].mxu0
  %v1467 = vadd.f32 %v1033, %v1466
  %v1468 = vpop.f32.mrb[0].mxu0
  %1469 = vmatprep.mubr.f32.mxu0 0.0
  %1470 = vmatmul.mubr.f32.gmra.mrb[0].mxu0 %v998
  %v1471 = vpop.f32.mrb[0].mxu0
  %v1472 = vadd.f32 %v1033, %v1471
  %v1473 = vpop.f32.mrb[0].mxu0
  %1474 = vmatprep.mubr.f32.mxu0 0.0
  %1475 = vmatmul.mubr.f32.gmra.mrb[0].mxu0 %v999
  %v1476 = vpop.f32.mrb[0].mxu0
  %v1477 = vadd.f32 %v1033, %v1476
  %v1478 = vpop.f32.mrb[0].mxu0
  %1479 = vmatprep.mubr.f32.mxu0 0.0
  %1480 = vmatmul.mubr.f32.gmra.mrb[0].mxu0 %v1000
  %v1481 = vpop.f32.mrb[0].mxu0
  %v1482 = vadd.f32 %v1033, %v1481
  %v1483 = vpop.f32.mrb[0].mxu0
  %1484 = vmatprep.mubr.f32.mxu0 0.0
  %1485 = vmatmul.mubr.f32.gmra.mrb[0].mxu0 %v1001
  %v1486 = vpop.f32.mrb[0].mxu0
  %v1487 = vadd.f32 %v1033, %v1486
  %v1488 = vpop.f32.mrb[0].mxu0
  %1489 = vmatprep.mubr.f32.mxu0 0.0
  %1490 = vmatmul.mubr.f32.gmra.mrb[0].mxu0 %v1002
  %v1491 = vpop.f32.mrb[0].mxu0
  %v1492 = vadd.f32 %v1033, %v1491
  %v1493 = vpop.f32.mrb[0].mxu0
  %1494 = vmatprep.mubr.f32.mxu0 0.0
  %1495 = vmatmul.mubr.f32.gmra.mrb[0].mxu0 %v1003
  %v1496 = vpop.f32.mrb[0].mxu0
  %v1497 = vadd.f32 %v1033, %v1496
  %v1498 = vpop.f32.mrb[0].mxu0
  %1499 = vmatprep.mubr.f32.mxu0 0.0
  %1500 = vmatmul.mubr.f32.gmra.mrb[0].mxu0 %v1004
  %v1501 = vpop.f32.mrb[0].mxu0
  %v1502 = vadd.f32 %v1033, %v1501
  %v1503 = vpop.f32.mrb[0].mxu0
  %1504 = vmatprep.mubr.f32.mxu0 0.0
  %1505 = vmatmul.mubr.f32.gmra.mrb[0].mxu0 %v1005
  %v1506 = vpop.f32.mrb[0].mxu0
  %v1507 = vadd.f32 %v1033, %v1506
  %v1508 = vpop.f32.mrb[0].mxu0
  %1509 = vmatprep.mubr.f32.mxu0 0.0
  %1510 = vmatmul.mubr.f32.gmra.mrb[0].mxu0 %v1006
  %v1511 = vpop.f32.mrb[0].mxu0
  %v1512 = vadd.f32 %v1033, %v1511
  %v1513 = vpop.f32.mrb[0].mxu0
  %1514 = vmatprep.mubr.f32.mxu0 0.0
  %1515 = vmatmul.mubr.f32.gmra.mrb[0].mxu0 %v1007
  %v1516 = vpop.f32.mrb[0].mxu0
  %v1517 = vadd.f32 %v1033, %v1516
  %v1518 = vpop.f32.mrb[0].mxu0
  %1519 = vmatprep.mubr.f32.mxu0 0.0
  %1520 = vmatmul.mubr.f32.gmra.mrb[0].mxu0 %v1008
  %v1521 = vpop.f32.mrb[0].mxu0
  %v1522 = vadd.f32 %v1033, %v1521
  %v1523 = vpop.f32.mrb[0].mxu0
  %1524 = vmatprep.mubr.f32.mxu0 0.0
  %1525 = vmatmul.mubr.f32.gmra.mrb[0].mxu0 %v1009
  %v1526 = vpop.f32.mrb[0].mxu0
  %v1527 = vadd.f32 %v1033, %v1526
  %v1528 = vpop.f32.mrb[0].mxu0
  %1529 = vmatprep.mubr.f32.mxu0 0.0
  %1530 = vmatmul.mubr.f32.gmra.mrb[0].mxu0 %v1010
  %v1531 = vpop.f32.mrb[0].mxu0
  %v1532 = vadd.f32 %v1033, %v1531
  %v1533 = vpop.f32.mrb[0].mxu0
  %1534 = vmatprep.mubr.f32.mxu0 0.0
  %1535 = vmatmul.mubr.f32.gmra.mrb[0].mxu0 %v1011
  %v1536 = vpop.f32.mrb[0].mxu0
  %v1537 = vadd.f32 %v1033, %v1536
  %v1538 = vpop.f32.mrb[0].mxu0
  %1539 = vdwg.mxu0
  %v1540 = vtanh.pop %v1102
  %v1541 = vtanh.pop %v1107
  %v1542 = vtanh.pop %v1112
  %v1543 = vtanh.pop %v1117
  %v1544 = vtanh.pop %v1122
  %v1545 = vtanh.pop %v1127
  %v1546 = vtanh.pop %v1132
  %v1547 = vtanh.pop %v1137
  %v1548 = vtanh.pop %v1142
  %v1549 = vtanh.pop %v1147
  %v1550 = vtanh.pop %v1152
  %v1551 = vtanh.pop %v1157
  %v1552 = vtanh.pop %v1162
  %v1553 = vtanh.pop %v1167
  %v1554 = vtanh.pop %v1172
  %v1555 = vtanh.pop %v1177
  %v1556 = vtanh.pop %v1182
  %v1557 = vtanh.pop %v1187
  %v1558 = vtanh.pop %v1192
  %v1559 = vtanh.pop %v1197
  %v1560 = vtanh.pop %v1202
  %v1561 = vtanh.pop %v1207
  %v1562 = vtanh.pop %v1212
  %v1563 = vtanh.pop %v1217
  %v1564 = vtanh.pop %v1222
  %v1565 = vtanh.pop %v1227
  %v1566 = vtanh.pop %v1232
  %v1567 = vtanh.pop %v1237
  %v1568 = vtanh.pop %v1242
  %v1569 = vtanh.pop %v1247
  %v1570 = vtanh.pop %v1252
  %v1571 = vtanh.pop %v1257
  %v1572 = vtanh.pop %v1262
  %v1573 = vtanh.pop %v1267
  %v1574 = vtanh.pop %v1272
  %v1575 = vtanh.pop %v1277
  %v1576 = vtanh.pop %v1282
  %v1577 = vtanh.pop %v1287
  %v1578 = vtanh.pop %v1292
  %v1579 = vtanh.pop %v1297
  %v1580 = vtanh.pop %v1302
  %v1581 = vtanh.pop %v1307
  %v1582 = vtanh.pop %v1312
  %v1583 = vtanh.pop %v1317
  %v1584 = vtanh.pop %v1322
  %v1585 = vtanh.pop %v1327
  %v1586 = vtanh.pop %v1332
  %v1587 = vtanh.pop %v1337
  %v1588 = vtanh.pop %v1342
  %v1589 = vtanh.pop %v1347
  %v1590 = vtanh.pop %v1352
  %v1591 = vtanh.pop %v1357
  %v1592 = vtanh.pop %v1362
  %v1593 = vtanh.pop %v1367
  %v1594 = vtanh.pop %v1372
  %v1595 = vtanh.pop %v1377
  %v1596 = vtanh.pop %v1382
  %v1597 = vtanh.pop %v1387
  %v1598 = vtanh.pop %v1392
  %v1599 = vtanh.pop %v1397
  %v1600 = vtanh.pop %v1402
  %v1601 = vtanh.pop %v1407
  %v1602 = vtanh.pop %v1412
  %v1603 = vtanh.pop %v1417
  %v1604 = vtanh.pop %v1422
  %v1605 = vtanh.pop %v1427
  %v1606 = vtanh.pop %v1432
  %v1607 = vtanh.pop %v1437
  %v1608 = vtanh.pop %v1442
  %v1609 = vtanh.pop %v1447
  %v1610 = vtanh.pop %v1452
  %v1611 = vtanh.pop %v1457
  %v1612 = vtanh.pop %v1462
  %v1613 = vtanh.pop %v1467
  %v1614 = vtanh.pop %v1472
  %v1615 = vtanh.pop %v1477
  %v1616 = vtanh.pop %v1482
  %v1617 = vtanh.pop %v1487
  %v1618 = vtanh.pop %v1492
  %v1619 = vtanh.pop %v1497
  %v1620 = vtanh.pop %v1502
  %v1621 = vtanh.pop %v1507
  %v1622 = vtanh.pop %v1512
  %v1623 = vtanh.pop %v1517
  %v1624 = vtanh.pop %v1522
  %v1625 = vtanh.pop %v1527
  %v1626 = vtanh.pop %v1532
  %v1627 = vtanh.pop %v1537
  %v1628 = vld [vmem:[%s6] sm:$0xff]
  %v1629 = vld [vmem:[%s6 + $0x8] sm:$0xff]
  %vm1630 = vcmask 130048
  %v1632 = vsel %vm1630, %v1540, 0
  %v1635 = vsel %vm1630, %v1541, 0
  %v1638 = vsel %vm1630, %v1542, 0
  %v1641 = vsel %vm1630, %v1543, 0
  %v1644 = vsel %vm1630, %v1544, 0
  %v1647 = vsel %vm1630, %v1545, 0
  %v1650 = vsel %vm1630, %v1546, 0
  %v1653 = vsel %vm1630, %v1547, 0
  %v1656 = vsel %vm1630, %v1548, 0
  %v1659 = vsel %vm1630, %v1549, 0
  %v1662 = vsel %vm1630, %v1550, 0
  %v1665 = vsel %vm1630, %v1551, 0
  %v1668 = vsel %vm1630, %v1552, 0
  %v1671 = vsel %vm1630, %v1553, 0
  %v1674 = vsel %vm1630, %v1554, 0
  %v1677 = vsel %vm1630, %v1555, 0
  %v1680 = vsel %vm1630, %v1556, 0
  %v1683 = vsel %vm1630, %v1557, 0
  %v1686 = vsel %vm1630, %v1558, 0
  %v1689 = vsel %vm1630, %v1559, 0
  %v1692 = vsel %vm1630, %v1560, 0
  %v1695 = vsel %vm1630, %v1561, 0
  %v1698 = vsel %vm1630, %v1562, 0
  %v1701 = vsel %vm1630, %v1563, 0
  %v1704 = vsel %vm1630, %v1564, 0
  %v1707 = vsel %vm1630, %v1565, 0
  %v1710 = vsel %vm1630, %v1566, 0
  %v1713 = vsel %vm1630, %v1567, 0
  %v1716 = vsel %vm1630, %v1568, 0
  %v1719 = vsel %vm1630, %v1569, 0
  %v1722 = vsel %vm1630, %v1570, 0
  %v1725 = vsel %vm1630, %v1571, 0
  %v1728 = vsel %vm1630, %v1572, 0
  %v1731 = vsel %vm1630, %v1573, 0
  %v1734 = vsel %vm1630, %v1574, 0
  %v1737 = vsel %vm1630, %v1575, 0
  %v1740 = vsel %vm1630, %v1576, 0
  %v1743 = vsel %vm1630, %v1577, 0
  %v1746 = vsel %vm1630, %v1578, 0
  %v1749 = vsel %vm1630, %v1579, 0
  %v1752 = vsel %vm1630, %v1580, 0
  %v1755 = vsel %vm1630, %v1581, 0
  %v1758 = vsel %vm1630, %v1582, 0
  %v1761 = vsel %vm1630, %v1583, 0
  %v1764 = vsel %vm1630, %v1584, 0
  %v1767 = vsel %vm1630, %v1585, 0
  %v1770 = vsel %vm1630, %v1586, 0
  %v1773 = vsel %vm1630, %v1587, 0
  %v1776 = vsel %vm1630, %v1588, 0
  %v1779 = vsel %vm1630, %v1589, 0
  %v1782 = vsel %vm1630, %v1590, 0
  %v1785 = vsel %vm1630, %v1591, 0
  %v1788 = vsel %vm1630, %v1592, 0
  %v1791 = vsel %vm1630, %v1593, 0
  %v1794 = vsel %vm1630, %v1594, 0
  %v1797 = vsel %vm1630, %v1595, 0
  %v1800 = vsel %vm1630, %v1596, 0
  %v1803 = vsel %vm1630, %v1597, 0
  %v1806 = vsel %vm1630, %v1598, 0
  %v1809 = vsel %vm1630, %v1599, 0
  %v1812 = vsel %vm1630, %v1600, 0
  %v1815 = vsel %vm1630, %v1601, 0
  %v1818 = vsel %vm1630, %v1602, 0
  %v1821 = vsel %vm1630, %v1603, 0
  %v1824 = vsel %vm1630, %v1604, 0
  %v1827 = vsel %vm1630, %v1605, 0
  %v1830 = vsel %vm1630, %v1606, 0
  %v1833 = vsel %vm1630, %v1607, 0
  %v1836 = vsel %vm1630, %v1608, 0
  %v1839 = vsel %vm1630, %v1609, 0
  %v1842 = vsel %vm1630, %v1610, 0
  %v1845 = vsel %vm1630, %v1611, 0
  %v1848 = vsel %vm1630, %v1612, 0
  %v1851 = vsel %vm1630, %v1613, 0
  %v1854 = vsel %vm1630, %v1614, 0
  %v1857 = vsel %vm1630, %v1615, 0
  %v1860 = vsel %vm1630, %v1616, 0
  %v1863 = vsel %vm1630, %v1617, 0
  %v1866 = vsel %vm1630, %v1618, 0
  %v1869 = vsel %vm1630, %v1619, 0
  %v1872 = vsel %vm1630, %v1620, 0
  %v1875 = vsel %vm1630, %v1621, 0
  %v1878 = vsel %vm1630, %v1622, 0
  %v1881 = vsel %vm1630, %v1623, 0
  %v1884 = vsel %vm1630, %v1624, 0
  %v1887 = vsel %vm1630, %v1625, 0
  %v1890 = vsel %vm1630, %v1626, 0
  %v1893 = vsel %vm1630, %v1627, 0
  %1895 = vmatprep.subr.mxu0 0.0
  %1896 = vmatpush1.msra.mxu0 %v1628
  %1897 = vmatprep.subr.mxu0 0.0
  %1898 = vmatpush1.msra.mxu0 %v1629
  %1899 = vmatprep.subr.mxu0 0.0
  %1900 = vmatpush1.msra.mxu0 0.0
  %1901 = vmatprep.subr.mxu0 0.0
  %1902 = vmatpush1.msra.mxu0 0.0
  %1903 = vmatprep.subr.mxu0 0.0
  %1904 = vmatpush1.msra.mxu0 0.0
  %1905 = vmatprep.subr.mxu0 0.0
  %1906 = vmatpush1.msra.mxu0 0.0
  %1907 = vmatprep.subr.mxu0 0.0
  %1908 = vmatpush1.msra.mxu0 0.0
  %1909 = vmatprep.subr.mxu0 0.0
  %1910 = vmatpush1.msra.mxu0 0.0
  %1911 = vmatprep.subr.mxu0 0.0
  %1912 = vmatpush1.msra.mxu0 0.0
  %1913 = vmatprep.subr.mxu0 0.0
  %1914 = vmatpush1.msra.mxu0 0.0
  %1915 = vmatprep.subr.mxu0 0.0
  %1916 = vmatpush1.msra.mxu0 0.0
  %1917 = vmatprep.subr.mxu0 0.0
  %1918 = vmatpush1.msra.mxu0 0.0
  %1919 = vmatprep.subr.mxu0 0.0
  %1920 = vmatpush1.msra.mxu0 0.0
  %1921 = vmatprep.subr.mxu0 0.0
  %1922 = vmatpush1.msra.mxu0 0.0
  %1923 = vmatprep.subr.mxu0 0.0
  %1924 = vmatpush1.msra.mxu0 0.0
  %1925 = vmatprep.subr.mxu0 0.0
  %1926 = vmatpush1.msra.mxu0 0.0
  %1927 = vmatprep.subr.mxu0 0.0
  %1928 = vmatpush1.msra.mxu0 0.0
  %1929 = vmatprep.subr.mxu0 0.0
  %1930 = vmatpush1.msra.mxu0 0.0
  %1931 = vmatprep.subr.mxu0 0.0
  %1932 = vmatpush1.msra.mxu0 0.0
  %1933 = vmatprep.subr.mxu0 0.0
  %1934 = vmatpush1.msra.mxu0 0.0
  %1935 = vmatprep.subr.mxu0 0.0
  %1936 = vmatpush1.msra.mxu0 0.0
  %1937 = vmatprep.subr.mxu0 0.0
  %1938 = vmatpush1.msra.mxu0 0.0
  %1939 = vmatprep.subr.mxu0 0.0
  %1940 = vmatpush1.msra.mxu0 0.0
  %1941 = vmatprep.subr.mxu0 0.0
  %1942 = vmatpush1.msra.mxu0 0.0
  %1943 = vmatprep.subr.mxu0 0.0
  %1944 = vmatpush1.msra.mxu0 0.0
  %1945 = vmatprep.subr.mxu0 0.0
  %1946 = vmatpush1.msra.mxu0 0.0
  %1947 = vmatprep.subr.mxu0 0.0
  %1948 = vmatpush1.msra.mxu0 0.0
  %1949 = vmatprep.subr.mxu0 0.0
  %1950 = vmatpush1.msra.mxu0 0.0
  %1951 = vmatprep.subr.mxu0 0.0
  %1952 = vmatpush1.msra.mxu0 0.0
  %1953 = vmatprep.subr.mxu0 0.0
  %1954 = vmatpush1.msra.mxu0 0.0
  %1955 = vmatprep.subr.mxu0 0.0
  %1956 = vmatpush1.msra.mxu0 0.0
  %1957 = vmatprep.subr.mxu0 0.0
  %1958 = vmatpush1.msra.mxu0 0.0
  %1959 = vmatprep.mubr.f32.mxu0 0.0
  %1960 = vmatmul.mubr.f32.gmra.mrb[0].mxu0 %v1632
  %v1961 = vpop.f32.mrb[0].mxu0
  %v1962 = vadd.f32 0.0, %v1961
  %v1963 = vpop.f32.mrb[0].mxu0
  %1964 = vmatprep.mubr.f32.mxu0 0.0
  %1965 = vmatmul.mubr.f32.gmra.mrb[0].mxu0 %v1635
  %v1966 = vpop.f32.mrb[0].mxu0
  %v1967 = vadd.f32 0.0, %v1966
  %v1968 = vpop.f32.mrb[0].mxu0
  %1969 = vmatprep.mubr.f32.mxu0 0.0
  %1970 = vmatmul.mubr.f32.gmra.mrb[0].mxu0 %v1638
  %v1971 = vpop.f32.mrb[0].mxu0
  %v1972 = vadd.f32 0.0, %v1971
  %v1973 = vpop.f32.mrb[0].mxu0
  %1974 = vmatprep.mubr.f32.mxu0 0.0
  %1975 = vmatmul.mubr.f32.gmra.mrb[0].mxu0 %v1641
  %v1976 = vpop.f32.mrb[0].mxu0
  %v1977 = vadd.f32 0.0, %v1976
  %v1978 = vpop.f32.mrb[0].mxu0
  %1979 = vmatprep.mubr.f32.mxu0 0.0
  %1980 = vmatmul.mubr.f32.gmra.mrb[0].mxu0 %v1644
  %v1981 = vpop.f32.mrb[0].mxu0
  %v1982 = vadd.f32 0.0, %v1981
  %v1983 = vpop.f32.mrb[0].mxu0
  %1984 = vmatprep.mubr.f32.mxu0 0.0
  %1985 = vmatmul.mubr.f32.gmra.mrb[0].mxu0 %v1647
  %v1986 = vpop.f32.mrb[0].mxu0
  %v1987 = vadd.f32 0.0, %v1986
  %v1988 = vpop.f32.mrb[0].mxu0
  %1989 = vmatprep.mubr.f32.mxu0 0.0
  %1990 = vmatmul.mubr.f32.gmra.mrb[0].mxu0 %v1650
  %v1991 = vpop.f32.mrb[0].mxu0
  %v1992 = vadd.f32 0.0, %v1991
  %v1993 = vpop.f32.mrb[0].mxu0
  %1994 = vmatprep.mubr.f32.mxu0 0.0
  %1995 = vmatmul.mubr.f32.gmra.mrb[0].mxu0 %v1653
  %v1996 = vpop.f32.mrb[0].mxu0
  %v1997 = vadd.f32 0.0, %v1996
  %v1998 = vpop.f32.mrb[0].mxu0
  %1999 = vmatprep.mubr.f32.mxu0 0.0
  %2000 = vmatmul.mubr.f32.gmra.mrb[0].mxu0 %v1656
  %v2001 = vpop.f32.mrb[0].mxu0
  %v2002 = vadd.f32 0.0, %v2001
  %v2003 = vpop.f32.mrb[0].mxu0
  %2004 = vmatprep.mubr.f32.mxu0 0.0
  %2005 = vmatmul.mubr.f32.gmra.mrb[0].mxu0 %v1659
  %v2006 = vpop.f32.mrb[0].mxu0
  %v2007 = vadd.f32 0.0, %v2006
  %v2008 = vpop.f32.mrb[0].mxu0
  %2009 = vmatprep.mubr.f32.mxu0 0.0
  %2010 = vmatmul.mubr.f32.gmra.mrb[0].mxu0 %v1662
  %v2011 = vpop.f32.mrb[0].mxu0
  %v2012 = vadd.f32 0.0, %v2011
  %v2013 = vpop.f32.mrb[0].mxu0
  %2014 = vmatprep.mubr.f32.mxu0 0.0
  %2015 = vmatmul.mubr.f32.gmra.mrb[0].mxu0 %v1665
  %v2016 = vpop.f32.mrb[0].mxu0
  %v2017 = vadd.f32 0.0, %v2016
  %v2018 = vpop.f32.mrb[0].mxu0
  %2019 = vmatprep.mubr.f32.mxu0 0.0
  %2020 = vmatmul.mubr.f32.gmra.mrb[0].mxu0 %v1668
  %v2021 = vpop.f32.mrb[0].mxu0
  %v2022 = vadd.f32 0.0, %v2021
  %v2023 = vpop.f32.mrb[0].mxu0
  %2024 = vmatprep.mubr.f32.mxu0 0.0
  %2025 = vmatmul.mubr.f32.gmra.mrb[0].mxu0 %v1671
  %v2026 = vpop.f32.mrb[0].mxu0
  %v2027 = vadd.f32 0.0, %v2026
  %v2028 = vpop.f32.mrb[0].mxu0
  %2029 = vmatprep.mubr.f32.mxu0 0.0
  %2030 = vmatmul.mubr.f32.gmra.mrb[0].mxu0 %v1674
  %v2031 = vpop.f32.mrb[0].mxu0
  %v2032 = vadd.f32 0.0, %v2031
  %v2033 = vpop.f32.mrb[0].mxu0
  %2034 = vmatprep.mubr.f32.mxu0 0.0
  %2035 = vmatmul.mubr.f32.gmra.mrb[0].mxu0 %v1677
  %v2036 = vpop.f32.mrb[0].mxu0
  %v2037 = vadd.f32 0.0, %v2036
  %v2038 = vpop.f32.mrb[0].mxu0
  %2039 = vmatprep.mubr.f32.mxu0 0.0
  %2040 = vmatmul.mubr.f32.gmra.mrb[0].mxu0 %v1680
  %v2041 = vpop.f32.mrb[0].mxu0
  %v2042 = vadd.f32 0.0, %v2041
  %v2043 = vpop.f32.mrb[0].mxu0
  %2044 = vmatprep.mubr.f32.mxu0 0.0
  %2045 = vmatmul.mubr.f32.gmra.mrb[0].mxu0 %v1683
  %v2046 = vpop.f32.mrb[0].mxu0
  %v2047 = vadd.f32 0.0, %v2046
  %v2048 = vpop.f32.mrb[0].mxu0
  %2049 = vmatprep.mubr.f32.mxu0 0.0
  %2050 = vmatmul.mubr.f32.gmra.mrb[0].mxu0 %v1686
  %v2051 = vpop.f32.mrb[0].mxu0
  %v2052 = vadd.f32 0.0, %v2051
  %v2053 = vpop.f32.mrb[0].mxu0
  %2054 = vmatprep.mubr.f32.mxu0 0.0
  %2055 = vmatmul.mubr.f32.gmra.mrb[0].mxu0 %v1689
  %v2056 = vpop.f32.mrb[0].mxu0
  %v2057 = vadd.f32 0.0, %v2056
  %v2058 = vpop.f32.mrb[0].mxu0
  %2059 = vmatprep.mubr.f32.mxu0 0.0
  %2060 = vmatmul.mubr.f32.gmra.mrb[0].mxu0 %v1692
  %v2061 = vpop.f32.mrb[0].mxu0
  %v2062 = vadd.f32 0.0, %v2061
  %v2063 = vpop.f32.mrb[0].mxu0
  %2064 = vmatprep.mubr.f32.mxu0 0.0
  %2065 = vmatmul.mubr.f32.gmra.mrb[0].mxu0 %v1695
  %v2066 = vpop.f32.mrb[0].mxu0
  %v2067 = vadd.f32 0.0, %v2066
  %v2068 = vpop.f32.mrb[0].mxu0
  %2069 = vmatprep.mubr.f32.mxu0 0.0
  %2070 = vmatmul.mubr.f32.gmra.mrb[0].mxu0 %v1698
  %v2071 = vpop.f32.mrb[0].mxu0
  %v2072 = vadd.f32 0.0, %v2071
  %v2073 = vpop.f32.mrb[0].mxu0
  %2074 = vmatprep.mubr.f32.mxu0 0.0
  %2075 = vmatmul.mubr.f32.gmra.mrb[0].mxu0 %v1701
  %v2076 = vpop.f32.mrb[0].mxu0
  %v2077 = vadd.f32 0.0, %v2076
  %v2078 = vpop.f32.mrb[0].mxu0
  %2079 = vmatprep.mubr.f32.mxu0 0.0
  %2080 = vmatmul.mubr.f32.gmra.mrb[0].mxu0 %v1704
  %v2081 = vpop.f32.mrb[0].mxu0
  %v2082 = vadd.f32 0.0, %v2081
  %v2083 = vpop.f32.mrb[0].mxu0
  %2084 = vmatprep.mubr.f32.mxu0 0.0
  %2085 = vmatmul.mubr.f32.gmra.mrb[0].mxu0 %v1707
  %v2086 = vpop.f32.mrb[0].mxu0
  %v2087 = vadd.f32 0.0, %v2086
  %v2088 = vpop.f32.mrb[0].mxu0
  %2089 = vmatprep.mubr.f32.mxu0 0.0
  %2090 = vmatmul.mubr.f32.gmra.mrb[0].mxu0 %v1710
  %v2091 = vpop.f32.mrb[0].mxu0
  %v2092 = vadd.f32 0.0, %v2091
  %v2093 = vpop.f32.mrb[0].mxu0
  %2094 = vmatprep.mubr.f32.mxu0 0.0
  %2095 = vmatmul.mubr.f32.gmra.mrb[0].mxu0 %v1713
  %v2096 = vpop.f32.mrb[0].mxu0
  %v2097 = vadd.f32 0.0, %v2096
  %v2098 = vpop.f32.mrb[0].mxu0
  %2099 = vmatprep.mubr.f32.mxu0 0.0
  %2100 = vmatmul.mubr.f32.gmra.mrb[0].mxu0 %v1716
  %v2101 = vpop.f32.mrb[0].mxu0
  %v2102 = vadd.f32 0.0, %v2101
  %v2103 = vpop.f32.mrb[0].mxu0
  %2104 = vmatprep.mubr.f32.mxu0 0.0
  %2105 = vmatmul.mubr.f32.gmra.mrb[0].mxu0 %v1719
  %v2106 = vpop.f32.mrb[0].mxu0
  %v2107 = vadd.f32 0.0, %v2106
  %v2108 = vpop.f32.mrb[0].mxu0
  %2109 = vmatprep.mubr.f32.mxu0 0.0
  %2110 = vmatmul.mubr.f32.gmra.mrb[0].mxu0 %v1722
  %v2111 = vpop.f32.mrb[0].mxu0
  %v2112 = vadd.f32 0.0, %v2111
  %v2113 = vpop.f32.mrb[0].mxu0
  %2114 = vmatprep.mubr.f32.mxu0 0.0
  %2115 = vmatmul.mubr.f32.gmra.mrb[0].mxu0 %v1725
  %v2116 = vpop.f32.mrb[0].mxu0
  %v2117 = vadd.f32 0.0, %v2116
  %v2118 = vpop.f32.mrb[0].mxu0
  %2119 = vmatprep.mubr.f32.mxu0 0.0
  %2120 = vmatmul.mubr.f32.gmra.mrb[0].mxu0 %v1728
  %v2121 = vpop.f32.mrb[0].mxu0
  %v2122 = vadd.f32 0.0, %v2121
  %v2123 = vpop.f32.mrb[0].mxu0
  %2124 = vmatprep.mubr.f32.mxu0 0.0
  %2125 = vmatmul.mubr.f32.gmra.mrb[0].mxu0 %v1731
  %v2126 = vpop.f32.mrb[0].mxu0
  %v2127 = vadd.f32 0.0, %v2126
  %v2128 = vpop.f32.mrb[0].mxu0
  %2129 = vmatprep.mubr.f32.mxu0 0.0
  %2130 = vmatmul.mubr.f32.gmra.mrb[0].mxu0 %v1734
  %v2131 = vpop.f32.mrb[0].mxu0
  %v2132 = vadd.f32 0.0, %v2131
  %v2133 = vpop.f32.mrb[0].mxu0
  %2134 = vmatprep.mubr.f32.mxu0 0.0
  %2135 = vmatmul.mubr.f32.gmra.mrb[0].mxu0 %v1737
  %v2136 = vpop.f32.mrb[0].mxu0
  %v2137 = vadd.f32 0.0, %v2136
  %v2138 = vpop.f32.mrb[0].mxu0
  %2139 = vmatprep.mubr.f32.mxu0 0.0
  %2140 = vmatmul.mubr.f32.gmra.mrb[0].mxu0 %v1740
  %v2141 = vpop.f32.mrb[0].mxu0
  %v2142 = vadd.f32 0.0, %v2141
  %v2143 = vpop.f32.mrb[0].mxu0
  %2144 = vmatprep.mubr.f32.mxu0 0.0
  %2145 = vmatmul.mubr.f32.gmra.mrb[0].mxu0 %v1743
  %v2146 = vpop.f32.mrb[0].mxu0
  %v2147 = vadd.f32 0.0, %v2146
  %v2148 = vpop.f32.mrb[0].mxu0
  %2149 = vmatprep.mubr.f32.mxu0 0.0
  %2150 = vmatmul.mubr.f32.gmra.mrb[0].mxu0 %v1746
  %v2151 = vpop.f32.mrb[0].mxu0
  %v2152 = vadd.f32 0.0, %v2151
  %v2153 = vpop.f32.mrb[0].mxu0
  %2154 = vmatprep.mubr.f32.mxu0 0.0
  %2155 = vmatmul.mubr.f32.gmra.mrb[0].mxu0 %v1749
  %v2156 = vpop.f32.mrb[0].mxu0
  %v2157 = vadd.f32 0.0, %v2156
  %v2158 = vpop.f32.mrb[0].mxu0
  %2159 = vmatprep.mubr.f32.mxu0 0.0
  %2160 = vmatmul.mubr.f32.gmra.mrb[0].mxu0 %v1752
  %v2161 = vpop.f32.mrb[0].mxu0
  %v2162 = vadd.f32 0.0, %v2161
  %v2163 = vpop.f32.mrb[0].mxu0
  %2164 = vmatprep.mubr.f32.mxu0 0.0
  %2165 = vmatmul.mubr.f32.gmra.mrb[0].mxu0 %v1755
  %v2166 = vpop.f32.mrb[0].mxu0
  %v2167 = vadd.f32 0.0, %v2166
  %v2168 = vpop.f32.mrb[0].mxu0
  %2169 = vmatprep.mubr.f32.mxu0 0.0
  %2170 = vmatmul.mubr.f32.gmra.mrb[0].mxu0 %v1758
  %v2171 = vpop.f32.mrb[0].mxu0
  %v2172 = vadd.f32 0.0, %v2171
  %v2173 = vpop.f32.mrb[0].mxu0
  %2174 = vmatprep.mubr.f32.mxu0 0.0
  %2175 = vmatmul.mubr.f32.gmra.mrb[0].mxu0 %v1761
  %v2176 = vpop.f32.mrb[0].mxu0
  %v2177 = vadd.f32 0.0, %v2176
  %v2178 = vpop.f32.mrb[0].mxu0
  %2179 = vmatprep.mubr.f32.mxu0 0.0
  %2180 = vmatmul.mubr.f32.gmra.mrb[0].mxu0 %v1764
  %v2181 = vpop.f32.mrb[0].mxu0
  %v2182 = vadd.f32 0.0, %v2181
  %v2183 = vpop.f32.mrb[0].mxu0
  %2184 = vmatprep.mubr.f32.mxu0 0.0
  %2185 = vmatmul.mubr.f32.gmra.mrb[0].mxu0 %v1767
  %v2186 = vpop.f32.mrb[0].mxu0
  %v2187 = vadd.f32 0.0, %v2186
  %v2188 = vpop.f32.mrb[0].mxu0
  %2189 = vmatprep.mubr.f32.mxu0 0.0
  %2190 = vmatmul.mubr.f32.gmra.mrb[0].mxu0 %v1770
  %v2191 = vpop.f32.mrb[0].mxu0
  %v2192 = vadd.f32 0.0, %v2191
  %v2193 = vpop.f32.mrb[0].mxu0
  %2194 = vmatprep.mubr.f32.mxu0 0.0
  %2195 = vmatmul.mubr.f32.gmra.mrb[0].mxu0 %v1773
  %v2196 = vpop.f32.mrb[0].mxu0
  %v2197 = vadd.f32 0.0, %v2196
  %v2198 = vpop.f32.mrb[0].mxu0
  %2199 = vmatprep.mubr.f32.mxu0 0.0
  %2200 = vmatmul.mubr.f32.gmra.mrb[0].mxu0 %v1776
  %v2201 = vpop.f32.mrb[0].mxu0
  %v2202 = vadd.f32 0.0, %v2201
  %v2203 = vpop.f32.mrb[0].mxu0
  %2204 = vmatprep.mubr.f32.mxu0 0.0
  %2205 = vmatmul.mubr.f32.gmra.mrb[0].mxu0 %v1779
  %v2206 = vpop.f32.mrb[0].mxu0
  %v2207 = vadd.f32 0.0, %v2206
  %v2208 = vpop.f32.mrb[0].mxu0
  %2209 = vmatprep.mubr.f32.mxu0 0.0
  %2210 = vmatmul.mubr.f32.gmra.mrb[0].mxu0 %v1782
  %v2211 = vpop.f32.mrb[0].mxu0
  %v2212 = vadd.f32 0.0, %v2211
  %v2213 = vpop.f32.mrb[0].mxu0
  %2214 = vmatprep.mubr.f32.mxu0 0.0
  %2215 = vmatmul.mubr.f32.gmra.mrb[0].mxu0 %v1785
  %v2216 = vpop.f32.mrb[0].mxu0
  %v2217 = vadd.f32 0.0, %v2216
  %v2218 = vpop.f32.mrb[0].mxu0
  %2219 = vmatprep.mubr.f32.mxu0 0.0
  %2220 = vmatmul.mubr.f32.gmra.mrb[0].mxu0 %v1788
  %v2221 = vpop.f32.mrb[0].mxu0
  %v2222 = vadd.f32 0.0, %v2221
  %v2223 = vpop.f32.mrb[0].mxu0
  %2224 = vmatprep.mubr.f32.mxu0 0.0
  %2225 = vmatmul.mubr.f32.gmra.mrb[0].mxu0 %v1791
  %v2226 = vpop.f32.mrb[0].mxu0
  %v2227 = vadd.f32 0.0, %v2226
  %v2228 = vpop.f32.mrb[0].mxu0
  %2229 = vmatprep.mubr.f32.mxu0 0.0
  %2230 = vmatmul.mubr.f32.gmra.mrb[0].mxu0 %v1794
  %v2231 = vpop.f32.mrb[0].mxu0
  %v2232 = vadd.f32 0.0, %v2231
  %v2233 = vpop.f32.mrb[0].mxu0
  %2234 = vmatprep.mubr.f32.mxu0 0.0
  %2235 = vmatmul.mubr.f32.gmra.mrb[0].mxu0 %v1797
  %v2236 = vpop.f32.mrb[0].mxu0
  %v2237 = vadd.f32 0.0, %v2236
  %v2238 = vpop.f32.mrb[0].mxu0
  %2239 = vmatprep.mubr.f32.mxu0 0.0
  %2240 = vmatmul.mubr.f32.gmra.mrb[0].mxu0 %v1800
  %v2241 = vpop.f32.mrb[0].mxu0
  %v2242 = vadd.f32 0.0, %v2241
  %v2243 = vpop.f32.mrb[0].mxu0
  %2244 = vmatprep.mubr.f32.mxu0 0.0
  %2245 = vmatmul.mubr.f32.gmra.mrb[0].mxu0 %v1803
  %v2246 = vpop.f32.mrb[0].mxu0
  %v2247 = vadd.f32 0.0, %v2246
  %v2248 = vpop.f32.mrb[0].mxu0
  %2249 = vmatprep.mubr.f32.mxu0 0.0
  %2250 = vmatmul.mubr.f32.gmra.mrb[0].mxu0 %v1806
  %v2251 = vpop.f32.mrb[0].mxu0
  %v2252 = vadd.f32 0.0, %v2251
  %v2253 = vpop.f32.mrb[0].mxu0
  %2254 = vmatprep.mubr.f32.mxu0 0.0
  %2255 = vmatmul.mubr.f32.gmra.mrb[0].mxu0 %v1809
  %v2256 = vpop.f32.mrb[0].mxu0
  %v2257 = vadd.f32 0.0, %v2256
  %v2258 = vpop.f32.mrb[0].mxu0
  %2259 = vmatprep.mubr.f32.mxu0 0.0
  %2260 = vmatmul.mubr.f32.gmra.mrb[0].mxu0 %v1812
  %v2261 = vpop.f32.mrb[0].mxu0
  %v2262 = vadd.f32 0.0, %v2261
  %v2263 = vpop.f32.mrb[0].mxu0
  %2264 = vmatprep.mubr.f32.mxu0 0.0
  %2265 = vmatmul.mubr.f32.gmra.mrb[0].mxu0 %v1815
  %v2266 = vpop.f32.mrb[0].mxu0
  %v2267 = vadd.f32 0.0, %v2266
  %v2268 = vpop.f32.mrb[0].mxu0
  %2269 = vmatprep.mubr.f32.mxu0 0.0
  %2270 = vmatmul.mubr.f32.gmra.mrb[0].mxu0 %v1818
  %v2271 = vpop.f32.mrb[0].mxu0
  %v2272 = vadd.f32 0.0, %v2271
  %v2273 = vpop.f32.mrb[0].mxu0
  %2274 = vmatprep.mubr.f32.mxu0 0.0
  %2275 = vmatmul.mubr.f32.gmra.mrb[0].mxu0 %v1821
  %v2276 = vpop.f32.mrb[0].mxu0
  %v2277 = vadd.f32 0.0, %v2276
  %v2278 = vpop.f32.mrb[0].mxu0
  %2279 = vmatprep.mubr.f32.mxu0 0.0
  %2280 = vmatmul.mubr.f32.gmra.mrb[0].mxu0 %v1824
  %v2281 = vpop.f32.mrb[0].mxu0
  %v2282 = vadd.f32 0.0, %v2281
  %v2283 = vpop.f32.mrb[0].mxu0
  %2284 = vmatprep.mubr.f32.mxu0 0.0
  %2285 = vmatmul.mubr.f32.gmra.mrb[0].mxu0 %v1827
  %v2286 = vpop.f32.mrb[0].mxu0
  %v2287 = vadd.f32 0.0, %v2286
  %v2288 = vpop.f32.mrb[0].mxu0
  %2289 = vmatprep.mubr.f32.mxu0 0.0
  %2290 = vmatmul.mubr.f32.gmra.mrb[0].mxu0 %v1830
  %v2291 = vpop.f32.mrb[0].mxu0
  %v2292 = vadd.f32 0.0, %v2291
  %v2293 = vpop.f32.mrb[0].mxu0
  %2294 = vmatprep.mubr.f32.mxu0 0.0
  %2295 = vmatmul.mubr.f32.gmra.mrb[0].mxu0 %v1833
  %v2296 = vpop.f32.mrb[0].mxu0
  %v2297 = vadd.f32 0.0, %v2296
  %v2298 = vpop.f32.mrb[0].mxu0
  %2299 = vmatprep.mubr.f32.mxu0 0.0
  %2300 = vmatmul.mubr.f32.gmra.mrb[0].mxu0 %v1836
  %v2301 = vpop.f32.mrb[0].mxu0
  %v2302 = vadd.f32 0.0, %v2301
  %v2303 = vpop.f32.mrb[0].mxu0
  %2304 = vmatprep.mubr.f32.mxu0 0.0
  %2305 = vmatmul.mubr.f32.gmra.mrb[0].mxu0 %v1839
  %v2306 = vpop.f32.mrb[0].mxu0
  %v2307 = vadd.f32 0.0, %v2306
  %v2308 = vpop.f32.mrb[0].mxu0
  %2309 = vmatprep.mubr.f32.mxu0 0.0
  %2310 = vmatmul.mubr.f32.gmra.mrb[0].mxu0 %v1842
  %v2311 = vpop.f32.mrb[0].mxu0
  %v2312 = vadd.f32 0.0, %v2311
  %v2313 = vpop.f32.mrb[0].mxu0
  %2314 = vmatprep.mubr.f32.mxu0 0.0
  %2315 = vmatmul.mubr.f32.gmra.mrb[0].mxu0 %v1845
  %v2316 = vpop.f32.mrb[0].mxu0
  %v2317 = vadd.f32 0.0, %v2316
  %v2318 = vpop.f32.mrb[0].mxu0
  %2319 = vmatprep.mubr.f32.mxu0 0.0
  %2320 = vmatmul.mubr.f32.gmra.mrb[0].mxu0 %v1848
  %v2321 = vpop.f32.mrb[0].mxu0
  %v2322 = vadd.f32 0.0, %v2321
  %v2323 = vpop.f32.mrb[0].mxu0
  %2324 = vmatprep.mubr.f32.mxu0 0.0
  %2325 = vmatmul.mubr.f32.gmra.mrb[0].mxu0 %v1851
  %v2326 = vpop.f32.mrb[0].mxu0
  %v2327 = vadd.f32 0.0, %v2326
  %v2328 = vpop.f32.mrb[0].mxu0
  %2329 = vmatprep.mubr.f32.mxu0 0.0
  %2330 = vmatmul.mubr.f32.gmra.mrb[0].mxu0 %v1854
  %v2331 = vpop.f32.mrb[0].mxu0
  %v2332 = vadd.f32 0.0, %v2331
  %v2333 = vpop.f32.mrb[0].mxu0
  %2334 = vmatprep.mubr.f32.mxu0 0.0
  %2335 = vmatmul.mubr.f32.gmra.mrb[0].mxu0 %v1857
  %v2336 = vpop.f32.mrb[0].mxu0
  %v2337 = vadd.f32 0.0, %v2336
  %v2338 = vpop.f32.mrb[0].mxu0
  %2339 = vmatprep.mubr.f32.mxu0 0.0
  %2340 = vmatmul.mubr.f32.gmra.mrb[0].mxu0 %v1860
  %v2341 = vpop.f32.mrb[0].mxu0
  %v2342 = vadd.f32 0.0, %v2341
  %v2343 = vpop.f32.mrb[0].mxu0
  %2344 = vmatprep.mubr.f32.mxu0 0.0
  %2345 = vmatmul.mubr.f32.gmra.mrb[0].mxu0 %v1863
  %v2346 = vpop.f32.mrb[0].mxu0
  %v2347 = vadd.f32 0.0, %v2346
  %v2348 = vpop.f32.mrb[0].mxu0
  %2349 = vmatprep.mubr.f32.mxu0 0.0
  %2350 = vmatmul.mubr.f32.gmra.mrb[0].mxu0 %v1866
  %v2351 = vpop.f32.mrb[0].mxu0
  %v2352 = vadd.f32 0.0, %v2351
  %v2353 = vpop.f32.mrb[0].mxu0
  %2354 = vmatprep.mubr.f32.mxu0 0.0
  %2355 = vmatmul.mubr.f32.gmra.mrb[0].mxu0 %v1869
  %v2356 = vpop.f32.mrb[0].mxu0
  %v2357 = vadd.f32 0.0, %v2356
  %v2358 = vpop.f32.mrb[0].mxu0
  %2359 = vmatprep.mubr.f32.mxu0 0.0
  %2360 = vmatmul.mubr.f32.gmra.mrb[0].mxu0 %v1872
  %v2361 = vpop.f32.mrb[0].mxu0
  %v2362 = vadd.f32 0.0, %v2361
  %v2363 = vpop.f32.mrb[0].mxu0
  %2364 = vmatprep.mubr.f32.mxu0 0.0
  %2365 = vmatmul.mubr.f32.gmra.mrb[0].mxu0 %v1875
  %v2366 = vpop.f32.mrb[0].mxu0
  %v2367 = vadd.f32 0.0, %v2366
  %v2368 = vpop.f32.mrb[0].mxu0
  %2369 = vmatprep.mubr.f32.mxu0 0.0
  %2370 = vmatmul.mubr.f32.gmra.mrb[0].mxu0 %v1878
  %v2371 = vpop.f32.mrb[0].mxu0
  %v2372 = vadd.f32 0.0, %v2371
  %v2373 = vpop.f32.mrb[0].mxu0
  %2374 = vmatprep.mubr.f32.mxu0 0.0
  %2375 = vmatmul.mubr.f32.gmra.mrb[0].mxu0 %v1881
  %v2376 = vpop.f32.mrb[0].mxu0
  %v2377 = vadd.f32 0.0, %v2376
  %v2378 = vpop.f32.mrb[0].mxu0
  %2379 = vmatprep.mubr.f32.mxu0 0.0
  %2380 = vmatmul.mubr.f32.gmra.mrb[0].mxu0 %v1884
  %v2381 = vpop.f32.mrb[0].mxu0
  %v2382 = vadd.f32 0.0, %v2381
  %v2383 = vpop.f32.mrb[0].mxu0
  %2384 = vmatprep.mubr.f32.mxu0 0.0
  %2385 = vmatmul.mubr.f32.gmra.mrb[0].mxu0 %v1887
  %v2386 = vpop.f32.mrb[0].mxu0
  %v2387 = vadd.f32 0.0, %v2386
  %v2388 = vpop.f32.mrb[0].mxu0
  %2389 = vmatprep.mubr.f32.mxu0 0.0
  %2390 = vmatmul.mubr.f32.gmra.mrb[0].mxu0 %v1890
  %v2391 = vpop.f32.mrb[0].mxu0
  %v2392 = vadd.f32 0.0, %v2391
  %v2393 = vpop.f32.mrb[0].mxu0
  %2394 = vmatprep.mubr.f32.mxu0 0.0
  %2395 = vmatmul.mubr.f32.gmra.mrb[0].mxu0 %v1893
  %v2396 = vpop.f32.mrb[0].mxu0
  %v2397 = vadd.f32 0.0, %v2396
  %v2398 = vpop.f32.mrb[0].mxu0
  %2399 = vdwg.mxu0
  %2488 = vset.pattern.permute.xlu0 0
  %2489 = vperm.xlu0 %2488, %v1962
  %v2490 = vpop.permute.xlu0 %2489
  %2491 = vset.pattern.permute.xlu0 0
  %2492 = vperm.xlu0 %2491, %v1967
  %v2493 = vpop.permute.xlu0 %2492
  %2494 = vset.pattern.permute.xlu0 0
  %2495 = vperm.xlu0 %2494, %v1972
  %v2496 = vpop.permute.xlu0 %2495
  %2497 = vset.pattern.permute.xlu0 0
  %2498 = vperm.xlu0 %2497, %v1977
  %v2499 = vpop.permute.xlu0 %2498
  %2500 = vset.pattern.permute.xlu0 0
  %2501 = vperm.xlu0 %2500, %v1982
  %v2502 = vpop.permute.xlu0 %2501
  %2503 = vset.pattern.permute.xlu0 0
  %2504 = vperm.xlu0 %2503, %v1987
  %v2505 = vpop.permute.xlu0 %2504
  %2506 = vset.pattern.permute.xlu0 0
  %2507 = vperm.xlu0 %2506, %v1992
  %v2508 = vpop.permute.xlu0 %2507
  %2509 = vset.pattern.permute.xlu0 0
  %2510 = vperm.xlu0 %2509, %v1997
  %v2511 = vpop.permute.xlu0 %2510
  %2512 = vset.pattern.permute.xlu0 0
  %2513 = vperm.xlu0 %2512, %v2002
  %v2514 = vpop.permute.xlu0 %2513
  %2515 = vset.pattern.permute.xlu0 0
  %2516 = vperm.xlu0 %2515, %v2007
  %v2517 = vpop.permute.xlu0 %2516
  %2518 = vset.pattern.permute.xlu0 0
  %2519 = vperm.xlu0 %2518, %v2012
  %v2520 = vpop.permute.xlu0 %2519
  %2521 = vset.pattern.permute.xlu0 0
  %2522 = vperm.xlu0 %2521, %v2017
  %v2523 = vpop.permute.xlu0 %2522
  %2524 = vset.pattern.permute.xlu0 0
  %2525 = vperm.xlu0 %2524, %v2022
  %v2526 = vpop.permute.xlu0 %2525
  %2527 = vset.pattern.permute.xlu0 0
  %2528 = vperm.xlu0 %2527, %v2027
  %v2529 = vpop.permute.xlu0 %2528
  %2530 = vset.pattern.permute.xlu0 0
  %2531 = vperm.xlu0 %2530, %v2032
  %v2532 = vpop.permute.xlu0 %2531
  %2533 = vset.pattern.permute.xlu0 0
  %2534 = vperm.xlu0 %2533, %v2037
  %v2535 = vpop.permute.xlu0 %2534
  %2536 = vset.pattern.permute.xlu0 0
  %2537 = vperm.xlu0 %2536, %v2042
  %v2538 = vpop.permute.xlu0 %2537
  %2539 = vset.pattern.permute.xlu0 0
  %2540 = vperm.xlu0 %2539, %v2047
  %v2541 = vpop.permute.xlu0 %2540
  %2542 = vset.pattern.permute.xlu0 0
  %2543 = vperm.xlu0 %2542, %v2052
  %v2544 = vpop.permute.xlu0 %2543
  %2545 = vset.pattern.permute.xlu0 0
  %2546 = vperm.xlu0 %2545, %v2057
  %v2547 = vpop.permute.xlu0 %2546
  %2548 = vset.pattern.permute.xlu0 0
  %2549 = vperm.xlu0 %2548, %v2062
  %v2550 = vpop.permute.xlu0 %2549
  %2551 = vset.pattern.permute.xlu0 0
  %2552 = vperm.xlu0 %2551, %v2067
  %v2553 = vpop.permute.xlu0 %2552
  %2554 = vset.pattern.permute.xlu0 0
  %2555 = vperm.xlu0 %2554, %v2072
  %v2556 = vpop.permute.xlu0 %2555
  %2557 = vset.pattern.permute.xlu0 0
  %2558 = vperm.xlu0 %2557, %v2077
  %v2559 = vpop.permute.xlu0 %2558
  %2560 = vset.pattern.permute.xlu0 0
  %2561 = vperm.xlu0 %2560, %v2082
  %v2562 = vpop.permute.xlu0 %2561
  %2563 = vset.pattern.permute.xlu0 0
  %2564 = vperm.xlu0 %2563, %v2087
  %v2565 = vpop.permute.xlu0 %2564
  %2566 = vset.pattern.permute.xlu0 0
  %2567 = vperm.xlu0 %2566, %v2092
  %v2568 = vpop.permute.xlu0 %2567
  %2569 = vset.pattern.permute.xlu0 0
  %2570 = vperm.xlu0 %2569, %v2097
  %v2571 = vpop.permute.xlu0 %2570
  %2572 = vset.pattern.permute.xlu0 0
  %2573 = vperm.xlu0 %2572, %v2102
  %v2574 = vpop.permute.xlu0 %2573
  %2575 = vset.pattern.permute.xlu0 0
  %2576 = vperm.xlu0 %2575, %v2107
  %v2577 = vpop.permute.xlu0 %2576
  %2578 = vset.pattern.permute.xlu0 0
  %2579 = vperm.xlu0 %2578, %v2112
  %v2580 = vpop.permute.xlu0 %2579
  %2581 = vset.pattern.permute.xlu0 0
  %2582 = vperm.xlu0 %2581, %v2117
  %v2583 = vpop.permute.xlu0 %2582
  %2584 = vset.pattern.permute.xlu0 0
  %2585 = vperm.xlu0 %2584, %v2122
  %v2586 = vpop.permute.xlu0 %2585
  %2587 = vset.pattern.permute.xlu0 0
  %2588 = vperm.xlu0 %2587, %v2127
  %v2589 = vpop.permute.xlu0 %2588
  %2590 = vset.pattern.permute.xlu0 0
  %2591 = vperm.xlu0 %2590, %v2132
  %v2592 = vpop.permute.xlu0 %2591
  %2593 = vset.pattern.permute.xlu0 0
  %2594 = vperm.xlu0 %2593, %v2137
  %v2595 = vpop.permute.xlu0 %2594
  %2596 = vset.pattern.permute.xlu0 0
  %2597 = vperm.xlu0 %2596, %v2142
  %v2598 = vpop.permute.xlu0 %2597
  %2599 = vset.pattern.permute.xlu0 0
  %2600 = vperm.xlu0 %2599, %v2147
  %v2601 = vpop.permute.xlu0 %2600
  %2602 = vset.pattern.permute.xlu0 0
  %2603 = vperm.xlu0 %2602, %v2152
  %v2604 = vpop.permute.xlu0 %2603
  %2605 = vset.pattern.permute.xlu0 0
  %2606 = vperm.xlu0 %2605, %v2157
  %v2607 = vpop.permute.xlu0 %2606
  %2608 = vset.pattern.permute.xlu0 0
  %2609 = vperm.xlu0 %2608, %v2162
  %v2610 = vpop.permute.xlu0 %2609
  %2611 = vset.pattern.permute.xlu0 0
  %2612 = vperm.xlu0 %2611, %v2167
  %v2613 = vpop.permute.xlu0 %2612
  %2614 = vset.pattern.permute.xlu0 0
  %2615 = vperm.xlu0 %2614, %v2172
  %v2616 = vpop.permute.xlu0 %2615
  %2617 = vset.pattern.permute.xlu0 0
  %2618 = vperm.xlu0 %2617, %v2177
  %v2619 = vpop.permute.xlu0 %2618
  %2620 = vset.pattern.permute.xlu0 0
  %2621 = vperm.xlu0 %2620, %v2182
  %v2622 = vpop.permute.xlu0 %2621
  %2623 = vset.pattern.permute.xlu0 0
  %2624 = vperm.xlu0 %2623, %v2187
  %v2625 = vpop.permute.xlu0 %2624
  %2626 = vset.pattern.permute.xlu0 0
  %2627 = vperm.xlu0 %2626, %v2192
  %v2628 = vpop.permute.xlu0 %2627
  %2629 = vset.pattern.permute.xlu0 0
  %2630 = vperm.xlu0 %2629, %v2197
  %v2631 = vpop.permute.xlu0 %2630
  %2632 = vset.pattern.permute.xlu0 0
  %2633 = vperm.xlu0 %2632, %v2202
  %v2634 = vpop.permute.xlu0 %2633
  %2635 = vset.pattern.permute.xlu0 0
  %2636 = vperm.xlu0 %2635, %v2207
  %v2637 = vpop.permute.xlu0 %2636
  %2638 = vset.pattern.permute.xlu0 0
  %2639 = vperm.xlu0 %2638, %v2212
  %v2640 = vpop.permute.xlu0 %2639
  %2641 = vset.pattern.permute.xlu0 0
  %2642 = vperm.xlu0 %2641, %v2217
  %v2643 = vpop.permute.xlu0 %2642
  %2644 = vset.pattern.permute.xlu0 0
  %2645 = vperm.xlu0 %2644, %v2222
  %v2646 = vpop.permute.xlu0 %2645
  %2647 = vset.pattern.permute.xlu0 0
  %2648 = vperm.xlu0 %2647, %v2227
  %v2649 = vpop.permute.xlu0 %2648
  %2650 = vset.pattern.permute.xlu0 0
  %2651 = vperm.xlu0 %2650, %v2232
  %v2652 = vpop.permute.xlu0 %2651
  %2653 = vset.pattern.permute.xlu0 0
  %2654 = vperm.xlu0 %2653, %v2237
  %v2655 = vpop.permute.xlu0 %2654
  %2656 = vset.pattern.permute.xlu0 0
  %2657 = vperm.xlu0 %2656, %v2242
  %v2658 = vpop.permute.xlu0 %2657
  %2659 = vset.pattern.permute.xlu0 0
  %2660 = vperm.xlu0 %2659, %v2247
  %v2661 = vpop.permute.xlu0 %2660
  %2662 = vset.pattern.permute.xlu0 0
  %2663 = vperm.xlu0 %2662, %v2252
  %v2664 = vpop.permute.xlu0 %2663
  %2665 = vset.pattern.permute.xlu0 0
  %2666 = vperm.xlu0 %2665, %v2257
  %v2667 = vpop.permute.xlu0 %2666
  %2668 = vset.pattern.permute.xlu0 0
  %2669 = vperm.xlu0 %2668, %v2262
  %v2670 = vpop.permute.xlu0 %2669
  %2671 = vset.pattern.permute.xlu0 0
  %2672 = vperm.xlu0 %2671, %v2267
  %v2673 = vpop.permute.xlu0 %2672
  %2674 = vset.pattern.permute.xlu0 0
  %2675 = vperm.xlu0 %2674, %v2272
  %v2676 = vpop.permute.xlu0 %2675
  %2677 = vset.pattern.permute.xlu0 0
  %2678 = vperm.xlu0 %2677, %v2277
  %v2679 = vpop.permute.xlu0 %2678
  %2680 = vset.pattern.permute.xlu0 0
  %2681 = vperm.xlu0 %2680, %v2282
  %v2682 = vpop.permute.xlu0 %2681
  %2683 = vset.pattern.permute.xlu0 0
  %2684 = vperm.xlu0 %2683, %v2287
  %v2685 = vpop.permute.xlu0 %2684
  %2686 = vset.pattern.permute.xlu0 0
  %2687 = vperm.xlu0 %2686, %v2292
  %v2688 = vpop.permute.xlu0 %2687
  %2689 = vset.pattern.permute.xlu0 0
  %2690 = vperm.xlu0 %2689, %v2297
  %v2691 = vpop.permute.xlu0 %2690
  %2692 = vset.pattern.permute.xlu0 0
  %2693 = vperm.xlu0 %2692, %v2302
  %v2694 = vpop.permute.xlu0 %2693
  %2695 = vset.pattern.permute.xlu0 0
  %2696 = vperm.xlu0 %2695, %v2307
  %v2697 = vpop.permute.xlu0 %2696
  %2698 = vset.pattern.permute.xlu0 0
  %2699 = vperm.xlu0 %2698, %v2312
  %v2700 = vpop.permute.xlu0 %2699
  %2701 = vset.pattern.permute.xlu0 0
  %2702 = vperm.xlu0 %2701, %v2317
  %v2703 = vpop.permute.xlu0 %2702
  %2704 = vset.pattern.permute.xlu0 0
  %2705 = vperm.xlu0 %2704, %v2322
  %v2706 = vpop.permute.xlu0 %2705
  %2707 = vset.pattern.permute.xlu0 0
  %2708 = vperm.xlu0 %2707, %v2327
  %v2709 = vpop.permute.xlu0 %2708
  %2710 = vset.pattern.permute.xlu0 0
  %2711 = vperm.xlu0 %2710, %v2332
  %v2712 = vpop.permute.xlu0 %2711
  %2713 = vset.pattern.permute.xlu0 0
  %2714 = vperm.xlu0 %2713, %v2337
  %v2715 = vpop.permute.xlu0 %2714
  %2716 = vset.pattern.permute.xlu0 0
  %2717 = vperm.xlu0 %2716, %v2342
  %v2718 = vpop.permute.xlu0 %2717
  %2719 = vset.pattern.permute.xlu0 0
  %2720 = vperm.xlu0 %2719, %v2347
  %v2721 = vpop.permute.xlu0 %2720
  %2722 = vset.pattern.permute.xlu0 0
  %2723 = vperm.xlu0 %2722, %v2352
  %v2724 = vpop.permute.xlu0 %2723
  %2725 = vset.pattern.permute.xlu0 0
  %2726 = vperm.xlu0 %2725, %v2357
  %v2727 = vpop.permute.xlu0 %2726
  %2728 = vset.pattern.permute.xlu0 0
  %2729 = vperm.xlu0 %2728, %v2362
  %v2730 = vpop.permute.xlu0 %2729
  %2731 = vset.pattern.permute.xlu0 0
  %2732 = vperm.xlu0 %2731, %v2367
  %v2733 = vpop.permute.xlu0 %2732
  %2734 = vset.pattern.permute.xlu0 0
  %2735 = vperm.xlu0 %2734, %v2372
  %v2736 = vpop.permute.xlu0 %2735
  %2737 = vset.pattern.permute.xlu0 0
  %2738 = vperm.xlu0 %2737, %v2377
  %v2739 = vpop.permute.xlu0 %2738
  %2740 = vset.pattern.permute.xlu0 0
  %2741 = vperm.xlu0 %2740, %v2382
  %v2742 = vpop.permute.xlu0 %2741
  %2743 = vset.pattern.permute.xlu0 0
  %2744 = vperm.xlu0 %2743, %v2387
  %v2745 = vpop.permute.xlu0 %2744
  %2746 = vset.pattern.permute.xlu0 0
  %2747 = vperm.xlu0 %2746, %v2392
  %v2748 = vpop.permute.xlu0 %2747
  %2749 = vset.pattern.permute.xlu0 0
  %2750 = vperm.xlu0 %2749, %v2397
  %v2751 = vpop.permute.xlu0 %2750
  %v2752 = vlaneseq
  %v2753 = vand.u32 %v2752, 127
  %v2754 = vlaneseq
  %v2755 = vshrl.u32 %v2754, 7
  %v2756 = vsub.s32 %v2753, %v2755
  %v2757 = vrot.slane %v2490, %v2756
  %v2758 = vlaneseq
  %v2759 = vshrl.u32 %v2758, 7
  %v2760 = vsub.s32 %v2753, %v2759
  %v2761 = vrot.slane %v2493, %v2760
  %v2762 = vlaneseq
  %v2763 = vshrl.u32 %v2762, 7
  %v2764 = vsub.s32 %v2753, %v2763
  %v2765 = vrot.slane %v2496, %v2764
  %v2766 = vlaneseq
  %v2767 = vshrl.u32 %v2766, 7
  %v2768 = vsub.s32 %v2753, %v2767
  %v2769 = vrot.slane %v2499, %v2768
  %v2770 = vlaneseq
  %v2771 = vshrl.u32 %v2770, 7
  %v2772 = vsub.s32 %v2753, %v2771
  %v2773 = vrot.slane %v2502, %v2772
  %v2774 = vlaneseq
  %v2775 = vshrl.u32 %v2774, 7
  %v2776 = vsub.s32 %v2753, %v2775
  %v2777 = vrot.slane %v2505, %v2776
  %v2778 = vlaneseq
  %v2779 = vshrl.u32 %v2778, 7
  %v2780 = vsub.s32 %v2753, %v2779
  %v2781 = vrot.slane %v2508, %v2780
  %v2782 = vlaneseq
  %v2783 = vshrl.u32 %v2782, 7
  %v2784 = vsub.s32 %v2753, %v2783
  %v2785 = vrot.slane %v2511, %v2784
  %v2786 = vlaneseq
  %v2787 = vshrl.u32 %v2786, 7
  %v2788 = vsub.s32 %v2753, %v2787
  %v2789 = vrot.slane %v2514, %v2788
  %v2790 = vlaneseq
  %v2791 = vshrl.u32 %v2790, 7
  %v2792 = vsub.s32 %v2753, %v2791
  %v2793 = vrot.slane %v2517, %v2792
  %v2794 = vlaneseq
  %v2795 = vshrl.u32 %v2794, 7
  %v2796 = vsub.s32 %v2753, %v2795
  %v2797 = vrot.slane %v2520, %v2796
  %v2798 = vlaneseq
  %v2799 = vshrl.u32 %v2798, 7
  %v2800 = vsub.s32 %v2753, %v2799
  %v2801 = vrot.slane %v2523, %v2800
  %v2802 = vlaneseq
  %v2803 = vshrl.u32 %v2802, 7
  %v2804 = vsub.s32 %v2753, %v2803
  %v2805 = vrot.slane %v2526, %v2804
  %v2806 = vlaneseq
  %v2807 = vshrl.u32 %v2806, 7
  %v2808 = vsub.s32 %v2753, %v2807
  %v2809 = vrot.slane %v2529, %v2808
  %v2810 = vlaneseq
  %v2811 = vshrl.u32 %v2810, 7
  %v2812 = vsub.s32 %v2753, %v2811
  %v2813 = vrot.slane %v2532, %v2812
  %v2814 = vlaneseq
  %v2815 = vshrl.u32 %v2814, 7
  %v2816 = vsub.s32 %v2753, %v2815
  %v2817 = vrot.slane %v2535, %v2816
  %v2818 = vlaneseq
  %v2819 = vshrl.u32 %v2818, 7
  %v2820 = vsub.s32 %v2753, %v2819
  %v2821 = vrot.slane %v2538, %v2820
  %v2822 = vlaneseq
  %v2823 = vshrl.u32 %v2822, 7
  %v2824 = vsub.s32 %v2753, %v2823
  %v2825 = vrot.slane %v2541, %v2824
  %v2826 = vlaneseq
  %v2827 = vshrl.u32 %v2826, 7
  %v2828 = vsub.s32 %v2753, %v2827
  %v2829 = vrot.slane %v2544, %v2828
  %v2830 = vlaneseq
  %v2831 = vshrl.u32 %v2830, 7
  %v2832 = vsub.s32 %v2753, %v2831
  %v2833 = vrot.slane %v2547, %v2832
  %v2834 = vlaneseq
  %v2835 = vshrl.u32 %v2834, 7
  %v2836 = vsub.s32 %v2753, %v2835
  %v2837 = vrot.slane %v2550, %v2836
  %v2838 = vlaneseq
  %v2839 = vshrl.u32 %v2838, 7
  %v2840 = vsub.s32 %v2753, %v2839
  %v2841 = vrot.slane %v2553, %v2840
  %v2842 = vlaneseq
  %v2843 = vshrl.u32 %v2842, 7
  %v2844 = vsub.s32 %v2753, %v2843
  %v2845 = vrot.slane %v2556, %v2844
  %v2846 = vlaneseq
  %v2847 = vshrl.u32 %v2846, 7
  %v2848 = vsub.s32 %v2753, %v2847
  %v2849 = vrot.slane %v2559, %v2848
  %v2850 = vlaneseq
  %v2851 = vshrl.u32 %v2850, 7
  %v2852 = vsub.s32 %v2753, %v2851
  %v2853 = vrot.slane %v2562, %v2852
  %v2854 = vlaneseq
  %v2855 = vshrl.u32 %v2854, 7
  %v2856 = vsub.s32 %v2753, %v2855
  %v2857 = vrot.slane %v2565, %v2856
  %v2858 = vlaneseq
  %v2859 = vshrl.u32 %v2858, 7
  %v2860 = vsub.s32 %v2753, %v2859
  %v2861 = vrot.slane %v2568, %v2860
  %v2862 = vlaneseq
  %v2863 = vshrl.u32 %v2862, 7
  %v2864 = vsub.s32 %v2753, %v2863
  %v2865 = vrot.slane %v2571, %v2864
  %v2866 = vlaneseq
  %v2867 = vshrl.u32 %v2866, 7
  %v2868 = vsub.s32 %v2753, %v2867
  %v2869 = vrot.slane %v2574, %v2868
  %v2870 = vlaneseq
  %v2871 = vshrl.u32 %v2870, 7
  %v2872 = vsub.s32 %v2753, %v2871
  %v2873 = vrot.slane %v2577, %v2872
  %v2874 = vlaneseq
  %v2875 = vshrl.u32 %v2874, 7
  %v2876 = vsub.s32 %v2753, %v2875
  %v2877 = vrot.slane %v2580, %v2876
  %v2878 = vlaneseq
  %v2879 = vshrl.u32 %v2878, 7
  %v2880 = vsub.s32 %v2753, %v2879
  %v2881 = vrot.slane %v2583, %v2880
  %v2882 = vlaneseq
  %v2883 = vshrl.u32 %v2882, 7
  %v2884 = vsub.s32 %v2753, %v2883
  %v2885 = vrot.slane %v2586, %v2884
  %v2886 = vlaneseq
  %v2887 = vshrl.u32 %v2886, 7
  %v2888 = vsub.s32 %v2753, %v2887
  %v2889 = vrot.slane %v2589, %v2888
  %v2890 = vlaneseq
  %v2891 = vshrl.u32 %v2890, 7
  %v2892 = vsub.s32 %v2753, %v2891
  %v2893 = vrot.slane %v2592, %v2892
  %v2894 = vlaneseq
  %v2895 = vshrl.u32 %v2894, 7
  %v2896 = vsub.s32 %v2753, %v2895
  %v2897 = vrot.slane %v2595, %v2896
  %v2898 = vlaneseq
  %v2899 = vshrl.u32 %v2898, 7
  %v2900 = vsub.s32 %v2753, %v2899
  %v2901 = vrot.slane %v2598, %v2900
  %v2902 = vlaneseq
  %v2903 = vshrl.u32 %v2902, 7
  %v2904 = vsub.s32 %v2753, %v2903
  %v2905 = vrot.slane %v2601, %v2904
  %v2906 = vlaneseq
  %v2907 = vshrl.u32 %v2906, 7
  %v2908 = vsub.s32 %v2753, %v2907
  %v2909 = vrot.slane %v2604, %v2908
  %v2910 = vlaneseq
  %v2911 = vshrl.u32 %v2910, 7
  %v2912 = vsub.s32 %v2753, %v2911
  %v2913 = vrot.slane %v2607, %v2912
  %v2914 = vlaneseq
  %v2915 = vshrl.u32 %v2914, 7
  %v2916 = vsub.s32 %v2753, %v2915
  %v2917 = vrot.slane %v2610, %v2916
  %v2918 = vlaneseq
  %v2919 = vshrl.u32 %v2918, 7
  %v2920 = vsub.s32 %v2753, %v2919
  %v2921 = vrot.slane %v2613, %v2920
  %v2922 = vlaneseq
  %v2923 = vshrl.u32 %v2922, 7
  %v2924 = vsub.s32 %v2753, %v2923
  %v2925 = vrot.slane %v2616, %v2924
  %v2926 = vlaneseq
  %v2927 = vshrl.u32 %v2926, 7
  %v2928 = vsub.s32 %v2753, %v2927
  %v2929 = vrot.slane %v2619, %v2928
  %v2930 = vlaneseq
  %v2931 = vshrl.u32 %v2930, 7
  %v2932 = vsub.s32 %v2753, %v2931
  %v2933 = vrot.slane %v2622, %v2932
  %v2934 = vlaneseq
  %v2935 = vshrl.u32 %v2934, 7
  %v2936 = vsub.s32 %v2753, %v2935
  %v2937 = vrot.slane %v2625, %v2936
  %v2938 = vlaneseq
  %v2939 = vshrl.u32 %v2938, 7
  %v2940 = vsub.s32 %v2753, %v2939
  %v2941 = vrot.slane %v2628, %v2940
  %v2942 = vlaneseq
  %v2943 = vshrl.u32 %v2942, 7
  %v2944 = vsub.s32 %v2753, %v2943
  %v2945 = vrot.slane %v2631, %v2944
  %v2946 = vlaneseq
  %v2947 = vshrl.u32 %v2946, 7
  %v2948 = vsub.s32 %v2753, %v2947
  %v2949 = vrot.slane %v2634, %v2948
  %v2950 = vlaneseq
  %v2951 = vshrl.u32 %v2950, 7
  %v2952 = vsub.s32 %v2753, %v2951
  %v2953 = vrot.slane %v2637, %v2952
  %v2954 = vlaneseq
  %v2955 = vshrl.u32 %v2954, 7
  %v2956 = vsub.s32 %v2753, %v2955
  %v2957 = vrot.slane %v2640, %v2956
  %v2958 = vlaneseq
  %v2959 = vshrl.u32 %v2958, 7
  %v2960 = vsub.s32 %v2753, %v2959
  %v2961 = vrot.slane %v2643, %v2960
  %v2962 = vlaneseq
  %v2963 = vshrl.u32 %v2962, 7
  %v2964 = vsub.s32 %v2753, %v2963
  %v2965 = vrot.slane %v2646, %v2964
  %v2966 = vlaneseq
  %v2967 = vshrl.u32 %v2966, 7
  %v2968 = vsub.s32 %v2753, %v2967
  %v2969 = vrot.slane %v2649, %v2968
  %v2970 = vlaneseq
  %v2971 = vshrl.u32 %v2970, 7
  %v2972 = vsub.s32 %v2753, %v2971
  %v2973 = vrot.slane %v2652, %v2972
  %v2974 = vlaneseq
  %v2975 = vshrl.u32 %v2974, 7
  %v2976 = vsub.s32 %v2753, %v2975
  %v2977 = vrot.slane %v2655, %v2976
  %v2978 = vlaneseq
  %v2979 = vshrl.u32 %v2978, 7
  %v2980 = vsub.s32 %v2753, %v2979
  %v2981 = vrot.slane %v2658, %v2980
  %v2982 = vlaneseq
  %v2983 = vshrl.u32 %v2982, 7
  %v2984 = vsub.s32 %v2753, %v2983
  %v2985 = vrot.slane %v2661, %v2984
  %v2986 = vlaneseq
  %v2987 = vshrl.u32 %v2986, 7
  %v2988 = vsub.s32 %v2753, %v2987
  %v2989 = vrot.slane %v2664, %v2988
  %v2990 = vlaneseq
  %v2991 = vshrl.u32 %v2990, 7
  %v2992 = vsub.s32 %v2753, %v2991
  %v2993 = vrot.slane %v2667, %v2992
  %v2994 = vlaneseq
  %v2995 = vshrl.u32 %v2994, 7
  %v2996 = vsub.s32 %v2753, %v2995
  %v2997 = vrot.slane %v2670, %v2996
  %v2998 = vlaneseq
  %v2999 = vshrl.u32 %v2998, 7
  %v3000 = vsub.s32 %v2753, %v2999
  %v3001 = vrot.slane %v2673, %v3000
  %v3002 = vlaneseq
  %v3003 = vshrl.u32 %v3002, 7
  %v3004 = vsub.s32 %v2753, %v3003
  %v3005 = vrot.slane %v2676, %v3004
  %v3006 = vlaneseq
  %v3007 = vshrl.u32 %v3006, 7
  %v3008 = vsub.s32 %v2753, %v3007
  %v3009 = vrot.slane %v2679, %v3008
  %v3010 = vlaneseq
  %v3011 = vshrl.u32 %v3010, 7
  %v3012 = vsub.s32 %v2753, %v3011
  %v3013 = vrot.slane %v2682, %v3012
  %v3014 = vlaneseq
  %v3015 = vshrl.u32 %v3014, 7
  %v3016 = vsub.s32 %v2753, %v3015
  %v3017 = vrot.slane %v2685, %v3016
  %v3018 = vlaneseq
  %v3019 = vshrl.u32 %v3018, 7
  %v3020 = vsub.s32 %v2753, %v3019
  %v3021 = vrot.slane %v2688, %v3020
  %v3022 = vlaneseq
  %v3023 = vshrl.u32 %v3022, 7
  %v3024 = vsub.s32 %v2753, %v3023
  %v3025 = vrot.slane %v2691, %v3024
  %v3026 = vlaneseq
  %v3027 = vshrl.u32 %v3026, 7
  %v3028 = vsub.s32 %v2753, %v3027
  %v3029 = vrot.slane %v2694, %v3028
  %v3030 = vlaneseq
  %v3031 = vshrl.u32 %v3030, 7
  %v3032 = vsub.s32 %v2753, %v3031
  %v3033 = vrot.slane %v2697, %v3032
  %v3034 = vlaneseq
  %v3035 = vshrl.u32 %v3034, 7
  %v3036 = vsub.s32 %v2753, %v3035
  %v3037 = vrot.slane %v2700, %v3036
  %v3038 = vlaneseq
  %v3039 = vshrl.u32 %v3038, 7
  %v3040 = vsub.s32 %v2753, %v3039
  %v3041 = vrot.slane %v2703, %v3040
  %v3042 = vlaneseq
  %v3043 = vshrl.u32 %v3042, 7
  %v3044 = vsub.s32 %v2753, %v3043
  %v3045 = vrot.slane %v2706, %v3044
  %v3046 = vlaneseq
  %v3047 = vshrl.u32 %v3046, 7
  %v3048 = vsub.s32 %v2753, %v3047
  %v3049 = vrot.slane %v2709, %v3048
  %v3050 = vlaneseq
  %v3051 = vshrl.u32 %v3050, 7
  %v3052 = vsub.s32 %v2753, %v3051
  %v3053 = vrot.slane %v2712, %v3052
  %v3054 = vlaneseq
  %v3055 = vshrl.u32 %v3054, 7
  %v3056 = vsub.s32 %v2753, %v3055
  %v3057 = vrot.slane %v2715, %v3056
  %v3058 = vlaneseq
  %v3059 = vshrl.u32 %v3058, 7
  %v3060 = vsub.s32 %v2753, %v3059
  %v3061 = vrot.slane %v2718, %v3060
  %v3062 = vlaneseq
  %v3063 = vshrl.u32 %v3062, 7
  %v3064 = vsub.s32 %v2753, %v3063
  %v3065 = vrot.slane %v2721, %v3064
  %v3066 = vlaneseq
  %v3067 = vshrl.u32 %v3066, 7
  %v3068 = vsub.s32 %v2753, %v3067
  %v3069 = vrot.slane %v2724, %v3068
  %v3070 = vlaneseq
  %v3071 = vshrl.u32 %v3070, 7
  %v3072 = vsub.s32 %v2753, %v3071
  %v3073 = vrot.slane %v2727, %v3072
  %v3074 = vlaneseq
  %v3075 = vshrl.u32 %v3074, 7
  %v3076 = vsub.s32 %v2753, %v3075
  %v3077 = vrot.slane %v2730, %v3076
  %v3078 = vlaneseq
  %v3079 = vshrl.u32 %v3078, 7
  %v3080 = vsub.s32 %v2753, %v3079
  %v3081 = vrot.slane %v2733, %v3080
  %v3082 = vlaneseq
  %v3083 = vshrl.u32 %v3082, 7
  %v3084 = vsub.s32 %v2753, %v3083
  %v3085 = vrot.slane %v2736, %v3084
  %v3086 = vlaneseq
  %v3087 = vshrl.u32 %v3086, 7
  %v3088 = vsub.s32 %v2753, %v3087
  %v3089 = vrot.slane %v2739, %v3088
  %v3090 = vlaneseq
  %v3091 = vshrl.u32 %v3090, 7
  %v3092 = vsub.s32 %v2753, %v3091
  %v3093 = vrot.slane %v2742, %v3092
  %v3094 = vlaneseq
  %v3095 = vshrl.u32 %v3094, 7
  %v3096 = vsub.s32 %v2753, %v3095
  %v3097 = vrot.slane %v2745, %v3096
  %v3098 = vlaneseq
  %v3099 = vshrl.u32 %v3098, 7
  %v3100 = vsub.s32 %v2753, %v3099
  %v3101 = vrot.slane %v2748, %v3100
  %v3102 = vlaneseq
  %v3103 = vshrl.u32 %v3102, 7
  %v3104 = vsub.s32 %v2753, %v3103
  %v3105 = vrot.slane %v2751, %v3104
  %vm3106 = vcmask 1041409
  %v3107 = vsel %vm3106, %v2761, %v2757
  %vm3108 = vcmask 1042434
  %v3109 = vsel %vm3108, %v2765, %v3107
  %vm3110 = vcmask 1043459
  %v3111 = vsel %vm3110, %v2769, %v3109
  %vm3112 = vcmask 1044484
  %v3113 = vsel %vm3112, %v2773, %v3111
  %vm3114 = vcmask 1045509
  %v3115 = vsel %vm3114, %v2777, %v3113
  %vm3116 = vcmask 1046534
  %v3117 = vsel %vm3116, %v2781, %v3115
  %vm3118 = vcmask 1047559
  %v3119 = vsel %vm3118, %v2785, %v3117
  %v3120 = vsel %vm3106, %v2793, %v2789
  %v3121 = vsel %vm3108, %v2797, %v3120
  %v3122 = vsel %vm3110, %v2801, %v3121
  %v3123 = vsel %vm3112, %v2805, %v3122
  %v3124 = vsel %vm3114, %v2809, %v3123
  %v3125 = vsel %vm3116, %v2813, %v3124
  %v3126 = vsel %vm3118, %v2817, %v3125
  %v3127 = vsel %vm3106, %v2825, %v2821
  %v3128 = vsel %vm3108, %v2829, %v3127
  %v3129 = vsel %vm3110, %v2833, %v3128
  %v3130 = vsel %vm3112, %v2837, %v3129
  %v3131 = vsel %vm3114, %v2841, %v3130
  %v3132 = vsel %vm3116, %v2845, %v3131
  %v3133 = vsel %vm3118, %v2849, %v3132
  %v3134 = vsel %vm3106, %v2857, %v2853
  %v3135 = vsel %vm3108, %v2861, %v3134
  %v3136 = vsel %vm3110, %v2865, %v3135
  %v3137 = vsel %vm3112, %v2869, %v3136
  %v3138 = vsel %vm3114, %v2873, %v3137
  %v3139 = vsel %vm3116, %v2877, %v3138
  %v3140 = vsel %vm3118, %v2881, %v3139
  %v3141 = vsel %vm3106, %v2889, %v2885
  %v3142 = vsel %vm3108, %v2893, %v3141
  %v3143 = vsel %vm3110, %v2897, %v3142
  %v3144 = vsel %vm3112, %v2901, %v3143
  %v3145 = vsel %vm3114, %v2905, %v3144
  %v3146 = vsel %vm3116, %v2909, %v3145
  %v3147 = vsel %vm3118, %v2913, %v3146
  %v3148 = vsel %vm3106, %v2921, %v2917
  %v3149 = vsel %vm3108, %v2925, %v3148
  %v3150 = vsel %vm3110, %v2929, %v3149
  %v3151 = vsel %vm3112, %v2933, %v3150
  %v3152 = vsel %vm3114, %v2937, %v3151
  %v3153 = vsel %vm3116, %v2941, %v3152
  %v3154 = vsel %vm3118, %v2945, %v3153
  %v3155 = vsel %vm3106, %v2953, %v2949
  %v3156 = vsel %vm3108, %v2957, %v3155
  %v3157 = vsel %vm3110, %v2961, %v3156
  %v3158 = vsel %vm3112, %v2965, %v3157
  %v3159 = vsel %vm3114, %v2969, %v3158
  %v3160 = vsel %vm3116, %v2973, %v3159
  %v3161 = vsel %vm3118, %v2977, %v3160
  %v3162 = vsel %vm3106, %v2985, %v2981
  %v3163 = vsel %vm3108, %v2989, %v3162
  %v3164 = vsel %vm3110, %v2993, %v3163
  %v3165 = vsel %vm3112, %v2997, %v3164
  %v3166 = vsel %vm3114, %v3001, %v3165
  %v3167 = vsel %vm3116, %v3005, %v3166
  %v3168 = vsel %vm3118, %v3009, %v3167
  %v3169 = vsel %vm3106, %v3017, %v3013
  %v3170 = vsel %vm3108, %v3021, %v3169
  %v3171 = vsel %vm3110, %v3025, %v3170
  %v3172 = vsel %vm3112, %v3029, %v3171
  %v3173 = vsel %vm3114, %v3033, %v3172
  %v3174 = vsel %vm3116, %v3037, %v3173
  %v3175 = vsel %vm3118, %v3041, %v3174
  %v3176 = vsel %vm3106, %v3049, %v3045
  %v3177 = vsel %vm3108, %v3053, %v3176
  %v3178 = vsel %vm3110, %v3057, %v3177
  %v3179 = vsel %vm3112, %v3061, %v3178
  %v3180 = vsel %vm3114, %v3065, %v3179
  %v3181 = vsel %vm3116, %v3069, %v3180
  %v3182 = vsel %vm3118, %v3073, %v3181
  %v3183 = vsel %vm3106, %v3081, %v3077
  %v3184 = vsel %vm3108, %v3085, %v3183
  %v3185 = vsel %vm3110, %v3089, %v3184
  %v3186 = vsel %vm3112, %v3093, %v3185
  %v3187 = vsel %vm3114, %v3097, %v3186
  %v3188 = vsel %vm3116, %v3101, %v3187
  %v3189 = vsel %vm3118, %v3105, %v3188
  %vm3201 = vcmask 64512
  %v3202 = vsel %vm3201, %v3119, -inf
  %3203 = vmax.xlane.f32.xlu0 %v3202
  %v3204 = vpop.xlane.xlu0 %3203
  %v3205 = vsel %vm3201, %v3126, -inf
  %3206 = vmax.xlane.f32.xlu0 %v3205
  %v3207 = vpop.xlane.xlu0 %3206
  %v3208 = vsel %vm3201, %v3133, -inf
  %3209 = vmax.xlane.f32.xlu0 %v3208
  %v3210 = vpop.xlane.xlu0 %3209
  %v3211 = vsel %vm3201, %v3140, -inf
  %3212 = vmax.xlane.f32.xlu0 %v3211
  %v3213 = vpop.xlane.xlu0 %3212
  %v3214 = vsel %vm3201, %v3147, -inf
  %3215 = vmax.xlane.f32.xlu0 %v3214
  %v3216 = vpop.xlane.xlu0 %3215
  %v3217 = vsel %vm3201, %v3154, -inf
  %3218 = vmax.xlane.f32.xlu0 %v3217
  %v3219 = vpop.xlane.xlu0 %3218
  %v3220 = vsel %vm3201, %v3161, -inf
  %3221 = vmax.xlane.f32.xlu0 %v3220
  %v3222 = vpop.xlane.xlu0 %3221
  %v3223 = vsel %vm3201, %v3168, -inf
  %3224 = vmax.xlane.f32.xlu0 %v3223
  %v3225 = vpop.xlane.xlu0 %3224
  %v3226 = vsel %vm3201, %v3175, -inf
  %3227 = vmax.xlane.f32.xlu0 %v3226
  %v3228 = vpop.xlane.xlu0 %3227
  %v3229 = vsel %vm3201, %v3182, -inf
  %3230 = vmax.xlane.f32.xlu0 %v3229
  %v3231 = vpop.xlane.xlu0 %3230
  %v3232 = vsel %vm3201, %v3189, -inf
  %3233 = vmax.xlane.f32.xlu0 %v3232
  %v3234 = vpop.xlane.xlu0 %3233
  %v3246 = vlaneseq
  %v3247 = vshrl.u32 %v3246, 7
  %v3248 = vsub.s32 0, %v3247
  %v3249 = vrot.slane %v3204, %v3248
  %v3250 = vlaneseq
  %v3251 = vshrl.u32 %v3250, 7
  %v3252 = vsub.s32 1, %v3251
  %v3253 = vrot.slane %v3204, %v3252
  %v3254 = vlaneseq
  %v3255 = vshrl.u32 %v3254, 7
  %v3256 = vsub.s32 2, %v3255
  %v3257 = vrot.slane %v3204, %v3256
  %v3258 = vlaneseq
  %v3259 = vshrl.u32 %v3258, 7
  %v3260 = vsub.s32 3, %v3259
  %v3261 = vrot.slane %v3204, %v3260
  %v3262 = vlaneseq
  %v3263 = vshrl.u32 %v3262, 7
  %v3264 = vsub.s32 4, %v3263
  %v3265 = vrot.slane %v3204, %v3264
  %v3266 = vlaneseq
  %v3267 = vshrl.u32 %v3266, 7
  %v3268 = vsub.s32 5, %v3267
  %v3269 = vrot.slane %v3204, %v3268
  %v3270 = vlaneseq
  %v3271 = vshrl.u32 %v3270, 7
  %v3272 = vsub.s32 6, %v3271
  %v3273 = vrot.slane %v3204, %v3272
  %v3274 = vlaneseq
  %v3275 = vshrl.u32 %v3274, 7
  %v3276 = vsub.s32 7, %v3275
  %v3277 = vrot.slane %v3204, %v3276
  %v3278 = vlaneseq
  %v3279 = vshrl.u32 %v3278, 7
  %v3280 = vsub.s32 0, %v3279
  %v3281 = vrot.slane %v3207, %v3280
  %v3282 = vlaneseq
  %v3283 = vshrl.u32 %v3282, 7
  %v3284 = vsub.s32 1, %v3283
  %v3285 = vrot.slane %v3207, %v3284
  %v3286 = vlaneseq
  %v3287 = vshrl.u32 %v3286, 7
  %v3288 = vsub.s32 2, %v3287
  %v3289 = vrot.slane %v3207, %v3288
  %v3290 = vlaneseq
  %v3291 = vshrl.u32 %v3290, 7
  %v3292 = vsub.s32 3, %v3291
  %v3293 = vrot.slane %v3207, %v3292
  %v3294 = vlaneseq
  %v3295 = vshrl.u32 %v3294, 7
  %v3296 = vsub.s32 4, %v3295
  %v3297 = vrot.slane %v3207, %v3296
  %v3298 = vlaneseq
  %v3299 = vshrl.u32 %v3298, 7
  %v3300 = vsub.s32 5, %v3299
  %v3301 = vrot.slane %v3207, %v3300
  %v3302 = vlaneseq
  %v3303 = vshrl.u32 %v3302, 7
  %v3304 = vsub.s32 6, %v3303
  %v3305 = vrot.slane %v3207, %v3304
  %v3306 = vlaneseq
  %v3307 = vshrl.u32 %v3306, 7
  %v3308 = vsub.s32 7, %v3307
  %v3309 = vrot.slane %v3207, %v3308
  %v3310 = vlaneseq
  %v3311 = vshrl.u32 %v3310, 7
  %v3312 = vsub.s32 0, %v3311
  %v3313 = vrot.slane %v3210, %v3312
  %v3314 = vlaneseq
  %v3315 = vshrl.u32 %v3314, 7
  %v3316 = vsub.s32 1, %v3315
  %v3317 = vrot.slane %v3210, %v3316
  %v3318 = vlaneseq
  %v3319 = vshrl.u32 %v3318, 7
  %v3320 = vsub.s32 2, %v3319
  %v3321 = vrot.slane %v3210, %v3320
  %v3322 = vlaneseq
  %v3323 = vshrl.u32 %v3322, 7
  %v3324 = vsub.s32 3, %v3323
  %v3325 = vrot.slane %v3210, %v3324
  %v3326 = vlaneseq
  %v3327 = vshrl.u32 %v3326, 7
  %v3328 = vsub.s32 4, %v3327
  %v3329 = vrot.slane %v3210, %v3328
  %v3330 = vlaneseq
  %v3331 = vshrl.u32 %v3330, 7
  %v3332 = vsub.s32 5, %v3331
  %v3333 = vrot.slane %v3210, %v3332
  %v3334 = vlaneseq
  %v3335 = vshrl.u32 %v3334, 7
  %v3336 = vsub.s32 6, %v3335
  %v3337 = vrot.slane %v3210, %v3336
  %v3338 = vlaneseq
  %v3339 = vshrl.u32 %v3338, 7
  %v3340 = vsub.s32 7, %v3339
  %v3341 = vrot.slane %v3210, %v3340
  %v3342 = vlaneseq
  %v3343 = vshrl.u32 %v3342, 7
  %v3344 = vsub.s32 0, %v3343
  %v3345 = vrot.slane %v3213, %v3344
  %v3346 = vlaneseq
  %v3347 = vshrl.u32 %v3346, 7
  %v3348 = vsub.s32 1, %v3347
  %v3349 = vrot.slane %v3213, %v3348
  %v3350 = vlaneseq
  %v3351 = vshrl.u32 %v3350, 7
  %v3352 = vsub.s32 2, %v3351
  %v3353 = vrot.slane %v3213, %v3352
  %v3354 = vlaneseq
  %v3355 = vshrl.u32 %v3354, 7
  %v3356 = vsub.s32 3, %v3355
  %v3357 = vrot.slane %v3213, %v3356
  %v3358 = vlaneseq
  %v3359 = vshrl.u32 %v3358, 7
  %v3360 = vsub.s32 4, %v3359
  %v3361 = vrot.slane %v3213, %v3360
  %v3362 = vlaneseq
  %v3363 = vshrl.u32 %v3362, 7
  %v3364 = vsub.s32 5, %v3363
  %v3365 = vrot.slane %v3213, %v3364
  %v3366 = vlaneseq
  %v3367 = vshrl.u32 %v3366, 7
  %v3368 = vsub.s32 6, %v3367
  %v3369 = vrot.slane %v3213, %v3368
  %v3370 = vlaneseq
  %v3371 = vshrl.u32 %v3370, 7
  %v3372 = vsub.s32 7, %v3371
  %v3373 = vrot.slane %v3213, %v3372
  %v3374 = vlaneseq
  %v3375 = vshrl.u32 %v3374, 7
  %v3376 = vsub.s32 0, %v3375
  %v3377 = vrot.slane %v3216, %v3376
  %v3378 = vlaneseq
  %v3379 = vshrl.u32 %v3378, 7
  %v3380 = vsub.s32 1, %v3379
  %v3381 = vrot.slane %v3216, %v3380
  %v3382 = vlaneseq
  %v3383 = vshrl.u32 %v3382, 7
  %v3384 = vsub.s32 2, %v3383
  %v3385 = vrot.slane %v3216, %v3384
  %v3386 = vlaneseq
  %v3387 = vshrl.u32 %v3386, 7
  %v3388 = vsub.s32 3, %v3387
  %v3389 = vrot.slane %v3216, %v3388
  %v3390 = vlaneseq
  %v3391 = vshrl.u32 %v3390, 7
  %v3392 = vsub.s32 4, %v3391
  %v3393 = vrot.slane %v3216, %v3392
  %v3394 = vlaneseq
  %v3395 = vshrl.u32 %v3394, 7
  %v3396 = vsub.s32 5, %v3395
  %v3397 = vrot.slane %v3216, %v3396
  %v3398 = vlaneseq
  %v3399 = vshrl.u32 %v3398, 7
  %v3400 = vsub.s32 6, %v3399
  %v3401 = vrot.slane %v3216, %v3400
  %v3402 = vlaneseq
  %v3403 = vshrl.u32 %v3402, 7
  %v3404 = vsub.s32 7, %v3403
  %v3405 = vrot.slane %v3216, %v3404
  %v3406 = vlaneseq
  %v3407 = vshrl.u32 %v3406, 7
  %v3408 = vsub.s32 0, %v3407
  %v3409 = vrot.slane %v3219, %v3408
  %v3410 = vlaneseq
  %v3411 = vshrl.u32 %v3410, 7
  %v3412 = vsub.s32 1, %v3411
  %v3413 = vrot.slane %v3219, %v3412
  %v3414 = vlaneseq
  %v3415 = vshrl.u32 %v3414, 7
  %v3416 = vsub.s32 2, %v3415
  %v3417 = vrot.slane %v3219, %v3416
  %v3418 = vlaneseq
  %v3419 = vshrl.u32 %v3418, 7
  %v3420 = vsub.s32 3, %v3419
  %v3421 = vrot.slane %v3219, %v3420
  %v3422 = vlaneseq
  %v3423 = vshrl.u32 %v3422, 7
  %v3424 = vsub.s32 4, %v3423
  %v3425 = vrot.slane %v3219, %v3424
  %v3426 = vlaneseq
  %v3427 = vshrl.u32 %v3426, 7
  %v3428 = vsub.s32 5, %v3427
  %v3429 = vrot.slane %v3219, %v3428
  %v3430 = vlaneseq
  %v3431 = vshrl.u32 %v3430, 7
  %v3432 = vsub.s32 6, %v3431
  %v3433 = vrot.slane %v3219, %v3432
  %v3434 = vlaneseq
  %v3435 = vshrl.u32 %v3434, 7
  %v3436 = vsub.s32 7, %v3435
  %v3437 = vrot.slane %v3219, %v3436
  %v3438 = vlaneseq
  %v3439 = vshrl.u32 %v3438, 7
  %v3440 = vsub.s32 0, %v3439
  %v3441 = vrot.slane %v3222, %v3440
  %v3442 = vlaneseq
  %v3443 = vshrl.u32 %v3442, 7
  %v3444 = vsub.s32 1, %v3443
  %v3445 = vrot.slane %v3222, %v3444
  %v3446 = vlaneseq
  %v3447 = vshrl.u32 %v3446, 7
  %v3448 = vsub.s32 2, %v3447
  %v3449 = vrot.slane %v3222, %v3448
  %v3450 = vlaneseq
  %v3451 = vshrl.u32 %v3450, 7
  %v3452 = vsub.s32 3, %v3451
  %v3453 = vrot.slane %v3222, %v3452
  %v3454 = vlaneseq
  %v3455 = vshrl.u32 %v3454, 7
  %v3456 = vsub.s32 4, %v3455
  %v3457 = vrot.slane %v3222, %v3456
  %v3458 = vlaneseq
  %v3459 = vshrl.u32 %v3458, 7
  %v3460 = vsub.s32 5, %v3459
  %v3461 = vrot.slane %v3222, %v3460
  %v3462 = vlaneseq
  %v3463 = vshrl.u32 %v3462, 7
  %v3464 = vsub.s32 6, %v3463
  %v3465 = vrot.slane %v3222, %v3464
  %v3466 = vlaneseq
  %v3467 = vshrl.u32 %v3466, 7
  %v3468 = vsub.s32 7, %v3467
  %v3469 = vrot.slane %v3222, %v3468
  %v3470 = vlaneseq
  %v3471 = vshrl.u32 %v3470, 7
  %v3472 = vsub.s32 0, %v3471
  %v3473 = vrot.slane %v3225, %v3472
  %v3474 = vlaneseq
  %v3475 = vshrl.u32 %v3474, 7
  %v3476 = vsub.s32 1, %v3475
  %v3477 = vrot.slane %v3225, %v3476
  %v3478 = vlaneseq
  %v3479 = vshrl.u32 %v3478, 7
  %v3480 = vsub.s32 2, %v3479
  %v3481 = vrot.slane %v3225, %v3480
  %v3482 = vlaneseq
  %v3483 = vshrl.u32 %v3482, 7
  %v3484 = vsub.s32 3, %v3483
  %v3485 = vrot.slane %v3225, %v3484
  %v3486 = vlaneseq
  %v3487 = vshrl.u32 %v3486, 7
  %v3488 = vsub.s32 4, %v3487
  %v3489 = vrot.slane %v3225, %v3488
  %v3490 = vlaneseq
  %v3491 = vshrl.u32 %v3490, 7
  %v3492 = vsub.s32 5, %v3491
  %v3493 = vrot.slane %v3225, %v3492
  %v3494 = vlaneseq
  %v3495 = vshrl.u32 %v3494, 7
  %v3496 = vsub.s32 6, %v3495
  %v3497 = vrot.slane %v3225, %v3496
  %v3498 = vlaneseq
  %v3499 = vshrl.u32 %v3498, 7
  %v3500 = vsub.s32 7, %v3499
  %v3501 = vrot.slane %v3225, %v3500
  %v3502 = vlaneseq
  %v3503 = vshrl.u32 %v3502, 7
  %v3504 = vsub.s32 0, %v3503
  %v3505 = vrot.slane %v3228, %v3504
  %v3506 = vlaneseq
  %v3507 = vshrl.u32 %v3506, 7
  %v3508 = vsub.s32 1, %v3507
  %v3509 = vrot.slane %v3228, %v3508
  %v3510 = vlaneseq
  %v3511 = vshrl.u32 %v3510, 7
  %v3512 = vsub.s32 2, %v3511
  %v3513 = vrot.slane %v3228, %v3512
  %v3514 = vlaneseq
  %v3515 = vshrl.u32 %v3514, 7
  %v3516 = vsub.s32 3, %v3515
  %v3517 = vrot.slane %v3228, %v3516
  %v3518 = vlaneseq
  %v3519 = vshrl.u32 %v3518, 7
  %v3520 = vsub.s32 4, %v3519
  %v3521 = vrot.slane %v3228, %v3520
  %v3522 = vlaneseq
  %v3523 = vshrl.u32 %v3522, 7
  %v3524 = vsub.s32 5, %v3523
  %v3525 = vrot.slane %v3228, %v3524
  %v3526 = vlaneseq
  %v3527 = vshrl.u32 %v3526, 7
  %v3528 = vsub.s32 6, %v3527
  %v3529 = vrot.slane %v3228, %v3528
  %v3530 = vlaneseq
  %v3531 = vshrl.u32 %v3530, 7
  %v3532 = vsub.s32 7, %v3531
  %v3533 = vrot.slane %v3228, %v3532
  %v3534 = vlaneseq
  %v3535 = vshrl.u32 %v3534, 7
  %v3536 = vsub.s32 0, %v3535
  %v3537 = vrot.slane %v3231, %v3536
  %v3538 = vlaneseq
  %v3539 = vshrl.u32 %v3538, 7
  %v3540 = vsub.s32 1, %v3539
  %v3541 = vrot.slane %v3231, %v3540
  %v3542 = vlaneseq
  %v3543 = vshrl.u32 %v3542, 7
  %v3544 = vsub.s32 2, %v3543
  %v3545 = vrot.slane %v3231, %v3544
  %v3546 = vlaneseq
  %v3547 = vshrl.u32 %v3546, 7
  %v3548 = vsub.s32 3, %v3547
  %v3549 = vrot.slane %v3231, %v3548
  %v3550 = vlaneseq
  %v3551 = vshrl.u32 %v3550, 7
  %v3552 = vsub.s32 4, %v3551
  %v3553 = vrot.slane %v3231, %v3552
  %v3554 = vlaneseq
  %v3555 = vshrl.u32 %v3554, 7
  %v3556 = vsub.s32 5, %v3555
  %v3557 = vrot.slane %v3231, %v3556
  %v3558 = vlaneseq
  %v3559 = vshrl.u32 %v3558, 7
  %v3560 = vsub.s32 6, %v3559
  %v3561 = vrot.slane %v3231, %v3560
  %v3562 = vlaneseq
  %v3563 = vshrl.u32 %v3562, 7
  %v3564 = vsub.s32 7, %v3563
  %v3565 = vrot.slane %v3231, %v3564
  %v3566 = vlaneseq
  %v3567 = vshrl.u32 %v3566, 7
  %v3568 = vsub.s32 0, %v3567
  %v3569 = vrot.slane %v3234, %v3568
  %v3570 = vlaneseq
  %v3571 = vshrl.u32 %v3570, 7
  %v3572 = vsub.s32 1, %v3571
  %v3573 = vrot.slane %v3234, %v3572
  %v3574 = vlaneseq
  %v3575 = vshrl.u32 %v3574, 7
  %v3576 = vsub.s32 2, %v3575
  %v3577 = vrot.slane %v3234, %v3576
  %v3578 = vlaneseq
  %v3579 = vshrl.u32 %v3578, 7
  %v3580 = vsub.s32 3, %v3579
  %v3581 = vrot.slane %v3234, %v3580
  %v3582 = vlaneseq
  %v3583 = vshrl.u32 %v3582, 7
  %v3584 = vsub.s32 4, %v3583
  %v3585 = vrot.slane %v3234, %v3584
  %v3586 = vlaneseq
  %v3587 = vshrl.u32 %v3586, 7
  %v3588 = vsub.s32 5, %v3587
  %v3589 = vrot.slane %v3234, %v3588
  %v3590 = vlaneseq
  %v3591 = vshrl.u32 %v3590, 7
  %v3592 = vsub.s32 6, %v3591
  %v3593 = vrot.slane %v3234, %v3592
  %v3594 = vlaneseq
  %v3595 = vshrl.u32 %v3594, 7
  %v3596 = vsub.s32 7, %v3595
  %v3597 = vrot.slane %v3234, %v3596
  %v3686 = vsub.f32 %v1962, %v3249
  %v3687 = vsub.f32 %v1967, %v3253
  %v3688 = vsub.f32 %v1972, %v3257
  %v3689 = vsub.f32 %v1977, %v3261
  %v3690 = vsub.f32 %v1982, %v3265
  %v3691 = vsub.f32 %v1987, %v3269
  %v3692 = vsub.f32 %v1992, %v3273
  %v3693 = vsub.f32 %v1997, %v3277
  %v3694 = vsub.f32 %v2002, %v3281
  %v3695 = vsub.f32 %v2007, %v3285
  %v3696 = vsub.f32 %v2012, %v3289
  %v3697 = vsub.f32 %v2017, %v3293
  %v3698 = vsub.f32 %v2022, %v3297
  %v3699 = vsub.f32 %v2027, %v3301
  %v3700 = vsub.f32 %v2032, %v3305
  %v3701 = vsub.f32 %v2037, %v3309
  %v3702 = vsub.f32 %v2042, %v3313
  %v3703 = vsub.f32 %v2047, %v3317
  %v3704 = vsub.f32 %v2052, %v3321
  %v3705 = vsub.f32 %v2057, %v3325
  %v3706 = vsub.f32 %v2062, %v3329
  %v3707 = vsub.f32 %v2067, %v3333
  %v3708 = vsub.f32 %v2072, %v3337
  %v3709 = vsub.f32 %v2077, %v3341
  %v3710 = vsub.f32 %v2082, %v3345
  %v3711 = vsub.f32 %v2087, %v3349
  %v3712 = vsub.f32 %v2092, %v3353
  %v3713 = vsub.f32 %v2097, %v3357
  %v3714 = vsub.f32 %v2102, %v3361
  %v3715 = vsub.f32 %v2107, %v3365
  %v3716 = vsub.f32 %v2112, %v3369
  %v3717 = vsub.f32 %v2117, %v3373
  %v3718 = vsub.f32 %v2122, %v3377
  %v3719 = vsub.f32 %v2127, %v3381
  %v3720 = vsub.f32 %v2132, %v3385
  %v3721 = vsub.f32 %v2137, %v3389
  %v3722 = vsub.f32 %v2142, %v3393
  %v3723 = vsub.f32 %v2147, %v3397
  %v3724 = vsub.f32 %v2152, %v3401
  %v3725 = vsub.f32 %v2157, %v3405
  %v3726 = vsub.f32 %v2162, %v3409
  %v3727 = vsub.f32 %v2167, %v3413
  %v3728 = vsub.f32 %v2172, %v3417
  %v3729 = vsub.f32 %v2177, %v3421
  %v3730 = vsub.f32 %v2182, %v3425
  %v3731 = vsub.f32 %v2187, %v3429
  %v3732 = vsub.f32 %v2192, %v3433
  %v3733 = vsub.f32 %v2197, %v3437
  %v3734 = vsub.f32 %v2202, %v3441
  %v3735 = vsub.f32 %v2207, %v3445
  %v3736 = vsub.f32 %v2212, %v3449
  %v3737 = vsub.f32 %v2217, %v3453
  %v3738 = vsub.f32 %v2222, %v3457
  %v3739 = vsub.f32 %v2227, %v3461
  %v3740 = vsub.f32 %v2232, %v3465
  %v3741 = vsub.f32 %v2237, %v3469
  %v3742 = vsub.f32 %v2242, %v3473
  %v3743 = vsub.f32 %v2247, %v3477
  %v3744 = vsub.f32 %v2252, %v3481
  %v3745 = vsub.f32 %v2257, %v3485
  %v3746 = vsub.f32 %v2262, %v3489
  %v3747 = vsub.f32 %v2267, %v3493
  %v3748 = vsub.f32 %v2272, %v3497
  %v3749 = vsub.f32 %v2277, %v3501
  %v3750 = vsub.f32 %v2282, %v3505
  %v3751 = vsub.f32 %v2287, %v3509
  %v3752 = vsub.f32 %v2292, %v3513
  %v3753 = vsub.f32 %v2297, %v3517
  %v3754 = vsub.f32 %v2302, %v3521
  %v3755 = vsub.f32 %v2307, %v3525
  %v3756 = vsub.f32 %v2312, %v3529
  %v3757 = vsub.f32 %v2317, %v3533
  %v3758 = vsub.f32 %v2322, %v3537
  %v3759 = vsub.f32 %v2327, %v3541
  %v3760 = vsub.f32 %v2332, %v3545
  %v3761 = vsub.f32 %v2337, %v3549
  %v3762 = vsub.f32 %v2342, %v3553
  %v3763 = vsub.f32 %v2347, %v3557
  %v3764 = vsub.f32 %v2352, %v3561
  %v3765 = vsub.f32 %v2357, %v3565
  %v3766 = vsub.f32 %v2362, %v3569
  %v3767 = vsub.f32 %v2367, %v3573
  %v3768 = vsub.f32 %v2372, %v3577
  %v3769 = vsub.f32 %v2377, %v3581
  %v3770 = vsub.f32 %v2382, %v3585
  %v3771 = vsub.f32 %v2387, %v3589
  %v3772 = vsub.f32 %v2392, %v3593
  %v3773 = vsub.f32 %v2397, %v3597
  %v3774 = vmul.f32 %v3686, 1.442695
  %v3775 = vpow.pop %v3774
  %v3776 = vmul.f32 %v3687, 1.442695
  %v3777 = vpow.pop %v3776
  %v3778 = vmul.f32 %v3688, 1.442695
  %v3779 = vpow.pop %v3778
  %v3780 = vmul.f32 %v3689, 1.442695
  %v3781 = vpow.pop %v3780
  %v3782 = vmul.f32 %v3690, 1.442695
  %v3783 = vpow.pop %v3782
  %v3784 = vmul.f32 %v3691, 1.442695
  %v3785 = vpow.pop %v3784
  %v3786 = vmul.f32 %v3692, 1.442695
  %v3787 = vpow.pop %v3786
  %v3788 = vmul.f32 %v3693, 1.442695
  %v3789 = vpow.pop %v3788
  %v3790 = vmul.f32 %v3694, 1.442695
  %v3791 = vpow.pop %v3790
  %v3792 = vmul.f32 %v3695, 1.442695
  %v3793 = vpow.pop %v3792
  %v3794 = vmul.f32 %v3696, 1.442695
  %v3795 = vpow.pop %v3794
  %v3796 = vmul.f32 %v3697, 1.442695
  %v3797 = vpow.pop %v3796
  %v3798 = vmul.f32 %v3698, 1.442695
  %v3799 = vpow.pop %v3798
  %v3800 = vmul.f32 %v3699, 1.442695
  %v3801 = vpow.pop %v3800
  %v3802 = vmul.f32 %v3700, 1.442695
  %v3803 = vpow.pop %v3802
  %v3804 = vmul.f32 %v3701, 1.442695
  %v3805 = vpow.pop %v3804
  %v3806 = vmul.f32 %v3702, 1.442695
  %v3807 = vpow.pop %v3806
  %v3808 = vmul.f32 %v3703, 1.442695
  %v3809 = vpow.pop %v3808
  %v3810 = vmul.f32 %v3704, 1.442695
  %v3811 = vpow.pop %v3810
  %v3812 = vmul.f32 %v3705, 1.442695
  %v3813 = vpow.pop %v3812
  %v3814 = vmul.f32 %v3706, 1.442695
  %v3815 = vpow.pop %v3814
  %v3816 = vmul.f32 %v3707, 1.442695
  %v3817 = vpow.pop %v3816
  %v3818 = vmul.f32 %v3708, 1.442695
  %v3819 = vpow.pop %v3818
  %v3820 = vmul.f32 %v3709, 1.442695
  %v3821 = vpow.pop %v3820
  %v3822 = vmul.f32 %v3710, 1.442695
  %v3823 = vpow.pop %v3822
  %v3824 = vmul.f32 %v3711, 1.442695
  %v3825 = vpow.pop %v3824
  %v3826 = vmul.f32 %v3712, 1.442695
  %v3827 = vpow.pop %v3826
  %v3828 = vmul.f32 %v3713, 1.442695
  %v3829 = vpow.pop %v3828
  %v3830 = vmul.f32 %v3714, 1.442695
  %v3831 = vpow.pop %v3830
  %v3832 = vmul.f32 %v3715, 1.442695
  %v3833 = vpow.pop %v3832
  %v3834 = vmul.f32 %v3716, 1.442695
  %v3835 = vpow.pop %v3834
  %v3836 = vmul.f32 %v3717, 1.442695
  %v3837 = vpow.pop %v3836
  %v3838 = vmul.f32 %v3718, 1.442695
  %v3839 = vpow.pop %v3838
  %v3840 = vmul.f32 %v3719, 1.442695
  %v3841 = vpow.pop %v3840
  %v3842 = vmul.f32 %v3720, 1.442695
  %v3843 = vpow.pop %v3842
  %v3844 = vmul.f32 %v3721, 1.442695
  %v3845 = vpow.pop %v3844
  %v3846 = vmul.f32 %v3722, 1.442695
  %v3847 = vpow.pop %v3846
  %v3848 = vmul.f32 %v3723, 1.442695
  %v3849 = vpow.pop %v3848
  %v3850 = vmul.f32 %v3724, 1.442695
  %v3851 = vpow.pop %v3850
  %v3852 = vmul.f32 %v3725, 1.442695
  %v3853 = vpow.pop %v3852
  %v3854 = vmul.f32 %v3726, 1.442695
  %v3855 = vpow.pop %v3854
  %v3856 = vmul.f32 %v3727, 1.442695
  %v3857 = vpow.pop %v3856
  %v3858 = vmul.f32 %v3728, 1.442695
  %v3859 = vpow.pop %v3858
  %v3860 = vmul.f32 %v3729, 1.442695
  %v3861 = vpow.pop %v3860
  %v3862 = vmul.f32 %v3730, 1.442695
  %v3863 = vpow.pop %v3862
  %v3864 = vmul.f32 %v3731, 1.442695
  %v3865 = vpow.pop %v3864
  %v3866 = vmul.f32 %v3732, 1.442695
  %v3867 = vpow.pop %v3866
  %v3868 = vmul.f32 %v3733, 1.442695
  %v3869 = vpow.pop %v3868
  %v3870 = vmul.f32 %v3734, 1.442695
  %v3871 = vpow.pop %v3870
  %v3872 = vmul.f32 %v3735, 1.442695
  %v3873 = vpow.pop %v3872
  %v3874 = vmul.f32 %v3736, 1.442695
  %v3875 = vpow.pop %v3874
  %v3876 = vmul.f32 %v3737, 1.442695
  %v3877 = vpow.pop %v3876
  %v3878 = vmul.f32 %v3738, 1.442695
  %v3879 = vpow.pop %v3878
  %v3880 = vmul.f32 %v3739, 1.442695
  %v3881 = vpow.pop %v3880
  %v3882 = vmul.f32 %v3740, 1.442695
  %v3883 = vpow.pop %v3882
  %v3884 = vmul.f32 %v3741, 1.442695
  %v3885 = vpow.pop %v3884
  %v3886 = vmul.f32 %v3742, 1.442695
  %v3887 = vpow.pop %v3886
  %v3888 = vmul.f32 %v3743, 1.442695
  %v3889 = vpow.pop %v3888
  %v3890 = vmul.f32 %v3744, 1.442695
  %v3891 = vpow.pop %v3890
  %v3892 = vmul.f32 %v3745, 1.442695
  %v3893 = vpow.pop %v3892
  %v3894 = vmul.f32 %v3746, 1.442695
  %v3895 = vpow.pop %v3894
  %v3896 = vmul.f32 %v3747, 1.442695
  %v3897 = vpow.pop %v3896
  %v3898 = vmul.f32 %v3748, 1.442695
  %v3899 = vpow.pop %v3898
  %v3900 = vmul.f32 %v3749, 1.442695
  %v3901 = vpow.pop %v3900
  %v3902 = vmul.f32 %v3750, 1.442695
  %v3903 = vpow.pop %v3902
  %v3904 = vmul.f32 %v3751, 1.442695
  %v3905 = vpow.pop %v3904
  %v3906 = vmul.f32 %v3752, 1.442695
  %v3907 = vpow.pop %v3906
  %v3908 = vmul.f32 %v3753, 1.442695
  %v3909 = vpow.pop %v3908
  %v3910 = vmul.f32 %v3754, 1.442695
  %v3911 = vpow.pop %v3910
  %v3912 = vmul.f32 %v3755, 1.442695
  %v3913 = vpow.pop %v3912
  %v3914 = vmul.f32 %v3756, 1.442695
  %v3915 = vpow.pop %v3914
  %v3916 = vmul.f32 %v3757, 1.442695
  %v3917 = vpow.pop %v3916
  %v3918 = vmul.f32 %v3758, 1.442695
  %v3919 = vpow.pop %v3918
  %v3920 = vmul.f32 %v3759, 1.442695
  %v3921 = vpow.pop %v3920
  %v3922 = vmul.f32 %v3760, 1.442695
  %v3923 = vpow.pop %v3922
  %v3924 = vmul.f32 %v3761, 1.442695
  %v3925 = vpow.pop %v3924
  %v3926 = vmul.f32 %v3762, 1.442695
  %v3927 = vpow.pop %v3926
  %v3928 = vmul.f32 %v3763, 1.442695
  %v3929 = vpow.pop %v3928
  %v3930 = vmul.f32 %v3764, 1.442695
  %v3931 = vpow.pop %v3930
  %v3932 = vmul.f32 %v3765, 1.442695
  %v3933 = vpow.pop %v3932
  %v3934 = vmul.f32 %v3766, 1.442695
  %v3935 = vpow.pop %v3934
  %v3936 = vmul.f32 %v3767, 1.442695
  %v3937 = vpow.pop %v3936
  %v3938 = vmul.f32 %v3768, 1.442695
  %v3939 = vpow.pop %v3938
  %v3940 = vmul.f32 %v3769, 1.442695
  %v3941 = vpow.pop %v3940
  %v3942 = vmul.f32 %v3770, 1.442695
  %v3943 = vpow.pop %v3942
  %v3944 = vmul.f32 %v3771, 1.442695
  %v3945 = vpow.pop %v3944
  %v3946 = vmul.f32 %v3772, 1.442695
  %v3947 = vpow.pop %v3946
  %v3948 = vmul.f32 %v3773, 1.442695
  %v3949 = vpow.pop %v3948
  %4038 = vset.pattern.permute.xlu0 0
  %4039 = vperm.xlu0 %4038, %v3775
  %v4040 = vpop.permute.xlu0 %4039
  %4041 = vset.pattern.permute.xlu0 0
  %4042 = vperm.xlu0 %4041, %v3777
  %v4043 = vpop.permute.xlu0 %4042
  %4044 = vset.pattern.permute.xlu0 0
  %4045 = vperm.xlu0 %4044, %v3779
  %v4046 = vpop.permute.xlu0 %4045
  %4047 = vset.pattern.permute.xlu0 0
  %4048 = vperm.xlu0 %4047, %v3781
  %v4049 = vpop.permute.xlu0 %4048
  %4050 = vset.pattern.permute.xlu0 0
  %4051 = vperm.xlu0 %4050, %v3783
  %v4052 = vpop.permute.xlu0 %4051
  %4053 = vset.pattern.permute.xlu0 0
  %4054 = vperm.xlu0 %4053, %v3785
  %v4055 = vpop.permute.xlu0 %4054
  %4056 = vset.pattern.permute.xlu0 0
  %4057 = vperm.xlu0 %4056, %v3787
  %v4058 = vpop.permute.xlu0 %4057
  %4059 = vset.pattern.permute.xlu0 0
  %4060 = vperm.xlu0 %4059, %v3789
  %v4061 = vpop.permute.xlu0 %4060
  %4062 = vset.pattern.permute.xlu0 0
  %4063 = vperm.xlu0 %4062, %v3791
  %v4064 = vpop.permute.xlu0 %4063
  %4065 = vset.pattern.permute.xlu0 0
  %4066 = vperm.xlu0 %4065, %v3793
  %v4067 = vpop.permute.xlu0 %4066
  %4068 = vset.pattern.permute.xlu0 0
  %4069 = vperm.xlu0 %4068, %v3795
  %v4070 = vpop.permute.xlu0 %4069
  %4071 = vset.pattern.permute.xlu0 0
  %4072 = vperm.xlu0 %4071, %v3797
  %v4073 = vpop.permute.xlu0 %4072
  %4074 = vset.pattern.permute.xlu0 0
  %4075 = vperm.xlu0 %4074, %v3799
  %v4076 = vpop.permute.xlu0 %4075
  %4077 = vset.pattern.permute.xlu0 0
  %4078 = vperm.xlu0 %4077, %v3801
  %v4079 = vpop.permute.xlu0 %4078
  %4080 = vset.pattern.permute.xlu0 0
  %4081 = vperm.xlu0 %4080, %v3803
  %v4082 = vpop.permute.xlu0 %4081
  %4083 = vset.pattern.permute.xlu0 0
  %4084 = vperm.xlu0 %4083, %v3805
  %v4085 = vpop.permute.xlu0 %4084
  %4086 = vset.pattern.permute.xlu0 0
  %4087 = vperm.xlu0 %4086, %v3807
  %v4088 = vpop.permute.xlu0 %4087
  %4089 = vset.pattern.permute.xlu0 0
  %4090 = vperm.xlu0 %4089, %v3809
  %v4091 = vpop.permute.xlu0 %4090
  %4092 = vset.pattern.permute.xlu0 0
  %4093 = vperm.xlu0 %4092, %v3811
  %v4094 = vpop.permute.xlu0 %4093
  %4095 = vset.pattern.permute.xlu0 0
  %4096 = vperm.xlu0 %4095, %v3813
  %v4097 = vpop.permute.xlu0 %4096
  %4098 = vset.pattern.permute.xlu0 0
  %4099 = vperm.xlu0 %4098, %v3815
  %v4100 = vpop.permute.xlu0 %4099
  %4101 = vset.pattern.permute.xlu0 0
  %4102 = vperm.xlu0 %4101, %v3817
  %v4103 = vpop.permute.xlu0 %4102
  %4104 = vset.pattern.permute.xlu0 0
  %4105 = vperm.xlu0 %4104, %v3819
  %v4106 = vpop.permute.xlu0 %4105
  %4107 = vset.pattern.permute.xlu0 0
  %4108 = vperm.xlu0 %4107, %v3821
  %v4109 = vpop.permute.xlu0 %4108
  %4110 = vset.pattern.permute.xlu0 0
  %4111 = vperm.xlu0 %4110, %v3823
  %v4112 = vpop.permute.xlu0 %4111
  %4113 = vset.pattern.permute.xlu0 0
  %4114 = vperm.xlu0 %4113, %v3825
  %v4115 = vpop.permute.xlu0 %4114
  %4116 = vset.pattern.permute.xlu0 0
  %4117 = vperm.xlu0 %4116, %v3827
  %v4118 = vpop.permute.xlu0 %4117
  %4119 = vset.pattern.permute.xlu0 0
  %4120 = vperm.xlu0 %4119, %v3829
  %v4121 = vpop.permute.xlu0 %4120
  %4122 = vset.pattern.permute.xlu0 0
  %4123 = vperm.xlu0 %4122, %v3831
  %v4124 = vpop.permute.xlu0 %4123
  %4125 = vset.pattern.permute.xlu0 0
  %4126 = vperm.xlu0 %4125, %v3833
  %v4127 = vpop.permute.xlu0 %4126
  %4128 = vset.pattern.permute.xlu0 0
  %4129 = vperm.xlu0 %4128, %v3835
  %v4130 = vpop.permute.xlu0 %4129
  %4131 = vset.pattern.permute.xlu0 0
  %4132 = vperm.xlu0 %4131, %v3837
  %v4133 = vpop.permute.xlu0 %4132
  %4134 = vset.pattern.permute.xlu0 0
  %4135 = vperm.xlu0 %4134, %v3839
  %v4136 = vpop.permute.xlu0 %4135
  %4137 = vset.pattern.permute.xlu0 0
  %4138 = vperm.xlu0 %4137, %v3841
  %v4139 = vpop.permute.xlu0 %4138
  %4140 = vset.pattern.permute.xlu0 0
  %4141 = vperm.xlu0 %4140, %v3843
  %v4142 = vpop.permute.xlu0 %4141
  %4143 = vset.pattern.permute.xlu0 0
  %4144 = vperm.xlu0 %4143, %v3845
  %v4145 = vpop.permute.xlu0 %4144
  %4146 = vset.pattern.permute.xlu0 0
  %4147 = vperm.xlu0 %4146, %v3847
  %v4148 = vpop.permute.xlu0 %4147
  %4149 = vset.pattern.permute.xlu0 0
  %4150 = vperm.xlu0 %4149, %v3849
  %v4151 = vpop.permute.xlu0 %4150
  %4152 = vset.pattern.permute.xlu0 0
  %4153 = vperm.xlu0 %4152, %v3851
  %v4154 = vpop.permute.xlu0 %4153
  %4155 = vset.pattern.permute.xlu0 0
  %4156 = vperm.xlu0 %4155, %v3853
  %v4157 = vpop.permute.xlu0 %4156
  %4158 = vset.pattern.permute.xlu0 0
  %4159 = vperm.xlu0 %4158, %v3855
  %v4160 = vpop.permute.xlu0 %4159
  %4161 = vset.pattern.permute.xlu0 0
  %4162 = vperm.xlu0 %4161, %v3857
  %v4163 = vpop.permute.xlu0 %4162
  %4164 = vset.pattern.permute.xlu0 0
  %4165 = vperm.xlu0 %4164, %v3859
  %v4166 = vpop.permute.xlu0 %4165
  %4167 = vset.pattern.permute.xlu0 0
  %4168 = vperm.xlu0 %4167, %v3861
  %v4169 = vpop.permute.xlu0 %4168
  %4170 = vset.pattern.permute.xlu0 0
  %4171 = vperm.xlu0 %4170, %v3863
  %v4172 = vpop.permute.xlu0 %4171
  %4173 = vset.pattern.permute.xlu0 0
  %4174 = vperm.xlu0 %4173, %v3865
  %v4175 = vpop.permute.xlu0 %4174
  %4176 = vset.pattern.permute.xlu0 0
  %4177 = vperm.xlu0 %4176, %v3867
  %v4178 = vpop.permute.xlu0 %4177
  %4179 = vset.pattern.permute.xlu0 0
  %4180 = vperm.xlu0 %4179, %v3869
  %v4181 = vpop.permute.xlu0 %4180
  %4182 = vset.pattern.permute.xlu0 0
  %4183 = vperm.xlu0 %4182, %v3871
  %v4184 = vpop.permute.xlu0 %4183
  %4185 = vset.pattern.permute.xlu0 0
  %4186 = vperm.xlu0 %4185, %v3873
  %v4187 = vpop.permute.xlu0 %4186
  %4188 = vset.pattern.permute.xlu0 0
  %4189 = vperm.xlu0 %4188, %v3875
  %v4190 = vpop.permute.xlu0 %4189
  %4191 = vset.pattern.permute.xlu0 0
  %4192 = vperm.xlu0 %4191, %v3877
  %v4193 = vpop.permute.xlu0 %4192
  %4194 = vset.pattern.permute.xlu0 0
  %4195 = vperm.xlu0 %4194, %v3879
  %v4196 = vpop.permute.xlu0 %4195
  %4197 = vset.pattern.permute.xlu0 0
  %4198 = vperm.xlu0 %4197, %v3881
  %v4199 = vpop.permute.xlu0 %4198
  %4200 = vset.pattern.permute.xlu0 0
  %4201 = vperm.xlu0 %4200, %v3883
  %v4202 = vpop.permute.xlu0 %4201
  %4203 = vset.pattern.permute.xlu0 0
  %4204 = vperm.xlu0 %4203, %v3885
  %v4205 = vpop.permute.xlu0 %4204
  %4206 = vset.pattern.permute.xlu0 0
  %4207 = vperm.xlu0 %4206, %v3887
  %v4208 = vpop.permute.xlu0 %4207
  %4209 = vset.pattern.permute.xlu0 0
  %4210 = vperm.xlu0 %4209, %v3889
  %v4211 = vpop.permute.xlu0 %4210
  %4212 = vset.pattern.permute.xlu0 0
  %4213 = vperm.xlu0 %4212, %v3891
  %v4214 = vpop.permute.xlu0 %4213
  %4215 = vset.pattern.permute.xlu0 0
  %4216 = vperm.xlu0 %4215, %v3893
  %v4217 = vpop.permute.xlu0 %4216
  %4218 = vset.pattern.permute.xlu0 0
  %4219 = vperm.xlu0 %4218, %v3895
  %v4220 = vpop.permute.xlu0 %4219
  %4221 = vset.pattern.permute.xlu0 0
  %4222 = vperm.xlu0 %4221, %v3897
  %v4223 = vpop.permute.xlu0 %4222
  %4224 = vset.pattern.permute.xlu0 0
  %4225 = vperm.xlu0 %4224, %v3899
  %v4226 = vpop.permute.xlu0 %4225
  %4227 = vset.pattern.permute.xlu0 0
  %4228 = vperm.xlu0 %4227, %v3901
  %v4229 = vpop.permute.xlu0 %4228
  %4230 = vset.pattern.permute.xlu0 0
  %4231 = vperm.xlu0 %4230, %v3903
  %v4232 = vpop.permute.xlu0 %4231
  %4233 = vset.pattern.permute.xlu0 0
  %4234 = vperm.xlu0 %4233, %v3905
  %v4235 = vpop.permute.xlu0 %4234
  %4236 = vset.pattern.permute.xlu0 0
  %4237 = vperm.xlu0 %4236, %v3907
  %v4238 = vpop.permute.xlu0 %4237
  %4239 = vset.pattern.permute.xlu0 0
  %4240 = vperm.xlu0 %4239, %v3909
  %v4241 = vpop.permute.xlu0 %4240
  %4242 = vset.pattern.permute.xlu0 0
  %4243 = vperm.xlu0 %4242, %v3911
  %v4244 = vpop.permute.xlu0 %4243
  %4245 = vset.pattern.permute.xlu0 0
  %4246 = vperm.xlu0 %4245, %v3913
  %v4247 = vpop.permute.xlu0 %4246
  %4248 = vset.pattern.permute.xlu0 0
  %4249 = vperm.xlu0 %4248, %v3915
  %v4250 = vpop.permute.xlu0 %4249
  %4251 = vset.pattern.permute.xlu0 0
  %4252 = vperm.xlu0 %4251, %v3917
  %v4253 = vpop.permute.xlu0 %4252
  %4254 = vset.pattern.permute.xlu0 0
  %4255 = vperm.xlu0 %4254, %v3919
  %v4256 = vpop.permute.xlu0 %4255
  %4257 = vset.pattern.permute.xlu0 0
  %4258 = vperm.xlu0 %4257, %v3921
  %v4259 = vpop.permute.xlu0 %4258
  %4260 = vset.pattern.permute.xlu0 0
  %4261 = vperm.xlu0 %4260, %v3923
  %v4262 = vpop.permute.xlu0 %4261
  %4263 = vset.pattern.permute.xlu0 0
  %4264 = vperm.xlu0 %4263, %v3925
  %v4265 = vpop.permute.xlu0 %4264
  %4266 = vset.pattern.permute.xlu0 0
  %4267 = vperm.xlu0 %4266, %v3927
  %v4268 = vpop.permute.xlu0 %4267
  %4269 = vset.pattern.permute.xlu0 0
  %4270 = vperm.xlu0 %4269, %v3929
  %v4271 = vpop.permute.xlu0 %4270
  %4272 = vset.pattern.permute.xlu0 0
  %4273 = vperm.xlu0 %4272, %v3931
  %v4274 = vpop.permute.xlu0 %4273
  %4275 = vset.pattern.permute.xlu0 0
  %4276 = vperm.xlu0 %4275, %v3933
  %v4277 = vpop.permute.xlu0 %4276
  %4278 = vset.pattern.permute.xlu0 0
  %4279 = vperm.xlu0 %4278, %v3935
  %v4280 = vpop.permute.xlu0 %4279
  %4281 = vset.pattern.permute.xlu0 0
  %4282 = vperm.xlu0 %4281, %v3937
  %v4283 = vpop.permute.xlu0 %4282
  %4284 = vset.pattern.permute.xlu0 0
  %4285 = vperm.xlu0 %4284, %v3939
  %v4286 = vpop.permute.xlu0 %4285
  %4287 = vset.pattern.permute.xlu0 0
  %4288 = vperm.xlu0 %4287, %v3941
  %v4289 = vpop.permute.xlu0 %4288
  %4290 = vset.pattern.permute.xlu0 0
  %4291 = vperm.xlu0 %4290, %v3943
  %v4292 = vpop.permute.xlu0 %4291
  %4293 = vset.pattern.permute.xlu0 0
  %4294 = vperm.xlu0 %4293, %v3945
  %v4295 = vpop.permute.xlu0 %4294
  %4296 = vset.pattern.permute.xlu0 0
  %4297 = vperm.xlu0 %4296, %v3947
  %v4298 = vpop.permute.xlu0 %4297
  %4299 = vset.pattern.permute.xlu0 0
  %4300 = vperm.xlu0 %4299, %v3949
  %v4301 = vpop.permute.xlu0 %4300
  %v4302 = vlaneseq
  %v4303 = vshrl.u32 %v4302, 7
  %v4304 = vsub.s32 %v2753, %v4303
  %v4305 = vrot.slane %v4040, %v4304
  %v4306 = vlaneseq
  %v4307 = vshrl.u32 %v4306, 7
  %v4308 = vsub.s32 %v2753, %v4307
  %v4309 = vrot.slane %v4043, %v4308
  %v4310 = vlaneseq
  %v4311 = vshrl.u32 %v4310, 7
  %v4312 = vsub.s32 %v2753, %v4311
  %v4313 = vrot.slane %v4046, %v4312
  %v4314 = vlaneseq
  %v4315 = vshrl.u32 %v4314, 7
  %v4316 = vsub.s32 %v2753, %v4315
  %v4317 = vrot.slane %v4049, %v4316
  %v4318 = vlaneseq
  %v4319 = vshrl.u32 %v4318, 7
  %v4320 = vsub.s32 %v2753, %v4319
  %v4321 = vrot.slane %v4052, %v4320
  %v4322 = vlaneseq
  %v4323 = vshrl.u32 %v4322, 7
  %v4324 = vsub.s32 %v2753, %v4323
  %v4325 = vrot.slane %v4055, %v4324
  %v4326 = vlaneseq
  %v4327 = vshrl.u32 %v4326, 7
  %v4328 = vsub.s32 %v2753, %v4327
  %v4329 = vrot.slane %v4058, %v4328
  %v4330 = vlaneseq
  %v4331 = vshrl.u32 %v4330, 7
  %v4332 = vsub.s32 %v2753, %v4331
  %v4333 = vrot.slane %v4061, %v4332
  %v4334 = vlaneseq
  %v4335 = vshrl.u32 %v4334, 7
  %v4336 = vsub.s32 %v2753, %v4335
  %v4337 = vrot.slane %v4064, %v4336
  %v4338 = vlaneseq
  %v4339 = vshrl.u32 %v4338, 7
  %v4340 = vsub.s32 %v2753, %v4339
  %v4341 = vrot.slane %v4067, %v4340
  %v4342 = vlaneseq
  %v4343 = vshrl.u32 %v4342, 7
  %v4344 = vsub.s32 %v2753, %v4343
  %v4345 = vrot.slane %v4070, %v4344
  %v4346 = vlaneseq
  %v4347 = vshrl.u32 %v4346, 7
  %v4348 = vsub.s32 %v2753, %v4347
  %v4349 = vrot.slane %v4073, %v4348
  %v4350 = vlaneseq
  %v4351 = vshrl.u32 %v4350, 7
  %v4352 = vsub.s32 %v2753, %v4351
  %v4353 = vrot.slane %v4076, %v4352
  %v4354 = vlaneseq
  %v4355 = vshrl.u32 %v4354, 7
  %v4356 = vsub.s32 %v2753, %v4355
  %v4357 = vrot.slane %v4079, %v4356
  %v4358 = vlaneseq
  %v4359 = vshrl.u32 %v4358, 7
  %v4360 = vsub.s32 %v2753, %v4359
  %v4361 = vrot.slane %v4082, %v4360
  %v4362 = vlaneseq
  %v4363 = vshrl.u32 %v4362, 7
  %v4364 = vsub.s32 %v2753, %v4363
  %v4365 = vrot.slane %v4085, %v4364
  %v4366 = vlaneseq
  %v4367 = vshrl.u32 %v4366, 7
  %v4368 = vsub.s32 %v2753, %v4367
  %v4369 = vrot.slane %v4088, %v4368
  %v4370 = vlaneseq
  %v4371 = vshrl.u32 %v4370, 7
  %v4372 = vsub.s32 %v2753, %v4371
  %v4373 = vrot.slane %v4091, %v4372
  %v4374 = vlaneseq
  %v4375 = vshrl.u32 %v4374, 7
  %v4376 = vsub.s32 %v2753, %v4375
  %v4377 = vrot.slane %v4094, %v4376
  %v4378 = vlaneseq
  %v4379 = vshrl.u32 %v4378, 7
  %v4380 = vsub.s32 %v2753, %v4379
  %v4381 = vrot.slane %v4097, %v4380
  %v4382 = vlaneseq
  %v4383 = vshrl.u32 %v4382, 7
  %v4384 = vsub.s32 %v2753, %v4383
  %v4385 = vrot.slane %v4100, %v4384
  %v4386 = vlaneseq
  %v4387 = vshrl.u32 %v4386, 7
  %v4388 = vsub.s32 %v2753, %v4387
  %v4389 = vrot.slane %v4103, %v4388
  %v4390 = vlaneseq
  %v4391 = vshrl.u32 %v4390, 7
  %v4392 = vsub.s32 %v2753, %v4391
  %v4393 = vrot.slane %v4106, %v4392
  %v4394 = vlaneseq
  %v4395 = vshrl.u32 %v4394, 7
  %v4396 = vsub.s32 %v2753, %v4395
  %v4397 = vrot.slane %v4109, %v4396
  %v4398 = vlaneseq
  %v4399 = vshrl.u32 %v4398, 7
  %v4400 = vsub.s32 %v2753, %v4399
  %v4401 = vrot.slane %v4112, %v4400
  %v4402 = vlaneseq
  %v4403 = vshrl.u32 %v4402, 7
  %v4404 = vsub.s32 %v2753, %v4403
  %v4405 = vrot.slane %v4115, %v4404
  %v4406 = vlaneseq
  %v4407 = vshrl.u32 %v4406, 7
  %v4408 = vsub.s32 %v2753, %v4407
  %v4409 = vrot.slane %v4118, %v4408
  %v4410 = vlaneseq
  %v4411 = vshrl.u32 %v4410, 7
  %v4412 = vsub.s32 %v2753, %v4411
  %v4413 = vrot.slane %v4121, %v4412
  %v4414 = vlaneseq
  %v4415 = vshrl.u32 %v4414, 7
  %v4416 = vsub.s32 %v2753, %v4415
  %v4417 = vrot.slane %v4124, %v4416
  %v4418 = vlaneseq
  %v4419 = vshrl.u32 %v4418, 7
  %v4420 = vsub.s32 %v2753, %v4419
  %v4421 = vrot.slane %v4127, %v4420
  %v4422 = vlaneseq
  %v4423 = vshrl.u32 %v4422, 7
  %v4424 = vsub.s32 %v2753, %v4423
  %v4425 = vrot.slane %v4130, %v4424
  %v4426 = vlaneseq
  %v4427 = vshrl.u32 %v4426, 7
  %v4428 = vsub.s32 %v2753, %v4427
  %v4429 = vrot.slane %v4133, %v4428
  %v4430 = vlaneseq
  %v4431 = vshrl.u32 %v4430, 7
  %v4432 = vsub.s32 %v2753, %v4431
  %v4433 = vrot.slane %v4136, %v4432
  %v4434 = vlaneseq
  %v4435 = vshrl.u32 %v4434, 7
  %v4436 = vsub.s32 %v2753, %v4435
  %v4437 = vrot.slane %v4139, %v4436
  %v4438 = vlaneseq
  %v4439 = vshrl.u32 %v4438, 7
  %v4440 = vsub.s32 %v2753, %v4439
  %v4441 = vrot.slane %v4142, %v4440
  %v4442 = vlaneseq
  %v4443 = vshrl.u32 %v4442, 7
  %v4444 = vsub.s32 %v2753, %v4443
  %v4445 = vrot.slane %v4145, %v4444
  %v4446 = vlaneseq
  %v4447 = vshrl.u32 %v4446, 7
  %v4448 = vsub.s32 %v2753, %v4447
  %v4449 = vrot.slane %v4148, %v4448
  %v4450 = vlaneseq
  %v4451 = vshrl.u32 %v4450, 7
  %v4452 = vsub.s32 %v2753, %v4451
  %v4453 = vrot.slane %v4151, %v4452
  %v4454 = vlaneseq
  %v4455 = vshrl.u32 %v4454, 7
  %v4456 = vsub.s32 %v2753, %v4455
  %v4457 = vrot.slane %v4154, %v4456
  %v4458 = vlaneseq
  %v4459 = vshrl.u32 %v4458, 7
  %v4460 = vsub.s32 %v2753, %v4459
  %v4461 = vrot.slane %v4157, %v4460
  %v4462 = vlaneseq
  %v4463 = vshrl.u32 %v4462, 7
  %v4464 = vsub.s32 %v2753, %v4463
  %v4465 = vrot.slane %v4160, %v4464
  %v4466 = vlaneseq
  %v4467 = vshrl.u32 %v4466, 7
  %v4468 = vsub.s32 %v2753, %v4467
  %v4469 = vrot.slane %v4163, %v4468
  %v4470 = vlaneseq
  %v4471 = vshrl.u32 %v4470, 7
  %v4472 = vsub.s32 %v2753, %v4471
  %v4473 = vrot.slane %v4166, %v4472
  %v4474 = vlaneseq
  %v4475 = vshrl.u32 %v4474, 7
  %v4476 = vsub.s32 %v2753, %v4475
  %v4477 = vrot.slane %v4169, %v4476
  %v4478 = vlaneseq
  %v4479 = vshrl.u32 %v4478, 7
  %v4480 = vsub.s32 %v2753, %v4479
  %v4481 = vrot.slane %v4172, %v4480
  %v4482 = vlaneseq
  %v4483 = vshrl.u32 %v4482, 7
  %v4484 = vsub.s32 %v2753, %v4483
  %v4485 = vrot.slane %v4175, %v4484
  %v4486 = vlaneseq
  %v4487 = vshrl.u32 %v4486, 7
  %v4488 = vsub.s32 %v2753, %v4487
  %v4489 = vrot.slane %v4178, %v4488
  %v4490 = vlaneseq
  %v4491 = vshrl.u32 %v4490, 7
  %v4492 = vsub.s32 %v2753, %v4491
  %v4493 = vrot.slane %v4181, %v4492
  %v4494 = vlaneseq
  %v4495 = vshrl.u32 %v4494, 7
  %v4496 = vsub.s32 %v2753, %v4495
  %v4497 = vrot.slane %v4184, %v4496
  %v4498 = vlaneseq
  %v4499 = vshrl.u32 %v4498, 7
  %v4500 = vsub.s32 %v2753, %v4499
  %v4501 = vrot.slane %v4187, %v4500
  %v4502 = vlaneseq
  %v4503 = vshrl.u32 %v4502, 7
  %v4504 = vsub.s32 %v2753, %v4503
  %v4505 = vrot.slane %v4190, %v4504
  %v4506 = vlaneseq
  %v4507 = vshrl.u32 %v4506, 7
  %v4508 = vsub.s32 %v2753, %v4507
  %v4509 = vrot.slane %v4193, %v4508
  %v4510 = vlaneseq
  %v4511 = vshrl.u32 %v4510, 7
  %v4512 = vsub.s32 %v2753, %v4511
  %v4513 = vrot.slane %v4196, %v4512
  %v4514 = vlaneseq
  %v4515 = vshrl.u32 %v4514, 7
  %v4516 = vsub.s32 %v2753, %v4515
  %v4517 = vrot.slane %v4199, %v4516
  %v4518 = vlaneseq
  %v4519 = vshrl.u32 %v4518, 7
  %v4520 = vsub.s32 %v2753, %v4519
  %v4521 = vrot.slane %v4202, %v4520
  %v4522 = vlaneseq
  %v4523 = vshrl.u32 %v4522, 7
  %v4524 = vsub.s32 %v2753, %v4523
  %v4525 = vrot.slane %v4205, %v4524
  %v4526 = vlaneseq
  %v4527 = vshrl.u32 %v4526, 7
  %v4528 = vsub.s32 %v2753, %v4527
  %v4529 = vrot.slane %v4208, %v4528
  %v4530 = vlaneseq
  %v4531 = vshrl.u32 %v4530, 7
  %v4532 = vsub.s32 %v2753, %v4531
  %v4533 = vrot.slane %v4211, %v4532
  %v4534 = vlaneseq
  %v4535 = vshrl.u32 %v4534, 7
  %v4536 = vsub.s32 %v2753, %v4535
  %v4537 = vrot.slane %v4214, %v4536
  %v4538 = vlaneseq
  %v4539 = vshrl.u32 %v4538, 7
  %v4540 = vsub.s32 %v2753, %v4539
  %v4541 = vrot.slane %v4217, %v4540
  %v4542 = vlaneseq
  %v4543 = vshrl.u32 %v4542, 7
  %v4544 = vsub.s32 %v2753, %v4543
  %v4545 = vrot.slane %v4220, %v4544
  %v4546 = vlaneseq
  %v4547 = vshrl.u32 %v4546, 7
  %v4548 = vsub.s32 %v2753, %v4547
  %v4549 = vrot.slane %v4223, %v4548
  %v4550 = vlaneseq
  %v4551 = vshrl.u32 %v4550, 7
  %v4552 = vsub.s32 %v2753, %v4551
  %v4553 = vrot.slane %v4226, %v4552
  %v4554 = vlaneseq
  %v4555 = vshrl.u32 %v4554, 7
  %v4556 = vsub.s32 %v2753, %v4555
  %v4557 = vrot.slane %v4229, %v4556
  %v4558 = vlaneseq
  %v4559 = vshrl.u32 %v4558, 7
  %v4560 = vsub.s32 %v2753, %v4559
  %v4561 = vrot.slane %v4232, %v4560
  %v4562 = vlaneseq
  %v4563 = vshrl.u32 %v4562, 7
  %v4564 = vsub.s32 %v2753, %v4563
  %v4565 = vrot.slane %v4235, %v4564
  %v4566 = vlaneseq
  %v4567 = vshrl.u32 %v4566, 7
  %v4568 = vsub.s32 %v2753, %v4567
  %v4569 = vrot.slane %v4238, %v4568
  %v4570 = vlaneseq
  %v4571 = vshrl.u32 %v4570, 7
  %v4572 = vsub.s32 %v2753, %v4571
  %v4573 = vrot.slane %v4241, %v4572
  %v4574 = vlaneseq
  %v4575 = vshrl.u32 %v4574, 7
  %v4576 = vsub.s32 %v2753, %v4575
  %v4577 = vrot.slane %v4244, %v4576
  %v4578 = vlaneseq
  %v4579 = vshrl.u32 %v4578, 7
  %v4580 = vsub.s32 %v2753, %v4579
  %v4581 = vrot.slane %v4247, %v4580
  %v4582 = vlaneseq
  %v4583 = vshrl.u32 %v4582, 7
  %v4584 = vsub.s32 %v2753, %v4583
  %v4585 = vrot.slane %v4250, %v4584
  %v4586 = vlaneseq
  %v4587 = vshrl.u32 %v4586, 7
  %v4588 = vsub.s32 %v2753, %v4587
  %v4589 = vrot.slane %v4253, %v4588
  %v4590 = vlaneseq
  %v4591 = vshrl.u32 %v4590, 7
  %v4592 = vsub.s32 %v2753, %v4591
  %v4593 = vrot.slane %v4256, %v4592
  %v4594 = vlaneseq
  %v4595 = vshrl.u32 %v4594, 7
  %v4596 = vsub.s32 %v2753, %v4595
  %v4597 = vrot.slane %v4259, %v4596
  %v4598 = vlaneseq
  %v4599 = vshrl.u32 %v4598, 7
  %v4600 = vsub.s32 %v2753, %v4599
  %v4601 = vrot.slane %v4262, %v4600
  %v4602 = vlaneseq
  %v4603 = vshrl.u32 %v4602, 7
  %v4604 = vsub.s32 %v2753, %v4603
  %v4605 = vrot.slane %v4265, %v4604
  %v4606 = vlaneseq
  %v4607 = vshrl.u32 %v4606, 7
  %v4608 = vsub.s32 %v2753, %v4607
  %v4609 = vrot.slane %v4268, %v4608
  %v4610 = vlaneseq
  %v4611 = vshrl.u32 %v4610, 7
  %v4612 = vsub.s32 %v2753, %v4611
  %v4613 = vrot.slane %v4271, %v4612
  %v4614 = vlaneseq
  %v4615 = vshrl.u32 %v4614, 7
  %v4616 = vsub.s32 %v2753, %v4615
  %v4617 = vrot.slane %v4274, %v4616
  %v4618 = vlaneseq
  %v4619 = vshrl.u32 %v4618, 7
  %v4620 = vsub.s32 %v2753, %v4619
  %v4621 = vrot.slane %v4277, %v4620
  %v4622 = vlaneseq
  %v4623 = vshrl.u32 %v4622, 7
  %v4624 = vsub.s32 %v2753, %v4623
  %v4625 = vrot.slane %v4280, %v4624
  %v4626 = vlaneseq
  %v4627 = vshrl.u32 %v4626, 7
  %v4628 = vsub.s32 %v2753, %v4627
  %v4629 = vrot.slane %v4283, %v4628
  %v4630 = vlaneseq
  %v4631 = vshrl.u32 %v4630, 7
  %v4632 = vsub.s32 %v2753, %v4631
  %v4633 = vrot.slane %v4286, %v4632
  %v4634 = vlaneseq
  %v4635 = vshrl.u32 %v4634, 7
  %v4636 = vsub.s32 %v2753, %v4635
  %v4637 = vrot.slane %v4289, %v4636
  %v4638 = vlaneseq
  %v4639 = vshrl.u32 %v4638, 7
  %v4640 = vsub.s32 %v2753, %v4639
  %v4641 = vrot.slane %v4292, %v4640
  %v4642 = vlaneseq
  %v4643 = vshrl.u32 %v4642, 7
  %v4644 = vsub.s32 %v2753, %v4643
  %v4645 = vrot.slane %v4295, %v4644
  %v4646 = vlaneseq
  %v4647 = vshrl.u32 %v4646, 7
  %v4648 = vsub.s32 %v2753, %v4647
  %v4649 = vrot.slane %v4298, %v4648
  %v4650 = vlaneseq
  %v4651 = vshrl.u32 %v4650, 7
  %v4652 = vsub.s32 %v2753, %v4651
  %v4653 = vrot.slane %v4301, %v4652
  %v4654 = vsel %vm3106, %v4309, %v4305
  %v4655 = vsel %vm3108, %v4313, %v4654
  %v4656 = vsel %vm3110, %v4317, %v4655
  %v4657 = vsel %vm3112, %v4321, %v4656
  %v4658 = vsel %vm3114, %v4325, %v4657
  %v4659 = vsel %vm3116, %v4329, %v4658
  %v4660 = vsel %vm3118, %v4333, %v4659
  %v4661 = vsel %vm3106, %v4341, %v4337
  %v4662 = vsel %vm3108, %v4345, %v4661
  %v4663 = vsel %vm3110, %v4349, %v4662
  %v4664 = vsel %vm3112, %v4353, %v4663
  %v4665 = vsel %vm3114, %v4357, %v4664
  %v4666 = vsel %vm3116, %v4361, %v4665
  %v4667 = vsel %vm3118, %v4365, %v4666
  %v4668 = vsel %vm3106, %v4373, %v4369
  %v4669 = vsel %vm3108, %v4377, %v4668
  %v4670 = vsel %vm3110, %v4381, %v4669
  %v4671 = vsel %vm3112, %v4385, %v4670
  %v4672 = vsel %vm3114, %v4389, %v4671
  %v4673 = vsel %vm3116, %v4393, %v4672
  %v4674 = vsel %vm3118, %v4397, %v4673
  %v4675 = vsel %vm3106, %v4405, %v4401
  %v4676 = vsel %vm3108, %v4409, %v4675
  %v4677 = vsel %vm3110, %v4413, %v4676
  %v4678 = vsel %vm3112, %v4417, %v4677
  %v4679 = vsel %vm3114, %v4421, %v4678
  %v4680 = vsel %vm3116, %v4425, %v4679
  %v4681 = vsel %vm3118, %v4429, %v4680
  %v4682 = vsel %vm3106, %v4437, %v4433
  %v4683 = vsel %vm3108, %v4441, %v4682
  %v4684 = vsel %vm3110, %v4445, %v4683
  %v4685 = vsel %vm3112, %v4449, %v4684
  %v4686 = vsel %vm3114, %v4453, %v4685
  %v4687 = vsel %vm3116, %v4457, %v4686
  %v4688 = vsel %vm3118, %v4461, %v4687
  %v4689 = vsel %vm3106, %v4469, %v4465
  %v4690 = vsel %vm3108, %v4473, %v4689
  %v4691 = vsel %vm3110, %v4477, %v4690
  %v4692 = vsel %vm3112, %v4481, %v4691
  %v4693 = vsel %vm3114, %v4485, %v4692
  %v4694 = vsel %vm3116, %v4489, %v4693
  %v4695 = vsel %vm3118, %v4493, %v4694
  %v4696 = vsel %vm3106, %v4501, %v4497
  %v4697 = vsel %vm3108, %v4505, %v4696
  %v4698 = vsel %vm3110, %v4509, %v4697
  %v4699 = vsel %vm3112, %v4513, %v4698
  %v4700 = vsel %vm3114, %v4517, %v4699
  %v4701 = vsel %vm3116, %v4521, %v4700
  %v4702 = vsel %vm3118, %v4525, %v4701
  %v4703 = vsel %vm3106, %v4533, %v4529
  %v4704 = vsel %vm3108, %v4537, %v4703
  %v4705 = vsel %vm3110, %v4541, %v4704
  %v4706 = vsel %vm3112, %v4545, %v4705
  %v4707 = vsel %vm3114, %v4549, %v4706
  %v4708 = vsel %vm3116, %v4553, %v4707
  %v4709 = vsel %vm3118, %v4557, %v4708
  %v4710 = vsel %vm3106, %v4565, %v4561
  %v4711 = vsel %vm3108, %v4569, %v4710
  %v4712 = vsel %vm3110, %v4573, %v4711
  %v4713 = vsel %vm3112, %v4577, %v4712
  %v4714 = vsel %vm3114, %v4581, %v4713
  %v4715 = vsel %vm3116, %v4585, %v4714
  %v4716 = vsel %vm3118, %v4589, %v4715
  %v4717 = vsel %vm3106, %v4597, %v4593
  %v4718 = vsel %vm3108, %v4601, %v4717
  %v4719 = vsel %vm3110, %v4605, %v4718
  %v4720 = vsel %vm3112, %v4609, %v4719
  %v4721 = vsel %vm3114, %v4613, %v4720
  %v4722 = vsel %vm3116, %v4617, %v4721
  %v4723 = vsel %vm3118, %v4621, %v4722
  %v4724 = vsel %vm3106, %v4629, %v4625
  %v4725 = vsel %vm3108, %v4633, %v4724
  %v4726 = vsel %vm3110, %v4637, %v4725
  %v4727 = vsel %vm3112, %v4641, %v4726
  %v4728 = vsel %vm3114, %v4645, %v4727
  %v4729 = vsel %vm3116, %v4649, %v4728
  %v4730 = vsel %vm3118, %v4653, %v4729
  %v4742 = vsel %vm3201, %v4660, 0.0
  %4743 = vadd.xlane.f32.xlu0 %v4742
  %v4744 = vpop.xlane.xlu0 %4743
  %v4745 = vsel %vm3201, %v4667, 0.0
  %4746 = vadd.xlane.f32.xlu0 %v4745
  %v4747 = vpop.xlane.xlu0 %4746
  %v4748 = vsel %vm3201, %v4674, 0.0
  %4749 = vadd.xlane.f32.xlu0 %v4748
  %v4750 = vpop.xlane.xlu0 %4749
  %v4751 = vsel %vm3201, %v4681, 0.0
  %4752 = vadd.xlane.f32.xlu0 %v4751
  %v4753 = vpop.xlane.xlu0 %4752
  %v4754 = vsel %vm3201, %v4688, 0.0
  %4755 = vadd.xlane.f32.xlu0 %v4754
  %v4756 = vpop.xlane.xlu0 %4755
  %v4757 = vsel %vm3201, %v4695, 0.0
  %4758 = vadd.xlane.f32.xlu0 %v4757
  %v4759 = vpop.xlane.xlu0 %4758
  %v4760 = vsel %vm3201, %v4702, 0.0
  %4761 = vadd.xlane.f32.xlu0 %v4760
  %v4762 = vpop.xlane.xlu0 %4761
  %v4763 = vsel %vm3201, %v4709, 0.0
  %4764 = vadd.xlane.f32.xlu0 %v4763
  %v4765 = vpop.xlane.xlu0 %4764
  %v4766 = vsel %vm3201, %v4716, 0.0
  %4767 = vadd.xlane.f32.xlu0 %v4766
  %v4768 = vpop.xlane.xlu0 %4767
  %v4769 = vsel %vm3201, %v4723, 0.0
  %4770 = vadd.xlane.f32.xlu0 %v4769
  %v4771 = vpop.xlane.xlu0 %4770
  %v4772 = vsel %vm3201, %v4730, 0.0
  %4773 = vadd.xlane.f32.xlu0 %v4772
  %v4774 = vpop.xlane.xlu0 %4773
  %v4786 = vlaneseq
  %v4787 = vshrl.u32 %v4786, 7
  %v4788 = vsub.s32 0, %v4787
  %v4789 = vrot.slane %v4744, %v4788
  %v4790 = vlaneseq
  %v4791 = vshrl.u32 %v4790, 7
  %v4792 = vsub.s32 1, %v4791
  %v4793 = vrot.slane %v4744, %v4792
  %v4794 = vlaneseq
  %v4795 = vshrl.u32 %v4794, 7
  %v4796 = vsub.s32 2, %v4795
  %v4797 = vrot.slane %v4744, %v4796
  %v4798 = vlaneseq
  %v4799 = vshrl.u32 %v4798, 7
  %v4800 = vsub.s32 3, %v4799
  %v4801 = vrot.slane %v4744, %v4800
  %v4802 = vlaneseq
  %v4803 = vshrl.u32 %v4802, 7
  %v4804 = vsub.s32 4, %v4803
  %v4805 = vrot.slane %v4744, %v4804
  %v4806 = vlaneseq
  %v4807 = vshrl.u32 %v4806, 7
  %v4808 = vsub.s32 5, %v4807
  %v4809 = vrot.slane %v4744, %v4808
  %v4810 = vlaneseq
  %v4811 = vshrl.u32 %v4810, 7
  %v4812 = vsub.s32 6, %v4811
  %v4813 = vrot.slane %v4744, %v4812
  %v4814 = vlaneseq
  %v4815 = vshrl.u32 %v4814, 7
  %v4816 = vsub.s32 7, %v4815
  %v4817 = vrot.slane %v4744, %v4816
  %v4818 = vlaneseq
  %v4819 = vshrl.u32 %v4818, 7
  %v4820 = vsub.s32 0, %v4819
  %v4821 = vrot.slane %v4747, %v4820
  %v4822 = vlaneseq
  %v4823 = vshrl.u32 %v4822, 7
  %v4824 = vsub.s32 1, %v4823
  %v4825 = vrot.slane %v4747, %v4824
  %v4826 = vlaneseq
  %v4827 = vshrl.u32 %v4826, 7
  %v4828 = vsub.s32 2, %v4827
  %v4829 = vrot.slane %v4747, %v4828
  %v4830 = vlaneseq
  %v4831 = vshrl.u32 %v4830, 7
  %v4832 = vsub.s32 3, %v4831
  %v4833 = vrot.slane %v4747, %v4832
  %v4834 = vlaneseq
  %v4835 = vshrl.u32 %v4834, 7
  %v4836 = vsub.s32 4, %v4835
  %v4837 = vrot.slane %v4747, %v4836
  %v4838 = vlaneseq
  %v4839 = vshrl.u32 %v4838, 7
  %v4840 = vsub.s32 5, %v4839
  %v4841 = vrot.slane %v4747, %v4840
  %v4842 = vlaneseq
  %v4843 = vshrl.u32 %v4842, 7
  %v4844 = vsub.s32 6, %v4843
  %v4845 = vrot.slane %v4747, %v4844
  %v4846 = vlaneseq
  %v4847 = vshrl.u32 %v4846, 7
  %v4848 = vsub.s32 7, %v4847
  %v4849 = vrot.slane %v4747, %v4848
  %v4850 = vlaneseq
  %v4851 = vshrl.u32 %v4850, 7
  %v4852 = vsub.s32 0, %v4851
  %v4853 = vrot.slane %v4750, %v4852
  %v4854 = vlaneseq
  %v4855 = vshrl.u32 %v4854, 7
  %v4856 = vsub.s32 1, %v4855
  %v4857 = vrot.slane %v4750, %v4856
  %v4858 = vlaneseq
  %v4859 = vshrl.u32 %v4858, 7
  %v4860 = vsub.s32 2, %v4859
  %v4861 = vrot.slane %v4750, %v4860
  %v4862 = vlaneseq
  %v4863 = vshrl.u32 %v4862, 7
  %v4864 = vsub.s32 3, %v4863
  %v4865 = vrot.slane %v4750, %v4864
  %v4866 = vlaneseq
  %v4867 = vshrl.u32 %v4866, 7
  %v4868 = vsub.s32 4, %v4867
  %v4869 = vrot.slane %v4750, %v4868
  %v4870 = vlaneseq
  %v4871 = vshrl.u32 %v4870, 7
  %v4872 = vsub.s32 5, %v4871
  %v4873 = vrot.slane %v4750, %v4872
  %v4874 = vlaneseq
  %v4875 = vshrl.u32 %v4874, 7
  %v4876 = vsub.s32 6, %v4875
  %v4877 = vrot.slane %v4750, %v4876
  %v4878 = vlaneseq
  %v4879 = vshrl.u32 %v4878, 7
  %v4880 = vsub.s32 7, %v4879
  %v4881 = vrot.slane %v4750, %v4880
  %v4882 = vlaneseq
  %v4883 = vshrl.u32 %v4882, 7
  %v4884 = vsub.s32 0, %v4883
  %v4885 = vrot.slane %v4753, %v4884
  %v4886 = vlaneseq
  %v4887 = vshrl.u32 %v4886, 7
  %v4888 = vsub.s32 1, %v4887
  %v4889 = vrot.slane %v4753, %v4888
  %v4890 = vlaneseq
  %v4891 = vshrl.u32 %v4890, 7
  %v4892 = vsub.s32 2, %v4891
  %v4893 = vrot.slane %v4753, %v4892
  %v4894 = vlaneseq
  %v4895 = vshrl.u32 %v4894, 7
  %v4896 = vsub.s32 3, %v4895
  %v4897 = vrot.slane %v4753, %v4896
  %v4898 = vlaneseq
  %v4899 = vshrl.u32 %v4898, 7
  %v4900 = vsub.s32 4, %v4899
  %v4901 = vrot.slane %v4753, %v4900
  %v4902 = vlaneseq
  %v4903 = vshrl.u32 %v4902, 7
  %v4904 = vsub.s32 5, %v4903
  %v4905 = vrot.slane %v4753, %v4904
  %v4906 = vlaneseq
  %v4907 = vshrl.u32 %v4906, 7
  %v4908 = vsub.s32 6, %v4907
  %v4909 = vrot.slane %v4753, %v4908
  %v4910 = vlaneseq
  %v4911 = vshrl.u32 %v4910, 7
  %v4912 = vsub.s32 7, %v4911
  %v4913 = vrot.slane %v4753, %v4912
  %v4914 = vlaneseq
  %v4915 = vshrl.u32 %v4914, 7
  %v4916 = vsub.s32 0, %v4915
  %v4917 = vrot.slane %v4756, %v4916
  %v4918 = vlaneseq
  %v4919 = vshrl.u32 %v4918, 7
  %v4920 = vsub.s32 1, %v4919
  %v4921 = vrot.slane %v4756, %v4920
  %v4922 = vlaneseq
  %v4923 = vshrl.u32 %v4922, 7
  %v4924 = vsub.s32 2, %v4923
  %v4925 = vrot.slane %v4756, %v4924
  %v4926 = vlaneseq
  %v4927 = vshrl.u32 %v4926, 7
  %v4928 = vsub.s32 3, %v4927
  %v4929 = vrot.slane %v4756, %v4928
  %v4930 = vlaneseq
  %v4931 = vshrl.u32 %v4930, 7
  %v4932 = vsub.s32 4, %v4931
  %v4933 = vrot.slane %v4756, %v4932
  %v4934 = vlaneseq
  %v4935 = vshrl.u32 %v4934, 7
  %v4936 = vsub.s32 5, %v4935
  %v4937 = vrot.slane %v4756, %v4936
  %v4938 = vlaneseq
  %v4939 = vshrl.u32 %v4938, 7
  %v4940 = vsub.s32 6, %v4939
  %v4941 = vrot.slane %v4756, %v4940
  %v4942 = vlaneseq
  %v4943 = vshrl.u32 %v4942, 7
  %v4944 = vsub.s32 7, %v4943
  %v4945 = vrot.slane %v4756, %v4944
  %v4946 = vlaneseq
  %v4947 = vshrl.u32 %v4946, 7
  %v4948 = vsub.s32 0, %v4947
  %v4949 = vrot.slane %v4759, %v4948
  %v4950 = vlaneseq
  %v4951 = vshrl.u32 %v4950, 7
  %v4952 = vsub.s32 1, %v4951
  %v4953 = vrot.slane %v4759, %v4952
  %v4954 = vlaneseq
  %v4955 = vshrl.u32 %v4954, 7
  %v4956 = vsub.s32 2, %v4955
  %v4957 = vrot.slane %v4759, %v4956
  %v4958 = vlaneseq
  %v4959 = vshrl.u32 %v4958, 7
  %v4960 = vsub.s32 3, %v4959
  %v4961 = vrot.slane %v4759, %v4960
  %v4962 = vlaneseq
  %v4963 = vshrl.u32 %v4962, 7
  %v4964 = vsub.s32 4, %v4963
  %v4965 = vrot.slane %v4759, %v4964
  %v4966 = vlaneseq
  %v4967 = vshrl.u32 %v4966, 7
  %v4968 = vsub.s32 5, %v4967
  %v4969 = vrot.slane %v4759, %v4968
  %v4970 = vlaneseq
  %v4971 = vshrl.u32 %v4970, 7
  %v4972 = vsub.s32 6, %v4971
  %v4973 = vrot.slane %v4759, %v4972
  %v4974 = vlaneseq
  %v4975 = vshrl.u32 %v4974, 7
  %v4976 = vsub.s32 7, %v4975
  %v4977 = vrot.slane %v4759, %v4976
  %v4978 = vlaneseq
  %v4979 = vshrl.u32 %v4978, 7
  %v4980 = vsub.s32 0, %v4979
  %v4981 = vrot.slane %v4762, %v4980
  %v4982 = vlaneseq
  %v4983 = vshrl.u32 %v4982, 7
  %v4984 = vsub.s32 1, %v4983
  %v4985 = vrot.slane %v4762, %v4984
  %v4986 = vlaneseq
  %v4987 = vshrl.u32 %v4986, 7
  %v4988 = vsub.s32 2, %v4987
  %v4989 = vrot.slane %v4762, %v4988
  %v4990 = vlaneseq
  %v4991 = vshrl.u32 %v4990, 7
  %v4992 = vsub.s32 3, %v4991
  %v4993 = vrot.slane %v4762, %v4992
  %v4994 = vlaneseq
  %v4995 = vshrl.u32 %v4994, 7
  %v4996 = vsub.s32 4, %v4995
  %v4997 = vrot.slane %v4762, %v4996
  %v4998 = vlaneseq
  %v4999 = vshrl.u32 %v4998, 7
  %v5000 = vsub.s32 5, %v4999
  %v5001 = vrot.slane %v4762, %v5000
  %v5002 = vlaneseq
  %v5003 = vshrl.u32 %v5002, 7
  %v5004 = vsub.s32 6, %v5003
  %v5005 = vrot.slane %v4762, %v5004
  %v5006 = vlaneseq
  %v5007 = vshrl.u32 %v5006, 7
  %v5008 = vsub.s32 7, %v5007
  %v5009 = vrot.slane %v4762, %v5008
  %v5010 = vlaneseq
  %v5011 = vshrl.u32 %v5010, 7
  %v5012 = vsub.s32 0, %v5011
  %v5013 = vrot.slane %v4765, %v5012
  %v5014 = vlaneseq
  %v5015 = vshrl.u32 %v5014, 7
  %v5016 = vsub.s32 1, %v5015
  %v5017 = vrot.slane %v4765, %v5016
  %v5018 = vlaneseq
  %v5019 = vshrl.u32 %v5018, 7
  %v5020 = vsub.s32 2, %v5019
  %v5021 = vrot.slane %v4765, %v5020
  %v5022 = vlaneseq
  %v5023 = vshrl.u32 %v5022, 7
  %v5024 = vsub.s32 3, %v5023
  %v5025 = vrot.slane %v4765, %v5024
  %v5026 = vlaneseq
  %v5027 = vshrl.u32 %v5026, 7
  %v5028 = vsub.s32 4, %v5027
  %v5029 = vrot.slane %v4765, %v5028
  %v5030 = vlaneseq
  %v5031 = vshrl.u32 %v5030, 7
  %v5032 = vsub.s32 5, %v5031
  %v5033 = vrot.slane %v4765, %v5032
  %v5034 = vlaneseq
  %v5035 = vshrl.u32 %v5034, 7
  %v5036 = vsub.s32 6, %v5035
  %v5037 = vrot.slane %v4765, %v5036
  %v5038 = vlaneseq
  %v5039 = vshrl.u32 %v5038, 7
  %v5040 = vsub.s32 7, %v5039
  %v5041 = vrot.slane %v4765, %v5040
  %v5042 = vlaneseq
  %v5043 = vshrl.u32 %v5042, 7
  %v5044 = vsub.s32 0, %v5043
  %v5045 = vrot.slane %v4768, %v5044
  %v5046 = vlaneseq
  %v5047 = vshrl.u32 %v5046, 7
  %v5048 = vsub.s32 1, %v5047
  %v5049 = vrot.slane %v4768, %v5048
  %v5050 = vlaneseq
  %v5051 = vshrl.u32 %v5050, 7
  %v5052 = vsub.s32 2, %v5051
  %v5053 = vrot.slane %v4768, %v5052
  %v5054 = vlaneseq
  %v5055 = vshrl.u32 %v5054, 7
  %v5056 = vsub.s32 3, %v5055
  %v5057 = vrot.slane %v4768, %v5056
  %v5058 = vlaneseq
  %v5059 = vshrl.u32 %v5058, 7
  %v5060 = vsub.s32 4, %v5059
  %v5061 = vrot.slane %v4768, %v5060
  %v5062 = vlaneseq
  %v5063 = vshrl.u32 %v5062, 7
  %v5064 = vsub.s32 5, %v5063
  %v5065 = vrot.slane %v4768, %v5064
  %v5066 = vlaneseq
  %v5067 = vshrl.u32 %v5066, 7
  %v5068 = vsub.s32 6, %v5067
  %v5069 = vrot.slane %v4768, %v5068
  %v5070 = vlaneseq
  %v5071 = vshrl.u32 %v5070, 7
  %v5072 = vsub.s32 7, %v5071
  %v5073 = vrot.slane %v4768, %v5072
  %v5074 = vlaneseq
  %v5075 = vshrl.u32 %v5074, 7
  %v5076 = vsub.s32 0, %v5075
  %v5077 = vrot.slane %v4771, %v5076
  %v5078 = vlaneseq
  %v5079 = vshrl.u32 %v5078, 7
  %v5080 = vsub.s32 1, %v5079
  %v5081 = vrot.slane %v4771, %v5080
  %v5082 = vlaneseq
  %v5083 = vshrl.u32 %v5082, 7
  %v5084 = vsub.s32 2, %v5083
  %v5085 = vrot.slane %v4771, %v5084
  %v5086 = vlaneseq
  %v5087 = vshrl.u32 %v5086, 7
  %v5088 = vsub.s32 3, %v5087
  %v5089 = vrot.slane %v4771, %v5088
  %v5090 = vlaneseq
  %v5091 = vshrl.u32 %v5090, 7
  %v5092 = vsub.s32 4, %v5091
  %v5093 = vrot.slane %v4771, %v5092
  %v5094 = vlaneseq
  %v5095 = vshrl.u32 %v5094, 7
  %v5096 = vsub.s32 5, %v5095
  %v5097 = vrot.slane %v4771, %v5096
  %v5098 = vlaneseq
  %v5099 = vshrl.u32 %v5098, 7
  %v5100 = vsub.s32 6, %v5099
  %v5101 = vrot.slane %v4771, %v5100
  %v5102 = vlaneseq
  %v5103 = vshrl.u32 %v5102, 7
  %v5104 = vsub.s32 7, %v5103
  %v5105 = vrot.slane %v4771, %v5104
  %v5106 = vlaneseq
  %v5107 = vshrl.u32 %v5106, 7
  %v5108 = vsub.s32 0, %v5107
  %v5109 = vrot.slane %v4774, %v5108
  %v5110 = vlaneseq
  %v5111 = vshrl.u32 %v5110, 7
  %v5112 = vsub.s32 1, %v5111
  %v5113 = vrot.slane %v4774, %v5112
  %v5114 = vlaneseq
  %v5115 = vshrl.u32 %v5114, 7
  %v5116 = vsub.s32 2, %v5115
  %v5117 = vrot.slane %v4774, %v5116
  %v5118 = vlaneseq
  %v5119 = vshrl.u32 %v5118, 7
  %v5120 = vsub.s32 3, %v5119
  %v5121 = vrot.slane %v4774, %v5120
  %v5122 = vlaneseq
  %v5123 = vshrl.u32 %v5122, 7
  %v5124 = vsub.s32 4, %v5123
  %v5125 = vrot.slane %v4774, %v5124
  %v5126 = vlaneseq
  %v5127 = vshrl.u32 %v5126, 7
  %v5128 = vsub.s32 5, %v5127
  %v5129 = vrot.slane %v4774, %v5128
  %v5130 = vlaneseq
  %v5131 = vshrl.u32 %v5130, 7
  %v5132 = vsub.s32 6, %v5131
  %v5133 = vrot.slane %v4774, %v5132
  %v5134 = vlaneseq
  %v5135 = vshrl.u32 %v5134, 7
  %v5136 = vsub.s32 7, %v5135
  %v5137 = vrot.slane %v4774, %v5136
  %v5226 = vrcp.pop %v4789
  %v5227 = vmul.f32 %v3775, %v5226
  %v5228 = vrcp.pop %v4793
  %v5229 = vmul.f32 %v3777, %v5228
  %v5230 = vrcp.pop %v4797
  %v5231 = vmul.f32 %v3779, %v5230
  %v5232 = vrcp.pop %v4801
  %v5233 = vmul.f32 %v3781, %v5232
  %v5234 = vrcp.pop %v4805
  %v5235 = vmul.f32 %v3783, %v5234
  %v5236 = vrcp.pop %v4809
  %v5237 = vmul.f32 %v3785, %v5236
  %v5238 = vrcp.pop %v4813
  %v5239 = vmul.f32 %v3787, %v5238
  %v5240 = vrcp.pop %v4817
  %v5241 = vmul.f32 %v3789, %v5240
  %v5242 = vrcp.pop %v4821
  %v5243 = vmul.f32 %v3791, %v5242
  %v5244 = vrcp.pop %v4825
  %v5245 = vmul.f32 %v3793, %v5244
  %v5246 = vrcp.pop %v4829
  %v5247 = vmul.f32 %v3795, %v5246
  %v5248 = vrcp.pop %v4833
  %v5249 = vmul.f32 %v3797, %v5248
  %v5250 = vrcp.pop %v4837
  %v5251 = vmul.f32 %v3799, %v5250
  %v5252 = vrcp.pop %v4841
  %v5253 = vmul.f32 %v3801, %v5252
  %v5254 = vrcp.pop %v4845
  %v5255 = vmul.f32 %v3803, %v5254
  %v5256 = vrcp.pop %v4849
  %v5257 = vmul.f32 %v3805, %v5256
  %v5258 = vrcp.pop %v4853
  %v5259 = vmul.f32 %v3807, %v5258
  %v5260 = vrcp.pop %v4857
  %v5261 = vmul.f32 %v3809, %v5260
  %v5262 = vrcp.pop %v4861
  %v5263 = vmul.f32 %v3811, %v5262
  %v5264 = vrcp.pop %v4865
  %v5265 = vmul.f32 %v3813, %v5264
  %v5266 = vrcp.pop %v4869
  %v5267 = vmul.f32 %v3815, %v5266
  %v5268 = vrcp.pop %v4873
  %v5269 = vmul.f32 %v3817, %v5268
  %v5270 = vrcp.pop %v4877
  %v5271 = vmul.f32 %v3819, %v5270
  %v5272 = vrcp.pop %v4881
  %v5273 = vmul.f32 %v3821, %v5272
  %v5274 = vrcp.pop %v4885
  %v5275 = vmul.f32 %v3823, %v5274
  %v5276 = vrcp.pop %v4889
  %v5277 = vmul.f32 %v3825, %v5276
  %v5278 = vrcp.pop %v4893
  %v5279 = vmul.f32 %v3827, %v5278
  %v5280 = vrcp.pop %v4897
  %v5281 = vmul.f32 %v3829, %v5280
  %v5282 = vrcp.pop %v4901
  %v5283 = vmul.f32 %v3831, %v5282
  %v5284 = vrcp.pop %v4905
  %v5285 = vmul.f32 %v3833, %v5284
  %v5286 = vrcp.pop %v4909
  %v5287 = vmul.f32 %v3835, %v5286
  %v5288 = vrcp.pop %v4913
  %v5289 = vmul.f32 %v3837, %v5288
  %v5290 = vrcp.pop %v4917
  %v5291 = vmul.f32 %v3839, %v5290
  %v5292 = vrcp.pop %v4921
  %v5293 = vmul.f32 %v3841, %v5292
  %v5294 = vrcp.pop %v4925
  %v5295 = vmul.f32 %v3843, %v5294
  %v5296 = vrcp.pop %v4929
  %v5297 = vmul.f32 %v3845, %v5296
  %v5298 = vrcp.pop %v4933
  %v5299 = vmul.f32 %v3847, %v5298
  %v5300 = vrcp.pop %v4937
  %v5301 = vmul.f32 %v3849, %v5300
  %v5302 = vrcp.pop %v4941
  %v5303 = vmul.f32 %v3851, %v5302
  %v5304 = vrcp.pop %v4945
  %v5305 = vmul.f32 %v3853, %v5304
  %v5306 = vrcp.pop %v4949
  %v5307 = vmul.f32 %v3855, %v5306
  %v5308 = vrcp.pop %v4953
  %v5309 = vmul.f32 %v3857, %v5308
  %v5310 = vrcp.pop %v4957
  %v5311 = vmul.f32 %v3859, %v5310
  %v5312 = vrcp.pop %v4961
  %v5313 = vmul.f32 %v3861, %v5312
  %v5314 = vrcp.pop %v4965
  %v5315 = vmul.f32 %v3863, %v5314
  %v5316 = vrcp.pop %v4969
  %v5317 = vmul.f32 %v3865, %v5316
  %v5318 = vrcp.pop %v4973
  %v5319 = vmul.f32 %v3867, %v5318
  %v5320 = vrcp.pop %v4977
  %v5321 = vmul.f32 %v3869, %v5320
  %v5322 = vrcp.pop %v4981
  %v5323 = vmul.f32 %v3871, %v5322
  %v5324 = vrcp.pop %v4985
  %v5325 = vmul.f32 %v3873, %v5324
  %v5326 = vrcp.pop %v4989
  %v5327 = vmul.f32 %v3875, %v5326
  %v5328 = vrcp.pop %v4993
  %v5329 = vmul.f32 %v3877, %v5328
  %v5330 = vrcp.pop %v4997
  %v5331 = vmul.f32 %v3879, %v5330
  %v5332 = vrcp.pop %v5001
  %v5333 = vmul.f32 %v3881, %v5332
  %v5334 = vrcp.pop %v5005
  %v5335 = vmul.f32 %v3883, %v5334
  %v5336 = vrcp.pop %v5009
  %v5337 = vmul.f32 %v3885, %v5336
  %v5338 = vrcp.pop %v5013
  %v5339 = vmul.f32 %v3887, %v5338
  %v5340 = vrcp.pop %v5017
  %v5341 = vmul.f32 %v3889, %v5340
  %v5342 = vrcp.pop %v5021
  %v5343 = vmul.f32 %v3891, %v5342
  %v5344 = vrcp.pop %v5025
  %v5345 = vmul.f32 %v3893, %v5344
  %v5346 = vrcp.pop %v5029
  %v5347 = vmul.f32 %v3895, %v5346
  %v5348 = vrcp.pop %v5033
  %v5349 = vmul.f32 %v3897, %v5348
  %v5350 = vrcp.pop %v5037
  %v5351 = vmul.f32 %v3899, %v5350
  %v5352 = vrcp.pop %v5041
  %v5353 = vmul.f32 %v3901, %v5352
  %v5354 = vrcp.pop %v5045
  %v5355 = vmul.f32 %v3903, %v5354
  %v5356 = vrcp.pop %v5049
  %v5357 = vmul.f32 %v3905, %v5356
  %v5358 = vrcp.pop %v5053
  %v5359 = vmul.f32 %v3907, %v5358
  %v5360 = vrcp.pop %v5057
  %v5361 = vmul.f32 %v3909, %v5360
  %v5362 = vrcp.pop %v5061
  %v5363 = vmul.f32 %v3911, %v5362
  %v5364 = vrcp.pop %v5065
  %v5365 = vmul.f32 %v3913, %v5364
  %v5366 = vrcp.pop %v5069
  %v5367 = vmul.f32 %v3915, %v5366
  %v5368 = vrcp.pop %v5073
  %v5369 = vmul.f32 %v3917, %v5368
  %v5370 = vrcp.pop %v5077
  %v5371 = vmul.f32 %v3919, %v5370
  %v5372 = vrcp.pop %v5081
  %v5373 = vmul.f32 %v3921, %v5372
  %v5374 = vrcp.pop %v5085
  %v5375 = vmul.f32 %v3923, %v5374
  %v5376 = vrcp.pop %v5089
  %v5377 = vmul.f32 %v3925, %v5376
  %v5378 = vrcp.pop %v5093
  %v5379 = vmul.f32 %v3927, %v5378
  %v5380 = vrcp.pop %v5097
  %v5381 = vmul.f32 %v3929, %v5380
  %v5382 = vrcp.pop %v5101
  %v5383 = vmul.f32 %v3931, %v5382
  %v5384 = vrcp.pop %v5105
  %v5385 = vmul.f32 %v3933, %v5384
  %v5386 = vrcp.pop %v5109
  %v5387 = vmul.f32 %v3935, %v5386
  %v5388 = vrcp.pop %v5113
  %v5389 = vmul.f32 %v3937, %v5388
  %v5390 = vrcp.pop %v5117
  %v5391 = vmul.f32 %v3939, %v5390
  %v5392 = vrcp.pop %v5121
  %v5393 = vmul.f32 %v3941, %v5392
  %v5394 = vrcp.pop %v5125
  %v5395 = vmul.f32 %v3943, %v5394
  %v5396 = vrcp.pop %v5129
  %v5397 = vmul.f32 %v3945, %v5396
  %v5398 = vrcp.pop %v5133
  %v5399 = vmul.f32 %v3947, %v5398
  %v5400 = vrcp.pop %v5137
  %v5401 = vmul.f32 %v3949, %v5400
  %5403 = vset.pattern.permute.xlu0 0
  %5404 = vperm.xlu0 %5403, %v5227
  %v5405 = vpop.permute.xlu0 %5404
  %5408 = vset.pattern.permute.xlu0 0
  %5409 = vperm.xlu0 %5408, %v5229
  %v5410 = vpop.permute.xlu0 %5409
  %5413 = vset.pattern.permute.xlu0 0
  %5414 = vperm.xlu0 %5413, %v5231
  %v5415 = vpop.permute.xlu0 %5414
  %5418 = vset.pattern.permute.xlu0 0
  %5419 = vperm.xlu0 %5418, %v5233
  %v5420 = vpop.permute.xlu0 %5419
  %5423 = vset.pattern.permute.xlu0 0
  %5424 = vperm.xlu0 %5423, %v5235
  %v5425 = vpop.permute.xlu0 %5424
  %5428 = vset.pattern.permute.xlu0 0
  %5429 = vperm.xlu0 %5428, %v5237
  %v5430 = vpop.permute.xlu0 %5429
  %5433 = vset.pattern.permute.xlu0 0
  %5434 = vperm.xlu0 %5433, %v5239
  %v5435 = vpop.permute.xlu0 %5434
  %5438 = vset.pattern.permute.xlu0 0
  %5439 = vperm.xlu0 %5438, %v5241
  %v5440 = vpop.permute.xlu0 %5439
  %5443 = vset.pattern.permute.xlu0 0
  %5444 = vperm.xlu0 %5443, %v5243
  %v5445 = vpop.permute.xlu0 %5444
  %5448 = vset.pattern.permute.xlu0 0
  %5449 = vperm.xlu0 %5448, %v5245
  %v5450 = vpop.permute.xlu0 %5449
  %5453 = vset.pattern.permute.xlu0 0
  %5454 = vperm.xlu0 %5453, %v5247
  %v5455 = vpop.permute.xlu0 %5454
  %5458 = vset.pattern.permute.xlu0 0
  %5459 = vperm.xlu0 %5458, %v5249
  %v5460 = vpop.permute.xlu0 %5459
  %5463 = vset.pattern.permute.xlu0 0
  %5464 = vperm.xlu0 %5463, %v5251
  %v5465 = vpop.permute.xlu0 %5464
  %5468 = vset.pattern.permute.xlu0 0
  %5469 = vperm.xlu0 %5468, %v5253
  %v5470 = vpop.permute.xlu0 %5469
  %5473 = vset.pattern.permute.xlu0 0
  %5474 = vperm.xlu0 %5473, %v5255
  %v5475 = vpop.permute.xlu0 %5474
  %5478 = vset.pattern.permute.xlu0 0
  %5479 = vperm.xlu0 %5478, %v5257
  %v5480 = vpop.permute.xlu0 %5479
  %5483 = vset.pattern.permute.xlu0 0
  %5484 = vperm.xlu0 %5483, %v5259
  %v5485 = vpop.permute.xlu0 %5484
  %5488 = vset.pattern.permute.xlu0 0
  %5489 = vperm.xlu0 %5488, %v5261
  %v5490 = vpop.permute.xlu0 %5489
  %5493 = vset.pattern.permute.xlu0 0
  %5494 = vperm.xlu0 %5493, %v5263
  %v5495 = vpop.permute.xlu0 %5494
  %5498 = vset.pattern.permute.xlu0 0
  %5499 = vperm.xlu0 %5498, %v5265
  %v5500 = vpop.permute.xlu0 %5499
  %5503 = vset.pattern.permute.xlu0 0
  %5504 = vperm.xlu0 %5503, %v5267
  %v5505 = vpop.permute.xlu0 %5504
  %5508 = vset.pattern.permute.xlu0 0
  %5509 = vperm.xlu0 %5508, %v5269
  %v5510 = vpop.permute.xlu0 %5509
  %5513 = vset.pattern.permute.xlu0 0
  %5514 = vperm.xlu0 %5513, %v5271
  %v5515 = vpop.permute.xlu0 %5514
  %5518 = vset.pattern.permute.xlu0 0
  %5519 = vperm.xlu0 %5518, %v5273
  %v5520 = vpop.permute.xlu0 %5519
  %5523 = vset.pattern.permute.xlu0 0
  %5524 = vperm.xlu0 %5523, %v5275
  %v5525 = vpop.permute.xlu0 %5524
  %5528 = vset.pattern.permute.xlu0 0
  %5529 = vperm.xlu0 %5528, %v5277
  %v5530 = vpop.permute.xlu0 %5529
  %5533 = vset.pattern.permute.xlu0 0
  %5534 = vperm.xlu0 %5533, %v5279
  %v5535 = vpop.permute.xlu0 %5534
  %5538 = vset.pattern.permute.xlu0 0
  %5539 = vperm.xlu0 %5538, %v5281
  %v5540 = vpop.permute.xlu0 %5539
  %5543 = vset.pattern.permute.xlu0 0
  %5544 = vperm.xlu0 %5543, %v5283
  %v5545 = vpop.permute.xlu0 %5544
  %5548 = vset.pattern.permute.xlu0 0
  %5549 = vperm.xlu0 %5548, %v5285
  %v5550 = vpop.permute.xlu0 %5549
  %5553 = vset.pattern.permute.xlu0 0
  %5554 = vperm.xlu0 %5553, %v5287
  %v5555 = vpop.permute.xlu0 %5554
  %5558 = vset.pattern.permute.xlu0 0
  %5559 = vperm.xlu0 %5558, %v5289
  %v5560 = vpop.permute.xlu0 %5559
  %5563 = vset.pattern.permute.xlu0 0
  %5564 = vperm.xlu0 %5563, %v5291
  %v5565 = vpop.permute.xlu0 %5564
  %5568 = vset.pattern.permute.xlu0 0
  %5569 = vperm.xlu0 %5568, %v5293
  %v5570 = vpop.permute.xlu0 %5569
  %5573 = vset.pattern.permute.xlu0 0
  %5574 = vperm.xlu0 %5573, %v5295
  %v5575 = vpop.permute.xlu0 %5574
  %5578 = vset.pattern.permute.xlu0 0
  %5579 = vperm.xlu0 %5578, %v5297
  %v5580 = vpop.permute.xlu0 %5579
  %5583 = vset.pattern.permute.xlu0 0
  %5584 = vperm.xlu0 %5583, %v5299
  %v5585 = vpop.permute.xlu0 %5584
  %5588 = vset.pattern.permute.xlu0 0
  %5589 = vperm.xlu0 %5588, %v5301
  %v5590 = vpop.permute.xlu0 %5589
  %5593 = vset.pattern.permute.xlu0 0
  %5594 = vperm.xlu0 %5593, %v5303
  %v5595 = vpop.permute.xlu0 %5594
  %5598 = vset.pattern.permute.xlu0 0
  %5599 = vperm.xlu0 %5598, %v5305
  %v5600 = vpop.permute.xlu0 %5599
  %5603 = vset.pattern.permute.xlu0 0
  %5604 = vperm.xlu0 %5603, %v5307
  %v5605 = vpop.permute.xlu0 %5604
  %5608 = vset.pattern.permute.xlu0 0
  %5609 = vperm.xlu0 %5608, %v5309
  %v5610 = vpop.permute.xlu0 %5609
  %5613 = vset.pattern.permute.xlu0 0
  %5614 = vperm.xlu0 %5613, %v5311
  %v5615 = vpop.permute.xlu0 %5614
  %5618 = vset.pattern.permute.xlu0 0
  %5619 = vperm.xlu0 %5618, %v5313
  %v5620 = vpop.permute.xlu0 %5619
  %5623 = vset.pattern.permute.xlu0 0
  %5624 = vperm.xlu0 %5623, %v5315
  %v5625 = vpop.permute.xlu0 %5624
  %5628 = vset.pattern.permute.xlu0 0
  %5629 = vperm.xlu0 %5628, %v5317
  %v5630 = vpop.permute.xlu0 %5629
  %5633 = vset.pattern.permute.xlu0 0
  %5634 = vperm.xlu0 %5633, %v5319
  %v5635 = vpop.permute.xlu0 %5634
  %5638 = vset.pattern.permute.xlu0 0
  %5639 = vperm.xlu0 %5638, %v5321
  %v5640 = vpop.permute.xlu0 %5639
  %5643 = vset.pattern.permute.xlu0 0
  %5644 = vperm.xlu0 %5643, %v5323
  %v5645 = vpop.permute.xlu0 %5644
  %5648 = vset.pattern.permute.xlu0 0
  %5649 = vperm.xlu0 %5648, %v5325
  %v5650 = vpop.permute.xlu0 %5649
  %5653 = vset.pattern.permute.xlu0 0
  %5654 = vperm.xlu0 %5653, %v5327
  %v5655 = vpop.permute.xlu0 %5654
  %5658 = vset.pattern.permute.xlu0 0
  %5659 = vperm.xlu0 %5658, %v5329
  %v5660 = vpop.permute.xlu0 %5659
  %5663 = vset.pattern.permute.xlu0 0
  %5664 = vperm.xlu0 %5663, %v5331
  %v5665 = vpop.permute.xlu0 %5664
  %5668 = vset.pattern.permute.xlu0 0
  %5669 = vperm.xlu0 %5668, %v5333
  %v5670 = vpop.permute.xlu0 %5669
  %5673 = vset.pattern.permute.xlu0 0
  %5674 = vperm.xlu0 %5673, %v5335
  %v5675 = vpop.permute.xlu0 %5674
  %5678 = vset.pattern.permute.xlu0 0
  %5679 = vperm.xlu0 %5678, %v5337
  %v5680 = vpop.permute.xlu0 %5679
  %5683 = vset.pattern.permute.xlu0 0
  %5684 = vperm.xlu0 %5683, %v5339
  %v5685 = vpop.permute.xlu0 %5684
  %5688 = vset.pattern.permute.xlu0 0
  %5689 = vperm.xlu0 %5688, %v5341
  %v5690 = vpop.permute.xlu0 %5689
  %5693 = vset.pattern.permute.xlu0 0
  %5694 = vperm.xlu0 %5693, %v5343
  %v5695 = vpop.permute.xlu0 %5694
  %5698 = vset.pattern.permute.xlu0 0
  %5699 = vperm.xlu0 %5698, %v5345
  %v5700 = vpop.permute.xlu0 %5699
  %5703 = vset.pattern.permute.xlu0 0
  %5704 = vperm.xlu0 %5703, %v5347
  %v5705 = vpop.permute.xlu0 %5704
  %5708 = vset.pattern.permute.xlu0 0
  %5709 = vperm.xlu0 %5708, %v5349
  %v5710 = vpop.permute.xlu0 %5709
  %5713 = vset.pattern.permute.xlu0 0
  %5714 = vperm.xlu0 %5713, %v5351
  %v5715 = vpop.permute.xlu0 %5714
  %5718 = vset.pattern.permute.xlu0 0
  %5719 = vperm.xlu0 %5718, %v5353
  %v5720 = vpop.permute.xlu0 %5719
  %5723 = vset.pattern.permute.xlu0 0
  %5724 = vperm.xlu0 %5723, %v5355
  %v5725 = vpop.permute.xlu0 %5724
  %5728 = vset.pattern.permute.xlu0 0
  %5729 = vperm.xlu0 %5728, %v5357
  %v5730 = vpop.permute.xlu0 %5729
  %5733 = vset.pattern.permute.xlu0 0
  %5734 = vperm.xlu0 %5733, %v5359
  %v5735 = vpop.permute.xlu0 %5734
  %5738 = vset.pattern.permute.xlu0 0
  %5739 = vperm.xlu0 %5738, %v5361
  %v5740 = vpop.permute.xlu0 %5739
  %5743 = vset.pattern.permute.xlu0 0
  %5744 = vperm.xlu0 %5743, %v5363
  %v5745 = vpop.permute.xlu0 %5744
  %5748 = vset.pattern.permute.xlu0 0
  %5749 = vperm.xlu0 %5748, %v5365
  %v5750 = vpop.permute.xlu0 %5749
  %5753 = vset.pattern.permute.xlu0 0
  %5754 = vperm.xlu0 %5753, %v5367
  %v5755 = vpop.permute.xlu0 %5754
  %5758 = vset.pattern.permute.xlu0 0
  %5759 = vperm.xlu0 %5758, %v5369
  %v5760 = vpop.permute.xlu0 %5759
  %5763 = vset.pattern.permute.xlu0 0
  %5764 = vperm.xlu0 %5763, %v5371
  %v5765 = vpop.permute.xlu0 %5764
  %5768 = vset.pattern.permute.xlu0 0
  %5769 = vperm.xlu0 %5768, %v5373
  %v5770 = vpop.permute.xlu0 %5769
  %5773 = vset.pattern.permute.xlu0 0
  %5774 = vperm.xlu0 %5773, %v5375
  %v5775 = vpop.permute.xlu0 %5774
  %5778 = vset.pattern.permute.xlu0 0
  %5779 = vperm.xlu0 %5778, %v5377
  %v5780 = vpop.permute.xlu0 %5779
  %5783 = vset.pattern.permute.xlu0 0
  %5784 = vperm.xlu0 %5783, %v5379
  %v5785 = vpop.permute.xlu0 %5784
  %5788 = vset.pattern.permute.xlu0 0
  %5789 = vperm.xlu0 %5788, %v5381
  %v5790 = vpop.permute.xlu0 %5789
  %5793 = vset.pattern.permute.xlu0 0
  %5794 = vperm.xlu0 %5793, %v5383
  %v5795 = vpop.permute.xlu0 %5794
  %5798 = vset.pattern.permute.xlu0 0
  %5799 = vperm.xlu0 %5798, %v5385
  %v5800 = vpop.permute.xlu0 %5799
  %5803 = vset.pattern.permute.xlu0 0
  %5804 = vperm.xlu0 %5803, %v5387
  %v5805 = vpop.permute.xlu0 %5804
  %5808 = vset.pattern.permute.xlu0 0
  %5809 = vperm.xlu0 %5808, %v5389
  %v5810 = vpop.permute.xlu0 %5809
  %5813 = vset.pattern.permute.xlu0 0
  %5814 = vperm.xlu0 %5813, %v5391
  %v5815 = vpop.permute.xlu0 %5814
  %5818 = vset.pattern.permute.xlu0 0
  %5819 = vperm.xlu0 %5818, %v5393
  %v5820 = vpop.permute.xlu0 %5819
  %5823 = vset.pattern.permute.xlu0 0
  %5824 = vperm.xlu0 %5823, %v5395
  %v5825 = vpop.permute.xlu0 %5824
  %5828 = vset.pattern.permute.xlu0 0
  %5829 = vperm.xlu0 %5828, %v5397
  %v5830 = vpop.permute.xlu0 %5829
  %5833 = vset.pattern.permute.xlu0 0
  %5834 = vperm.xlu0 %5833, %v5399
  %v5835 = vpop.permute.xlu0 %5834
  %5838 = vset.pattern.permute.xlu0 0
  %5839 = vperm.xlu0 %5838, %v5401
  %v5840 = vpop.permute.xlu0 %5839
  %v5842 = vmul.f32 %v924, %v5405
  %v5843 = vmul.f32 %v925, %v5410
  %v5844 = vmul.f32 %v926, %v5415
  %v5845 = vmul.f32 %v927, %v5420
  %v5846 = vmul.f32 %v928, %v5425
  %v5847 = vmul.f32 %v929, %v5430
  %v5848 = vmul.f32 %v930, %v5435
  %v5849 = vmul.f32 %v931, %v5440
  %v5850 = vmul.f32 %v932, %v5445
  %v5851 = vmul.f32 %v933, %v5450
  %v5852 = vmul.f32 %v934, %v5455
  %v5853 = vmul.f32 %v935, %v5460
  %v5854 = vmul.f32 %v936, %v5465
  %v5855 = vmul.f32 %v937, %v5470
  %v5856 = vmul.f32 %v938, %v5475
  %v5857 = vmul.f32 %v939, %v5480
  %v5858 = vmul.f32 %v940, %v5485
  %v5859 = vmul.f32 %v941, %v5490
  %v5860 = vmul.f32 %v942, %v5495
  %v5861 = vmul.f32 %v943, %v5500
  %v5862 = vmul.f32 %v944, %v5505
  %v5863 = vmul.f32 %v945, %v5510
  %v5864 = vmul.f32 %v946, %v5515
  %v5865 = vmul.f32 %v947, %v5520
  %v5866 = vmul.f32 %v948, %v5525
  %v5867 = vmul.f32 %v949, %v5530
  %v5868 = vmul.f32 %v950, %v5535
  %v5869 = vmul.f32 %v951, %v5540
  %v5870 = vmul.f32 %v952, %v5545
  %v5871 = vmul.f32 %v953, %v5550
  %v5872 = vmul.f32 %v954, %v5555
  %v5873 = vmul.f32 %v955, %v5560
  %v5874 = vmul.f32 %v956, %v5565
  %v5875 = vmul.f32 %v957, %v5570
  %v5876 = vmul.f32 %v958, %v5575
  %v5877 = vmul.f32 %v959, %v5580
  %v5878 = vmul.f32 %v960, %v5585
  %v5879 = vmul.f32 %v961, %v5590
  %v5880 = vmul.f32 %v962, %v5595
  %v5881 = vmul.f32 %v963, %v5600
  %v5882 = vmul.f32 %v964, %v5605
  %v5883 = vmul.f32 %v965, %v5610
  %v5884 = vmul.f32 %v966, %v5615
  %v5885 = vmul.f32 %v967, %v5620
  %v5886 = vmul.f32 %v968, %v5625
  %v5887 = vmul.f32 %v969, %v5630
  %v5888 = vmul.f32 %v970, %v5635
  %v5889 = vmul.f32 %v971, %v5640
  %v5890 = vmul.f32 %v972, %v5645
  %v5891 = vmul.f32 %v973, %v5650
  %v5892 = vmul.f32 %v974, %v5655
  %v5893 = vmul.f32 %v975, %v5660
  %v5894 = vmul.f32 %v976, %v5665
  %v5895 = vmul.f32 %v977, %v5670
  %v5896 = vmul.f32 %v978, %v5675
  %v5897 = vmul.f32 %v979, %v5680
  %v5898 = vmul.f32 %v980, %v5685
  %v5899 = vmul.f32 %v981, %v5690
  %v5900 = vmul.f32 %v982, %v5695
  %v5901 = vmul.f32 %v983, %v5700
  %v5902 = vmul.f32 %v984, %v5705
  %v5903 = vmul.f32 %v985, %v5710
  %v5904 = vmul.f32 %v986, %v5715
  %v5905 = vmul.f32 %v987, %v5720
  %v5906 = vmul.f32 %v988, %v5725
  %v5907 = vmul.f32 %v989, %v5730
  %v5908 = vmul.f32 %v990, %v5735
  %v5909 = vmul.f32 %v991, %v5740
  %v5910 = vmul.f32 %v992, %v5745
  %v5911 = vmul.f32 %v993, %v5750
  %v5912 = vmul.f32 %v994, %v5755
  %v5913 = vmul.f32 %v995, %v5760
  %v5914 = vmul.f32 %v996, %v5765
  %v5915 = vmul.f32 %v997, %v5770
  %v5916 = vmul.f32 %v998, %v5775
  %v5917 = vmul.f32 %v999, %v5780
  %v5918 = vmul.f32 %v1000, %v5785
  %v5919 = vmul.f32 %v1001, %v5790
  %v5920 = vmul.f32 %v1002, %v5795
  %v5921 = vmul.f32 %v1003, %v5800
  %v5922 = vmul.f32 %v1004, %v5805
  %v5923 = vmul.f32 %v1005, %v5810
  %v5924 = vmul.f32 %v1006, %v5815
  %v5925 = vmul.f32 %v1007, %v5820
  %v5926 = vmul.f32 %v1008, %v5825
  %v5927 = vmul.f32 %v1009, %v5830
  %v5928 = vmul.f32 %v1010, %v5835
  %v5929 = vmul.f32 %v1011, %v5840
  %v5930 = vrot.slane %v5842, 4
  %v5931 = vadd.f32 %v5842, %v5930
  %v5932 = vrot.slane %v5931, 2
  %v5933 = vadd.f32 %v5931, %v5932
  %v5934 = vrot.slane %v5933, 1
  %v5935 = vadd.f32 %v5933, %v5934
  %v5936 = vrot.slane %v5843, 4
  %v5937 = vadd.f32 %v5843, %v5936
  %v5938 = vrot.slane %v5937, 2
  %v5939 = vadd.f32 %v5937, %v5938
  %v5940 = vrot.slane %v5939, 1
  %v5941 = vadd.f32 %v5939, %v5940
  %v5942 = vrot.slane %v5844, 4
  %v5943 = vadd.f32 %v5844, %v5942
  %v5944 = vrot.slane %v5943, 2
  %v5945 = vadd.f32 %v5943, %v5944
  %v5946 = vrot.slane %v5945, 1
  %v5947 = vadd.f32 %v5945, %v5946
  %v5948 = vrot.slane %v5845, 4
  %v5949 = vadd.f32 %v5845, %v5948
  %v5950 = vrot.slane %v5949, 2
  %v5951 = vadd.f32 %v5949, %v5950
  %v5952 = vrot.slane %v5951, 1
  %v5953 = vadd.f32 %v5951, %v5952
  %v5954 = vrot.slane %v5846, 4
  %v5955 = vadd.f32 %v5846, %v5954
  %v5956 = vrot.slane %v5955, 2
  %v5957 = vadd.f32 %v5955, %v5956
  %v5958 = vrot.slane %v5957, 1
  %v5959 = vadd.f32 %v5957, %v5958
  %v5960 = vrot.slane %v5847, 4
  %v5961 = vadd.f32 %v5847, %v5960
  %v5962 = vrot.slane %v5961, 2
  %v5963 = vadd.f32 %v5961, %v5962
  %v5964 = vrot.slane %v5963, 1
  %v5965 = vadd.f32 %v5963, %v5964
  %v5966 = vrot.slane %v5848, 4
  %v5967 = vadd.f32 %v5848, %v5966
  %v5968 = vrot.slane %v5967, 2
  %v5969 = vadd.f32 %v5967, %v5968
  %v5970 = vrot.slane %v5969, 1
  %v5971 = vadd.f32 %v5969, %v5970
  %v5972 = vrot.slane %v5849, 4
  %v5973 = vadd.f32 %v5849, %v5972
  %v5974 = vrot.slane %v5973, 2
  %v5975 = vadd.f32 %v5973, %v5974
  %v5976 = vrot.slane %v5975, 1
  %v5977 = vadd.f32 %v5975, %v5976
  %v5978 = vrot.slane %v5850, 4
  %v5979 = vadd.f32 %v5850, %v5978
  %v5980 = vrot.slane %v5979, 2
  %v5981 = vadd.f32 %v5979, %v5980
  %v5982 = vrot.slane %v5981, 1
  %v5983 = vadd.f32 %v5981, %v5982
  %v5984 = vrot.slane %v5851, 4
  %v5985 = vadd.f32 %v5851, %v5984
  %v5986 = vrot.slane %v5985, 2
  %v5987 = vadd.f32 %v5985, %v5986
  %v5988 = vrot.slane %v5987, 1
  %v5989 = vadd.f32 %v5987, %v5988
  %v5990 = vrot.slane %v5852, 4
  %v5991 = vadd.f32 %v5852, %v5990
  %v5992 = vrot.slane %v5991, 2
  %v5993 = vadd.f32 %v5991, %v5992
  %v5994 = vrot.slane %v5993, 1
  %v5995 = vadd.f32 %v5993, %v5994
  %v5996 = vrot.slane %v5853, 4
  %v5997 = vadd.f32 %v5853, %v5996
  %v5998 = vrot.slane %v5997, 2
  %v5999 = vadd.f32 %v5997, %v5998
  %v6000 = vrot.slane %v5999, 1
  %v6001 = vadd.f32 %v5999, %v6000
  %v6002 = vrot.slane %v5854, 4
  %v6003 = vadd.f32 %v5854, %v6002
  %v6004 = vrot.slane %v6003, 2
  %v6005 = vadd.f32 %v6003, %v6004
  %v6006 = vrot.slane %v6005, 1
  %v6007 = vadd.f32 %v6005, %v6006
  %v6008 = vrot.slane %v5855, 4
  %v6009 = vadd.f32 %v5855, %v6008
  %v6010 = vrot.slane %v6009, 2
  %v6011 = vadd.f32 %v6009, %v6010
  %v6012 = vrot.slane %v6011, 1
  %v6013 = vadd.f32 %v6011, %v6012
  %v6014 = vrot.slane %v5856, 4
  %v6015 = vadd.f32 %v5856, %v6014
  %v6016 = vrot.slane %v6015, 2
  %v6017 = vadd.f32 %v6015, %v6016
  %v6018 = vrot.slane %v6017, 1
  %v6019 = vadd.f32 %v6017, %v6018
  %v6020 = vrot.slane %v5857, 4
  %v6021 = vadd.f32 %v5857, %v6020
  %v6022 = vrot.slane %v6021, 2
  %v6023 = vadd.f32 %v6021, %v6022
  %v6024 = vrot.slane %v6023, 1
  %v6025 = vadd.f32 %v6023, %v6024
  %v6026 = vrot.slane %v5858, 4
  %v6027 = vadd.f32 %v5858, %v6026
  %v6028 = vrot.slane %v6027, 2
  %v6029 = vadd.f32 %v6027, %v6028
  %v6030 = vrot.slane %v6029, 1
  %v6031 = vadd.f32 %v6029, %v6030
  %v6032 = vrot.slane %v5859, 4
  %v6033 = vadd.f32 %v5859, %v6032
  %v6034 = vrot.slane %v6033, 2
  %v6035 = vadd.f32 %v6033, %v6034
  %v6036 = vrot.slane %v6035, 1
  %v6037 = vadd.f32 %v6035, %v6036
  %v6038 = vrot.slane %v5860, 4
  %v6039 = vadd.f32 %v5860, %v6038
  %v6040 = vrot.slane %v6039, 2
  %v6041 = vadd.f32 %v6039, %v6040
  %v6042 = vrot.slane %v6041, 1
  %v6043 = vadd.f32 %v6041, %v6042
  %v6044 = vrot.slane %v5861, 4
  %v6045 = vadd.f32 %v5861, %v6044
  %v6046 = vrot.slane %v6045, 2
  %v6047 = vadd.f32 %v6045, %v6046
  %v6048 = vrot.slane %v6047, 1
  %v6049 = vadd.f32 %v6047, %v6048
  %v6050 = vrot.slane %v5862, 4
  %v6051 = vadd.f32 %v5862, %v6050
  %v6052 = vrot.slane %v6051, 2
  %v6053 = vadd.f32 %v6051, %v6052
  %v6054 = vrot.slane %v6053, 1
  %v6055 = vadd.f32 %v6053, %v6054
  %v6056 = vrot.slane %v5863, 4
  %v6057 = vadd.f32 %v5863, %v6056
  %v6058 = vrot.slane %v6057, 2
  %v6059 = vadd.f32 %v6057, %v6058
  %v6060 = vrot.slane %v6059, 1
  %v6061 = vadd.f32 %v6059, %v6060
  %v6062 = vrot.slane %v5864, 4
  %v6063 = vadd.f32 %v5864, %v6062
  %v6064 = vrot.slane %v6063, 2
  %v6065 = vadd.f32 %v6063, %v6064
  %v6066 = vrot.slane %v6065, 1
  %v6067 = vadd.f32 %v6065, %v6066
  %v6068 = vrot.slane %v5865, 4
  %v6069 = vadd.f32 %v5865, %v6068
  %v6070 = vrot.slane %v6069, 2
  %v6071 = vadd.f32 %v6069, %v6070
  %v6072 = vrot.slane %v6071, 1
  %v6073 = vadd.f32 %v6071, %v6072
  %v6074 = vrot.slane %v5866, 4
  %v6075 = vadd.f32 %v5866, %v6074
  %v6076 = vrot.slane %v6075, 2
  %v6077 = vadd.f32 %v6075, %v6076
  %v6078 = vrot.slane %v6077, 1
  %v6079 = vadd.f32 %v6077, %v6078
  %v6080 = vrot.slane %v5867, 4
  %v6081 = vadd.f32 %v5867, %v6080
  %v6082 = vrot.slane %v6081, 2
  %v6083 = vadd.f32 %v6081, %v6082
  %v6084 = vrot.slane %v6083, 1
  %v6085 = vadd.f32 %v6083, %v6084
  %v6086 = vrot.slane %v5868, 4
  %v6087 = vadd.f32 %v5868, %v6086
  %v6088 = vrot.slane %v6087, 2
  %v6089 = vadd.f32 %v6087, %v6088
  %v6090 = vrot.slane %v6089, 1
  %v6091 = vadd.f32 %v6089, %v6090
  %v6092 = vrot.slane %v5869, 4
  %v6093 = vadd.f32 %v5869, %v6092
  %v6094 = vrot.slane %v6093, 2
  %v6095 = vadd.f32 %v6093, %v6094
  %v6096 = vrot.slane %v6095, 1
  %v6097 = vadd.f32 %v6095, %v6096
  %v6098 = vrot.slane %v5870, 4
  %v6099 = vadd.f32 %v5870, %v6098
  %v6100 = vrot.slane %v6099, 2
  %v6101 = vadd.f32 %v6099, %v6100
  %v6102 = vrot.slane %v6101, 1
  %v6103 = vadd.f32 %v6101, %v6102
  %v6104 = vrot.slane %v5871, 4
  %v6105 = vadd.f32 %v5871, %v6104
  %v6106 = vrot.slane %v6105, 2
  %v6107 = vadd.f32 %v6105, %v6106
  %v6108 = vrot.slane %v6107, 1
  %v6109 = vadd.f32 %v6107, %v6108
  %v6110 = vrot.slane %v5872, 4
  %v6111 = vadd.f32 %v5872, %v6110
  %v6112 = vrot.slane %v6111, 2
  %v6113 = vadd.f32 %v6111, %v6112
  %v6114 = vrot.slane %v6113, 1
  %v6115 = vadd.f32 %v6113, %v6114
  %v6116 = vrot.slane %v5873, 4
  %v6117 = vadd.f32 %v5873, %v6116
  %v6118 = vrot.slane %v6117, 2
  %v6119 = vadd.f32 %v6117, %v6118
  %v6120 = vrot.slane %v6119, 1
  %v6121 = vadd.f32 %v6119, %v6120
  %v6122 = vrot.slane %v5874, 4
  %v6123 = vadd.f32 %v5874, %v6122
  %v6124 = vrot.slane %v6123, 2
  %v6125 = vadd.f32 %v6123, %v6124
  %v6126 = vrot.slane %v6125, 1
  %v6127 = vadd.f32 %v6125, %v6126
  %v6128 = vrot.slane %v5875, 4
  %v6129 = vadd.f32 %v5875, %v6128
  %v6130 = vrot.slane %v6129, 2
  %v6131 = vadd.f32 %v6129, %v6130
  %v6132 = vrot.slane %v6131, 1
  %v6133 = vadd.f32 %v6131, %v6132
  %v6134 = vrot.slane %v5876, 4
  %v6135 = vadd.f32 %v5876, %v6134
  %v6136 = vrot.slane %v6135, 2
  %v6137 = vadd.f32 %v6135, %v6136
  %v6138 = vrot.slane %v6137, 1
  %v6139 = vadd.f32 %v6137, %v6138
  %v6140 = vrot.slane %v5877, 4
  %v6141 = vadd.f32 %v5877, %v6140
  %v6142 = vrot.slane %v6141, 2
  %v6143 = vadd.f32 %v6141, %v6142
  %v6144 = vrot.slane %v6143, 1
  %v6145 = vadd.f32 %v6143, %v6144
  %v6146 = vrot.slane %v5878, 4
  %v6147 = vadd.f32 %v5878, %v6146
  %v6148 = vrot.slane %v6147, 2
  %v6149 = vadd.f32 %v6147, %v6148
  %v6150 = vrot.slane %v6149, 1
  %v6151 = vadd.f32 %v6149, %v6150
  %v6152 = vrot.slane %v5879, 4
  %v6153 = vadd.f32 %v5879, %v6152
  %v6154 = vrot.slane %v6153, 2
  %v6155 = vadd.f32 %v6153, %v6154
  %v6156 = vrot.slane %v6155, 1
  %v6157 = vadd.f32 %v6155, %v6156
  %v6158 = vrot.slane %v5880, 4
  %v6159 = vadd.f32 %v5880, %v6158
  %v6160 = vrot.slane %v6159, 2
  %v6161 = vadd.f32 %v6159, %v6160
  %v6162 = vrot.slane %v6161, 1
  %v6163 = vadd.f32 %v6161, %v6162
  %v6164 = vrot.slane %v5881, 4
  %v6165 = vadd.f32 %v5881, %v6164
  %v6166 = vrot.slane %v6165, 2
  %v6167 = vadd.f32 %v6165, %v6166
  %v6168 = vrot.slane %v6167, 1
  %v6169 = vadd.f32 %v6167, %v6168
  %v6170 = vrot.slane %v5882, 4
  %v6171 = vadd.f32 %v5882, %v6170
  %v6172 = vrot.slane %v6171, 2
  %v6173 = vadd.f32 %v6171, %v6172
  %v6174 = vrot.slane %v6173, 1
  %v6175 = vadd.f32 %v6173, %v6174
  %v6176 = vrot.slane %v5883, 4
  %v6177 = vadd.f32 %v5883, %v6176
  %v6178 = vrot.slane %v6177, 2
  %v6179 = vadd.f32 %v6177, %v6178
  %v6180 = vrot.slane %v6179, 1
  %v6181 = vadd.f32 %v6179, %v6180
  %v6182 = vrot.slane %v5884, 4
  %v6183 = vadd.f32 %v5884, %v6182
  %v6184 = vrot.slane %v6183, 2
  %v6185 = vadd.f32 %v6183, %v6184
  %v6186 = vrot.slane %v6185, 1
  %v6187 = vadd.f32 %v6185, %v6186
  %v6188 = vrot.slane %v5885, 4
  %v6189 = vadd.f32 %v5885, %v6188
  %v6190 = vrot.slane %v6189, 2
  %v6191 = vadd.f32 %v6189, %v6190
  %v6192 = vrot.slane %v6191, 1
  %v6193 = vadd.f32 %v6191, %v6192
  %v6194 = vrot.slane %v5886, 4
  %v6195 = vadd.f32 %v5886, %v6194
  %v6196 = vrot.slane %v6195, 2
  %v6197 = vadd.f32 %v6195, %v6196
  %v6198 = vrot.slane %v6197, 1
  %v6199 = vadd.f32 %v6197, %v6198
  %v6200 = vrot.slane %v5887, 4
  %v6201 = vadd.f32 %v5887, %v6200
  %v6202 = vrot.slane %v6201, 2
  %v6203 = vadd.f32 %v6201, %v6202
  %v6204 = vrot.slane %v6203, 1
  %v6205 = vadd.f32 %v6203, %v6204
  %v6206 = vrot.slane %v5888, 4
  %v6207 = vadd.f32 %v5888, %v6206
  %v6208 = vrot.slane %v6207, 2
  %v6209 = vadd.f32 %v6207, %v6208
  %v6210 = vrot.slane %v6209, 1
  %v6211 = vadd.f32 %v6209, %v6210
  %v6212 = vrot.slane %v5889, 4
  %v6213 = vadd.f32 %v5889, %v6212
  %v6214 = vrot.slane %v6213, 2
  %v6215 = vadd.f32 %v6213, %v6214
  %v6216 = vrot.slane %v6215, 1
  %v6217 = vadd.f32 %v6215, %v6216
  %v6218 = vrot.slane %v5890, 4
  %v6219 = vadd.f32 %v5890, %v6218
  %v6220 = vrot.slane %v6219, 2
  %v6221 = vadd.f32 %v6219, %v6220
  %v6222 = vrot.slane %v6221, 1
  %v6223 = vadd.f32 %v6221, %v6222
  %v6224 = vrot.slane %v5891, 4
  %v6225 = vadd.f32 %v5891, %v6224
  %v6226 = vrot.slane %v6225, 2
  %v6227 = vadd.f32 %v6225, %v6226
  %v6228 = vrot.slane %v6227, 1
  %v6229 = vadd.f32 %v6227, %v6228
  %v6230 = vrot.slane %v5892, 4
  %v6231 = vadd.f32 %v5892, %v6230
  %v6232 = vrot.slane %v6231, 2
  %v6233 = vadd.f32 %v6231, %v6232
  %v6234 = vrot.slane %v6233, 1
  %v6235 = vadd.f32 %v6233, %v6234
  %v6236 = vrot.slane %v5893, 4
  %v6237 = vadd.f32 %v5893, %v6236
  %v6238 = vrot.slane %v6237, 2
  %v6239 = vadd.f32 %v6237, %v6238
  %v6240 = vrot.slane %v6239, 1
  %v6241 = vadd.f32 %v6239, %v6240
  %v6242 = vrot.slane %v5894, 4
  %v6243 = vadd.f32 %v5894, %v6242
  %v6244 = vrot.slane %v6243, 2
  %v6245 = vadd.f32 %v6243, %v6244
  %v6246 = vrot.slane %v6245, 1
  %v6247 = vadd.f32 %v6245, %v6246
  %v6248 = vrot.slane %v5895, 4
  %v6249 = vadd.f32 %v5895, %v6248
  %v6250 = vrot.slane %v6249, 2
  %v6251 = vadd.f32 %v6249, %v6250
  %v6252 = vrot.slane %v6251, 1
  %v6253 = vadd.f32 %v6251, %v6252
  %v6254 = vrot.slane %v5896, 4
  %v6255 = vadd.f32 %v5896, %v6254
  %v6256 = vrot.slane %v6255, 2
  %v6257 = vadd.f32 %v6255, %v6256
  %v6258 = vrot.slane %v6257, 1
  %v6259 = vadd.f32 %v6257, %v6258
  %v6260 = vrot.slane %v5897, 4
  %v6261 = vadd.f32 %v5897, %v6260
  %v6262 = vrot.slane %v6261, 2
  %v6263 = vadd.f32 %v6261, %v6262
  %v6264 = vrot.slane %v6263, 1
  %v6265 = vadd.f32 %v6263, %v6264
  %v6266 = vrot.slane %v5898, 4
  %v6267 = vadd.f32 %v5898, %v6266
  %v6268 = vrot.slane %v6267, 2
  %v6269 = vadd.f32 %v6267, %v6268
  %v6270 = vrot.slane %v6269, 1
  %v6271 = vadd.f32 %v6269, %v6270
  %v6272 = vrot.slane %v5899, 4
  %v6273 = vadd.f32 %v5899, %v6272
  %v6274 = vrot.slane %v6273, 2
  %v6275 = vadd.f32 %v6273, %v6274
  %v6276 = vrot.slane %v6275, 1
  %v6277 = vadd.f32 %v6275, %v6276
  %v6278 = vrot.slane %v5900, 4
  %v6279 = vadd.f32 %v5900, %v6278
  %v6280 = vrot.slane %v6279, 2
  %v6281 = vadd.f32 %v6279, %v6280
  %v6282 = vrot.slane %v6281, 1
  %v6283 = vadd.f32 %v6281, %v6282
  %v6284 = vrot.slane %v5901, 4
  %v6285 = vadd.f32 %v5901, %v6284
  %v6286 = vrot.slane %v6285, 2
  %v6287 = vadd.f32 %v6285, %v6286
  %v6288 = vrot.slane %v6287, 1
  %v6289 = vadd.f32 %v6287, %v6288
  %v6290 = vrot.slane %v5902, 4
  %v6291 = vadd.f32 %v5902, %v6290
  %v6292 = vrot.slane %v6291, 2
  %v6293 = vadd.f32 %v6291, %v6292
  %v6294 = vrot.slane %v6293, 1
  %v6295 = vadd.f32 %v6293, %v6294
  %v6296 = vrot.slane %v5903, 4
  %v6297 = vadd.f32 %v5903, %v6296
  %v6298 = vrot.slane %v6297, 2
  %v6299 = vadd.f32 %v6297, %v6298
  %v6300 = vrot.slane %v6299, 1
  %v6301 = vadd.f32 %v6299, %v6300
  %v6302 = vrot.slane %v5904, 4
  %v6303 = vadd.f32 %v5904, %v6302
  %v6304 = vrot.slane %v6303, 2
  %v6305 = vadd.f32 %v6303, %v6304
  %v6306 = vrot.slane %v6305, 1
  %v6307 = vadd.f32 %v6305, %v6306
  %v6308 = vrot.slane %v5905, 4
  %v6309 = vadd.f32 %v5905, %v6308
  %v6310 = vrot.slane %v6309, 2
  %v6311 = vadd.f32 %v6309, %v6310
  %v6312 = vrot.slane %v6311, 1
  %v6313 = vadd.f32 %v6311, %v6312
  %v6314 = vrot.slane %v5906, 4
  %v6315 = vadd.f32 %v5906, %v6314
  %v6316 = vrot.slane %v6315, 2
  %v6317 = vadd.f32 %v6315, %v6316
  %v6318 = vrot.slane %v6317, 1
  %v6319 = vadd.f32 %v6317, %v6318
  %v6320 = vrot.slane %v5907, 4
  %v6321 = vadd.f32 %v5907, %v6320
  %v6322 = vrot.slane %v6321, 2
  %v6323 = vadd.f32 %v6321, %v6322
  %v6324 = vrot.slane %v6323, 1
  %v6325 = vadd.f32 %v6323, %v6324
  %v6326 = vrot.slane %v5908, 4
  %v6327 = vadd.f32 %v5908, %v6326
  %v6328 = vrot.slane %v6327, 2
  %v6329 = vadd.f32 %v6327, %v6328
  %v6330 = vrot.slane %v6329, 1
  %v6331 = vadd.f32 %v6329, %v6330
  %v6332 = vrot.slane %v5909, 4
  %v6333 = vadd.f32 %v5909, %v6332
  %v6334 = vrot.slane %v6333, 2
  %v6335 = vadd.f32 %v6333, %v6334
  %v6336 = vrot.slane %v6335, 1
  %v6337 = vadd.f32 %v6335, %v6336
  %v6338 = vrot.slane %v5910, 4
  %v6339 = vadd.f32 %v5910, %v6338
  %v6340 = vrot.slane %v6339, 2
  %v6341 = vadd.f32 %v6339, %v6340
  %v6342 = vrot.slane %v6341, 1
  %v6343 = vadd.f32 %v6341, %v6342
  %v6344 = vrot.slane %v5911, 4
  %v6345 = vadd.f32 %v5911, %v6344
  %v6346 = vrot.slane %v6345, 2
  %v6347 = vadd.f32 %v6345, %v6346
  %v6348 = vrot.slane %v6347, 1
  %v6349 = vadd.f32 %v6347, %v6348
  %v6350 = vrot.slane %v5912, 4
  %v6351 = vadd.f32 %v5912, %v6350
  %v6352 = vrot.slane %v6351, 2
  %v6353 = vadd.f32 %v6351, %v6352
  %v6354 = vrot.slane %v6353, 1
  %v6355 = vadd.f32 %v6353, %v6354
  %v6356 = vrot.slane %v5913, 4
  %v6357 = vadd.f32 %v5913, %v6356
  %v6358 = vrot.slane %v6357, 2
  %v6359 = vadd.f32 %v6357, %v6358
  %v6360 = vrot.slane %v6359, 1
  %v6361 = vadd.f32 %v6359, %v6360
  %v6362 = vrot.slane %v5914, 4
  %v6363 = vadd.f32 %v5914, %v6362
  %v6364 = vrot.slane %v6363, 2
  %v6365 = vadd.f32 %v6363, %v6364
  %v6366 = vrot.slane %v6365, 1
  %v6367 = vadd.f32 %v6365, %v6366
  %v6368 = vrot.slane %v5915, 4
  %v6369 = vadd.f32 %v5915, %v6368
  %v6370 = vrot.slane %v6369, 2
  %v6371 = vadd.f32 %v6369, %v6370
  %v6372 = vrot.slane %v6371, 1
  %v6373 = vadd.f32 %v6371, %v6372
  %v6374 = vrot.slane %v5916, 4
  %v6375 = vadd.f32 %v5916, %v6374
  %v6376 = vrot.slane %v6375, 2
  %v6377 = vadd.f32 %v6375, %v6376
  %v6378 = vrot.slane %v6377, 1
  %v6379 = vadd.f32 %v6377, %v6378
  %v6380 = vrot.slane %v5917, 4
  %v6381 = vadd.f32 %v5917, %v6380
  %v6382 = vrot.slane %v6381, 2
  %v6383 = vadd.f32 %v6381, %v6382
  %v6384 = vrot.slane %v6383, 1
  %v6385 = vadd.f32 %v6383, %v6384
  %v6386 = vrot.slane %v5918, 4
  %v6387 = vadd.f32 %v5918, %v6386
  %v6388 = vrot.slane %v6387, 2
  %v6389 = vadd.f32 %v6387, %v6388
  %v6390 = vrot.slane %v6389, 1
  %v6391 = vadd.f32 %v6389, %v6390
  %v6392 = vrot.slane %v5919, 4
  %v6393 = vadd.f32 %v5919, %v6392
  %v6394 = vrot.slane %v6393, 2
  %v6395 = vadd.f32 %v6393, %v6394
  %v6396 = vrot.slane %v6395, 1
  %v6397 = vadd.f32 %v6395, %v6396
  %v6398 = vrot.slane %v5920, 4
  %v6399 = vadd.f32 %v5920, %v6398
  %v6400 = vrot.slane %v6399, 2
  %v6401 = vadd.f32 %v6399, %v6400
  %v6402 = vrot.slane %v6401, 1
  %v6403 = vadd.f32 %v6401, %v6402
  %v6404 = vrot.slane %v5921, 4
  %v6405 = vadd.f32 %v5921, %v6404
  %v6406 = vrot.slane %v6405, 2
  %v6407 = vadd.f32 %v6405, %v6406
  %v6408 = vrot.slane %v6407, 1
  %v6409 = vadd.f32 %v6407, %v6408
  %v6410 = vrot.slane %v5922, 4
  %v6411 = vadd.f32 %v5922, %v6410
  %v6412 = vrot.slane %v6411, 2
  %v6413 = vadd.f32 %v6411, %v6412
  %v6414 = vrot.slane %v6413, 1
  %v6415 = vadd.f32 %v6413, %v6414
  %v6416 = vrot.slane %v5923, 4
  %v6417 = vadd.f32 %v5923, %v6416
  %v6418 = vrot.slane %v6417, 2
  %v6419 = vadd.f32 %v6417, %v6418
  %v6420 = vrot.slane %v6419, 1
  %v6421 = vadd.f32 %v6419, %v6420
  %v6422 = vrot.slane %v5924, 4
  %v6423 = vadd.f32 %v5924, %v6422
  %v6424 = vrot.slane %v6423, 2
  %v6425 = vadd.f32 %v6423, %v6424
  %v6426 = vrot.slane %v6425, 1
  %v6427 = vadd.f32 %v6425, %v6426
  %v6428 = vrot.slane %v5925, 4
  %v6429 = vadd.f32 %v5925, %v6428
  %v6430 = vrot.slane %v6429, 2
  %v6431 = vadd.f32 %v6429, %v6430
  %v6432 = vrot.slane %v6431, 1
  %v6433 = vadd.f32 %v6431, %v6432
  %v6434 = vrot.slane %v5926, 4
  %v6435 = vadd.f32 %v5926, %v6434
  %v6436 = vrot.slane %v6435, 2
  %v6437 = vadd.f32 %v6435, %v6436
  %v6438 = vrot.slane %v6437, 1
  %v6439 = vadd.f32 %v6437, %v6438
  %v6440 = vrot.slane %v5927, 4
  %v6441 = vadd.f32 %v5927, %v6440
  %v6442 = vrot.slane %v6441, 2
  %v6443 = vadd.f32 %v6441, %v6442
  %v6444 = vrot.slane %v6443, 1
  %v6445 = vadd.f32 %v6443, %v6444
  %v6446 = vrot.slane %v5928, 4
  %v6447 = vadd.f32 %v5928, %v6446
  %v6448 = vrot.slane %v6447, 2
  %v6449 = vadd.f32 %v6447, %v6448
  %v6450 = vrot.slane %v6449, 1
  %v6451 = vadd.f32 %v6449, %v6450
  %v6452 = vrot.slane %v5929, 4
  %v6453 = vadd.f32 %v5929, %v6452
  %v6454 = vrot.slane %v6453, 2
  %v6455 = vadd.f32 %v6453, %v6454
  %v6456 = vrot.slane %v6455, 1
  %v6457 = vadd.f32 %v6455, %v6456
  %v6458 = vld [vmem:[%s1] sm:$0xff]
  %v6459 = vld [vmem:[%s1 + $0x8] sm:$0xff]
  %v6460 = vld [vmem:[%s1 + $0x10] sm:$0xff]
  %v6461 = vld [vmem:[%s1 + $0x18] sm:$0xff]
  %v6462 = vld [vmem:[%s1 + $0x20] sm:$0xff]
  %v6463 = vld [vmem:[%s1 + $0x28] sm:$0xff]
  %v6464 = vld [vmem:[%s1 + $0x30] sm:$0xff]
  %v6465 = vld [vmem:[%s1 + $0x38] sm:$0xff]
  %v6466 = vld [vmem:[%s1 + $0x40] sm:$0xff]
  %v6467 = vld [vmem:[%s1 + $0x48] sm:$0xff]
  %v6468 = vld [vmem:[%s1 + $0x50] sm:$0xff]
  %v6557 = vsel %vm3106, %v5941, %v5935
  %v6558 = vsel %vm3108, %v5947, %v6557
  %v6559 = vsel %vm3110, %v5953, %v6558
  %v6560 = vsel %vm3112, %v5959, %v6559
  %v6561 = vsel %vm3114, %v5965, %v6560
  %v6562 = vsel %vm3116, %v5971, %v6561
  %v6563 = vsel %vm3118, %v5977, %v6562
  %v6564 = vsel %vm3106, %v5989, %v5983
  %v6565 = vsel %vm3108, %v5995, %v6564
  %v6566 = vsel %vm3110, %v6001, %v6565
  %v6567 = vsel %vm3112, %v6007, %v6566
  %v6568 = vsel %vm3114, %v6013, %v6567
  %v6569 = vsel %vm3116, %v6019, %v6568
  %v6570 = vsel %vm3118, %v6025, %v6569
  %v6571 = vsel %vm3106, %v6037, %v6031
  %v6572 = vsel %vm3108, %v6043, %v6571
  %v6573 = vsel %vm3110, %v6049, %v6572
  %v6574 = vsel %vm3112, %v6055, %v6573
  %v6575 = vsel %vm3114, %v6061, %v6574
  %v6576 = vsel %vm3116, %v6067, %v6575
  %v6577 = vsel %vm3118, %v6073, %v6576
  %v6578 = vsel %vm3106, %v6085, %v6079
  %v6579 = vsel %vm3108, %v6091, %v6578
  %v6580 = vsel %vm3110, %v6097, %v6579
  %v6581 = vsel %vm3112, %v6103, %v6580
  %v6582 = vsel %vm3114, %v6109, %v6581
  %v6583 = vsel %vm3116, %v6115, %v6582
  %v6584 = vsel %vm3118, %v6121, %v6583
  %v6585 = vsel %vm3106, %v6133, %v6127
  %v6586 = vsel %vm3108, %v6139, %v6585
  %v6587 = vsel %vm3110, %v6145, %v6586
  %v6588 = vsel %vm3112, %v6151, %v6587
  %v6589 = vsel %vm3114, %v6157, %v6588
  %v6590 = vsel %vm3116, %v6163, %v6589
  %v6591 = vsel %vm3118, %v6169, %v6590
  %v6592 = vsel %vm3106, %v6181, %v6175
  %v6593 = vsel %vm3108, %v6187, %v6592
  %v6594 = vsel %vm3110, %v6193, %v6593
  %v6595 = vsel %vm3112, %v6199, %v6594
  %v6596 = vsel %vm3114, %v6205, %v6595
  %v6597 = vsel %vm3116, %v6211, %v6596
  %v6598 = vsel %vm3118, %v6217, %v6597
  %v6599 = vsel %vm3106, %v6229, %v6223
  %v6600 = vsel %vm3108, %v6235, %v6599
  %v6601 = vsel %vm3110, %v6241, %v6600
  %v6602 = vsel %vm3112, %v6247, %v6601
  %v6603 = vsel %vm3114, %v6253, %v6602
  %v6604 = vsel %vm3116, %v6259, %v6603
  %v6605 = vsel %vm3118, %v6265, %v6604
  %v6606 = vsel %vm3106, %v6277, %v6271
  %v6607 = vsel %vm3108, %v6283, %v6606
  %v6608 = vsel %vm3110, %v6289, %v6607
  %v6609 = vsel %vm3112, %v6295, %v6608
  %v6610 = vsel %vm3114, %v6301, %v6609
  %v6611 = vsel %vm3116, %v6307, %v6610
  %v6612 = vsel %vm3118, %v6313, %v6611
  %v6613 = vsel %vm3106, %v6325, %v6319
  %v6614 = vsel %vm3108, %v6331, %v6613
  %v6615 = vsel %vm3110, %v6337, %v6614
  %v6616 = vsel %vm3112, %v6343, %v6615
  %v6617 = vsel %vm3114, %v6349, %v6616
  %v6618 = vsel %vm3116, %v6355, %v6617
  %v6619 = vsel %vm3118, %v6361, %v6618
  %v6620 = vsel %vm3106, %v6373, %v6367
  %v6621 = vsel %vm3108, %v6379, %v6620
  %v6622 = vsel %vm3110, %v6385, %v6621
  %v6623 = vsel %vm3112, %v6391, %v6622
  %v6624 = vsel %vm3114, %v6397, %v6623
  %v6625 = vsel %vm3116, %v6403, %v6624
  %v6626 = vsel %vm3118, %v6409, %v6625
  %v6627 = vsel %vm3106, %v6421, %v6415
  %v6628 = vsel %vm3108, %v6427, %v6627
  %v6629 = vsel %vm3110, %v6433, %v6628
  %v6630 = vsel %vm3112, %v6439, %v6629
  %v6631 = vsel %vm3114, %v6445, %v6630
  %v6632 = vsel %vm3116, %v6451, %v6631
  %v6633 = vsel %vm3118, %v6457, %v6632
  %v6645 = vadd.f32 %v6458, %v6563
  %v6646 = vadd.f32 %v6459, %v6570
  %v6647 = vadd.f32 %v6460, %v6577
  %v6648 = vadd.f32 %v6461, %v6584
  %v6649 = vadd.f32 %v6462, %v6591
  %v6650 = vadd.f32 %v6463, %v6598
  %v6651 = vadd.f32 %v6464, %v6605
  %v6652 = vadd.f32 %v6465, %v6612
  %v6653 = vadd.f32 %v6466, %v6619
  %v6654 = vadd.f32 %v6467, %v6626
  %v6655 = vadd.f32 %v6468, %v6633
  %v6656 = vld [vmem:[%s10] sm:$0xff]
  %v6657 = vld [vmem:[%s10 + $0x8] sm:$0xff]
  %v6658 = vld [vmem:[%s10 + $0x10] sm:$0xff]
  %v6659 = vld [vmem:[%s10 + $0x18] sm:$0xff]
  %v6660 = vld [vmem:[%s10 + $0x20] sm:$0xff]
  %v6661 = vld [vmem:[%s10 + $0x28] sm:$0xff]
  %v6662 = vld [vmem:[%s10 + $0x30] sm:$0xff]
  %v6663 = vld [vmem:[%s10 + $0x38] sm:$0xff]
  %v6664 = vld [vmem:[%s10 + $0x40] sm:$0xff]
  %v6665 = vld [vmem:[%s10 + $0x48] sm:$0xff]
  %v6666 = vld [vmem:[%s10 + $0x50] sm:$0xff]
  %v6667 = vld [vmem:[%s10 + $0x58] sm:$0xff]
  %v6668 = vld [vmem:[%s10 + $0x60] sm:$0xff]
  %v6669 = vld [vmem:[%s10 + $0x68] sm:$0xff]
  %v6670 = vld [vmem:[%s10 + $0x70] sm:$0xff]
  %v6671 = vld [vmem:[%s10 + $0x78] sm:$0xff]
  %v6672 = vld [vmem:[%s10 + $0x80] sm:$0xff]
  %v6673 = vld [vmem:[%s10 + $0x88] sm:$0xff]
  %v6674 = vld [vmem:[%s10 + $0x90] sm:$0xff]
  %v6675 = vld [vmem:[%s10 + $0x98] sm:$0xff]
  %v6676 = vld [vmem:[%s10 + $0xa0] sm:$0xff]
  %v6677 = vld [vmem:[%s10 + $0xa8] sm:$0xff]
  %v6678 = vld [vmem:[%s10 + $0xb0] sm:$0xff]
  %v6679 = vld [vmem:[%s10 + $0xb8] sm:$0xff]
  %v6680 = vld [vmem:[%s10 + $0xc0] sm:$0xff]
  %v6681 = vld [vmem:[%s10 + $0xc8] sm:$0xff]
  %v6682 = vld [vmem:[%s10 + $0xd0] sm:$0xff]
  %v6683 = vld [vmem:[%s10 + $0xd8] sm:$0xff]
  %v6684 = vld [vmem:[%s10 + $0xe0] sm:$0xff]
  %v6685 = vld [vmem:[%s10 + $0xe8] sm:$0xff]
  %v6686 = vld [vmem:[%s10 + $0xf0] sm:$0xff]
  %v6687 = vld [vmem:[%s10 + $0xf8] sm:$0xff]
  %v6688 = vld [vmem:[%s10 + $0x100] sm:$0xff]
  %v6689 = vld [vmem:[%s10 + $0x108] sm:$0xff]
  %v6690 = vld [vmem:[%s10 + $0x110] sm:$0xff]
  %v6691 = vld [vmem:[%s10 + $0x118] sm:$0xff]
  %v6692 = vld [vmem:[%s10 + $0x120] sm:$0xff]
  %v6693 = vld [vmem:[%s10 + $0x128] sm:$0xff]
  %v6694 = vld [vmem:[%s10 + $0x130] sm:$0xff]
  %v6695 = vld [vmem:[%s10 + $0x138] sm:$0xff]
  %v6696 = vld [vmem:[%s10 + $0x140] sm:$0xff]
  %v6697 = vld [vmem:[%s10 + $0x148] sm:$0xff]
  %v6698 = vld [vmem:[%s10 + $0x150] sm:$0xff]
  %v6699 = vld [vmem:[%s10 + $0x158] sm:$0xff]
  %v6700 = vld [vmem:[%s10 + $0x160] sm:$0xff]
  %v6701 = vld [vmem:[%s10 + $0x168] sm:$0xff]
  %v6702 = vld [vmem:[%s10 + $0x170] sm:$0xff]
  %v6703 = vld [vmem:[%s10 + $0x178] sm:$0xff]
  %v6704 = vld [vmem:[%s11] sm:$0xff]
  %v6705 = vld [vmem:[%s11 + $0x8] sm:$0xff]
  %v6706 = vld [vmem:[%s11 + $0x10] sm:$0xff]
  %v6707 = vld [vmem:[%s11 + $0x18] sm:$0xff]
  %v6708 = vld [vmem:[%s11 + $0x20] sm:$0xff]
  %v6709 = vld [vmem:[%s11 + $0x28] sm:$0xff]
  %v6710 = vld [vmem:[%s11 + $0x30] sm:$0xff]
  %v6711 = vld [vmem:[%s11 + $0x38] sm:$0xff]
  %v6712 = vld [vmem:[%s11 + $0x40] sm:$0xff]
  %v6713 = vld [vmem:[%s11 + $0x48] sm:$0xff]
  %v6714 = vld [vmem:[%s11 + $0x50] sm:$0xff]
  %v6715 = vld [vmem:[%s11 + $0x58] sm:$0xff]
  %v6716 = vld [vmem:[%s11 + $0x60] sm:$0xff]
  %v6717 = vld [vmem:[%s11 + $0x68] sm:$0xff]
  %v6718 = vld [vmem:[%s11 + $0x70] sm:$0xff]
  %v6719 = vld [vmem:[%s11 + $0x78] sm:$0xff]
  %v6720 = vld [vmem:[%s11 + $0x80] sm:$0xff]
  %v6721 = vld [vmem:[%s11 + $0x88] sm:$0xff]
  %v6722 = vld [vmem:[%s11 + $0x90] sm:$0xff]
  %v6723 = vld [vmem:[%s11 + $0x98] sm:$0xff]
  %v6724 = vld [vmem:[%s11 + $0xa0] sm:$0xff]
  %v6725 = vld [vmem:[%s11 + $0xa8] sm:$0xff]
  %v6726 = vld [vmem:[%s11 + $0xb0] sm:$0xff]
  %v6727 = vld [vmem:[%s11 + $0xb8] sm:$0xff]
  %v6728 = vld [vmem:[%s11 + $0xc0] sm:$0xff]
  %v6729 = vld [vmem:[%s11 + $0xc8] sm:$0xff]
  %v6730 = vld [vmem:[%s11 + $0xd0] sm:$0xff]
  %v6731 = vld [vmem:[%s11 + $0xd8] sm:$0xff]
  %v6732 = vld [vmem:[%s11 + $0xe0] sm:$0xff]
  %v6733 = vld [vmem:[%s11 + $0xe8] sm:$0xff]
  %v6734 = vld [vmem:[%s11 + $0xf0] sm:$0xff]
  %v6735 = vld [vmem:[%s11 + $0xf8] sm:$0xff]
  %v6736 = vld [vmem:[%s11 + $0x100] sm:$0xff]
  %v6737 = vld [vmem:[%s11 + $0x108] sm:$0xff]
  %v6738 = vld [vmem:[%s11 + $0x110] sm:$0xff]
  %v6739 = vld [vmem:[%s11 + $0x118] sm:$0xff]
  %v6740 = vld [vmem:[%s11 + $0x120] sm:$0xff]
  %v6741 = vld [vmem:[%s11 + $0x128] sm:$0xff]
  %v6742 = vld [vmem:[%s11 + $0x130] sm:$0xff]
  %v6743 = vld [vmem:[%s11 + $0x138] sm:$0xff]
  %v6744 = vld [vmem:[%s11 + $0x140] sm:$0xff]
  %v6745 = vld [vmem:[%s11 + $0x148] sm:$0xff]
  %v6746 = vld [vmem:[%s11 + $0x150] sm:$0xff]
  %v6747 = vld [vmem:[%s11 + $0x158] sm:$0xff]
  %v6748 = vld [vmem:[%s11 + $0x160] sm:$0xff]
  %v6749 = vld [vmem:[%s11 + $0x168] sm:$0xff]
  %v6750 = vld [vmem:[%s11 + $0x170] sm:$0xff]
  %v6751 = vld [vmem:[%s11 + $0x178] sm:$0xff]
  %v6752 = vld [vmem:[%s12] sm:$0x7]
  %v6753 = vld [vmem:[%s13] sm:$0x7]
  %v6754 = vld [vmem:[%s8] sm:$0xff]
  %v6755 = vld [vmem:[%s9] sm:$0xff]
  %v6756 = vld [vmem:[%s7] sm:$0xff]
  %6758 = vset.pattern.permute.xlu0 0
  %6759 = vperm.xlu0 %6758, %v6755
  %v6760 = vpop.permute.xlu0 %6759
  %v6762 = vmul.f32 %v6648, %v6760
  %v6764 = vlaneseq
  %v6765 = vshrl.u32 %v6764, 7
  %v6766 = vsub.s32 0, %v6765
  %v6767 = vrot.slane %v6752, %v6766
  %v6768 = vlaneseq
  %v6769 = vshrl.u32 %v6768, 7
  %v6770 = vsub.s32 1, %v6769
  %v6771 = vrot.slane %v6752, %v6770
  %v6772 = vlaneseq
  %v6773 = vshrl.u32 %v6772, 7
  %v6774 = vsub.s32 2, %v6773
  %v6775 = vrot.slane %v6752, %v6774
  %6779 = vmatprep.subr.mxu0 %v6657
  %6780 = vmatpush1.msra.mxu0 %v6656
  %6781 = vmatprep.subr.mxu0 %v6660
  %6782 = vmatpush1.msra.mxu0 %v6659
  %6783 = vmatprep.subr.mxu0 %v6663
  %6784 = vmatpush1.msra.mxu0 %v6662
  %6785 = vmatprep.subr.mxu0 %v6666
  %6786 = vmatpush1.msra.mxu0 %v6665
  %6787 = vmatprep.subr.mxu0 %v6669
  %6788 = vmatpush1.msra.mxu0 %v6668
  %6789 = vmatprep.subr.mxu0 %v6672
  %6790 = vmatpush1.msra.mxu0 %v6671
  %6791 = vmatprep.subr.mxu0 %v6675
  %6792 = vmatpush1.msra.mxu0 %v6674
  %6793 = vmatprep.subr.mxu0 %v6678
  %6794 = vmatpush1.msra.mxu0 %v6677
  %6795 = vmatprep.subr.mxu0 %v6681
  %6796 = vmatpush1.msra.mxu0 %v6680
  %6797 = vmatprep.subr.mxu0 %v6684
  %6798 = vmatpush1.msra.mxu0 %v6683
  %6799 = vmatprep.subr.mxu0 %v6687
  %6800 = vmatpush1.msra.mxu0 %v6686
  %6801 = vmatprep.subr.mxu0 %v6690
  %6802 = vmatpush1.msra.mxu0 %v6689
  %6803 = vmatprep.subr.mxu0 %v6693
  %6804 = vmatpush1.msra.mxu0 %v6692
  %6805 = vmatprep.subr.mxu0 %v6696
  %6806 = vmatpush1.msra.mxu0 %v6695
  %6807 = vmatprep.subr.mxu0 %v6699
  %6808 = vmatpush1.msra.mxu0 %v6698
  %6809 = vmatprep.subr.mxu0 %v6702
  %6810 = vmatpush1.msra.mxu0 %v6701
  %6811 = vmatprep.subr.mxu0 0.0
  %6812 = vmatpush1.msra.mxu0 0.0
  %6813 = vmatprep.subr.mxu0 0.0
  %6814 = vmatpush1.msra.mxu0 0.0
  %6815 = vmatprep.subr.mxu0 0.0
  %6816 = vmatpush1.msra.mxu0 0.0
  %6817 = vmatprep.subr.mxu0 0.0
  %6818 = vmatpush1.msra.mxu0 0.0
  %6819 = vmatprep.subr.mxu0 0.0
  %6820 = vmatpush1.msra.mxu0 0.0
  %6821 = vmatprep.subr.mxu0 0.0
  %6822 = vmatpush1.msra.mxu0 0.0
  %6823 = vmatprep.subr.mxu0 0.0
  %6824 = vmatpush1.msra.mxu0 0.0
  %6825 = vmatprep.subr.mxu0 0.0
  %6826 = vmatpush1.msra.mxu0 0.0
  %6827 = vmatprep.subr.mxu0 0.0
  %6828 = vmatpush1.msra.mxu0 0.0
  %6829 = vmatprep.subr.mxu0 0.0
  %6830 = vmatpush1.msra.mxu0 0.0
  %6831 = vmatprep.subr.mxu0 0.0
  %6832 = vmatpush1.msra.mxu0 0.0
  %6833 = vmatprep.subr.mxu0 0.0
  %6834 = vmatpush1.msra.mxu0 0.0
  %6835 = vmatprep.subr.mxu0 0.0
  %6836 = vmatpush1.msra.mxu0 0.0
  %6837 = vmatprep.subr.mxu0 0.0
  %6838 = vmatpush1.msra.mxu0 0.0
  %6839 = vmatprep.subr.mxu0 0.0
  %6840 = vmatpush1.msra.mxu0 0.0
  %6841 = vmatprep.subr.mxu0 0.0
  %6842 = vmatpush1.msra.mxu0 0.0
  %6843 = vmatprep.mubr.f32.mxu0 0.0
  %6844 = vmatmul.mubr.f32.gmra.mrb[0].mxu0 %v6762
  %v6845 = vpop.f32.mrb[0].mxu0
  %v6846 = vadd.f32 %v6767, %v6845
  %v6847 = vpop.f32.mrb[0].mxu0
  %v6848 = vadd.f32 %v6771, %v6847
  %6849 = vdwg.mxu0
  %6850 = vmatprep.subr.mxu0 0.0
  %6851 = vmatpush1.msra.mxu0 %v6658
  %6852 = vmatprep.subr.mxu0 0.0
  %6853 = vmatpush1.msra.mxu0 %v6661
  %6854 = vmatprep.subr.mxu0 0.0
  %6855 = vmatpush1.msra.mxu0 %v6664
  %6856 = vmatprep.subr.mxu0 0.0
  %6857 = vmatpush1.msra.mxu0 %v6667
  %6858 = vmatprep.subr.mxu0 0.0
  %6859 = vmatpush1.msra.mxu0 %v6670
  %6860 = vmatprep.subr.mxu0 0.0
  %6861 = vmatpush1.msra.mxu0 %v6673
  %6862 = vmatprep.subr.mxu0 0.0
  %6863 = vmatpush1.msra.mxu0 %v6676
  %6864 = vmatprep.subr.mxu0 0.0
  %6865 = vmatpush1.msra.mxu0 %v6679
  %6866 = vmatprep.subr.mxu0 0.0
  %6867 = vmatpush1.msra.mxu0 %v6682
  %6868 = vmatprep.subr.mxu0 0.0
  %6869 = vmatpush1.msra.mxu0 %v6685
  %6870 = vmatprep.subr.mxu0 0.0
  %6871 = vmatpush1.msra.mxu0 %v6688
  %6872 = vmatprep.subr.mxu0 0.0
  %6873 = vmatpush1.msra.mxu0 %v6691
  %6874 = vmatprep.subr.mxu0 0.0
  %6875 = vmatpush1.msra.mxu0 %v6694
  %6876 = vmatprep.subr.mxu0 0.0
  %6877 = vmatpush1.msra.mxu0 %v6697
  %6878 = vmatprep.subr.mxu0 0.0
  %6879 = vmatpush1.msra.mxu0 %v6700
  %6880 = vmatprep.subr.mxu0 0.0
  %6881 = vmatpush1.msra.mxu0 %v6703
  %6882 = vmatprep.subr.mxu0 0.0
  %6883 = vmatpush1.msra.mxu0 0.0
  %6884 = vmatprep.subr.mxu0 0.0
  %6885 = vmatpush1.msra.mxu0 0.0
  %6886 = vmatprep.subr.mxu0 0.0
  %6887 = vmatpush1.msra.mxu0 0.0
  %6888 = vmatprep.subr.mxu0 0.0
  %6889 = vmatpush1.msra.mxu0 0.0
  %6890 = vmatprep.subr.mxu0 0.0
  %6891 = vmatpush1.msra.mxu0 0.0
  %6892 = vmatprep.subr.mxu0 0.0
  %6893 = vmatpush1.msra.mxu0 0.0
  %6894 = vmatprep.subr.mxu0 0.0
  %6895 = vmatpush1.msra.mxu0 0.0
  %6896 = vmatprep.subr.mxu0 0.0
  %6897 = vmatpush1.msra.mxu0 0.0
  %6898 = vmatprep.subr.mxu0 0.0
  %6899 = vmatpush1.msra.mxu0 0.0
  %6900 = vmatprep.subr.mxu0 0.0
  %6901 = vmatpush1.msra.mxu0 0.0
  %6902 = vmatprep.subr.mxu0 0.0
  %6903 = vmatpush1.msra.mxu0 0.0
  %6904 = vmatprep.subr.mxu0 0.0
  %6905 = vmatpush1.msra.mxu0 0.0
  %6906 = vmatprep.subr.mxu0 0.0
  %6907 = vmatpush1.msra.mxu0 0.0
  %6908 = vmatprep.subr.mxu0 0.0
  %6909 = vmatpush1.msra.mxu0 0.0
  %6910 = vmatprep.subr.mxu0 0.0
  %6911 = vmatpush1.msra.mxu0 0.0
  %6912 = vmatprep.subr.mxu0 0.0
  %6913 = vmatpush1.msra.mxu0 0.0
  %6914 = vmatprep.mubr.f32.mxu0 0.0
  %6915 = vmatmul.mubr.f32.gmra.mrb[0].mxu0 %v6762
  %v6916 = vpop.f32.mrb[0].mxu0
  %v6917 = vadd.f32 %v6775, %v6916
  %v6918 = vpop.f32.mrb[0].mxu0
  %6919 = vdwg.mxu0
  %v6921 = vlaneseq
  %v6922 = vshrl.u32 %v6921, 7
  %v6923 = vsub.s32 0, %v6922
  %v6924 = vrot.slane %v6753, %v6923
  %v6925 = vlaneseq
  %v6926 = vshrl.u32 %v6925, 7
  %v6927 = vsub.s32 1, %v6926
  %v6928 = vrot.slane %v6753, %v6927
  %v6929 = vlaneseq
  %v6930 = vshrl.u32 %v6929, 7
  %v6931 = vsub.s32 2, %v6930
  %v6932 = vrot.slane %v6753, %v6931
  %6936 = vmatprep.subr.mxu0 %v6705
  %6937 = vmatpush1.msra.mxu0 %v6704
  %6938 = vmatprep.subr.mxu0 %v6708
  %6939 = vmatpush1.msra.mxu0 %v6707
  %6940 = vmatprep.subr.mxu0 %v6711
  %6941 = vmatpush1.msra.mxu0 %v6710
  %6942 = vmatprep.subr.mxu0 %v6714
  %6943 = vmatpush1.msra.mxu0 %v6713
  %6944 = vmatprep.subr.mxu0 %v6717
  %6945 = vmatpush1.msra.mxu0 %v6716
  %6946 = vmatprep.subr.mxu0 %v6720
  %6947 = vmatpush1.msra.mxu0 %v6719
  %6948 = vmatprep.subr.mxu0 %v6723
  %6949 = vmatpush1.msra.mxu0 %v6722
  %6950 = vmatprep.subr.mxu0 %v6726
  %6951 = vmatpush1.msra.mxu0 %v6725
  %6952 = vmatprep.subr.mxu0 %v6729
  %6953 = vmatpush1.msra.mxu0 %v6728
  %6954 = vmatprep.subr.mxu0 %v6732
  %6955 = vmatpush1.msra.mxu0 %v6731
  %6956 = vmatprep.subr.mxu0 %v6735
  %6957 = vmatpush1.msra.mxu0 %v6734
  %6958 = vmatprep.subr.mxu0 %v6738
  %6959 = vmatpush1.msra.mxu0 %v6737
  %6960 = vmatprep.subr.mxu0 %v6741
  %6961 = vmatpush1.msra.mxu0 %v6740
  %6962 = vmatprep.subr.mxu0 %v6744
  %6963 = vmatpush1.msra.mxu0 %v6743
  %6964 = vmatprep.subr.mxu0 %v6747
  %6965 = vmatpush1.msra.mxu0 %v6746
  %6966 = vmatprep.subr.mxu0 %v6750
  %6967 = vmatpush1.msra.mxu0 %v6749
  %6968 = vmatprep.subr.mxu0 0.0
  %6969 = vmatpush1.msra.mxu0 0.0
  %6970 = vmatprep.subr.mxu0 0.0
  %6971 = vmatpush1.msra.mxu0 0.0
  %6972 = vmatprep.subr.mxu0 0.0
  %6973 = vmatpush1.msra.mxu0 0.0
  %6974 = vmatprep.subr.mxu0 0.0
  %6975 = vmatpush1.msra.mxu0 0.0
  %6976 = vmatprep.subr.mxu0 0.0
  %6977 = vmatpush1.msra.mxu0 0.0
  %6978 = vmatprep.subr.mxu0 0.0
  %6979 = vmatpush1.msra.mxu0 0.0
  %6980 = vmatprep.subr.mxu0 0.0
  %6981 = vmatpush1.msra.mxu0 0.0
  %6982 = vmatprep.subr.mxu0 0.0
  %6983 = vmatpush1.msra.mxu0 0.0
  %6984 = vmatprep.subr.mxu0 0.0
  %6985 = vmatpush1.msra.mxu0 0.0
  %6986 = vmatprep.subr.mxu0 0.0
  %6987 = vmatpush1.msra.mxu0 0.0
  %6988 = vmatprep.subr.mxu0 0.0
  %6989 = vmatpush1.msra.mxu0 0.0
  %6990 = vmatprep.subr.mxu0 0.0
  %6991 = vmatpush1.msra.mxu0 0.0
  %6992 = vmatprep.subr.mxu0 0.0
  %6993 = vmatpush1.msra.mxu0 0.0
  %6994 = vmatprep.subr.mxu0 0.0
  %6995 = vmatpush1.msra.mxu0 0.0
  %6996 = vmatprep.subr.mxu0 0.0
  %6997 = vmatpush1.msra.mxu0 0.0
  %6998 = vmatprep.subr.mxu0 0.0
  %6999 = vmatpush1.msra.mxu0 0.0
  %7000 = vmatprep.mubr.f32.mxu0 0.0
  %7001 = vmatmul.mubr.f32.gmra.mrb[0].mxu0 %v6756
  %v7002 = vpop.f32.mrb[0].mxu0
  %v7003 = vadd.f32 %v6924, %v7002
  %v7004 = vpop.f32.mrb[0].mxu0
  %v7005 = vadd.f32 %v6928, %v7004
  %7006 = vdwg.mxu0
  %7007 = vmatprep.subr.mxu0 0.0
  %7008 = vmatpush1.msra.mxu0 %v6706
  %7009 = vmatprep.subr.mxu0 0.0
  %7010 = vmatpush1.msra.mxu0 %v6709
  %7011 = vmatprep.subr.mxu0 0.0
  %7012 = vmatpush1.msra.mxu0 %v6712
  %7013 = vmatprep.subr.mxu0 0.0
  %7014 = vmatpush1.msra.mxu0 %v6715
  %7015 = vmatprep.subr.mxu0 0.0
  %7016 = vmatpush1.msra.mxu0 %v6718
  %7017 = vmatprep.subr.mxu0 0.0
  %7018 = vmatpush1.msra.mxu0 %v6721
  %7019 = vmatprep.subr.mxu0 0.0
  %7020 = vmatpush1.msra.mxu0 %v6724
  %7021 = vmatprep.subr.mxu0 0.0
  %7022 = vmatpush1.msra.mxu0 %v6727
  %7023 = vmatprep.subr.mxu0 0.0
  %7024 = vmatpush1.msra.mxu0 %v6730
  %7025 = vmatprep.subr.mxu0 0.0
  %7026 = vmatpush1.msra.mxu0 %v6733
  %7027 = vmatprep.subr.mxu0 0.0
  %7028 = vmatpush1.msra.mxu0 %v6736
  %7029 = vmatprep.subr.mxu0 0.0
  %7030 = vmatpush1.msra.mxu0 %v6739
  %7031 = vmatprep.subr.mxu0 0.0
  %7032 = vmatpush1.msra.mxu0 %v6742
  %7033 = vmatprep.subr.mxu0 0.0
  %7034 = vmatpush1.msra.mxu0 %v6745
  %7035 = vmatprep.subr.mxu0 0.0
  %7036 = vmatpush1.msra.mxu0 %v6748
  %7037 = vmatprep.subr.mxu0 0.0
  %7038 = vmatpush1.msra.mxu0 %v6751
  %7039 = vmatprep.subr.mxu0 0.0
  %7040 = vmatpush1.msra.mxu0 0.0
  %7041 = vmatprep.subr.mxu0 0.0
  %7042 = vmatpush1.msra.mxu0 0.0
  %7043 = vmatprep.subr.mxu0 0.0
  %7044 = vmatpush1.msra.mxu0 0.0
  %7045 = vmatprep.subr.mxu0 0.0
  %7046 = vmatpush1.msra.mxu0 0.0
  %7047 = vmatprep.subr.mxu0 0.0
  %7048 = vmatpush1.msra.mxu0 0.0
  %7049 = vmatprep.subr.mxu0 0.0
  %7050 = vmatpush1.msra.mxu0 0.0
  %7051 = vmatprep.subr.mxu0 0.0
  %7052 = vmatpush1.msra.mxu0 0.0
  %7053 = vmatprep.subr.mxu0 0.0
  %7054 = vmatpush1.msra.mxu0 0.0
  %7055 = vmatprep.subr.mxu0 0.0
  %7056 = vmatpush1.msra.mxu0 0.0
  %7057 = vmatprep.subr.mxu0 0.0
  %7058 = vmatpush1.msra.mxu0 0.0
  %7059 = vmatprep.subr.mxu0 0.0
  %7060 = vmatpush1.msra.mxu0 0.0
  %7061 = vmatprep.subr.mxu0 0.0
  %7062 = vmatpush1.msra.mxu0 0.0
  %7063 = vmatprep.subr.mxu0 0.0
  %7064 = vmatpush1.msra.mxu0 0.0
  %7065 = vmatprep.subr.mxu0 0.0
  %7066 = vmatpush1.msra.mxu0 0.0
  %7067 = vmatprep.subr.mxu0 0.0
  %7068 = vmatpush1.msra.mxu0 0.0
  %7069 = vmatprep.subr.mxu0 0.0
  %7070 = vmatpush1.msra.mxu0 0.0
  %7071 = vmatprep.mubr.f32.mxu0 0.0
  %7072 = vmatmul.mubr.f32.gmra.mrb[0].mxu0 %v6756
  %v7073 = vpop.f32.mrb[0].mxu0
  %v7074 = vadd.f32 %v6932, %v7073
  %v7075 = vpop.f32.mrb[0].mxu0
  %7076 = vdwg.mxu0
  %v7077 = vadd.f32 %v6846, %v7003
  %v7078 = vxor.u32 %v7077, 2147483648
  %v7079 = vmul.f32 %v7078, 1.442695
  %v7080 = vpow.pop %v7079
  %v7081 = vadd.f32 %v7080, 1.0
  %v7082 = vrcp.pop %v7081
  %v7083 = vmul.f32 1.0, %v7082
  %v7084 = vadd.f32 %v6848, %v7005
  %v7085 = vxor.u32 %v7084, 2147483648
  %v7086 = vmul.f32 %v7085, 1.442695
  %v7087 = vpow.pop %v7086
  %v7088 = vadd.f32 %v7087, 1.0
  %v7089 = vrcp.pop %v7088
  %v7090 = vmul.f32 1.0, %v7089
  %v7091 = vmul.f32 %v7083, %v7074
  %v7092 = vadd.f32 %v6917, %v7091
  %v7093 = vtanh.pop %v7092
  %v7094 = vsub.f32 1.0, %v7090
  %v7095 = vmul.f32 %v7094, %v7093
  %v7096 = vmul.f32 %v7090, %v6756
  %v7097 = vadd.f32 %v7095, %v7096
  %vm7098 = vcmp.gt.s32.totalorder %v6754, 0
  %v7099 = vsel %vm7098, 1, 0
  %v7100 = vcvt.s32.f32 %v7099
  %7102 = vset.pattern.permute.xlu0 0
  %7103 = vperm.xlu0 %7102, %v7100
  %v7104 = vpop.permute.xlu0 %7103
  %v7106 = vmul.f32 %v7104, %v7097
  %v7107 = vsub.f32 1.0, %v7100
  %7109 = vset.pattern.permute.xlu0 0
  %7110 = vperm.xlu0 %7109, %v7107
  %v7111 = vpop.permute.xlu0 %7110
  %v7113 = vmul.f32 %v7111, %v6756
  %v7114 = vadd.f32 %v7106, %v7113
  %7115 = vset.pattern.permute.xlu0 1
  %7116 = vperm.xlu0 %7115, %v6755
  %v7117 = vpop.permute.xlu0 %7116
  %v7119 = vmul.f32 %v6649, %v7117
  %7120 = vmatprep.subr.mxu0 %v6657
  %7121 = vmatpush1.msra.mxu0 %v6656
  %7122 = vmatprep.subr.mxu0 %v6660
  %7123 = vmatpush1.msra.mxu0 %v6659
  %7124 = vmatprep.subr.mxu0 %v6663
  %7125 = vmatpush1.msra.mxu0 %v6662
  %7126 = vmatprep.subr.mxu0 %v6666
  %7127 = vmatpush1.msra.mxu0 %v6665
  %7128 = vmatprep.subr.mxu0 %v6669
  %7129 = vmatpush1.msra.mxu0 %v6668
  %7130 = vmatprep.subr.mxu0 %v6672
  %7131 = vmatpush1.msra.mxu0 %v6671
  %7132 = vmatprep.subr.mxu0 %v6675
  %7133 = vmatpush1.msra.mxu0 %v6674
  %7134 = vmatprep.subr.mxu0 %v6678
  %7135 = vmatpush1.msra.mxu0 %v6677
  %7136 = vmatprep.subr.mxu0 %v6681
  %7137 = vmatpush1.msra.mxu0 %v6680
  %7138 = vmatprep.subr.mxu0 %v6684
  %7139 = vmatpush1.msra.mxu0 %v6683
  %7140 = vmatprep.subr.mxu0 %v6687
  %7141 = vmatpush1.msra.mxu0 %v6686
  %7142 = vmatprep.subr.mxu0 %v6690
  %7143 = vmatpush1.msra.mxu0 %v6689
  %7144 = vmatprep.subr.mxu0 %v6693
  %7145 = vmatpush1.msra.mxu0 %v6692
  %7146 = vmatprep.subr.mxu0 %v6696
  %7147 = vmatpush1.msra.mxu0 %v6695
  %7148 = vmatprep.subr.mxu0 %v6699
  %7149 = vmatpush1.msra.mxu0 %v6698
  %7150 = vmatprep.subr.mxu0 %v6702
  %7151 = vmatpush1.msra.mxu0 %v6701
  %7152 = vmatprep.subr.mxu0 0.0
  %7153 = vmatpush1.msra.mxu0 0.0
  %7154 = vmatprep.subr.mxu0 0.0
  %7155 = vmatpush1.msra.mxu0 0.0
  %7156 = vmatprep.subr.mxu0 0.0
  %7157 = vmatpush1.msra.mxu0 0.0
  %7158 = vmatprep.subr.mxu0 0.0
  %7159 = vmatpush1.msra.mxu0 0.0
  %7160 = vmatprep.subr.mxu0 0.0
  %7161 = vmatpush1.msra.mxu0 0.0
  %7162 = vmatprep.subr.mxu0 0.0
  %7163 = vmatpush1.msra.mxu0 0.0
  %7164 = vmatprep.subr.mxu0 0.0
  %7165 = vmatpush1.msra.mxu0 0.0
  %7166 = vmatprep.subr.mxu0 0.0
  %7167 = vmatpush1.msra.mxu0 0.0
  %7168 = vmatprep.subr.mxu0 0.0
  %7169 = vmatpush1.msra.mxu0 0.0
  %7170 = vmatprep.subr.mxu0 0.0
  %7171 = vmatpush1.msra.mxu0 0.0
  %7172 = vmatprep.subr.mxu0 0.0
  %7173 = vmatpush1.msra.mxu0 0.0
  %7174 = vmatprep.subr.mxu0 0.0
  %7175 = vmatpush1.msra.mxu0 0.0
  %7176 = vmatprep.subr.mxu0 0.0
  %7177 = vmatpush1.msra.mxu0 0.0
  %7178 = vmatprep.subr.mxu0 0.0
  %7179 = vmatpush1.msra.mxu0 0.0
  %7180 = vmatprep.subr.mxu0 0.0
  %7181 = vmatpush1.msra.mxu0 0.0
  %7182 = vmatprep.subr.mxu0 0.0
  %7183 = vmatpush1.msra.mxu0 0.0
  %7184 = vmatprep.mubr.f32.mxu0 0.0
  %7185 = vmatmul.mubr.f32.gmra.mrb[0].mxu0 %v7119
  %v7186 = vpop.f32.mrb[0].mxu0
  %v7187 = vadd.f32 %v6767, %v7186
  %v7188 = vpop.f32.mrb[0].mxu0
  %v7189 = vadd.f32 %v6771, %v7188
  %7190 = vdwg.mxu0
  %7191 = vmatprep.subr.mxu0 0.0
  %7192 = vmatpush1.msra.mxu0 %v6658
  %7193 = vmatprep.subr.mxu0 0.0
  %7194 = vmatpush1.msra.mxu0 %v6661
  %7195 = vmatprep.subr.mxu0 0.0
  %7196 = vmatpush1.msra.mxu0 %v6664
  %7197 = vmatprep.subr.mxu0 0.0
  %7198 = vmatpush1.msra.mxu0 %v6667
  %7199 = vmatprep.subr.mxu0 0.0
  %7200 = vmatpush1.msra.mxu0 %v6670
  %7201 = vmatprep.subr.mxu0 0.0
  %7202 = vmatpush1.msra.mxu0 %v6673
  %7203 = vmatprep.subr.mxu0 0.0
  %7204 = vmatpush1.msra.mxu0 %v6676
  %7205 = vmatprep.subr.mxu0 0.0
  %7206 = vmatpush1.msra.mxu0 %v6679
  %7207 = vmatprep.subr.mxu0 0.0
  %7208 = vmatpush1.msra.mxu0 %v6682
  %7209 = vmatprep.subr.mxu0 0.0
  %7210 = vmatpush1.msra.mxu0 %v6685
  %7211 = vmatprep.subr.mxu0 0.0
  %7212 = vmatpush1.msra.mxu0 %v6688
  %7213 = vmatprep.subr.mxu0 0.0
  %7214 = vmatpush1.msra.mxu0 %v6691
  %7215 = vmatprep.subr.mxu0 0.0
  %7216 = vmatpush1.msra.mxu0 %v6694
  %7217 = vmatprep.subr.mxu0 0.0
  %7218 = vmatpush1.msra.mxu0 %v6697
  %7219 = vmatprep.subr.mxu0 0.0
  %7220 = vmatpush1.msra.mxu0 %v6700
  %7221 = vmatprep.subr.mxu0 0.0
  %7222 = vmatpush1.msra.mxu0 %v6703
  %7223 = vmatprep.subr.mxu0 0.0
  %7224 = vmatpush1.msra.mxu0 0.0
  %7225 = vmatprep.subr.mxu0 0.0
  %7226 = vmatpush1.msra.mxu0 0.0
  %7227 = vmatprep.subr.mxu0 0.0
  %7228 = vmatpush1.msra.mxu0 0.0
  %7229 = vmatprep.subr.mxu0 0.0
  %7230 = vmatpush1.msra.mxu0 0.0
  %7231 = vmatprep.subr.mxu0 0.0
  %7232 = vmatpush1.msra.mxu0 0.0
  %7233 = vmatprep.subr.mxu0 0.0
  %7234 = vmatpush1.msra.mxu0 0.0
  %7235 = vmatprep.subr.mxu0 0.0
  %7236 = vmatpush1.msra.mxu0 0.0
  %7237 = vmatprep.subr.mxu0 0.0
  %7238 = vmatpush1.msra.mxu0 0.0
  %7239 = vmatprep.subr.mxu0 0.0
  %7240 = vmatpush1.msra.mxu0 0.0
  %7241 = vmatprep.subr.mxu0 0.0
  %7242 = vmatpush1.msra.mxu0 0.0
  %7243 = vmatprep.subr.mxu0 0.0
  %7244 = vmatpush1.msra.mxu0 0.0
  %7245 = vmatprep.subr.mxu0 0.0
  %7246 = vmatpush1.msra.mxu0 0.0
  %7247 = vmatprep.subr.mxu0 0.0
  %7248 = vmatpush1.msra.mxu0 0.0
  %7249 = vmatprep.subr.mxu0 0.0
  %7250 = vmatpush1.msra.mxu0 0.0
  %7251 = vmatprep.subr.mxu0 0.0
  %7252 = vmatpush1.msra.mxu0 0.0
  %7253 = vmatprep.subr.mxu0 0.0
  %7254 = vmatpush1.msra.mxu0 0.0
  %7255 = vmatprep.mubr.f32.mxu0 0.0
  %7256 = vmatmul.mubr.f32.gmra.mrb[0].mxu0 %v7119
  %v7257 = vpop.f32.mrb[0].mxu0
  %v7258 = vadd.f32 %v6775, %v7257
  %v7259 = vpop.f32.mrb[0].mxu0
  %7260 = vdwg.mxu0
  %7261 = vmatprep.subr.mxu0 %v6705
  %7262 = vmatpush1.msra.mxu0 %v6704
  %7263 = vmatprep.subr.mxu0 %v6708
  %7264 = vmatpush1.msra.mxu0 %v6707
  %7265 = vmatprep.subr.mxu0 %v6711
  %7266 = vmatpush1.msra.mxu0 %v6710
  %7267 = vmatprep.subr.mxu0 %v6714
  %7268 = vmatpush1.msra.mxu0 %v6713
  %7269 = vmatprep.subr.mxu0 %v6717
  %7270 = vmatpush1.msra.mxu0 %v6716
  %7271 = vmatprep.subr.mxu0 %v6720
  %7272 = vmatpush1.msra.mxu0 %v6719
  %7273 = vmatprep.subr.mxu0 %v6723
  %7274 = vmatpush1.msra.mxu0 %v6722
  %7275 = vmatprep.subr.mxu0 %v6726
  %7276 = vmatpush1.msra.mxu0 %v6725
  %7277 = vmatprep.subr.mxu0 %v6729
  %7278 = vmatpush1.msra.mxu0 %v6728
  %7279 = vmatprep.subr.mxu0 %v6732
  %7280 = vmatpush1.msra.mxu0 %v6731
  %7281 = vmatprep.subr.mxu0 %v6735
  %7282 = vmatpush1.msra.mxu0 %v6734
  %7283 = vmatprep.subr.mxu0 %v6738
  %7284 = vmatpush1.msra.mxu0 %v6737
  %7285 = vmatprep.subr.mxu0 %v6741
  %7286 = vmatpush1.msra.mxu0 %v6740
  %7287 = vmatprep.subr.mxu0 %v6744
  %7288 = vmatpush1.msra.mxu0 %v6743
  %7289 = vmatprep.subr.mxu0 %v6747
  %7290 = vmatpush1.msra.mxu0 %v6746
  %7291 = vmatprep.subr.mxu0 %v6750
  %7292 = vmatpush1.msra.mxu0 %v6749
  %7293 = vmatprep.subr.mxu0 0.0
  %7294 = vmatpush1.msra.mxu0 0.0
  %7295 = vmatprep.subr.mxu0 0.0
  %7296 = vmatpush1.msra.mxu0 0.0
  %7297 = vmatprep.subr.mxu0 0.0
  %7298 = vmatpush1.msra.mxu0 0.0
  %7299 = vmatprep.subr.mxu0 0.0
  %7300 = vmatpush1.msra.mxu0 0.0
  %7301 = vmatprep.subr.mxu0 0.0
  %7302 = vmatpush1.msra.mxu0 0.0
  %7303 = vmatprep.subr.mxu0 0.0
  %7304 = vmatpush1.msra.mxu0 0.0
  %7305 = vmatprep.subr.mxu0 0.0
  %7306 = vmatpush1.msra.mxu0 0.0
  %7307 = vmatprep.subr.mxu0 0.0
  %7308 = vmatpush1.msra.mxu0 0.0
  %7309 = vmatprep.subr.mxu0 0.0
  %7310 = vmatpush1.msra.mxu0 0.0
  %7311 = vmatprep.subr.mxu0 0.0
  %7312 = vmatpush1.msra.mxu0 0.0
  %7313 = vmatprep.subr.mxu0 0.0
  %7314 = vmatpush1.msra.mxu0 0.0
  %7315 = vmatprep.subr.mxu0 0.0
  %7316 = vmatpush1.msra.mxu0 0.0
  %7317 = vmatprep.subr.mxu0 0.0
  %7318 = vmatpush1.msra.mxu0 0.0
  %7319 = vmatprep.subr.mxu0 0.0
  %7320 = vmatpush1.msra.mxu0 0.0
  %7321 = vmatprep.subr.mxu0 0.0
  %7322 = vmatpush1.msra.mxu0 0.0
  %7323 = vmatprep.subr.mxu0 0.0
  %7324 = vmatpush1.msra.mxu0 0.0
  %7325 = vmatprep.mubr.f32.mxu0 0.0
  %7326 = vmatmul.mubr.f32.gmra.mrb[0].mxu0 %v7114
  %v7327 = vpop.f32.mrb[0].mxu0
  %v7328 = vadd.f32 %v6924, %v7327
  %v7329 = vpop.f32.mrb[0].mxu0
  %v7330 = vadd.f32 %v6928, %v7329
  %7331 = vdwg.mxu0
  %7332 = vmatprep.subr.mxu0 0.0
  %7333 = vmatpush1.msra.mxu0 %v6706
  %7334 = vmatprep.subr.mxu0 0.0
  %7335 = vmatpush1.msra.mxu0 %v6709
  %7336 = vmatprep.subr.mxu0 0.0
  %7337 = vmatpush1.msra.mxu0 %v6712
  %7338 = vmatprep.subr.mxu0 0.0
  %7339 = vmatpush1.msra.mxu0 %v6715
  %7340 = vmatprep.subr.mxu0 0.0
  %7341 = vmatpush1.msra.mxu0 %v6718
  %7342 = vmatprep.subr.mxu0 0.0
  %7343 = vmatpush1.msra.mxu0 %v6721
  %7344 = vmatprep.subr.mxu0 0.0
  %7345 = vmatpush1.msra.mxu0 %v6724
  %7346 = vmatprep.subr.mxu0 0.0
  %7347 = vmatpush1.msra.mxu0 %v6727
  %7348 = vmatprep.subr.mxu0 0.0
  %7349 = vmatpush1.msra.mxu0 %v6730
  %7350 = vmatprep.subr.mxu0 0.0
  %7351 = vmatpush1.msra.mxu0 %v6733
  %7352 = vmatprep.subr.mxu0 0.0
  %7353 = vmatpush1.msra.mxu0 %v6736
  %7354 = vmatprep.subr.mxu0 0.0
  %7355 = vmatpush1.msra.mxu0 %v6739
  %7356 = vmatprep.subr.mxu0 0.0
  %7357 = vmatpush1.msra.mxu0 %v6742
  %7358 = vmatprep.subr.mxu0 0.0
  %7359 = vmatpush1.msra.mxu0 %v6745
  %7360 = vmatprep.subr.mxu0 0.0
  %7361 = vmatpush1.msra.mxu0 %v6748
  %7362 = vmatprep.subr.mxu0 0.0
  %7363 = vmatpush1.msra.mxu0 %v6751
  %7364 = vmatprep.subr.mxu0 0.0
  %7365 = vmatpush1.msra.mxu0 0.0
  %7366 = vmatprep.subr.mxu0 0.0
  %7367 = vmatpush1.msra.mxu0 0.0
  %7368 = vmatprep.subr.mxu0 0.0
  %7369 = vmatpush1.msra.mxu0 0.0
  %7370 = vmatprep.subr.mxu0 0.0
  %7371 = vmatpush1.msra.mxu0 0.0
  %7372 = vmatprep.subr.mxu0 0.0
  %7373 = vmatpush1.msra.mxu0 0.0
  %7374 = vmatprep.subr.mxu0 0.0
  %7375 = vmatpush1.msra.mxu0 0.0
  %7376 = vmatprep.subr.mxu0 0.0
  %7377 = vmatpush1.msra.mxu0 0.0
  %7378 = vmatprep.subr.mxu0 0.0
  %7379 = vmatpush1.msra.mxu0 0.0
  %7380 = vmatprep.subr.mxu0 0.0
  %7381 = vmatpush1.msra.mxu0 0.0
  %7382 = vmatprep.subr.mxu0 0.0
  %7383 = vmatpush1.msra.mxu0 0.0
  %7384 = vmatprep.subr.mxu0 0.0
  %7385 = vmatpush1.msra.mxu0 0.0
  %7386 = vmatprep.subr.mxu0 0.0
  %7387 = vmatpush1.msra.mxu0 0.0
  %7388 = vmatprep.subr.mxu0 0.0
  %7389 = vmatpush1.msra.mxu0 0.0
  %7390 = vmatprep.subr.mxu0 0.0
  %7391 = vmatpush1.msra.mxu0 0.0
  %7392 = vmatprep.subr.mxu0 0.0
  %7393 = vmatpush1.msra.mxu0 0.0
  %7394 = vmatprep.subr.mxu0 0.0
  %7395 = vmatpush1.msra.mxu0 0.0
  %7396 = vmatprep.mubr.f32.mxu0 0.0
  %7397 = vmatmul.mubr.f32.gmra.mrb[0].mxu0 %v7114
  %v7398 = vpop.f32.mrb[0].mxu0
  %v7399 = vadd.f32 %v6932, %v7398
  %v7400 = vpop.f32.mrb[0].mxu0
  %7401 = vdwg.mxu0
  %v7402 = vadd.f32 %v7187, %v7328
  %v7403 = vxor.u32 %v7402, 2147483648
  %v7404 = vmul.f32 %v7403, 1.442695
  %v7405 = vpow.pop %v7404
  %v7406 = vadd.f32 %v7405, 1.0
  %v7407 = vrcp.pop %v7406
  %v7408 = vmul.f32 1.0, %v7407
  %v7409 = vadd.f32 %v7189, %v7330
  %v7410 = vxor.u32 %v7409, 2147483648
  %v7411 = vmul.f32 %v7410, 1.442695
  %v7412 = vpow.pop %v7411
  %v7413 = vadd.f32 %v7412, 1.0
  %v7414 = vrcp.pop %v7413
  %v7415 = vmul.f32 1.0, %v7414
  %v7416 = vmul.f32 %v7408, %v7399
  %v7417 = vadd.f32 %v7258, %v7416
  %v7418 = vtanh.pop %v7417
  %v7419 = vsub.f32 1.0, %v7415
  %v7420 = vmul.f32 %v7419, %v7418
  %v7421 = vmul.f32 %v7415, %v7114
  %v7422 = vadd.f32 %v7420, %v7421
  %vm7423 = vcmp.gt.s32.totalorder %v6754, 1
  %v7424 = vsel %vm7423, 1, 0
  %v7425 = vcvt.s32.f32 %v7424
  %7427 = vset.pattern.permute.xlu0 0
  %7428 = vperm.xlu0 %7427, %v7425
  %v7429 = vpop.permute.xlu0 %7428
  %v7431 = vmul.f32 %v7429, %v7422
  %v7432 = vsub.f32 1.0, %v7425
  %7434 = vset.pattern.permute.xlu0 0
  %7435 = vperm.xlu0 %7434, %v7432
  %v7436 = vpop.permute.xlu0 %7435
  %v7438 = vmul.f32 %v7436, %v7114
  %v7439 = vadd.f32 %v7431, %v7438
  %7440 = vset.pattern.permute.xlu0 2
  %7441 = vperm.xlu0 %7440, %v6755
  %v7442 = vpop.permute.xlu0 %7441
  %v7444 = vmul.f32 %v6650, %v7442
  %7445 = vmatprep.subr.mxu0 %v6657
  %7446 = vmatpush1.msra.mxu0 %v6656
  %7447 = vmatprep.subr.mxu0 %v6660
  %7448 = vmatpush1.msra.mxu0 %v6659
  %7449 = vmatprep.subr.mxu0 %v6663
  %7450 = vmatpush1.msra.mxu0 %v6662
  %7451 = vmatprep.subr.mxu0 %v6666
  %7452 = vmatpush1.msra.mxu0 %v6665
  %7453 = vmatprep.subr.mxu0 %v6669
  %7454 = vmatpush1.msra.mxu0 %v6668
  %7455 = vmatprep.subr.mxu0 %v6672
  %7456 = vmatpush1.msra.mxu0 %v6671
  %7457 = vmatprep.subr.mxu0 %v6675
  %7458 = vmatpush1.msra.mxu0 %v6674
  %7459 = vmatprep.subr.mxu0 %v6678
  %7460 = vmatpush1.msra.mxu0 %v6677
  %7461 = vmatprep.subr.mxu0 %v6681
  %7462 = vmatpush1.msra.mxu0 %v6680
  %7463 = vmatprep.subr.mxu0 %v6684
  %7464 = vmatpush1.msra.mxu0 %v6683
  %7465 = vmatprep.subr.mxu0 %v6687
  %7466 = vmatpush1.msra.mxu0 %v6686
  %7467 = vmatprep.subr.mxu0 %v6690
  %7468 = vmatpush1.msra.mxu0 %v6689
  %7469 = vmatprep.subr.mxu0 %v6693
  %7470 = vmatpush1.msra.mxu0 %v6692
  %7471 = vmatprep.subr.mxu0 %v6696
  %7472 = vmatpush1.msra.mxu0 %v6695
  %7473 = vmatprep.subr.mxu0 %v6699
  %7474 = vmatpush1.msra.mxu0 %v6698
  %7475 = vmatprep.subr.mxu0 %v6702
  %7476 = vmatpush1.msra.mxu0 %v6701
  %7477 = vmatprep.subr.mxu0 0.0
  %7478 = vmatpush1.msra.mxu0 0.0
  %7479 = vmatprep.subr.mxu0 0.0
  %7480 = vmatpush1.msra.mxu0 0.0
  %7481 = vmatprep.subr.mxu0 0.0
  %7482 = vmatpush1.msra.mxu0 0.0
  %7483 = vmatprep.subr.mxu0 0.0
  %7484 = vmatpush1.msra.mxu0 0.0
  %7485 = vmatprep.subr.mxu0 0.0
  %7486 = vmatpush1.msra.mxu0 0.0
  %7487 = vmatprep.subr.mxu0 0.0
  %7488 = vmatpush1.msra.mxu0 0.0
  %7489 = vmatprep.subr.mxu0 0.0
  %7490 = vmatpush1.msra.mxu0 0.0
  %7491 = vmatprep.subr.mxu0 0.0
  %7492 = vmatpush1.msra.mxu0 0.0
  %7493 = vmatprep.subr.mxu0 0.0
  %7494 = vmatpush1.msra.mxu0 0.0
  %7495 = vmatprep.subr.mxu0 0.0
  %7496 = vmatpush1.msra.mxu0 0.0
  %7497 = vmatprep.subr.mxu0 0.0
  %7498 = vmatpush1.msra.mxu0 0.0
  %7499 = vmatprep.subr.mxu0 0.0
  %7500 = vmatpush1.msra.mxu0 0.0
  %7501 = vmatprep.subr.mxu0 0.0
  %7502 = vmatpush1.msra.mxu0 0.0
  %7503 = vmatprep.subr.mxu0 0.0
  %7504 = vmatpush1.msra.mxu0 0.0
  %7505 = vmatprep.subr.mxu0 0.0
  %7506 = vmatpush1.msra.mxu0 0.0
  %7507 = vmatprep.subr.mxu0 0.0
  %7508 = vmatpush1.msra.mxu0 0.0
  %7509 = vmatprep.mubr.f32.mxu0 0.0
  %7510 = vmatmul.mubr.f32.gmra.mrb[0].mxu0 %v7444
  %v7511 = vpop.f32.mrb[0].mxu0
  %v7512 = vadd.f32 %v6767, %v7511
  %v7513 = vpop.f32.mrb[0].mxu0
  %v7514 = vadd.f32 %v6771, %v7513
  %7515 = vdwg.mxu0
  %7516 = vmatprep.subr.mxu0 0.0
  %7517 = vmatpush1.msra.mxu0 %v6658
  %7518 = vmatprep.subr.mxu0 0.0
  %7519 = vmatpush1.msra.mxu0 %v6661
  %7520 = vmatprep.subr.mxu0 0.0
  %7521 = vmatpush1.msra.mxu0 %v6664
  %7522 = vmatprep.subr.mxu0 0.0
  %7523 = vmatpush1.msra.mxu0 %v6667
  %7524 = vmatprep.subr.mxu0 0.0
  %7525 = vmatpush1.msra.mxu0 %v6670
  %7526 = vmatprep.subr.mxu0 0.0
  %7527 = vmatpush1.msra.mxu0 %v6673
  %7528 = vmatprep.subr.mxu0 0.0
  %7529 = vmatpush1.msra.mxu0 %v6676
  %7530 = vmatprep.subr.mxu0 0.0
  %7531 = vmatpush1.msra.mxu0 %v6679
  %7532 = vmatprep.subr.mxu0 0.0
  %7533 = vmatpush1.msra.mxu0 %v6682
  %7534 = vmatprep.subr.mxu0 0.0
  %7535 = vmatpush1.msra.mxu0 %v6685
  %7536 = vmatprep.subr.mxu0 0.0
  %7537 = vmatpush1.msra.mxu0 %v6688
  %7538 = vmatprep.subr.mxu0 0.0
  %7539 = vmatpush1.msra.mxu0 %v6691
  %7540 = vmatprep.subr.mxu0 0.0
  %7541 = vmatpush1.msra.mxu0 %v6694
  %7542 = vmatprep.subr.mxu0 0.0
  %7543 = vmatpush1.msra.mxu0 %v6697
  %7544 = vmatprep.subr.mxu0 0.0
  %7545 = vmatpush1.msra.mxu0 %v6700
  %7546 = vmatprep.subr.mxu0 0.0
  %7547 = vmatpush1.msra.mxu0 %v6703
  %7548 = vmatprep.subr.mxu0 0.0
  %7549 = vmatpush1.msra.mxu0 0.0
  %7550 = vmatprep.subr.mxu0 0.0
  %7551 = vmatpush1.msra.mxu0 0.0
  %7552 = vmatprep.subr.mxu0 0.0
  %7553 = vmatpush1.msra.mxu0 0.0
  %7554 = vmatprep.subr.mxu0 0.0
  %7555 = vmatpush1.msra.mxu0 0.0
  %7556 = vmatprep.subr.mxu0 0.0
  %7557 = vmatpush1.msra.mxu0 0.0
  %7558 = vmatprep.subr.mxu0 0.0
  %7559 = vmatpush1.msra.mxu0 0.0
  %7560 = vmatprep.subr.mxu0 0.0
  %7561 = vmatpush1.msra.mxu0 0.0
  %7562 = vmatprep.subr.mxu0 0.0
  %7563 = vmatpush1.msra.mxu0 0.0
  %7564 = vmatprep.subr.mxu0 0.0
  %7565 = vmatpush1.msra.mxu0 0.0
  %7566 = vmatprep.subr.mxu0 0.0
  %7567 = vmatpush1.msra.mxu0 0.0
  %7568 = vmatprep.subr.mxu0 0.0
  %7569 = vmatpush1.msra.mxu0 0.0
  %7570 = vmatprep.subr.mxu0 0.0
  %7571 = vmatpush1.msra.mxu0 0.0
  %7572 = vmatprep.subr.mxu0 0.0
  %7573 = vmatpush1.msra.mxu0 0.0
  %7574 = vmatprep.subr.mxu0 0.0
  %7575 = vmatpush1.msra.mxu0 0.0
  %7576 = vmatprep.subr.mxu0 0.0
  %7577 = vmatpush1.msra.mxu0 0.0
  %7578 = vmatprep.subr.mxu0 0.0
  %7579 = vmatpush1.msra.mxu0 0.0
  %7580 = vmatprep.mubr.f32.mxu0 0.0
  %7581 = vmatmul.mubr.f32.gmra.mrb[0].mxu0 %v7444
  %v7582 = vpop.f32.mrb[0].mxu0
  %v7583 = vadd.f32 %v6775, %v7582
  %v7584 = vpop.f32.mrb[0].mxu0
  %7585 = vdwg.mxu0
  %7586 = vmatprep.subr.mxu0 %v6705
  %7587 = vmatpush1.msra.mxu0 %v6704
  %7588 = vmatprep.subr.mxu0 %v6708
  %7589 = vmatpush1.msra.mxu0 %v6707
  %7590 = vmatprep.subr.mxu0 %v6711
  %7591 = vmatpush1.msra.mxu0 %v6710
  %7592 = vmatprep.subr.mxu0 %v6714
  %7593 = vmatpush1.msra.mxu0 %v6713
  %7594 = vmatprep.subr.mxu0 %v6717
  %7595 = vmatpush1.msra.mxu0 %v6716
  %7596 = vmatprep.subr.mxu0 %v6720
  %7597 = vmatpush1.msra.mxu0 %v6719
  %7598 = vmatprep.subr.mxu0 %v6723
  %7599 = vmatpush1.msra.mxu0 %v6722
  %7600 = vmatprep.subr.mxu0 %v6726
  %7601 = vmatpush1.msra.mxu0 %v6725
  %7602 = vmatprep.subr.mxu0 %v6729
  %7603 = vmatpush1.msra.mxu0 %v6728
  %7604 = vmatprep.subr.mxu0 %v6732
  %7605 = vmatpush1.msra.mxu0 %v6731
  %7606 = vmatprep.subr.mxu0 %v6735
  %7607 = vmatpush1.msra.mxu0 %v6734
  %7608 = vmatprep.subr.mxu0 %v6738
  %7609 = vmatpush1.msra.mxu0 %v6737
  %7610 = vmatprep.subr.mxu0 %v6741
  %7611 = vmatpush1.msra.mxu0 %v6740
  %7612 = vmatprep.subr.mxu0 %v6744
  %7613 = vmatpush1.msra.mxu0 %v6743
  %7614 = vmatprep.subr.mxu0 %v6747
  %7615 = vmatpush1.msra.mxu0 %v6746
  %7616 = vmatprep.subr.mxu0 %v6750
  %7617 = vmatpush1.msra.mxu0 %v6749
  %7618 = vmatprep.subr.mxu0 0.0
  %7619 = vmatpush1.msra.mxu0 0.0
  %7620 = vmatprep.subr.mxu0 0.0
  %7621 = vmatpush1.msra.mxu0 0.0
  %7622 = vmatprep.subr.mxu0 0.0
  %7623 = vmatpush1.msra.mxu0 0.0
  %7624 = vmatprep.subr.mxu0 0.0
  %7625 = vmatpush1.msra.mxu0 0.0
  %7626 = vmatprep.subr.mxu0 0.0
  %7627 = vmatpush1.msra.mxu0 0.0
  %7628 = vmatprep.subr.mxu0 0.0
  %7629 = vmatpush1.msra.mxu0 0.0
  %7630 = vmatprep.subr.mxu0 0.0
  %7631 = vmatpush1.msra.mxu0 0.0
  %7632 = vmatprep.subr.mxu0 0.0
  %7633 = vmatpush1.msra.mxu0 0.0
  %7634 = vmatprep.subr.mxu0 0.0
  %7635 = vmatpush1.msra.mxu0 0.0
  %7636 = vmatprep.subr.mxu0 0.0
  %7637 = vmatpush1.msra.mxu0 0.0
  %7638 = vmatprep.subr.mxu0 0.0
  %7639 = vmatpush1.msra.mxu0 0.0
  %7640 = vmatprep.subr.mxu0 0.0
  %7641 = vmatpush1.msra.mxu0 0.0
  %7642 = vmatprep.subr.mxu0 0.0
  %7643 = vmatpush1.msra.mxu0 0.0
  %7644 = vmatprep.subr.mxu0 0.0
  %7645 = vmatpush1.msra.mxu0 0.0
  %7646 = vmatprep.subr.mxu0 0.0
  %7647 = vmatpush1.msra.mxu0 0.0
  %7648 = vmatprep.subr.mxu0 0.0
  %7649 = vmatpush1.msra.mxu0 0.0
  %7650 = vmatprep.mubr.f32.mxu0 0.0
  %7651 = vmatmul.mubr.f32.gmra.mrb[0].mxu0 %v7439
  %v7652 = vpop.f32.mrb[0].mxu0
  %v7653 = vadd.f32 %v6924, %v7652
  %v7654 = vpop.f32.mrb[0].mxu0
  %v7655 = vadd.f32 %v6928, %v7654
  %7656 = vdwg.mxu0
  %7657 = vmatprep.subr.mxu0 0.0
  %7658 = vmatpush1.msra.mxu0 %v6706
  %7659 = vmatprep.subr.mxu0 0.0
  %7660 = vmatpush1.msra.mxu0 %v6709
  %7661 = vmatprep.subr.mxu0 0.0
  %7662 = vmatpush1.msra.mxu0 %v6712
  %7663 = vmatprep.subr.mxu0 0.0
  %7664 = vmatpush1.msra.mxu0 %v6715
  %7665 = vmatprep.subr.mxu0 0.0
  %7666 = vmatpush1.msra.mxu0 %v6718
  %7667 = vmatprep.subr.mxu0 0.0
  %7668 = vmatpush1.msra.mxu0 %v6721
  %7669 = vmatprep.subr.mxu0 0.0
  %7670 = vmatpush1.msra.mxu0 %v6724
  %7671 = vmatprep.subr.mxu0 0.0
  %7672 = vmatpush1.msra.mxu0 %v6727
  %7673 = vmatprep.subr.mxu0 0.0
  %7674 = vmatpush1.msra.mxu0 %v6730
  %7675 = vmatprep.subr.mxu0 0.0
  %7676 = vmatpush1.msra.mxu0 %v6733
  %7677 = vmatprep.subr.mxu0 0.0
  %7678 = vmatpush1.msra.mxu0 %v6736
  %7679 = vmatprep.subr.mxu0 0.0
  %7680 = vmatpush1.msra.mxu0 %v6739
  %7681 = vmatprep.subr.mxu0 0.0
  %7682 = vmatpush1.msra.mxu0 %v6742
  %7683 = vmatprep.subr.mxu0 0.0
  %7684 = vmatpush1.msra.mxu0 %v6745
  %7685 = vmatprep.subr.mxu0 0.0
  %7686 = vmatpush1.msra.mxu0 %v6748
  %7687 = vmatprep.subr.mxu0 0.0
  %7688 = vmatpush1.msra.mxu0 %v6751
  %7689 = vmatprep.subr.mxu0 0.0
  %7690 = vmatpush1.msra.mxu0 0.0
  %7691 = vmatprep.subr.mxu0 0.0
  %7692 = vmatpush1.msra.mxu0 0.0
  %7693 = vmatprep.subr.mxu0 0.0
  %7694 = vmatpush1.msra.mxu0 0.0
  %7695 = vmatprep.subr.mxu0 0.0
  %7696 = vmatpush1.msra.mxu0 0.0
  %7697 = vmatprep.subr.mxu0 0.0
  %7698 = vmatpush1.msra.mxu0 0.0
  %7699 = vmatprep.subr.mxu0 0.0
  %7700 = vmatpush1.msra.mxu0 0.0
  %7701 = vmatprep.subr.mxu0 0.0
  %7702 = vmatpush1.msra.mxu0 0.0
  %7703 = vmatprep.subr.mxu0 0.0
  %7704 = vmatpush1.msra.mxu0 0.0
  %7705 = vmatprep.subr.mxu0 0.0
  %7706 = vmatpush1.msra.mxu0 0.0
  %7707 = vmatprep.subr.mxu0 0.0
  %7708 = vmatpush1.msra.mxu0 0.0
  %7709 = vmatprep.subr.mxu0 0.0
  %7710 = vmatpush1.msra.mxu0 0.0
  %7711 = vmatprep.subr.mxu0 0.0
  %7712 = vmatpush1.msra.mxu0 0.0
  %7713 = vmatprep.subr.mxu0 0.0
  %7714 = vmatpush1.msra.mxu0 0.0
  %7715 = vmatprep.subr.mxu0 0.0
  %7716 = vmatpush1.msra.mxu0 0.0
  %7717 = vmatprep.subr.mxu0 0.0
  %7718 = vmatpush1.msra.mxu0 0.0
  %7719 = vmatprep.subr.mxu0 0.0
  %7720 = vmatpush1.msra.mxu0 0.0
  %7721 = vmatprep.mubr.f32.mxu0 0.0
  %7722 = vmatmul.mubr.f32.gmra.mrb[0].mxu0 %v7439
  %v7723 = vpop.f32.mrb[0].mxu0
  %v7724 = vadd.f32 %v6932, %v7723
  %v7725 = vpop.f32.mrb[0].mxu0
  %7726 = vdwg.mxu0
  %v7727 = vadd.f32 %v7512, %v7653
  %v7728 = vxor.u32 %v7727, 2147483648
  %v7729 = vmul.f32 %v7728, 1.442695
  %v7730 = vpow.pop %v7729
  %v7731 = vadd.f32 %v7730, 1.0
  %v7732 = vrcp.pop %v7731
  %v7733 = vmul.f32 1.0, %v7732
  %v7734 = vadd.f32 %v7514, %v7655
  %v7735 = vxor.u32 %v7734, 2147483648
  %v7736 = vmul.f32 %v7735, 1.442695
  %v7737 = vpow.pop %v7736
  %v7738 = vadd.f32 %v7737, 1.0
  %v7739 = vrcp.pop %v7738
  %v7740 = vmul.f32 1.0, %v7739
  %v7741 = vmul.f32 %v7733, %v7724
  %v7742 = vadd.f32 %v7583, %v7741
  %v7743 = vtanh.pop %v7742
  %v7744 = vsub.f32 1.0, %v7740
  %v7745 = vmul.f32 %v7744, %v7743
  %v7746 = vmul.f32 %v7740, %v7439
  %v7747 = vadd.f32 %v7745, %v7746
  %vm7748 = vcmp.gt.s32.totalorder %v6754, 2
  %v7749 = vsel %vm7748, 1, 0
  %v7750 = vcvt.s32.f32 %v7749
  %7752 = vset.pattern.permute.xlu0 0
  %7753 = vperm.xlu0 %7752, %v7750
  %v7754 = vpop.permute.xlu0 %7753
  %v7756 = vmul.f32 %v7754, %v7747
  %v7757 = vsub.f32 1.0, %v7750
  %7759 = vset.pattern.permute.xlu0 0
  %7760 = vperm.xlu0 %7759, %v7757
  %v7761 = vpop.permute.xlu0 %7760
  %v7763 = vmul.f32 %v7761, %v7439
  %v7764 = vadd.f32 %v7756, %v7763
  %7765 = vset.pattern.permute.xlu0 3
  %7766 = vperm.xlu0 %7765, %v6755
  %v7767 = vpop.permute.xlu0 %7766
  %v7769 = vmul.f32 %v6651, %v7767
  %7770 = vmatprep.subr.mxu0 %v6657
  %7771 = vmatpush1.msra.mxu0 %v6656
  %7772 = vmatprep.subr.mxu0 %v6660
  %7773 = vmatpush1.msra.mxu0 %v6659
  %7774 = vmatprep.subr.mxu0 %v6663
  %7775 = vmatpush1.msra.mxu0 %v6662
  %7776 = vmatprep.subr.mxu0 %v6666
  %7777 = vmatpush1.msra.mxu0 %v6665
  %7778 = vmatprep.subr.mxu0 %v6669
  %7779 = vmatpush1.msra.mxu0 %v6668
  %7780 = vmatprep.subr.mxu0 %v6672
  %7781 = vmatpush1.msra.mxu0 %v6671
  %7782 = vmatprep.subr.mxu0 %v6675
  %7783 = vmatpush1.msra.mxu0 %v6674
  %7784 = vmatprep.subr.mxu0 %v6678
  %7785 = vmatpush1.msra.mxu0 %v6677
  %7786 = vmatprep.subr.mxu0 %v6681
  %7787 = vmatpush1.msra.mxu0 %v6680
  %7788 = vmatprep.subr.mxu0 %v6684
  %7789 = vmatpush1.msra.mxu0 %v6683
  %7790 = vmatprep.subr.mxu0 %v6687
  %7791 = vmatpush1.msra.mxu0 %v6686
  %7792 = vmatprep.subr.mxu0 %v6690
  %7793 = vmatpush1.msra.mxu0 %v6689
  %7794 = vmatprep.subr.mxu0 %v6693
  %7795 = vmatpush1.msra.mxu0 %v6692
  %7796 = vmatprep.subr.mxu0 %v6696
  %7797 = vmatpush1.msra.mxu0 %v6695
  %7798 = vmatprep.subr.mxu0 %v6699
  %7799 = vmatpush1.msra.mxu0 %v6698
  %7800 = vmatprep.subr.mxu0 %v6702
  %7801 = vmatpush1.msra.mxu0 %v6701
  %7802 = vmatprep.subr.mxu0 0.0
  %7803 = vmatpush1.msra.mxu0 0.0
  %7804 = vmatprep.subr.mxu0 0.0
  %7805 = vmatpush1.msra.mxu0 0.0
  %7806 = vmatprep.subr.mxu0 0.0
  %7807 = vmatpush1.msra.mxu0 0.0
  %7808 = vmatprep.subr.mxu0 0.0
  %7809 = vmatpush1.msra.mxu0 0.0
  %7810 = vmatprep.subr.mxu0 0.0
  %7811 = vmatpush1.msra.mxu0 0.0
  %7812 = vmatprep.subr.mxu0 0.0
  %7813 = vmatpush1.msra.mxu0 0.0
  %7814 = vmatprep.subr.mxu0 0.0
  %7815 = vmatpush1.msra.mxu0 0.0
  %7816 = vmatprep.subr.mxu0 0.0
  %7817 = vmatpush1.msra.mxu0 0.0
  %7818 = vmatprep.subr.mxu0 0.0
  %7819 = vmatpush1.msra.mxu0 0.0
  %7820 = vmatprep.subr.mxu0 0.0
  %7821 = vmatpush1.msra.mxu0 0.0
  %7822 = vmatprep.subr.mxu0 0.0
  %7823 = vmatpush1.msra.mxu0 0.0
  %7824 = vmatprep.subr.mxu0 0.0
  %7825 = vmatpush1.msra.mxu0 0.0
  %7826 = vmatprep.subr.mxu0 0.0
  %7827 = vmatpush1.msra.mxu0 0.0
  %7828 = vmatprep.subr.mxu0 0.0
  %7829 = vmatpush1.msra.mxu0 0.0
  %7830 = vmatprep.subr.mxu0 0.0
  %7831 = vmatpush1.msra.mxu0 0.0
  %7832 = vmatprep.subr.mxu0 0.0
  %7833 = vmatpush1.msra.mxu0 0.0
  %7834 = vmatprep.mubr.f32.mxu0 0.0
  %7835 = vmatmul.mubr.f32.gmra.mrb[0].mxu0 %v7769
  %v7836 = vpop.f32.mrb[0].mxu0
  %v7837 = vadd.f32 %v6767, %v7836
  %v7838 = vpop.f32.mrb[0].mxu0
  %v7839 = vadd.f32 %v6771, %v7838
  %7840 = vdwg.mxu0
  %7841 = vmatprep.subr.mxu0 0.0
  %7842 = vmatpush1.msra.mxu0 %v6658
  %7843 = vmatprep.subr.mxu0 0.0
  %7844 = vmatpush1.msra.mxu0 %v6661
  %7845 = vmatprep.subr.mxu0 0.0
  %7846 = vmatpush1.msra.mxu0 %v6664
  %7847 = vmatprep.subr.mxu0 0.0
  %7848 = vmatpush1.msra.mxu0 %v6667
  %7849 = vmatprep.subr.mxu0 0.0
  %7850 = vmatpush1.msra.mxu0 %v6670
  %7851 = vmatprep.subr.mxu0 0.0
  %7852 = vmatpush1.msra.mxu0 %v6673
  %7853 = vmatprep.subr.mxu0 0.0
  %7854 = vmatpush1.msra.mxu0 %v6676
  %7855 = vmatprep.subr.mxu0 0.0
  %7856 = vmatpush1.msra.mxu0 %v6679
  %7857 = vmatprep.subr.mxu0 0.0
  %7858 = vmatpush1.msra.mxu0 %v6682
  %7859 = vmatprep.subr.mxu0 0.0
  %7860 = vmatpush1.msra.mxu0 %v6685
  %7861 = vmatprep.subr.mxu0 0.0
  %7862 = vmatpush1.msra.mxu0 %v6688
  %7863 = vmatprep.subr.mxu0 0.0
  %7864 = vmatpush1.msra.mxu0 %v6691
  %7865 = vmatprep.subr.mxu0 0.0
  %7866 = vmatpush1.msra.mxu0 %v6694
  %7867 = vmatprep.subr.mxu0 0.0
  %7868 = vmatpush1.msra.mxu0 %v6697
  %7869 = vmatprep.subr.mxu0 0.0
  %7870 = vmatpush1.msra.mxu0 %v6700
  %7871 = vmatprep.subr.mxu0 0.0
  %7872 = vmatpush1.msra.mxu0 %v6703
  %7873 = vmatprep.subr.mxu0 0.0
  %7874 = vmatpush1.msra.mxu0 0.0
  %7875 = vmatprep.subr.mxu0 0.0
  %7876 = vmatpush1.msra.mxu0 0.0
  %7877 = vmatprep.subr.mxu0 0.0
  %7878 = vmatpush1.msra.mxu0 0.0
  %7879 = vmatprep.subr.mxu0 0.0
  %7880 = vmatpush1.msra.mxu0 0.0
  %7881 = vmatprep.subr.mxu0 0.0
  %7882 = vmatpush1.msra.mxu0 0.0
  %7883 = vmatprep.subr.mxu0 0.0
  %7884 = vmatpush1.msra.mxu0 0.0
  %7885 = vmatprep.subr.mxu0 0.0
  %7886 = vmatpush1.msra.mxu0 0.0
  %7887 = vmatprep.subr.mxu0 0.0
  %7888 = vmatpush1.msra.mxu0 0.0
  %7889 = vmatprep.subr.mxu0 0.0
  %7890 = vmatpush1.msra.mxu0 0.0
  %7891 = vmatprep.subr.mxu0 0.0
  %7892 = vmatpush1.msra.mxu0 0.0
  %7893 = vmatprep.subr.mxu0 0.0
  %7894 = vmatpush1.msra.mxu0 0.0
  %7895 = vmatprep.subr.mxu0 0.0
  %7896 = vmatpush1.msra.mxu0 0.0
  %7897 = vmatprep.subr.mxu0 0.0
  %7898 = vmatpush1.msra.mxu0 0.0
  %7899 = vmatprep.subr.mxu0 0.0
  %7900 = vmatpush1.msra.mxu0 0.0
  %7901 = vmatprep.subr.mxu0 0.0
  %7902 = vmatpush1.msra.mxu0 0.0
  %7903 = vmatprep.subr.mxu0 0.0
  %7904 = vmatpush1.msra.mxu0 0.0
  %7905 = vmatprep.mubr.f32.mxu0 0.0
  %7906 = vmatmul.mubr.f32.gmra.mrb[0].mxu0 %v7769
  %v7907 = vpop.f32.mrb[0].mxu0
  %v7908 = vadd.f32 %v6775, %v7907
  %v7909 = vpop.f32.mrb[0].mxu0
  %7910 = vdwg.mxu0
  %7911 = vmatprep.subr.mxu0 %v6705
  %7912 = vmatpush1.msra.mxu0 %v6704
  %7913 = vmatprep.subr.mxu0 %v6708
  %7914 = vmatpush1.msra.mxu0 %v6707
  %7915 = vmatprep.subr.mxu0 %v6711
  %7916 = vmatpush1.msra.mxu0 %v6710
  %7917 = vmatprep.subr.mxu0 %v6714
  %7918 = vmatpush1.msra.mxu0 %v6713
  %7919 = vmatprep.subr.mxu0 %v6717
  %7920 = vmatpush1.msra.mxu0 %v6716
  %7921 = vmatprep.subr.mxu0 %v6720
  %7922 = vmatpush1.msra.mxu0 %v6719
  %7923 = vmatprep.subr.mxu0 %v6723
  %7924 = vmatpush1.msra.mxu0 %v6722
  %7925 = vmatprep.subr.mxu0 %v6726
  %7926 = vmatpush1.msra.mxu0 %v6725
  %7927 = vmatprep.subr.mxu0 %v6729
  %7928 = vmatpush1.msra.mxu0 %v6728
  %7929 = vmatprep.subr.mxu0 %v6732
  %7930 = vmatpush1.msra.mxu0 %v6731
  %7931 = vmatprep.subr.mxu0 %v6735
  %7932 = vmatpush1.msra.mxu0 %v6734
  %7933 = vmatprep.subr.mxu0 %v6738
  %7934 = vmatpush1.msra.mxu0 %v6737
  %7935 = vmatprep.subr.mxu0 %v6741
  %7936 = vmatpush1.msra.mxu0 %v6740
  %7937 = vmatprep.subr.mxu0 %v6744
  %7938 = vmatpush1.msra.mxu0 %v6743
  %7939 = vmatprep.subr.mxu0 %v6747
  %7940 = vmatpush1.msra.mxu0 %v6746
  %7941 = vmatprep.subr.mxu0 %v6750
  %7942 = vmatpush1.msra.mxu0 %v6749
  %7943 = vmatprep.subr.mxu0 0.0
  %7944 = vmatpush1.msra.mxu0 0.0
  %7945 = vmatprep.subr.mxu0 0.0
  %7946 = vmatpush1.msra.mxu0 0.0
  %7947 = vmatprep.subr.mxu0 0.0
  %7948 = vmatpush1.msra.mxu0 0.0
  %7949 = vmatprep.subr.mxu0 0.0
  %7950 = vmatpush1.msra.mxu0 0.0
  %7951 = vmatprep.subr.mxu0 0.0
  %7952 = vmatpush1.msra.mxu0 0.0
  %7953 = vmatprep.subr.mxu0 0.0
  %7954 = vmatpush1.msra.mxu0 0.0
  %7955 = vmatprep.subr.mxu0 0.0
  %7956 = vmatpush1.msra.mxu0 0.0
  %7957 = vmatprep.subr.mxu0 0.0
  %7958 = vmatpush1.msra.mxu0 0.0
  %7959 = vmatprep.subr.mxu0 0.0
  %7960 = vmatpush1.msra.mxu0 0.0
  %7961 = vmatprep.subr.mxu0 0.0
  %7962 = vmatpush1.msra.mxu0 0.0
  %7963 = vmatprep.subr.mxu0 0.0
  %7964 = vmatpush1.msra.mxu0 0.0
  %7965 = vmatprep.subr.mxu0 0.0
  %7966 = vmatpush1.msra.mxu0 0.0
  %7967 = vmatprep.subr.mxu0 0.0
  %7968 = vmatpush1.msra.mxu0 0.0
  %7969 = vmatprep.subr.mxu0 0.0
  %7970 = vmatpush1.msra.mxu0 0.0
  %7971 = vmatprep.subr.mxu0 0.0
  %7972 = vmatpush1.msra.mxu0 0.0
  %7973 = vmatprep.subr.mxu0 0.0
  %7974 = vmatpush1.msra.mxu0 0.0
  %7975 = vmatprep.mubr.f32.mxu0 0.0
  %7976 = vmatmul.mubr.f32.gmra.mrb[0].mxu0 %v7764
  %v7977 = vpop.f32.mrb[0].mxu0
  %v7978 = vadd.f32 %v6924, %v7977
  %v7979 = vpop.f32.mrb[0].mxu0
  %v7980 = vadd.f32 %v6928, %v7979
  %7981 = vdwg.mxu0
  %7982 = vmatprep.subr.mxu0 0.0
  %7983 = vmatpush1.msra.mxu0 %v6706
  %7984 = vmatprep.subr.mxu0 0.0
  %7985 = vmatpush1.msra.mxu0 %v6709
  %7986 = vmatprep.subr.mxu0 0.0
  %7987 = vmatpush1.msra.mxu0 %v6712
  %7988 = vmatprep.subr.mxu0 0.0
  %7989 = vmatpush1.msra.mxu0 %v6715
  %7990 = vmatprep.subr.mxu0 0.0
  %7991 = vmatpush1.msra.mxu0 %v6718
  %7992 = vmatprep.subr.mxu0 0.0
  %7993 = vmatpush1.msra.mxu0 %v6721
  %7994 = vmatprep.subr.mxu0 0.0
  %7995 = vmatpush1.msra.mxu0 %v6724
  %7996 = vmatprep.subr.mxu0 0.0
  %7997 = vmatpush1.msra.mxu0 %v6727
  %7998 = vmatprep.subr.mxu0 0.0
  %7999 = vmatpush1.msra.mxu0 %v6730
  %8000 = vmatprep.subr.mxu0 0.0
  %8001 = vmatpush1.msra.mxu0 %v6733
  %8002 = vmatprep.subr.mxu0 0.0
  %8003 = vmatpush1.msra.mxu0 %v6736
  %8004 = vmatprep.subr.mxu0 0.0
  %8005 = vmatpush1.msra.mxu0 %v6739
  %8006 = vmatprep.subr.mxu0 0.0
  %8007 = vmatpush1.msra.mxu0 %v6742
  %8008 = vmatprep.subr.mxu0 0.0
  %8009 = vmatpush1.msra.mxu0 %v6745
  %8010 = vmatprep.subr.mxu0 0.0
  %8011 = vmatpush1.msra.mxu0 %v6748
  %8012 = vmatprep.subr.mxu0 0.0
  %8013 = vmatpush1.msra.mxu0 %v6751
  %8014 = vmatprep.subr.mxu0 0.0
  %8015 = vmatpush1.msra.mxu0 0.0
  %8016 = vmatprep.subr.mxu0 0.0
  %8017 = vmatpush1.msra.mxu0 0.0
  %8018 = vmatprep.subr.mxu0 0.0
  %8019 = vmatpush1.msra.mxu0 0.0
  %8020 = vmatprep.subr.mxu0 0.0
  %8021 = vmatpush1.msra.mxu0 0.0
  %8022 = vmatprep.subr.mxu0 0.0
  %8023 = vmatpush1.msra.mxu0 0.0
  %8024 = vmatprep.subr.mxu0 0.0
  %8025 = vmatpush1.msra.mxu0 0.0
  %8026 = vmatprep.subr.mxu0 0.0
  %8027 = vmatpush1.msra.mxu0 0.0
  %8028 = vmatprep.subr.mxu0 0.0
  %8029 = vmatpush1.msra.mxu0 0.0
  %8030 = vmatprep.subr.mxu0 0.0
  %8031 = vmatpush1.msra.mxu0 0.0
  %8032 = vmatprep.subr.mxu0 0.0
  %8033 = vmatpush1.msra.mxu0 0.0
  %8034 = vmatprep.subr.mxu0 0.0
  %8035 = vmatpush1.msra.mxu0 0.0
  %8036 = vmatprep.subr.mxu0 0.0
  %8037 = vmatpush1.msra.mxu0 0.0
  %8038 = vmatprep.subr.mxu0 0.0
  %8039 = vmatpush1.msra.mxu0 0.0
  %8040 = vmatprep.subr.mxu0 0.0
  %8041 = vmatpush1.msra.mxu0 0.0
  %8042 = vmatprep.subr.mxu0 0.0
  %8043 = vmatpush1.msra.mxu0 0.0
  %8044 = vmatprep.subr.mxu0 0.0
  %8045 = vmatpush1.msra.mxu0 0.0
  %8046 = vmatprep.mubr.f32.mxu0 0.0
  %8047 = vmatmul.mubr.f32.gmra.mrb[0].mxu0 %v7764
  %v8048 = vpop.f32.mrb[0].mxu0
  %v8049 = vadd.f32 %v6932, %v8048
  %v8050 = vpop.f32.mrb[0].mxu0
  %8051 = vdwg.mxu0
  %v8052 = vadd.f32 %v7837, %v7978
  %v8053 = vxor.u32 %v8052, 2147483648
  %v8054 = vmul.f32 %v8053, 1.442695
  %v8055 = vpow.pop %v8054
  %v8056 = vadd.f32 %v8055, 1.0
  %v8057 = vrcp.pop %v8056
  %v8058 = vmul.f32 1.0, %v8057
  %v8059 = vadd.f32 %v7839, %v7980
  %v8060 = vxor.u32 %v8059, 2147483648
  %v8061 = vmul.f32 %v8060, 1.442695
  %v8062 = vpow.pop %v8061
  %v8063 = vadd.f32 %v8062, 1.0
  %v8064 = vrcp.pop %v8063
  %v8065 = vmul.f32 1.0, %v8064
  %v8066 = vmul.f32 %v8058, %v8049
  %v8067 = vadd.f32 %v7908, %v8066
  %v8068 = vtanh.pop %v8067
  %v8069 = vsub.f32 1.0, %v8065
  %v8070 = vmul.f32 %v8069, %v8068
  %v8071 = vmul.f32 %v8065, %v7764
  %v8072 = vadd.f32 %v8070, %v8071
  %vm8073 = vcmp.gt.s32.totalorder %v6754, 3
  %v8074 = vsel %vm8073, 1, 0
  %v8075 = vcvt.s32.f32 %v8074
  %8077 = vset.pattern.permute.xlu0 0
  %8078 = vperm.xlu0 %8077, %v8075
  %v8079 = vpop.permute.xlu0 %8078
  %v8081 = vmul.f32 %v8079, %v8072
  %v8082 = vsub.f32 1.0, %v8075
  %8084 = vset.pattern.permute.xlu0 0
  %8085 = vperm.xlu0 %8084, %v8082
  %v8086 = vpop.permute.xlu0 %8085
  %v8088 = vmul.f32 %v8086, %v7764
  %v8089 = vadd.f32 %v8081, %v8088
  %8090 = vset.pattern.permute.xlu0 4
  %8091 = vperm.xlu0 %8090, %v6755
  %v8092 = vpop.permute.xlu0 %8091
  %v8094 = vmul.f32 %v6652, %v8092
  %8095 = vmatprep.subr.mxu0 %v6657
  %8096 = vmatpush1.msra.mxu0 %v6656
  %8097 = vmatprep.subr.mxu0 %v6660
  %8098 = vmatpush1.msra.mxu0 %v6659
  %8099 = vmatprep.subr.mxu0 %v6663
  %8100 = vmatpush1.msra.mxu0 %v6662
  %8101 = vmatprep.subr.mxu0 %v6666
  %8102 = vmatpush1.msra.mxu0 %v6665
  %8103 = vmatprep.subr.mxu0 %v6669
  %8104 = vmatpush1.msra.mxu0 %v6668
  %8105 = vmatprep.subr.mxu0 %v6672
  %8106 = vmatpush1.msra.mxu0 %v6671
  %8107 = vmatprep.subr.mxu0 %v6675
  %8108 = vmatpush1.msra.mxu0 %v6674
  %8109 = vmatprep.subr.mxu0 %v6678
  %8110 = vmatpush1.msra.mxu0 %v6677
  %8111 = vmatprep.subr.mxu0 %v6681
  %8112 = vmatpush1.msra.mxu0 %v6680
  %8113 = vmatprep.subr.mxu0 %v6684
  %8114 = vmatpush1.msra.mxu0 %v6683
  %8115 = vmatprep.subr.mxu0 %v6687
  %8116 = vmatpush1.msra.mxu0 %v6686
  %8117 = vmatprep.subr.mxu0 %v6690
  %8118 = vmatpush1.msra.mxu0 %v6689
  %8119 = vmatprep.subr.mxu0 %v6693
  %8120 = vmatpush1.msra.mxu0 %v6692
  %8121 = vmatprep.subr.mxu0 %v6696
  %8122 = vmatpush1.msra.mxu0 %v6695
  %8123 = vmatprep.subr.mxu0 %v6699
  %8124 = vmatpush1.msra.mxu0 %v6698
  %8125 = vmatprep.subr.mxu0 %v6702
  %8126 = vmatpush1.msra.mxu0 %v6701
  %8127 = vmatprep.subr.mxu0 0.0
  %8128 = vmatpush1.msra.mxu0 0.0
  %8129 = vmatprep.subr.mxu0 0.0
  %8130 = vmatpush1.msra.mxu0 0.0
  %8131 = vmatprep.subr.mxu0 0.0
  %8132 = vmatpush1.msra.mxu0 0.0
  %8133 = vmatprep.subr.mxu0 0.0
  %8134 = vmatpush1.msra.mxu0 0.0
  %8135 = vmatprep.subr.mxu0 0.0
  %8136 = vmatpush1.msra.mxu0 0.0
  %8137 = vmatprep.subr.mxu0 0.0
  %8138 = vmatpush1.msra.mxu0 0.0
  %8139 = vmatprep.subr.mxu0 0.0
  %8140 = vmatpush1.msra.mxu0 0.0
  %8141 = vmatprep.subr.mxu0 0.0
  %8142 = vmatpush1.msra.mxu0 0.0
  %8143 = vmatprep.subr.mxu0 0.0
  %8144 = vmatpush1.msra.mxu0 0.0
  %8145 = vmatprep.subr.mxu0 0.0
  %8146 = vmatpush1.msra.mxu0 0.0
  %8147 = vmatprep.subr.mxu0 0.0
  %8148 = vmatpush1.msra.mxu0 0.0
  %8149 = vmatprep.subr.mxu0 0.0
  %8150 = vmatpush1.msra.mxu0 0.0
  %8151 = vmatprep.subr.mxu0 0.0
  %8152 = vmatpush1.msra.mxu0 0.0
  %8153 = vmatprep.subr.mxu0 0.0
  %8154 = vmatpush1.msra.mxu0 0.0
  %8155 = vmatprep.subr.mxu0 0.0
  %8156 = vmatpush1.msra.mxu0 0.0
  %8157 = vmatprep.subr.mxu0 0.0
  %8158 = vmatpush1.msra.mxu0 0.0
  %8159 = vmatprep.mubr.f32.mxu0 0.0
  %8160 = vmatmul.mubr.f32.gmra.mrb[0].mxu0 %v8094
  %v8161 = vpop.f32.mrb[0].mxu0
  %v8162 = vadd.f32 %v6767, %v8161
  %v8163 = vpop.f32.mrb[0].mxu0
  %v8164 = vadd.f32 %v6771, %v8163
  %8165 = vdwg.mxu0
  %8166 = vmatprep.subr.mxu0 0.0
  %8167 = vmatpush1.msra.mxu0 %v6658
  %8168 = vmatprep.subr.mxu0 0.0
  %8169 = vmatpush1.msra.mxu0 %v6661
  %8170 = vmatprep.subr.mxu0 0.0
  %8171 = vmatpush1.msra.mxu0 %v6664
  %8172 = vmatprep.subr.mxu0 0.0
  %8173 = vmatpush1.msra.mxu0 %v6667
  %8174 = vmatprep.subr.mxu0 0.0
  %8175 = vmatpush1.msra.mxu0 %v6670
  %8176 = vmatprep.subr.mxu0 0.0
  %8177 = vmatpush1.msra.mxu0 %v6673
  %8178 = vmatprep.subr.mxu0 0.0
  %8179 = vmatpush1.msra.mxu0 %v6676
  %8180 = vmatprep.subr.mxu0 0.0
  %8181 = vmatpush1.msra.mxu0 %v6679
  %8182 = vmatprep.subr.mxu0 0.0
  %8183 = vmatpush1.msra.mxu0 %v6682
  %8184 = vmatprep.subr.mxu0 0.0
  %8185 = vmatpush1.msra.mxu0 %v6685
  %8186 = vmatprep.subr.mxu0 0.0
  %8187 = vmatpush1.msra.mxu0 %v6688
  %8188 = vmatprep.subr.mxu0 0.0
  %8189 = vmatpush1.msra.mxu0 %v6691
  %8190 = vmatprep.subr.mxu0 0.0
  %8191 = vmatpush1.msra.mxu0 %v6694
  %8192 = vmatprep.subr.mxu0 0.0
  %8193 = vmatpush1.msra.mxu0 %v6697
  %8194 = vmatprep.subr.mxu0 0.0
  %8195 = vmatpush1.msra.mxu0 %v6700
  %8196 = vmatprep.subr.mxu0 0.0
  %8197 = vmatpush1.msra.mxu0 %v6703
  %8198 = vmatprep.subr.mxu0 0.0
  %8199 = vmatpush1.msra.mxu0 0.0
  %8200 = vmatprep.subr.mxu0 0.0
  %8201 = vmatpush1.msra.mxu0 0.0
  %8202 = vmatprep.subr.mxu0 0.0
  %8203 = vmatpush1.msra.mxu0 0.0
  %8204 = vmatprep.subr.mxu0 0.0
  %8205 = vmatpush1.msra.mxu0 0.0
  %8206 = vmatprep.subr.mxu0 0.0
  %8207 = vmatpush1.msra.mxu0 0.0
  %8208 = vmatprep.subr.mxu0 0.0
  %8209 = vmatpush1.msra.mxu0 0.0
  %8210 = vmatprep.subr.mxu0 0.0
  %8211 = vmatpush1.msra.mxu0 0.0
  %8212 = vmatprep.subr.mxu0 0.0
  %8213 = vmatpush1.msra.mxu0 0.0
  %8214 = vmatprep.subr.mxu0 0.0
  %8215 = vmatpush1.msra.mxu0 0.0
  %8216 = vmatprep.subr.mxu0 0.0
  %8217 = vmatpush1.msra.mxu0 0.0
  %8218 = vmatprep.subr.mxu0 0.0
  %8219 = vmatpush1.msra.mxu0 0.0
  %8220 = vmatprep.subr.mxu0 0.0
  %8221 = vmatpush1.msra.mxu0 0.0
  %8222 = vmatprep.subr.mxu0 0.0
  %8223 = vmatpush1.msra.mxu0 0.0
  %8224 = vmatprep.subr.mxu0 0.0
  %8225 = vmatpush1.msra.mxu0 0.0
  %8226 = vmatprep.subr.mxu0 0.0
  %8227 = vmatpush1.msra.mxu0 0.0
  %8228 = vmatprep.subr.mxu0 0.0
  %8229 = vmatpush1.msra.mxu0 0.0
  %8230 = vmatprep.mubr.f32.mxu0 0.0
  %8231 = vmatmul.mubr.f32.gmra.mrb[0].mxu0 %v8094
  %v8232 = vpop.f32.mrb[0].mxu0
  %v8233 = vadd.f32 %v6775, %v8232
  %v8234 = vpop.f32.mrb[0].mxu0
  %8235 = vdwg.mxu0
  %8236 = vmatprep.subr.mxu0 %v6705
  %8237 = vmatpush1.msra.mxu0 %v6704
  %8238 = vmatprep.subr.mxu0 %v6708
  %8239 = vmatpush1.msra.mxu0 %v6707
  %8240 = vmatprep.subr.mxu0 %v6711
  %8241 = vmatpush1.msra.mxu0 %v6710
  %8242 = vmatprep.subr.mxu0 %v6714
  %8243 = vmatpush1.msra.mxu0 %v6713
  %8244 = vmatprep.subr.mxu0 %v6717
  %8245 = vmatpush1.msra.mxu0 %v6716
  %8246 = vmatprep.subr.mxu0 %v6720
  %8247 = vmatpush1.msra.mxu0 %v6719
  %8248 = vmatprep.subr.mxu0 %v6723
  %8249 = vmatpush1.msra.mxu0 %v6722
  %8250 = vmatprep.subr.mxu0 %v6726
  %8251 = vmatpush1.msra.mxu0 %v6725
  %8252 = vmatprep.subr.mxu0 %v6729
  %8253 = vmatpush1.msra.mxu0 %v6728
  %8254 = vmatprep.subr.mxu0 %v6732
  %8255 = vmatpush1.msra.mxu0 %v6731
  %8256 = vmatprep.subr.mxu0 %v6735
  %8257 = vmatpush1.msra.mxu0 %v6734
  %8258 = vmatprep.subr.mxu0 %v6738
  %8259 = vmatpush1.msra.mxu0 %v6737
  %8260 = vmatprep.subr.mxu0 %v6741
  %8261 = vmatpush1.msra.mxu0 %v6740
  %8262 = vmatprep.subr.mxu0 %v6744
  %8263 = vmatpush1.msra.mxu0 %v6743
  %8264 = vmatprep.subr.mxu0 %v6747
  %8265 = vmatpush1.msra.mxu0 %v6746
  %8266 = vmatprep.subr.mxu0 %v6750
  %8267 = vmatpush1.msra.mxu0 %v6749
  %8268 = vmatprep.subr.mxu0 0.0
  %8269 = vmatpush1.msra.mxu0 0.0
  %8270 = vmatprep.subr.mxu0 0.0
  %8271 = vmatpush1.msra.mxu0 0.0
  %8272 = vmatprep.subr.mxu0 0.0
  %8273 = vmatpush1.msra.mxu0 0.0
  %8274 = vmatprep.subr.mxu0 0.0
  %8275 = vmatpush1.msra.mxu0 0.0
  %8276 = vmatprep.subr.mxu0 0.0
  %8277 = vmatpush1.msra.mxu0 0.0
  %8278 = vmatprep.subr.mxu0 0.0
  %8279 = vmatpush1.msra.mxu0 0.0
  %8280 = vmatprep.subr.mxu0 0.0
  %8281 = vmatpush1.msra.mxu0 0.0
  %8282 = vmatprep.subr.mxu0 0.0
  %8283 = vmatpush1.msra.mxu0 0.0
  %8284 = vmatprep.subr.mxu0 0.0
  %8285 = vmatpush1.msra.mxu0 0.0
  %8286 = vmatprep.subr.mxu0 0.0
  %8287 = vmatpush1.msra.mxu0 0.0
  %8288 = vmatprep.subr.mxu0 0.0
  %8289 = vmatpush1.msra.mxu0 0.0
  %8290 = vmatprep.subr.mxu0 0.0
  %8291 = vmatpush1.msra.mxu0 0.0
  %8292 = vmatprep.subr.mxu0 0.0
  %8293 = vmatpush1.msra.mxu0 0.0
  %8294 = vmatprep.subr.mxu0 0.0
  %8295 = vmatpush1.msra.mxu0 0.0
  %8296 = vmatprep.subr.mxu0 0.0
  %8297 = vmatpush1.msra.mxu0 0.0
  %8298 = vmatprep.subr.mxu0 0.0
  %8299 = vmatpush1.msra.mxu0 0.0
  %8300 = vmatprep.mubr.f32.mxu0 0.0
  %8301 = vmatmul.mubr.f32.gmra.mrb[0].mxu0 %v8089
  %v8302 = vpop.f32.mrb[0].mxu0
  %v8303 = vadd.f32 %v6924, %v8302
  %v8304 = vpop.f32.mrb[0].mxu0
  %v8305 = vadd.f32 %v6928, %v8304
  %8306 = vdwg.mxu0
  %8307 = vmatprep.subr.mxu0 0.0
  %8308 = vmatpush1.msra.mxu0 %v6706
  %8309 = vmatprep.subr.mxu0 0.0
  %8310 = vmatpush1.msra.mxu0 %v6709
  %8311 = vmatprep.subr.mxu0 0.0
  %8312 = vmatpush1.msra.mxu0 %v6712
  %8313 = vmatprep.subr.mxu0 0.0
  %8314 = vmatpush1.msra.mxu0 %v6715
  %8315 = vmatprep.subr.mxu0 0.0
  %8316 = vmatpush1.msra.mxu0 %v6718
  %8317 = vmatprep.subr.mxu0 0.0
  %8318 = vmatpush1.msra.mxu0 %v6721
  %8319 = vmatprep.subr.mxu0 0.0
  %8320 = vmatpush1.msra.mxu0 %v6724
  %8321 = vmatprep.subr.mxu0 0.0
  %8322 = vmatpush1.msra.mxu0 %v6727
  %8323 = vmatprep.subr.mxu0 0.0
  %8324 = vmatpush1.msra.mxu0 %v6730
  %8325 = vmatprep.subr.mxu0 0.0
  %8326 = vmatpush1.msra.mxu0 %v6733
  %8327 = vmatprep.subr.mxu0 0.0
  %8328 = vmatpush1.msra.mxu0 %v6736
  %8329 = vmatprep.subr.mxu0 0.0
  %8330 = vmatpush1.msra.mxu0 %v6739
  %8331 = vmatprep.subr.mxu0 0.0
  %8332 = vmatpush1.msra.mxu0 %v6742
  %8333 = vmatprep.subr.mxu0 0.0
  %8334 = vmatpush1.msra.mxu0 %v6745
  %8335 = vmatprep.subr.mxu0 0.0
  %8336 = vmatpush1.msra.mxu0 %v6748
  %8337 = vmatprep.subr.mxu0 0.0
  %8338 = vmatpush1.msra.mxu0 %v6751
  %8339 = vmatprep.subr.mxu0 0.0
  %8340 = vmatpush1.msra.mxu0 0.0
  %8341 = vmatprep.subr.mxu0 0.0
  %8342 = vmatpush1.msra.mxu0 0.0
  %8343 = vmatprep.subr.mxu0 0.0
  %8344 = vmatpush1.msra.mxu0 0.0
  %8345 = vmatprep.subr.mxu0 0.0
  %8346 = vmatpush1.msra.mxu0 0.0
  %8347 = vmatprep.subr.mxu0 0.0
  %8348 = vmatpush1.msra.mxu0 0.0
  %8349 = vmatprep.subr.mxu0 0.0
  %8350 = vmatpush1.msra.mxu0 0.0
  %8351 = vmatprep.subr.mxu0 0.0
  %8352 = vmatpush1.msra.mxu0 0.0
  %8353 = vmatprep.subr.mxu0 0.0
  %8354 = vmatpush1.msra.mxu0 0.0
  %8355 = vmatprep.subr.mxu0 0.0
  %8356 = vmatpush1.msra.mxu0 0.0
  %8357 = vmatprep.subr.mxu0 0.0
  %8358 = vmatpush1.msra.mxu0 0.0
  %8359 = vmatprep.subr.mxu0 0.0
  %8360 = vmatpush1.msra.mxu0 0.0
  %8361 = vmatprep.subr.mxu0 0.0
  %8362 = vmatpush1.msra.mxu0 0.0
  %8363 = vmatprep.subr.mxu0 0.0
  %8364 = vmatpush1.msra.mxu0 0.0
  %8365 = vmatprep.subr.mxu0 0.0
  %8366 = vmatpush1.msra.mxu0 0.0
  %8367 = vmatprep.subr.mxu0 0.0
  %8368 = vmatpush1.msra.mxu0 0.0
  %8369 = vmatprep.subr.mxu0 0.0
  %8370 = vmatpush1.msra.mxu0 0.0
  %8371 = vmatprep.mubr.f32.mxu0 0.0
  %8372 = vmatmul.mubr.f32.gmra.mrb[0].mxu0 %v8089
  %v8373 = vpop.f32.mrb[0].mxu0
  %v8374 = vadd.f32 %v6932, %v8373
  %v8375 = vpop.f32.mrb[0].mxu0
  %8376 = vdwg.mxu0
  %v8377 = vadd.f32 %v8162, %v8303
  %v8378 = vxor.u32 %v8377, 2147483648
  %v8379 = vmul.f32 %v8378, 1.442695
  %v8380 = vpow.pop %v8379
  %v8381 = vadd.f32 %v8380, 1.0
  %v8382 = vrcp.pop %v8381
  %v8383 = vmul.f32 1.0, %v8382
  %v8384 = vadd.f32 %v8164, %v8305
  %v8385 = vxor.u32 %v8384, 2147483648
  %v8386 = vmul.f32 %v8385, 1.442695
  %v8387 = vpow.pop %v8386
  %v8388 = vadd.f32 %v8387, 1.0
  %v8389 = vrcp.pop %v8388
  %v8390 = vmul.f32 1.0, %v8389
  %v8391 = vmul.f32 %v8383, %v8374
  %v8392 = vadd.f32 %v8233, %v8391
  %v8393 = vtanh.pop %v8392
  %v8394 = vsub.f32 1.0, %v8390
  %v8395 = vmul.f32 %v8394, %v8393
  %v8396 = vmul.f32 %v8390, %v8089
  %v8397 = vadd.f32 %v8395, %v8396
  %vm8398 = vcmp.gt.s32.totalorder %v6754, 4
  %v8399 = vsel %vm8398, 1, 0
  %v8400 = vcvt.s32.f32 %v8399
  %8402 = vset.pattern.permute.xlu0 0
  %8403 = vperm.xlu0 %8402, %v8400
  %v8404 = vpop.permute.xlu0 %8403
  %v8406 = vmul.f32 %v8404, %v8397
  %v8407 = vsub.f32 1.0, %v8400
  %8409 = vset.pattern.permute.xlu0 0
  %8410 = vperm.xlu0 %8409, %v8407
  %v8411 = vpop.permute.xlu0 %8410
  %v8413 = vmul.f32 %v8411, %v8089
  %v8414 = vadd.f32 %v8406, %v8413
  %8415 = vset.pattern.permute.xlu0 5
  %8416 = vperm.xlu0 %8415, %v6755
  %v8417 = vpop.permute.xlu0 %8416
  %v8419 = vmul.f32 %v6653, %v8417
  %8420 = vmatprep.subr.mxu0 %v6657
  %8421 = vmatpush1.msra.mxu0 %v6656
  %8422 = vmatprep.subr.mxu0 %v6660
  %8423 = vmatpush1.msra.mxu0 %v6659
  %8424 = vmatprep.subr.mxu0 %v6663
  %8425 = vmatpush1.msra.mxu0 %v6662
  %8426 = vmatprep.subr.mxu0 %v6666
  %8427 = vmatpush1.msra.mxu0 %v6665
  %8428 = vmatprep.subr.mxu0 %v6669
  %8429 = vmatpush1.msra.mxu0 %v6668
  %8430 = vmatprep.subr.mxu0 %v6672
  %8431 = vmatpush1.msra.mxu0 %v6671
  %8432 = vmatprep.subr.mxu0 %v6675
  %8433 = vmatpush1.msra.mxu0 %v6674
  %8434 = vmatprep.subr.mxu0 %v6678
  %8435 = vmatpush1.msra.mxu0 %v6677
  %8436 = vmatprep.subr.mxu0 %v6681
  %8437 = vmatpush1.msra.mxu0 %v6680
  %8438 = vmatprep.subr.mxu0 %v6684
  %8439 = vmatpush1.msra.mxu0 %v6683
  %8440 = vmatprep.subr.mxu0 %v6687
  %8441 = vmatpush1.msra.mxu0 %v6686
  %8442 = vmatprep.subr.mxu0 %v6690
  %8443 = vmatpush1.msra.mxu0 %v6689
  %8444 = vmatprep.subr.mxu0 %v6693
  %8445 = vmatpush1.msra.mxu0 %v6692
  %8446 = vmatprep.subr.mxu0 %v6696
  %8447 = vmatpush1.msra.mxu0 %v6695
  %8448 = vmatprep.subr.mxu0 %v6699
  %8449 = vmatpush1.msra.mxu0 %v6698
  %8450 = vmatprep.subr.mxu0 %v6702
  %8451 = vmatpush1.msra.mxu0 %v6701
  %8452 = vmatprep.subr.mxu0 0.0
  %8453 = vmatpush1.msra.mxu0 0.0
  %8454 = vmatprep.subr.mxu0 0.0
  %8455 = vmatpush1.msra.mxu0 0.0
  %8456 = vmatprep.subr.mxu0 0.0
  %8457 = vmatpush1.msra.mxu0 0.0
  %8458 = vmatprep.subr.mxu0 0.0
  %8459 = vmatpush1.msra.mxu0 0.0
  %8460 = vmatprep.subr.mxu0 0.0
  %8461 = vmatpush1.msra.mxu0 0.0
  %8462 = vmatprep.subr.mxu0 0.0
  %8463 = vmatpush1.msra.mxu0 0.0
  %8464 = vmatprep.subr.mxu0 0.0
  %8465 = vmatpush1.msra.mxu0 0.0
  %8466 = vmatprep.subr.mxu0 0.0
  %8467 = vmatpush1.msra.mxu0 0.0
  %8468 = vmatprep.subr.mxu0 0.0
  %8469 = vmatpush1.msra.mxu0 0.0
  %8470 = vmatprep.subr.mxu0 0.0
  %8471 = vmatpush1.msra.mxu0 0.0
  %8472 = vmatprep.subr.mxu0 0.0
  %8473 = vmatpush1.msra.mxu0 0.0
  %8474 = vmatprep.subr.mxu0 0.0
  %8475 = vmatpush1.msra.mxu0 0.0
  %8476 = vmatprep.subr.mxu0 0.0
  %8477 = vmatpush1.msra.mxu0 0.0
  %8478 = vmatprep.subr.mxu0 0.0
  %8479 = vmatpush1.msra.mxu0 0.0
  %8480 = vmatprep.subr.mxu0 0.0
  %8481 = vmatpush1.msra.mxu0 0.0
  %8482 = vmatprep.subr.mxu0 0.0
  %8483 = vmatpush1.msra.mxu0 0.0
  %8484 = vmatprep.mubr.f32.mxu0 0.0
  %8485 = vmatmul.mubr.f32.gmra.mrb[0].mxu0 %v8419
  %v8486 = vpop.f32.mrb[0].mxu0
  %v8487 = vadd.f32 %v6767, %v8486
  %v8488 = vpop.f32.mrb[0].mxu0
  %v8489 = vadd.f32 %v6771, %v8488
  %8490 = vdwg.mxu0
  %8491 = vmatprep.subr.mxu0 0.0
  %8492 = vmatpush1.msra.mxu0 %v6658
  %8493 = vmatprep.subr.mxu0 0.0
  %8494 = vmatpush1.msra.mxu0 %v6661
  %8495 = vmatprep.subr.mxu0 0.0
  %8496 = vmatpush1.msra.mxu0 %v6664
  %8497 = vmatprep.subr.mxu0 0.0
  %8498 = vmatpush1.msra.mxu0 %v6667
  %8499 = vmatprep.subr.mxu0 0.0
  %8500 = vmatpush1.msra.mxu0 %v6670
  %8501 = vmatprep.subr.mxu0 0.0
  %8502 = vmatpush1.msra.mxu0 %v6673
  %8503 = vmatprep.subr.mxu0 0.0
  %8504 = vmatpush1.msra.mxu0 %v6676
  %8505 = vmatprep.subr.mxu0 0.0
  %8506 = vmatpush1.msra.mxu0 %v6679
  %8507 = vmatprep.subr.mxu0 0.0
  %8508 = vmatpush1.msra.mxu0 %v6682
  %8509 = vmatprep.subr.mxu0 0.0
  %8510 = vmatpush1.msra.mxu0 %v6685
  %8511 = vmatprep.subr.mxu0 0.0
  %8512 = vmatpush1.msra.mxu0 %v6688
  %8513 = vmatprep.subr.mxu0 0.0
  %8514 = vmatpush1.msra.mxu0 %v6691
  %8515 = vmatprep.subr.mxu0 0.0
  %8516 = vmatpush1.msra.mxu0 %v6694
  %8517 = vmatprep.subr.mxu0 0.0
  %8518 = vmatpush1.msra.mxu0 %v6697
  %8519 = vmatprep.subr.mxu0 0.0
  %8520 = vmatpush1.msra.mxu0 %v6700
  %8521 = vmatprep.subr.mxu0 0.0
  %8522 = vmatpush1.msra.mxu0 %v6703
  %8523 = vmatprep.subr.mxu0 0.0
  %8524 = vmatpush1.msra.mxu0 0.0
  %8525 = vmatprep.subr.mxu0 0.0
  %8526 = vmatpush1.msra.mxu0 0.0
  %8527 = vmatprep.subr.mxu0 0.0
  %8528 = vmatpush1.msra.mxu0 0.0
  %8529 = vmatprep.subr.mxu0 0.0
  %8530 = vmatpush1.msra.mxu0 0.0
  %8531 = vmatprep.subr.mxu0 0.0
  %8532 = vmatpush1.msra.mxu0 0.0
  %8533 = vmatprep.subr.mxu0 0.0
  %8534 = vmatpush1.msra.mxu0 0.0
  %8535 = vmatprep.subr.mxu0 0.0
  %8536 = vmatpush1.msra.mxu0 0.0
  %8537 = vmatprep.subr.mxu0 0.0
  %8538 = vmatpush1.msra.mxu0 0.0
  %8539 = vmatprep.subr.mxu0 0.0
  %8540 = vmatpush1.msra.mxu0 0.0
  %8541 = vmatprep.subr.mxu0 0.0
  %8542 = vmatpush1.msra.mxu0 0.0
  %8543 = vmatprep.subr.mxu0 0.0
  %8544 = vmatpush1.msra.mxu0 0.0
  %8545 = vmatprep.subr.mxu0 0.0
  %8546 = vmatpush1.msra.mxu0 0.0
  %8547 = vmatprep.subr.mxu0 0.0
  %8548 = vmatpush1.msra.mxu0 0.0
  %8549 = vmatprep.subr.mxu0 0.0
  %8550 = vmatpush1.msra.mxu0 0.0
  %8551 = vmatprep.subr.mxu0 0.0
  %8552 = vmatpush1.msra.mxu0 0.0
  %8553 = vmatprep.subr.mxu0 0.0
  %8554 = vmatpush1.msra.mxu0 0.0
  %8555 = vmatprep.mubr.f32.mxu0 0.0
  %8556 = vmatmul.mubr.f32.gmra.mrb[0].mxu0 %v8419
  %v8557 = vpop.f32.mrb[0].mxu0
  %v8558 = vadd.f32 %v6775, %v8557
  %v8559 = vpop.f32.mrb[0].mxu0
  %8560 = vdwg.mxu0
  %8561 = vmatprep.subr.mxu0 %v6705
  %8562 = vmatpush1.msra.mxu0 %v6704
  %8563 = vmatprep.subr.mxu0 %v6708
  %8564 = vmatpush1.msra.mxu0 %v6707
  %8565 = vmatprep.subr.mxu0 %v6711
  %8566 = vmatpush1.msra.mxu0 %v6710
  %8567 = vmatprep.subr.mxu0 %v6714
  %8568 = vmatpush1.msra.mxu0 %v6713
  %8569 = vmatprep.subr.mxu0 %v6717
  %8570 = vmatpush1.msra.mxu0 %v6716
  %8571 = vmatprep.subr.mxu0 %v6720
  %8572 = vmatpush1.msra.mxu0 %v6719
  %8573 = vmatprep.subr.mxu0 %v6723
  %8574 = vmatpush1.msra.mxu0 %v6722
  %8575 = vmatprep.subr.mxu0 %v6726
  %8576 = vmatpush1.msra.mxu0 %v6725
  %8577 = vmatprep.subr.mxu0 %v6729
  %8578 = vmatpush1.msra.mxu0 %v6728
  %8579 = vmatprep.subr.mxu0 %v6732
  %8580 = vmatpush1.msra.mxu0 %v6731
  %8581 = vmatprep.subr.mxu0 %v6735
  %8582 = vmatpush1.msra.mxu0 %v6734
  %8583 = vmatprep.subr.mxu0 %v6738
  %8584 = vmatpush1.msra.mxu0 %v6737
  %8585 = vmatprep.subr.mxu0 %v6741
  %8586 = vmatpush1.msra.mxu0 %v6740
  %8587 = vmatprep.subr.mxu0 %v6744
  %8588 = vmatpush1.msra.mxu0 %v6743
  %8589 = vmatprep.subr.mxu0 %v6747
  %8590 = vmatpush1.msra.mxu0 %v6746
  %8591 = vmatprep.subr.mxu0 %v6750
  %8592 = vmatpush1.msra.mxu0 %v6749
  %8593 = vmatprep.subr.mxu0 0.0
  %8594 = vmatpush1.msra.mxu0 0.0
  %8595 = vmatprep.subr.mxu0 0.0
  %8596 = vmatpush1.msra.mxu0 0.0
  %8597 = vmatprep.subr.mxu0 0.0
  %8598 = vmatpush1.msra.mxu0 0.0
  %8599 = vmatprep.subr.mxu0 0.0
  %8600 = vmatpush1.msra.mxu0 0.0
  %8601 = vmatprep.subr.mxu0 0.0
  %8602 = vmatpush1.msra.mxu0 0.0
  %8603 = vmatprep.subr.mxu0 0.0
  %8604 = vmatpush1.msra.mxu0 0.0
  %8605 = vmatprep.subr.mxu0 0.0
  %8606 = vmatpush1.msra.mxu0 0.0
  %8607 = vmatprep.subr.mxu0 0.0
  %8608 = vmatpush1.msra.mxu0 0.0
  %8609 = vmatprep.subr.mxu0 0.0
  %8610 = vmatpush1.msra.mxu0 0.0
  %8611 = vmatprep.subr.mxu0 0.0
  %8612 = vmatpush1.msra.mxu0 0.0
  %8613 = vmatprep.subr.mxu0 0.0
  %8614 = vmatpush1.msra.mxu0 0.0
  %8615 = vmatprep.subr.mxu0 0.0
  %8616 = vmatpush1.msra.mxu0 0.0
  %8617 = vmatprep.subr.mxu0 0.0
  %8618 = vmatpush1.msra.mxu0 0.0
  %8619 = vmatprep.subr.mxu0 0.0
  %8620 = vmatpush1.msra.mxu0 0.0
  %8621 = vmatprep.subr.mxu0 0.0
  %8622 = vmatpush1.msra.mxu0 0.0
  %8623 = vmatprep.subr.mxu0 0.0
  %8624 = vmatpush1.msra.mxu0 0.0
  %8625 = vmatprep.mubr.f32.mxu0 0.0
  %8626 = vmatmul.mubr.f32.gmra.mrb[0].mxu0 %v8414
  %v8627 = vpop.f32.mrb[0].mxu0
  %v8628 = vadd.f32 %v6924, %v8627
  %v8629 = vpop.f32.mrb[0].mxu0
  %v8630 = vadd.f32 %v6928, %v8629
  %8631 = vdwg.mxu0
  %8632 = vmatprep.subr.mxu0 0.0
  %8633 = vmatpush1.msra.mxu0 %v6706
  %8634 = vmatprep.subr.mxu0 0.0
  %8635 = vmatpush1.msra.mxu0 %v6709
  %8636 = vmatprep.subr.mxu0 0.0
  %8637 = vmatpush1.msra.mxu0 %v6712
  %8638 = vmatprep.subr.mxu0 0.0
  %8639 = vmatpush1.msra.mxu0 %v6715
  %8640 = vmatprep.subr.mxu0 0.0
  %8641 = vmatpush1.msra.mxu0 %v6718
  %8642 = vmatprep.subr.mxu0 0.0
  %8643 = vmatpush1.msra.mxu0 %v6721
  %8644 = vmatprep.subr.mxu0 0.0
  %8645 = vmatpush1.msra.mxu0 %v6724
  %8646 = vmatprep.subr.mxu0 0.0
  %8647 = vmatpush1.msra.mxu0 %v6727
  %8648 = vmatprep.subr.mxu0 0.0
  %8649 = vmatpush1.msra.mxu0 %v6730
  %8650 = vmatprep.subr.mxu0 0.0
  %8651 = vmatpush1.msra.mxu0 %v6733
  %8652 = vmatprep.subr.mxu0 0.0
  %8653 = vmatpush1.msra.mxu0 %v6736
  %8654 = vmatprep.subr.mxu0 0.0
  %8655 = vmatpush1.msra.mxu0 %v6739
  %8656 = vmatprep.subr.mxu0 0.0
  %8657 = vmatpush1.msra.mxu0 %v6742
  %8658 = vmatprep.subr.mxu0 0.0
  %8659 = vmatpush1.msra.mxu0 %v6745
  %8660 = vmatprep.subr.mxu0 0.0
  %8661 = vmatpush1.msra.mxu0 %v6748
  %8662 = vmatprep.subr.mxu0 0.0
  %8663 = vmatpush1.msra.mxu0 %v6751
  %8664 = vmatprep.subr.mxu0 0.0
  %8665 = vmatpush1.msra.mxu0 0.0
  %8666 = vmatprep.subr.mxu0 0.0
  %8667 = vmatpush1.msra.mxu0 0.0
  %8668 = vmatprep.subr.mxu0 0.0
  %8669 = vmatpush1.msra.mxu0 0.0
  %8670 = vmatprep.subr.mxu0 0.0
  %8671 = vmatpush1.msra.mxu0 0.0
  %8672 = vmatprep.subr.mxu0 0.0
  %8673 = vmatpush1.msra.mxu0 0.0
  %8674 = vmatprep.subr.mxu0 0.0
  %8675 = vmatpush1.msra.mxu0 0.0
  %8676 = vmatprep.subr.mxu0 0.0
  %8677 = vmatpush1.msra.mxu0 0.0
  %8678 = vmatprep.subr.mxu0 0.0
  %8679 = vmatpush1.msra.mxu0 0.0
  %8680 = vmatprep.subr.mxu0 0.0
  %8681 = vmatpush1.msra.mxu0 0.0
  %8682 = vmatprep.subr.mxu0 0.0
  %8683 = vmatpush1.msra.mxu0 0.0
  %8684 = vmatprep.subr.mxu0 0.0
  %8685 = vmatpush1.msra.mxu0 0.0
  %8686 = vmatprep.subr.mxu0 0.0
  %8687 = vmatpush1.msra.mxu0 0.0
  %8688 = vmatprep.subr.mxu0 0.0
  %8689 = vmatpush1.msra.mxu0 0.0
  %8690 = vmatprep.subr.mxu0 0.0
  %8691 = vmatpush1.msra.mxu0 0.0
  %8692 = vmatprep.subr.mxu0 0.0
  %8693 = vmatpush1.msra.mxu0 0.0
  %8694 = vmatprep.subr.mxu0 0.0
  %8695 = vmatpush1.msra.mxu0 0.0
  %8696 = vmatprep.mubr.f32.mxu0 0.0
  %8697 = vmatmul.mubr.f32.gmra.mrb[0].mxu0 %v8414
  %v8698 = vpop.f32.mrb[0].mxu0
  %v8699 = vadd.f32 %v6932, %v8698
  %v8700 = vpop.f32.mrb[0].mxu0
  %8701 = vdwg.mxu0
  %v8702 = vadd.f32 %v8487, %v8628
  %v8703 = vxor.u32 %v8702, 2147483648
  %v8704 = vmul.f32 %v8703, 1.442695
  %v8705 = vpow.pop %v8704
  %v8706 = vadd.f32 %v8705, 1.0
  %v8707 = vrcp.pop %v8706
  %v8708 = vmul.f32 1.0, %v8707
  %v8709 = vadd.f32 %v8489, %v8630
  %v8710 = vxor.u32 %v8709, 2147483648
  %v8711 = vmul.f32 %v8710, 1.442695
  %v8712 = vpow.pop %v8711
  %v8713 = vadd.f32 %v8712, 1.0
  %v8714 = vrcp.pop %v8713
  %v8715 = vmul.f32 1.0, %v8714
  %v8716 = vmul.f32 %v8708, %v8699
  %v8717 = vadd.f32 %v8558, %v8716
  %v8718 = vtanh.pop %v8717
  %v8719 = vsub.f32 1.0, %v8715
  %v8720 = vmul.f32 %v8719, %v8718
  %v8721 = vmul.f32 %v8715, %v8414
  %v8722 = vadd.f32 %v8720, %v8721
  %vm8723 = vcmp.gt.s32.totalorder %v6754, 5
  %v8724 = vsel %vm8723, 1, 0
  %v8725 = vcvt.s32.f32 %v8724
  %8727 = vset.pattern.permute.xlu0 0
  %8728 = vperm.xlu0 %8727, %v8725
  %v8729 = vpop.permute.xlu0 %8728
  %v8731 = vmul.f32 %v8729, %v8722
  %v8732 = vsub.f32 1.0, %v8725
  %8734 = vset.pattern.permute.xlu0 0
  %8735 = vperm.xlu0 %8734, %v8732
  %v8736 = vpop.permute.xlu0 %8735
  %v8738 = vmul.f32 %v8736, %v8414
  %v8739 = vadd.f32 %v8731, %v8738
  %8740 = vset.pattern.permute.xlu0 6
  %8741 = vperm.xlu0 %8740, %v6755
  %v8742 = vpop.permute.xlu0 %8741
  %v8744 = vmul.f32 %v6654, %v8742
  %8745 = vmatprep.subr.mxu0 %v6657
  %8746 = vmatpush1.msra.mxu0 %v6656
  %8747 = vmatprep.subr.mxu0 %v6660
  %8748 = vmatpush1.msra.mxu0 %v6659
  %8749 = vmatprep.subr.mxu0 %v6663
  %8750 = vmatpush1.msra.mxu0 %v6662
  %8751 = vmatprep.subr.mxu0 %v6666
  %8752 = vmatpush1.msra.mxu0 %v6665
  %8753 = vmatprep.subr.mxu0 %v6669
  %8754 = vmatpush1.msra.mxu0 %v6668
  %8755 = vmatprep.subr.mxu0 %v6672
  %8756 = vmatpush1.msra.mxu0 %v6671
  %8757 = vmatprep.subr.mxu0 %v6675
  %8758 = vmatpush1.msra.mxu0 %v6674
  %8759 = vmatprep.subr.mxu0 %v6678
  %8760 = vmatpush1.msra.mxu0 %v6677
  %8761 = vmatprep.subr.mxu0 %v6681
  %8762 = vmatpush1.msra.mxu0 %v6680
  %8763 = vmatprep.subr.mxu0 %v6684
  %8764 = vmatpush1.msra.mxu0 %v6683
  %8765 = vmatprep.subr.mxu0 %v6687
  %8766 = vmatpush1.msra.mxu0 %v6686
  %8767 = vmatprep.subr.mxu0 %v6690
  %8768 = vmatpush1.msra.mxu0 %v6689
  %8769 = vmatprep.subr.mxu0 %v6693
  %8770 = vmatpush1.msra.mxu0 %v6692
  %8771 = vmatprep.subr.mxu0 %v6696
  %8772 = vmatpush1.msra.mxu0 %v6695
  %8773 = vmatprep.subr.mxu0 %v6699
  %8774 = vmatpush1.msra.mxu0 %v6698
  %8775 = vmatprep.subr.mxu0 %v6702
  %8776 = vmatpush1.msra.mxu0 %v6701
  %8777 = vmatprep.subr.mxu0 0.0
  %8778 = vmatpush1.msra.mxu0 0.0
  %8779 = vmatprep.subr.mxu0 0.0
  %8780 = vmatpush1.msra.mxu0 0.0
  %8781 = vmatprep.subr.mxu0 0.0
  %8782 = vmatpush1.msra.mxu0 0.0
  %8783 = vmatprep.subr.mxu0 0.0
  %8784 = vmatpush1.msra.mxu0 0.0
  %8785 = vmatprep.subr.mxu0 0.0
  %8786 = vmatpush1.msra.mxu0 0.0
  %8787 = vmatprep.subr.mxu0 0.0
  %8788 = vmatpush1.msra.mxu0 0.0
  %8789 = vmatprep.subr.mxu0 0.0
  %8790 = vmatpush1.msra.mxu0 0.0
  %8791 = vmatprep.subr.mxu0 0.0
  %8792 = vmatpush1.msra.mxu0 0.0
  %8793 = vmatprep.subr.mxu0 0.0
  %8794 = vmatpush1.msra.mxu0 0.0
  %8795 = vmatprep.subr.mxu0 0.0
  %8796 = vmatpush1.msra.mxu0 0.0
  %8797 = vmatprep.subr.mxu0 0.0
  %8798 = vmatpush1.msra.mxu0 0.0
  %8799 = vmatprep.subr.mxu0 0.0
  %8800 = vmatpush1.msra.mxu0 0.0
  %8801 = vmatprep.subr.mxu0 0.0
  %8802 = vmatpush1.msra.mxu0 0.0
  %8803 = vmatprep.subr.mxu0 0.0
  %8804 = vmatpush1.msra.mxu0 0.0
  %8805 = vmatprep.subr.mxu0 0.0
  %8806 = vmatpush1.msra.mxu0 0.0
  %8807 = vmatprep.subr.mxu0 0.0
  %8808 = vmatpush1.msra.mxu0 0.0
  %8809 = vmatprep.mubr.f32.mxu0 0.0
  %8810 = vmatmul.mubr.f32.gmra.mrb[0].mxu0 %v8744
  %v8811 = vpop.f32.mrb[0].mxu0
  %v8812 = vadd.f32 %v6767, %v8811
  %v8813 = vpop.f32.mrb[0].mxu0
  %v8814 = vadd.f32 %v6771, %v8813
  %8815 = vdwg.mxu0
  %8816 = vmatprep.subr.mxu0 0.0
  %8817 = vmatpush1.msra.mxu0 %v6658
  %8818 = vmatprep.subr.mxu0 0.0
  %8819 = vmatpush1.msra.mxu0 %v6661
  %8820 = vmatprep.subr.mxu0 0.0
  %8821 = vmatpush1.msra.mxu0 %v6664
  %8822 = vmatprep.subr.mxu0 0.0
  %8823 = vmatpush1.msra.mxu0 %v6667
  %8824 = vmatprep.subr.mxu0 0.0
  %8825 = vmatpush1.msra.mxu0 %v6670
  %8826 = vmatprep.subr.mxu0 0.0
  %8827 = vmatpush1.msra.mxu0 %v6673
  %8828 = vmatprep.subr.mxu0 0.0
  %8829 = vmatpush1.msra.mxu0 %v6676
  %8830 = vmatprep.subr.mxu0 0.0
  %8831 = vmatpush1.msra.mxu0 %v6679
  %8832 = vmatprep.subr.mxu0 0.0
  %8833 = vmatpush1.msra.mxu0 %v6682
  %8834 = vmatprep.subr.mxu0 0.0
  %8835 = vmatpush1.msra.mxu0 %v6685
  %8836 = vmatprep.subr.mxu0 0.0
  %8837 = vmatpush1.msra.mxu0 %v6688
  %8838 = vmatprep.subr.mxu0 0.0
  %8839 = vmatpush1.msra.mxu0 %v6691
  %8840 = vmatprep.subr.mxu0 0.0
  %8841 = vmatpush1.msra.mxu0 %v6694
  %8842 = vmatprep.subr.mxu0 0.0
  %8843 = vmatpush1.msra.mxu0 %v6697
  %8844 = vmatprep.subr.mxu0 0.0
  %8845 = vmatpush1.msra.mxu0 %v6700
  %8846 = vmatprep.subr.mxu0 0.0
  %8847 = vmatpush1.msra.mxu0 %v6703
  %8848 = vmatprep.subr.mxu0 0.0
  %8849 = vmatpush1.msra.mxu0 0.0
  %8850 = vmatprep.subr.mxu0 0.0
  %8851 = vmatpush1.msra.mxu0 0.0
  %8852 = vmatprep.subr.mxu0 0.0
  %8853 = vmatpush1.msra.mxu0 0.0
  %8854 = vmatprep.subr.mxu0 0.0
  %8855 = vmatpush1.msra.mxu0 0.0
  %8856 = vmatprep.subr.mxu0 0.0
  %8857 = vmatpush1.msra.mxu0 0.0
  %8858 = vmatprep.subr.mxu0 0.0
  %8859 = vmatpush1.msra.mxu0 0.0
  %8860 = vmatprep.subr.mxu0 0.0
  %8861 = vmatpush1.msra.mxu0 0.0
  %8862 = vmatprep.subr.mxu0 0.0
  %8863 = vmatpush1.msra.mxu0 0.0
  %8864 = vmatprep.subr.mxu0 0.0
  %8865 = vmatpush1.msra.mxu0 0.0
  %8866 = vmatprep.subr.mxu0 0.0
  %8867 = vmatpush1.msra.mxu0 0.0
  %8868 = vmatprep.subr.mxu0 0.0
  %8869 = vmatpush1.msra.mxu0 0.0
  %8870 = vmatprep.subr.mxu0 0.0
  %8871 = vmatpush1.msra.mxu0 0.0
  %8872 = vmatprep.subr.mxu0 0.0
  %8873 = vmatpush1.msra.mxu0 0.0
  %8874 = vmatprep.subr.mxu0 0.0
  %8875 = vmatpush1.msra.mxu0 0.0
  %8876 = vmatprep.subr.mxu0 0.0
  %8877 = vmatpush1.msra.mxu0 0.0
  %8878 = vmatprep.subr.mxu0 0.0
  %8879 = vmatpush1.msra.mxu0 0.0
  %8880 = vmatprep.mubr.f32.mxu0 0.0
  %8881 = vmatmul.mubr.f32.gmra.mrb[0].mxu0 %v8744
  %v8882 = vpop.f32.mrb[0].mxu0
  %v8883 = vadd.f32 %v6775, %v8882
  %v8884 = vpop.f32.mrb[0].mxu0
  %8885 = vdwg.mxu0
  %8886 = vmatprep.subr.mxu0 %v6705
  %8887 = vmatpush1.msra.mxu0 %v6704
  %8888 = vmatprep.subr.mxu0 %v6708
  %8889 = vmatpush1.msra.mxu0 %v6707
  %8890 = vmatprep.subr.mxu0 %v6711
  %8891 = vmatpush1.msra.mxu0 %v6710
  %8892 = vmatprep.subr.mxu0 %v6714
  %8893 = vmatpush1.msra.mxu0 %v6713
  %8894 = vmatprep.subr.mxu0 %v6717
  %8895 = vmatpush1.msra.mxu0 %v6716
  %8896 = vmatprep.subr.mxu0 %v6720
  %8897 = vmatpush1.msra.mxu0 %v6719
  %8898 = vmatprep.subr.mxu0 %v6723
  %8899 = vmatpush1.msra.mxu0 %v6722
  %8900 = vmatprep.subr.mxu0 %v6726
  %8901 = vmatpush1.msra.mxu0 %v6725
  %8902 = vmatprep.subr.mxu0 %v6729
  %8903 = vmatpush1.msra.mxu0 %v6728
  %8904 = vmatprep.subr.mxu0 %v6732
  %8905 = vmatpush1.msra.mxu0 %v6731
  %8906 = vmatprep.subr.mxu0 %v6735
  %8907 = vmatpush1.msra.mxu0 %v6734
  %8908 = vmatprep.subr.mxu0 %v6738
  %8909 = vmatpush1.msra.mxu0 %v6737
  %8910 = vmatprep.subr.mxu0 %v6741
  %8911 = vmatpush1.msra.mxu0 %v6740
  %8912 = vmatprep.subr.mxu0 %v6744
  %8913 = vmatpush1.msra.mxu0 %v6743
  %8914 = vmatprep.subr.mxu0 %v6747
  %8915 = vmatpush1.msra.mxu0 %v6746
  %8916 = vmatprep.subr.mxu0 %v6750
  %8917 = vmatpush1.msra.mxu0 %v6749
  %8918 = vmatprep.subr.mxu0 0.0
  %8919 = vmatpush1.msra.mxu0 0.0
  %8920 = vmatprep.subr.mxu0 0.0
  %8921 = vmatpush1.msra.mxu0 0.0
  %8922 = vmatprep.subr.mxu0 0.0
  %8923 = vmatpush1.msra.mxu0 0.0
  %8924 = vmatprep.subr.mxu0 0.0
  %8925 = vmatpush1.msra.mxu0 0.0
  %8926 = vmatprep.subr.mxu0 0.0
  %8927 = vmatpush1.msra.mxu0 0.0
  %8928 = vmatprep.subr.mxu0 0.0
  %8929 = vmatpush1.msra.mxu0 0.0
  %8930 = vmatprep.subr.mxu0 0.0
  %8931 = vmatpush1.msra.mxu0 0.0
  %8932 = vmatprep.subr.mxu0 0.0
  %8933 = vmatpush1.msra.mxu0 0.0
  %8934 = vmatprep.subr.mxu0 0.0
  %8935 = vmatpush1.msra.mxu0 0.0
  %8936 = vmatprep.subr.mxu0 0.0
  %8937 = vmatpush1.msra.mxu0 0.0
  %8938 = vmatprep.subr.mxu0 0.0
  %8939 = vmatpush1.msra.mxu0 0.0
  %8940 = vmatprep.subr.mxu0 0.0
  %8941 = vmatpush1.msra.mxu0 0.0
  %8942 = vmatprep.subr.mxu0 0.0
  %8943 = vmatpush1.msra.mxu0 0.0
  %8944 = vmatprep.subr.mxu0 0.0
  %8945 = vmatpush1.msra.mxu0 0.0
  %8946 = vmatprep.subr.mxu0 0.0
  %8947 = vmatpush1.msra.mxu0 0.0
  %8948 = vmatprep.subr.mxu0 0.0
  %8949 = vmatpush1.msra.mxu0 0.0
  %8950 = vmatprep.mubr.f32.mxu0 0.0
  %8951 = vmatmul.mubr.f32.gmra.mrb[0].mxu0 %v8739
  %v8952 = vpop.f32.mrb[0].mxu0
  %v8953 = vadd.f32 %v6924, %v8952
  %v8954 = vpop.f32.mrb[0].mxu0
  %v8955 = vadd.f32 %v6928, %v8954
  %8956 = vdwg.mxu0
  %8957 = vmatprep.subr.mxu0 0.0
  %8958 = vmatpush1.msra.mxu0 %v6706
  %8959 = vmatprep.subr.mxu0 0.0
  %8960 = vmatpush1.msra.mxu0 %v6709
  %8961 = vmatprep.subr.mxu0 0.0
  %8962 = vmatpush1.msra.mxu0 %v6712
  %8963 = vmatprep.subr.mxu0 0.0
  %8964 = vmatpush1.msra.mxu0 %v6715
  %8965 = vmatprep.subr.mxu0 0.0
  %8966 = vmatpush1.msra.mxu0 %v6718
  %8967 = vmatprep.subr.mxu0 0.0
  %8968 = vmatpush1.msra.mxu0 %v6721
  %8969 = vmatprep.subr.mxu0 0.0
  %8970 = vmatpush1.msra.mxu0 %v6724
  %8971 = vmatprep.subr.mxu0 0.0
  %8972 = vmatpush1.msra.mxu0 %v6727
  %8973 = vmatprep.subr.mxu0 0.0
  %8974 = vmatpush1.msra.mxu0 %v6730
  %8975 = vmatprep.subr.mxu0 0.0
  %8976 = vmatpush1.msra.mxu0 %v6733
  %8977 = vmatprep.subr.mxu0 0.0
  %8978 = vmatpush1.msra.mxu0 %v6736
  %8979 = vmatprep.subr.mxu0 0.0
  %8980 = vmatpush1.msra.mxu0 %v6739
  %8981 = vmatprep.subr.mxu0 0.0
  %8982 = vmatpush1.msra.mxu0 %v6742
  %8983 = vmatprep.subr.mxu0 0.0
  %8984 = vmatpush1.msra.mxu0 %v6745
  %8985 = vmatprep.subr.mxu0 0.0
  %8986 = vmatpush1.msra.mxu0 %v6748
  %8987 = vmatprep.subr.mxu0 0.0
  %8988 = vmatpush1.msra.mxu0 %v6751
  %8989 = vmatprep.subr.mxu0 0.0
  %8990 = vmatpush1.msra.mxu0 0.0
  %8991 = vmatprep.subr.mxu0 0.0
  %8992 = vmatpush1.msra.mxu0 0.0
  %8993 = vmatprep.subr.mxu0 0.0
  %8994 = vmatpush1.msra.mxu0 0.0
  %8995 = vmatprep.subr.mxu0 0.0
  %8996 = vmatpush1.msra.mxu0 0.0
  %8997 = vmatprep.subr.mxu0 0.0
  %8998 = vmatpush1.msra.mxu0 0.0
  %8999 = vmatprep.subr.mxu0 0.0
  %9000 = vmatpush1.msra.mxu0 0.0
  %9001 = vmatprep.subr.mxu0 0.0
  %9002 = vmatpush1.msra.mxu0 0.0
  %9003 = vmatprep.subr.mxu0 0.0
  %9004 = vmatpush1.msra.mxu0 0.0
  %9005 = vmatprep.subr.mxu0 0.0
  %9006 = vmatpush1.msra.mxu0 0.0
  %9007 = vmatprep.subr.mxu0 0.0
  %9008 = vmatpush1.msra.mxu0 0.0
  %9009 = vmatprep.subr.mxu0 0.0
  %9010 = vmatpush1.msra.mxu0 0.0
  %9011 = vmatprep.subr.mxu0 0.0
  %9012 = vmatpush1.msra.mxu0 0.0
  %9013 = vmatprep.subr.mxu0 0.0
  %9014 = vmatpush1.msra.mxu0 0.0
  %9015 = vmatprep.subr.mxu0 0.0
  %9016 = vmatpush1.msra.mxu0 0.0
  %9017 = vmatprep.subr.mxu0 0.0
  %9018 = vmatpush1.msra.mxu0 0.0
  %9019 = vmatprep.subr.mxu0 0.0
  %9020 = vmatpush1.msra.mxu0 0.0
  %9021 = vmatprep.mubr.f32.mxu0 0.0
  %9022 = vmatmul.mubr.f32.gmra.mrb[0].mxu0 %v8739
  %v9023 = vpop.f32.mrb[0].mxu0
  %v9024 = vadd.f32 %v6932, %v9023
  %v9025 = vpop.f32.mrb[0].mxu0
  %9026 = vdwg.mxu0
  %v9027 = vadd.f32 %v8812, %v8953
  %v9028 = vxor.u32 %v9027, 2147483648
  %v9029 = vmul.f32 %v9028, 1.442695
  %v9030 = vpow.pop %v9029
  %v9031 = vadd.f32 %v9030, 1.0
  %v9032 = vrcp.pop %v9031
  %v9033 = vmul.f32 1.0, %v9032
  %v9034 = vadd.f32 %v8814, %v8955
  %v9035 = vxor.u32 %v9034, 2147483648
  %v9036 = vmul.f32 %v9035, 1.442695
  %v9037 = vpow.pop %v9036
  %v9038 = vadd.f32 %v9037, 1.0
  %v9039 = vrcp.pop %v9038
  %v9040 = vmul.f32 1.0, %v9039
  %v9041 = vmul.f32 %v9033, %v9024
  %v9042 = vadd.f32 %v8883, %v9041
  %v9043 = vtanh.pop %v9042
  %v9044 = vsub.f32 1.0, %v9040
  %v9045 = vmul.f32 %v9044, %v9043
  %v9046 = vmul.f32 %v9040, %v8739
  %v9047 = vadd.f32 %v9045, %v9046
  %vm9048 = vcmp.gt.s32.totalorder %v6754, 6
  %v9049 = vsel %vm9048, 1, 0
  %v9050 = vcvt.s32.f32 %v9049
  %9052 = vset.pattern.permute.xlu0 0
  %9053 = vperm.xlu0 %9052, %v9050
  %v9054 = vpop.permute.xlu0 %9053
  %v9056 = vmul.f32 %v9054, %v9047
  %v9057 = vsub.f32 1.0, %v9050
  %9059 = vset.pattern.permute.xlu0 0
  %9060 = vperm.xlu0 %9059, %v9057
  %v9061 = vpop.permute.xlu0 %9060
  %v9063 = vmul.f32 %v9061, %v8739
  %v9064 = vadd.f32 %v9056, %v9063
  %9065 = vset.pattern.permute.xlu0 7
  %9066 = vperm.xlu0 %9065, %v6755
  %v9067 = vpop.permute.xlu0 %9066
  %v9069 = vmul.f32 %v6655, %v9067
  %9070 = vmatprep.subr.mxu0 %v6657
  %9071 = vmatpush1.msra.mxu0 %v6656
  %9072 = vmatprep.subr.mxu0 %v6660
  %9073 = vmatpush1.msra.mxu0 %v6659
  %9074 = vmatprep.subr.mxu0 %v6663
  %9075 = vmatpush1.msra.mxu0 %v6662
  %9076 = vmatprep.subr.mxu0 %v6666
  %9077 = vmatpush1.msra.mxu0 %v6665
  %9078 = vmatprep.subr.mxu0 %v6669
  %9079 = vmatpush1.msra.mxu0 %v6668
  %9080 = vmatprep.subr.mxu0 %v6672
  %9081 = vmatpush1.msra.mxu0 %v6671
  %9082 = vmatprep.subr.mxu0 %v6675
  %9083 = vmatpush1.msra.mxu0 %v6674
  %9084 = vmatprep.subr.mxu0 %v6678
  %9085 = vmatpush1.msra.mxu0 %v6677
  %9086 = vmatprep.subr.mxu0 %v6681
  %9087 = vmatpush1.msra.mxu0 %v6680
  %9088 = vmatprep.subr.mxu0 %v6684
  %9089 = vmatpush1.msra.mxu0 %v6683
  %9090 = vmatprep.subr.mxu0 %v6687
  %9091 = vmatpush1.msra.mxu0 %v6686
  %9092 = vmatprep.subr.mxu0 %v6690
  %9093 = vmatpush1.msra.mxu0 %v6689
  %9094 = vmatprep.subr.mxu0 %v6693
  %9095 = vmatpush1.msra.mxu0 %v6692
  %9096 = vmatprep.subr.mxu0 %v6696
  %9097 = vmatpush1.msra.mxu0 %v6695
  %9098 = vmatprep.subr.mxu0 %v6699
  %9099 = vmatpush1.msra.mxu0 %v6698
  %9100 = vmatprep.subr.mxu0 %v6702
  %9101 = vmatpush1.msra.mxu0 %v6701
  %9102 = vmatprep.subr.mxu0 0.0
  %9103 = vmatpush1.msra.mxu0 0.0
  %9104 = vmatprep.subr.mxu0 0.0
  %9105 = vmatpush1.msra.mxu0 0.0
  %9106 = vmatprep.subr.mxu0 0.0
  %9107 = vmatpush1.msra.mxu0 0.0
  %9108 = vmatprep.subr.mxu0 0.0
  %9109 = vmatpush1.msra.mxu0 0.0
  %9110 = vmatprep.subr.mxu0 0.0
  %9111 = vmatpush1.msra.mxu0 0.0
  %9112 = vmatprep.subr.mxu0 0.0
  %9113 = vmatpush1.msra.mxu0 0.0
  %9114 = vmatprep.subr.mxu0 0.0
  %9115 = vmatpush1.msra.mxu0 0.0
  %9116 = vmatprep.subr.mxu0 0.0
  %9117 = vmatpush1.msra.mxu0 0.0
  %9118 = vmatprep.subr.mxu0 0.0
  %9119 = vmatpush1.msra.mxu0 0.0
  %9120 = vmatprep.subr.mxu0 0.0
  %9121 = vmatpush1.msra.mxu0 0.0
  %9122 = vmatprep.subr.mxu0 0.0
  %9123 = vmatpush1.msra.mxu0 0.0
  %9124 = vmatprep.subr.mxu0 0.0
  %9125 = vmatpush1.msra.mxu0 0.0
  %9126 = vmatprep.subr.mxu0 0.0
  %9127 = vmatpush1.msra.mxu0 0.0
  %9128 = vmatprep.subr.mxu0 0.0
  %9129 = vmatpush1.msra.mxu0 0.0
  %9130 = vmatprep.subr.mxu0 0.0
  %9131 = vmatpush1.msra.mxu0 0.0
  %9132 = vmatprep.subr.mxu0 0.0
  %9133 = vmatpush1.msra.mxu0 0.0
  %9134 = vmatprep.mubr.f32.mxu0 0.0
  %9135 = vmatmul.mubr.f32.gmra.mrb[0].mxu0 %v9069
  %v9136 = vpop.f32.mrb[0].mxu0
  %v9137 = vadd.f32 %v6767, %v9136
  %v9138 = vpop.f32.mrb[0].mxu0
  %v9139 = vadd.f32 %v6771, %v9138
  %9140 = vdwg.mxu0
  %9141 = vmatprep.subr.mxu0 0.0
  %9142 = vmatpush1.msra.mxu0 %v6658
  %9143 = vmatprep.subr.mxu0 0.0
  %9144 = vmatpush1.msra.mxu0 %v6661
  %9145 = vmatprep.subr.mxu0 0.0
  %9146 = vmatpush1.msra.mxu0 %v6664
  %9147 = vmatprep.subr.mxu0 0.0
  %9148 = vmatpush1.msra.mxu0 %v6667
  %9149 = vmatprep.subr.mxu0 0.0
  %9150 = vmatpush1.msra.mxu0 %v6670
  %9151 = vmatprep.subr.mxu0 0.0
  %9152 = vmatpush1.msra.mxu0 %v6673
  %9153 = vmatprep.subr.mxu0 0.0
  %9154 = vmatpush1.msra.mxu0 %v6676
  %9155 = vmatprep.subr.mxu0 0.0
  %9156 = vmatpush1.msra.mxu0 %v6679
  %9157 = vmatprep.subr.mxu0 0.0
  %9158 = vmatpush1.msra.mxu0 %v6682
  %9159 = vmatprep.subr.mxu0 0.0
  %9160 = vmatpush1.msra.mxu0 %v6685
  %9161 = vmatprep.subr.mxu0 0.0
  %9162 = vmatpush1.msra.mxu0 %v6688
  %9163 = vmatprep.subr.mxu0 0.0
  %9164 = vmatpush1.msra.mxu0 %v6691
  %9165 = vmatprep.subr.mxu0 0.0
  %9166 = vmatpush1.msra.mxu0 %v6694
  %9167 = vmatprep.subr.mxu0 0.0
  %9168 = vmatpush1.msra.mxu0 %v6697
  %9169 = vmatprep.subr.mxu0 0.0
  %9170 = vmatpush1.msra.mxu0 %v6700
  %9171 = vmatprep.subr.mxu0 0.0
  %9172 = vmatpush1.msra.mxu0 %v6703
  %9173 = vmatprep.subr.mxu0 0.0
  %9174 = vmatpush1.msra.mxu0 0.0
  %9175 = vmatprep.subr.mxu0 0.0
  %9176 = vmatpush1.msra.mxu0 0.0
  %9177 = vmatprep.subr.mxu0 0.0
  %9178 = vmatpush1.msra.mxu0 0.0
  %9179 = vmatprep.subr.mxu0 0.0
  %9180 = vmatpush1.msra.mxu0 0.0
  %9181 = vmatprep.subr.mxu0 0.0
  %9182 = vmatpush1.msra.mxu0 0.0
  %9183 = vmatprep.subr.mxu0 0.0
  %9184 = vmatpush1.msra.mxu0 0.0
  %9185 = vmatprep.subr.mxu0 0.0
  %9186 = vmatpush1.msra.mxu0 0.0
  %9187 = vmatprep.subr.mxu0 0.0
  %9188 = vmatpush1.msra.mxu0 0.0
  %9189 = vmatprep.subr.mxu0 0.0
  %9190 = vmatpush1.msra.mxu0 0.0
  %9191 = vmatprep.subr.mxu0 0.0
  %9192 = vmatpush1.msra.mxu0 0.0
  %9193 = vmatprep.subr.mxu0 0.0
  %9194 = vmatpush1.msra.mxu0 0.0
  %9195 = vmatprep.subr.mxu0 0.0
  %9196 = vmatpush1.msra.mxu0 0.0
  %9197 = vmatprep.subr.mxu0 0.0
  %9198 = vmatpush1.msra.mxu0 0.0
  %9199 = vmatprep.subr.mxu0 0.0
  %9200 = vmatpush1.msra.mxu0 0.0
  %9201 = vmatprep.subr.mxu0 0.0
  %9202 = vmatpush1.msra.mxu0 0.0
  %9203 = vmatprep.subr.mxu0 0.0
  %9204 = vmatpush1.msra.mxu0 0.0
  %9205 = vmatprep.mubr.f32.mxu0 0.0
  %9206 = vmatmul.mubr.f32.gmra.mrb[0].mxu0 %v9069
  %v9207 = vpop.f32.mrb[0].mxu0
  %v9208 = vadd.f32 %v6775, %v9207
  %v9209 = vpop.f32.mrb[0].mxu0
  %9210 = vdwg.mxu0
  %9211 = vmatprep.subr.mxu0 %v6705
  %9212 = vmatpush1.msra.mxu0 %v6704
  %9213 = vmatprep.subr.mxu0 %v6708
  %9214 = vmatpush1.msra.mxu0 %v6707
  %9215 = vmatprep.subr.mxu0 %v6711
  %9216 = vmatpush1.msra.mxu0 %v6710
  %9217 = vmatprep.subr.mxu0 %v6714
  %9218 = vmatpush1.msra.mxu0 %v6713
  %9219 = vmatprep.subr.mxu0 %v6717
  %9220 = vmatpush1.msra.mxu0 %v6716
  %9221 = vmatprep.subr.mxu0 %v6720
  %9222 = vmatpush1.msra.mxu0 %v6719
  %9223 = vmatprep.subr.mxu0 %v6723
  %9224 = vmatpush1.msra.mxu0 %v6722
  %9225 = vmatprep.subr.mxu0 %v6726
  %9226 = vmatpush1.msra.mxu0 %v6725
  %9227 = vmatprep.subr.mxu0 %v6729
  %9228 = vmatpush1.msra.mxu0 %v6728
  %9229 = vmatprep.subr.mxu0 %v6732
  %9230 = vmatpush1.msra.mxu0 %v6731
  %9231 = vmatprep.subr.mxu0 %v6735
  %9232 = vmatpush1.msra.mxu0 %v6734
  %9233 = vmatprep.subr.mxu0 %v6738
  %9234 = vmatpush1.msra.mxu0 %v6737
  %9235 = vmatprep.subr.mxu0 %v6741
  %9236 = vmatpush1.msra.mxu0 %v6740
  %9237 = vmatprep.subr.mxu0 %v6744
  %9238 = vmatpush1.msra.mxu0 %v6743
  %9239 = vmatprep.subr.mxu0 %v6747
  %9240 = vmatpush1.msra.mxu0 %v6746
  %9241 = vmatprep.subr.mxu0 %v6750
  %9242 = vmatpush1.msra.mxu0 %v6749
  %9243 = vmatprep.subr.mxu0 0.0
  %9244 = vmatpush1.msra.mxu0 0.0
  %9245 = vmatprep.subr.mxu0 0.0
  %9246 = vmatpush1.msra.mxu0 0.0
  %9247 = vmatprep.subr.mxu0 0.0
  %9248 = vmatpush1.msra.mxu0 0.0
  %9249 = vmatprep.subr.mxu0 0.0
  %9250 = vmatpush1.msra.mxu0 0.0
  %9251 = vmatprep.subr.mxu0 0.0
  %9252 = vmatpush1.msra.mxu0 0.0
  %9253 = vmatprep.subr.mxu0 0.0
  %9254 = vmatpush1.msra.mxu0 0.0
  %9255 = vmatprep.subr.mxu0 0.0
  %9256 = vmatpush1.msra.mxu0 0.0
  %9257 = vmatprep.subr.mxu0 0.0
  %9258 = vmatpush1.msra.mxu0 0.0
  %9259 = vmatprep.subr.mxu0 0.0
  %9260 = vmatpush1.msra.mxu0 0.0
  %9261 = vmatprep.subr.mxu0 0.0
  %9262 = vmatpush1.msra.mxu0 0.0
  %9263 = vmatprep.subr.mxu0 0.0
  %9264 = vmatpush1.msra.mxu0 0.0
  %9265 = vmatprep.subr.mxu0 0.0
  %9266 = vmatpush1.msra.mxu0 0.0
  %9267 = vmatprep.subr.mxu0 0.0
  %9268 = vmatpush1.msra.mxu0 0.0
  %9269 = vmatprep.subr.mxu0 0.0
  %9270 = vmatpush1.msra.mxu0 0.0
  %9271 = vmatprep.subr.mxu0 0.0
  %9272 = vmatpush1.msra.mxu0 0.0
  %9273 = vmatprep.subr.mxu0 0.0
  %9274 = vmatpush1.msra.mxu0 0.0
  %9275 = vmatprep.mubr.f32.mxu0 0.0
  %9276 = vmatmul.mubr.f32.gmra.mrb[0].mxu0 %v9064
  %v9277 = vpop.f32.mrb[0].mxu0
  %v9278 = vadd.f32 %v6924, %v9277
  %v9279 = vpop.f32.mrb[0].mxu0
  %v9280 = vadd.f32 %v6928, %v9279
  %9281 = vdwg.mxu0
  %9282 = vmatprep.subr.mxu0 0.0
  %9283 = vmatpush1.msra.mxu0 %v6706
  %9284 = vmatprep.subr.mxu0 0.0
  %9285 = vmatpush1.msra.mxu0 %v6709
  %9286 = vmatprep.subr.mxu0 0.0
  %9287 = vmatpush1.msra.mxu0 %v6712
  %9288 = vmatprep.subr.mxu0 0.0
  %9289 = vmatpush1.msra.mxu0 %v6715
  %9290 = vmatprep.subr.mxu0 0.0
  %9291 = vmatpush1.msra.mxu0 %v6718
  %9292 = vmatprep.subr.mxu0 0.0
  %9293 = vmatpush1.msra.mxu0 %v6721
  %9294 = vmatprep.subr.mxu0 0.0
  %9295 = vmatpush1.msra.mxu0 %v6724
  %9296 = vmatprep.subr.mxu0 0.0
  %9297 = vmatpush1.msra.mxu0 %v6727
  %9298 = vmatprep.subr.mxu0 0.0
  %9299 = vmatpush1.msra.mxu0 %v6730
  %9300 = vmatprep.subr.mxu0 0.0
  %9301 = vmatpush1.msra.mxu0 %v6733
  %9302 = vmatprep.subr.mxu0 0.0
  %9303 = vmatpush1.msra.mxu0 %v6736
  %9304 = vmatprep.subr.mxu0 0.0
  %9305 = vmatpush1.msra.mxu0 %v6739
  %9306 = vmatprep.subr.mxu0 0.0
  %9307 = vmatpush1.msra.mxu0 %v6742
  %9308 = vmatprep.subr.mxu0 0.0
  %9309 = vmatpush1.msra.mxu0 %v6745
  %9310 = vmatprep.subr.mxu0 0.0
  %9311 = vmatpush1.msra.mxu0 %v6748
  %9312 = vmatprep.subr.mxu0 0.0
  %9313 = vmatpush1.msra.mxu0 %v6751
  %9314 = vmatprep.subr.mxu0 0.0
  %9315 = vmatpush1.msra.mxu0 0.0
  %9316 = vmatprep.subr.mxu0 0.0
  %9317 = vmatpush1.msra.mxu0 0.0
  %9318 = vmatprep.subr.mxu0 0.0
  %9319 = vmatpush1.msra.mxu0 0.0
  %9320 = vmatprep.subr.mxu0 0.0
  %9321 = vmatpush1.msra.mxu0 0.0
  %9322 = vmatprep.subr.mxu0 0.0
  %9323 = vmatpush1.msra.mxu0 0.0
  %9324 = vmatprep.subr.mxu0 0.0
  %9325 = vmatpush1.msra.mxu0 0.0
  %9326 = vmatprep.subr.mxu0 0.0
  %9327 = vmatpush1.msra.mxu0 0.0
  %9328 = vmatprep.subr.mxu0 0.0
  %9329 = vmatpush1.msra.mxu0 0.0
  %9330 = vmatprep.subr.mxu0 0.0
  %9331 = vmatpush1.msra.mxu0 0.0
  %9332 = vmatprep.subr.mxu0 0.0
  %9333 = vmatpush1.msra.mxu0 0.0
  %9334 = vmatprep.subr.mxu0 0.0
  %9335 = vmatpush1.msra.mxu0 0.0
  %9336 = vmatprep.subr.mxu0 0.0
  %9337 = vmatpush1.msra.mxu0 0.0
  %9338 = vmatprep.subr.mxu0 0.0
  %9339 = vmatpush1.msra.mxu0 0.0
  %9340 = vmatprep.subr.mxu0 0.0
  %9341 = vmatpush1.msra.mxu0 0.0
  %9342 = vmatprep.subr.mxu0 0.0
  %9343 = vmatpush1.msra.mxu0 0.0
  %9344 = vmatprep.subr.mxu0 0.0
  %9345 = vmatpush1.msra.mxu0 0.0
  %9346 = vmatprep.mubr.f32.mxu0 0.0
  %9347 = vmatmul.mubr.f32.gmra.mrb[0].mxu0 %v9064
  %v9348 = vpop.f32.mrb[0].mxu0
  %v9349 = vadd.f32 %v6932, %v9348
  %v9350 = vpop.f32.mrb[0].mxu0
  %9351 = vdwg.mxu0
  %v9352 = vadd.f32 %v9137, %v9278
  %v9353 = vxor.u32 %v9352, 2147483648
  %v9354 = vmul.f32 %v9353, 1.442695
  %v9355 = vpow.pop %v9354
  %v9356 = vadd.f32 %v9355, 1.0
  %v9357 = vrcp.pop %v9356
  %v9358 = vmul.f32 1.0, %v9357
  %v9359 = vadd.f32 %v9139, %v9280
  %v9360 = vxor.u32 %v9359, 2147483648
  %v9361 = vmul.f32 %v9360, 1.442695
  %v9362 = vpow.pop %v9361
  %v9363 = vadd.f32 %v9362, 1.0
  %v9364 = vrcp.pop %v9363
  %v9365 = vmul.f32 1.0, %v9364
  %v9366 = vmul.f32 %v9358, %v9349
  %v9367 = vadd.f32 %v9208, %v9366
  %v9368 = vtanh.pop %v9367
  %v9369 = vsub.f32 1.0, %v9365
  %v9370 = vmul.f32 %v9369, %v9368
  %v9371 = vmul.f32 %v9365, %v9064
  %v9372 = vadd.f32 %v9370, %v9371
  %vm9373 = vcmp.gt.s32.totalorder %v6754, 7
  %v9374 = vsel %vm9373, 1, 0
  %v9375 = vcvt.s32.f32 %v9374
  %9377 = vset.pattern.permute.xlu0 0
  %9378 = vperm.xlu0 %9377, %v9375
  %v9379 = vpop.permute.xlu0 %9378
  %v9381 = vmul.f32 %v9379, %v9372
  %v9382 = vsub.f32 1.0, %v9375
  %9384 = vset.pattern.permute.xlu0 0
  %9385 = vperm.xlu0 %9384, %v9382
  %v9386 = vpop.permute.xlu0 %9385
  %v9388 = vmul.f32 %v9386, %v9064
  %v9389 = vadd.f32 %v9381, %v9388
  %v9390 = vmul.f32 %v6645, %v9389
  %9391 = vadd.xlane.f32.xlu0 %v9390
  %v9392 = vpop.xlane.xlu0 %9391
  %vm9393 = vcmp.eq.s32.totalorder %v2753, 0
  %v9394 = vsel %vm9393, 1, 0
  %v9395 = vcvt.s32.f32 %v9394
  %v9396 = vmul.f32 %v9395, %v9392
  %v9397 = vadd.f32 %v9396, 0.0
  %v9398 = vmul.f32 %v6646, %v9389
  %9399 = vadd.xlane.f32.xlu0 %v9398
  %v9400 = vpop.xlane.xlu0 %9399
  %vm9401 = vcmp.eq.s32.totalorder %v2753, 1
  %v9402 = vsel %vm9401, 1, 0
  %v9403 = vcvt.s32.f32 %v9402
  %v9404 = vmul.f32 %v9403, %v9400
  %v9405 = vadd.f32 %v9397, %v9404
  %v9406 = vmul.f32 %v6647, %v9389
  %9407 = vadd.xlane.f32.xlu0 %v9406
  %v9408 = vpop.xlane.xlu0 %9407
  %vm9409 = vcmp.eq.s32.totalorder %v2753, 2
  %v9410 = vsel %vm9409, 1, 0
  %v9411 = vcvt.s32.f32 %v9410
  %v9412 = vmul.f32 %v9411, %v9408
  %v9413 = vadd.f32 %v9405, %v9412
  %9414 = vst [vmem:[%s14] sm:$0xff] %v9413
  // Predicated region
  $region58: #{lstur_forward.1} parent=0 // pred_check
    _
  $region59: #{lstur_forward.1} parent=0 // pred_check_branch
    %9416 = sbr.rel (0) target = $region61
  $region60: #{lstur_forward.1} parent=0 // pred_region
    _
  $region61: #{lstur_forward.1} parent=0 // pred_fallthru
    _
  // Predicated region
  $region62: #{lstur_forward.1} parent=0 // pred_check
    _
  $region63: #{lstur_forward.1} parent=0 // pred_check_branch
    %9418 = sbr.rel (0) target = $region65
  $region64: #{lstur_forward.1} parent=0 // pred_region
    _
  $region65: #{lstur_forward.1} parent=0 // pred_fallthru
    _

</llo_original>
